<compile_context>
chip_gen: v6e
topology: v6e:2x2x1
jax: 0.10.0
libtpu: 0.0.40
codegen_flags: <defaults>
</compile_context>

<pallas_src>
import functools

import jax
import jax.numpy as jnp
from jax.experimental import pallas as pl
from jax.experimental.pallas import tpu as pltpu

LANE = 128


def _round_up(x, m):
    return (x + m - 1) // m * m


# ---------------------------------------------------------------------------
# Pallas kernel: fused conv(S2D tap-matmuls) + BN(eval) + 2x2 max-pool + ReLU
# ---------------------------------------------------------------------------
def _conv_bn_relu_pool_kernel(x_ref, w_ref, scale_ref, bias_ref, o_ref, *,
                              H2, W2):
    # x_ref:    (S_rows, 4*Cin) bf16  flattened space-to-depth slab, 1 image
    # w_ref:    (16, 4*Cin, 128) bf16 folded conv weights per (pool_pos, cell)
    # scale/bias: (1, 128) f32 folded BatchNorm affine (eval mode)
    # o_ref:    (H2*(W2+2), 128) pooled output (cols >= W2 are garbage, sliced
    #           away by the wrapper)
    Wc = W2 + 2
    R = H2 * Wc
    s = scale_ref[...]
    b = bias_ref[...]

    m = None
    for dd in range(4):                       # pool position (dh, dw)
        dh, dw = dd // 2, dd % 2
        acc = None
        for t in range(4):                    # S2D cell tap (p, q)
            p, q = t // 2, t % 2
            start = (dh + p) * Wc + (dw + q)  # constant row offset of this tap
            lhs = x_ref[pl.ds(start, R), :]
            prod = jnp.dot(lhs, w_ref[dd * 4 + t],
                           preferred_element_type=jnp.float32)
            acc = prod if acc is None else acc + prod
        # affine before the max (scale may be negative); ReLU commutes with max
        branch = acc * s + b
        m = branch if m is None else jnp.maximum(m, branch)
    o_ref[...] = jnp.maximum(m, 0.0).astype(o_ref.dtype)


def conv_bn_relu_pool(slab, w2, scale, bias, *, H2, W2, out_dtype):
    """slab: (N, S_rows, 4*Cin) bf16; w2: (16, 4*Cin, Cpad) bf16;
    scale/bias: (1, Cpad) f32.  Returns (N, H2*(W2+2), Cpad) out_dtype."""
    N, S_rows, K4 = slab.shape
    Cpad = w2.shape[-1]
    R = H2 * (W2 + 2)

    kernel = functools.partial(_conv_bn_relu_pool_kernel, H2=H2, W2=W2)
    out_bytes = 2 if out_dtype == jnp.bfloat16 else 4
    flops = int(2 * 16 * N * R * K4 * Cpad)
    bytes_accessed = int(N * S_rows * K4 * 2 + 16 * K4 * Cpad * 2
                         + N * R * Cpad * out_bytes)

    return pl.pallas_call(
        kernel,
        out_shape=jax.ShapeDtypeStruct((N, R, Cpad), out_dtype),
        grid_spec=pltpu.PrefetchScalarGridSpec(
            num_scalar_prefetch=0,
            grid=(N,),
            in_specs=[
                pl.BlockSpec((None, S_rows, K4), lambda n: (n, 0, 0)),
                pl.BlockSpec((16, K4, Cpad), lambda n: (0, 0, 0)),
                pl.BlockSpec((1, Cpad), lambda n: (0, 0)),
                pl.BlockSpec((1, Cpad), lambda n: (0, 0)),
            ],
            out_specs=pl.BlockSpec((None, R, Cpad), lambda n: (n, 0, 0)),
        ),
        compiler_params=pltpu.CompilerParams(
            dimension_semantics=("parallel",),
            vmem_limit_bytes=32 * 1024 * 1024),
        cost_estimate=pl.CostEstimate(
            flops=flops, transcendentals=0, bytes_accessed=bytes_accessed),
    )(slab, w2, scale, bias)


# ---------------------------------------------------------------------------
# Glue: space-to-depth slab, weight / BN folding, backbone assembly
# ---------------------------------------------------------------------------
def space_to_depth_slab(x_nhwc):
    """Zero-pad by 2, space-to-depth into 2x2 cells (incl. a 1-cell halo on
    every side) and flatten the cell grid per image so every 3x3 conv tap is a
    constant row offset inside the kernel."""
    N, H, W, C = x_nhwc.shape
    H2, W2 = H // 2, W // 2
    Hc, Wc = H2 + 2, W2 + 2
    pad_b = 2 * Hc - H - 2      # 2 for even H, 1 for odd H (floor pooling)
    pad_r = 2 * Wc - W - 2
    xp = jnp.pad(x_nhwc, ((0, 0), (2, pad_b), (2, pad_r), (0, 0)))
    z = xp.reshape(N, Hc, 2, Wc, 2, C).transpose(0, 1, 3, 2, 4, 5)
    z = z.reshape(N, Hc * Wc, 4 * C)
    s_rows = _round_up(Hc * Wc + 2, 8)        # +2: max tap offset of last row
    z = jnp.pad(z, ((0, 0), (0, s_rows - Hc * Wc), (0, 0)))
    return z.astype(jnp.bfloat16), (H2, W2)


def fold_weights(params, eps=1e-5):
    """Rearrange the 3x3 conv kernel into per-(pool_pos, S2D-cell) tap matrices
    (zero where a tap falls outside the 3x3 window) and fold BN(eval)."""
    w_pt = params["w"]                                   # (Cout, Cin, 3, 3)
    Cout, Cin = w_pt.shape[0], w_pt.shape[1]
    Cpad = _round_up(Cout, LANE)
    w_hwio = jnp.transpose(w_pt, (2, 3, 1, 0))           # (3, 3, Cin, Cout)
    zero = jnp.zeros((Cin, Cout), w_pt.dtype)

    taps = []
    for dh in range(2):
        for dw in range(2):
            for p in range(2):
                for q in range(2):
                    blk = []
                    for ph in range(2):
                        for pw in range(2):
                            kh = dh + 2 * p + ph - 1
                            kw = dw + 2 * q + pw - 1
                            ok = 0 <= kh < 3 and 0 <= kw < 3
                            blk.append(w_hwio[kh, kw] if ok else zero)
                    taps.append(jnp.concatenate(blk, axis=0))   # (4*Cin, Cout)
    w2 = jnp.stack(taps, axis=0)                                 # (16, 4Cin, Cout)
    w2 = jnp.pad(w2, ((0, 0), (0, 0), (0, Cpad - Cout))).astype(jnp.bfloat16)

    scale = params["gamma"] / jnp.sqrt(params["var"] + eps)
    bias = params["beta"] - params["mean"] * scale
    scale = jnp.pad(scale, (0, Cpad - Cout)).reshape(1, Cpad).astype(jnp.float32)
    bias = jnp.pad(bias, (0, Cpad - Cout)).reshape(1, Cpad).astype(jnp.float32)
    return w2, scale, bias, Cout


def conv_block(x_nhwc, params, *, out_dtype=jnp.bfloat16):
    """Conv3x3(pad=1) -> BN(eval) -> ReLU -> MaxPool2x2, one fused kernel."""
    N = x_nhwc.shape[0]
    w2, scale, bias, Cout = fold_weights(params)
    slab, (H2, W2) = space_to_depth_slab(x_nhwc)
    out = conv_bn_relu_pool(slab, w2, scale, bias,
                            H2=H2, W2=W2, out_dtype=out_dtype)
    Cpad = out.shape[-1]
    return out.reshape(N, H2, W2 + 2, Cpad)[:, :, :W2, :Cout]


def init_backbone_params(key, in_ch=3, hid=32, n_blocks=4):
    params = []
    c_in = in_ch
    for _ in range(n_blocks):
        key, kw, kg, kb = jax.random.split(key, 4)
        params.append({
            "w": 0.1 * jax.random.normal(kw, (hid, c_in, 3, 3), jnp.float32),
            "gamma": 1.0 + 0.05 * jax.random.normal(kg, (hid,), jnp.float32),
            "beta": 0.05 * jax.random.normal(kb, (hid,), jnp.float32),
            "mean": jnp.zeros((hid,), jnp.float32),
            "var": jnp.ones((hid,), jnp.float32),
        })
        c_in = hid
    return params


@jax.jit
def _forward_impl(params_list, x_nchw):
    x = jnp.transpose(x_nchw, (0, 2, 3, 1))               # NCHW -> NHWC
    last = len(params_list) - 1
    for i, p in enumerate(params_list):
        x = conv_block(x, p,
                       out_dtype=jnp.float32 if i == last else jnp.bfloat16)
    return jnp.transpose(x, (0, 3, 1, 2))                  # NHWC -> NCHW


class MetaTemplatePallas:
    """forward(x) == self.feature.forward(x) of the PyTorch MetaTemplate."""

    def __init__(self, params_list, n_way=2, n_support=1, n_query=1):
        self.n_way = n_way
        self.n_support = n_support
        self.n_query = n_query
        self.backbone_params = params_list

    def forward(self, x_nchw):
        return _forward_impl(self.backbone_params, x_nchw)

    # TODO(synk): set_forward / set_forward_loss / feature_forward are abstract
    # in MetaTemplate (no concrete semantics to implement); train/test loops
    # are host-side driver code, not kernels.


# ---------------------------------------------------------------------------
# Pure-JAX reference (matches the kernel's bf16-input / f32-accum precision)
# ---------------------------------------------------------------------------
def reference_forward(x_nchw, params_list):
    x = x_nchw
    eps = 1e-5
    for p in params_list:
        y = jax.lax.conv_general_dilated(
            x.astype(jnp.bfloat16), p["w"].astype(jnp.bfloat16),
            window_strides=(1, 1), padding="SAME",
            dimension_numbers=("NCHW", "OIHW", "NCHW"),
            preferred_element_type=jnp.float32)
        scale = p["gamma"] / jnp.sqrt(p["var"] + eps)
        bias = p["beta"] - p["mean"] * scale
        y = y * scale[None, :, None, None] + bias[None, :, None, None]
        y = jnp.maximum(y, 0.0)
        x = jax.lax.reduce_window(
            y, -jnp.inf, jax.lax.max,
            window_dimensions=(1, 1, 2, 2), window_strides=(1, 1, 2, 2),
            padding="VALID")
    return x


if __name__ == "__main__":
    key = jax.random.PRNGKey(0)
    key, kx = jax.random.split(key)
    # Small episode-like batch: 2 images, 3 channels, 16x16 spatial (NCHW).
    x = jax.random.normal(kx, (2, 3, 16, 16), jnp.float32)

    backbone_params = init_backbone_params(key, in_ch=3, hid=32, n_blocks=4)
    model = MetaTemplatePallas(backbone_params, n_way=2, n_support=1, n_query=1)

    out = jax.block_until_ready(model.forward(x))
    ref = jax.block_until_ready(reference_forward(x, backbone_params))

    assert out.shape == ref.shape == (2, 32, 1, 1), out.shape
    max_err = float(jnp.max(jnp.abs(out - ref)))
    assert jnp.allclose(out, ref, rtol=1e-2, atol=1e-2), max_err

    print("KERNEL_OK")
</pallas_src>

<mosaic_0001>
module attributes {stable_mosaic.version = 11 : i64} {
  func.func @_conv_bn_relu_pool_kernel(%arg0: i32, %arg1: memref<1x104x12xbf16, #tpu.memory_space<vmem>>, %arg2: memref<16x12x128xbf16, #tpu.memory_space<vmem>>, %arg3: memref<1x128xf32, #tpu.memory_space<vmem>>, %arg4: memref<1x128xf32, #tpu.memory_space<vmem>>, %arg5: memref<1x80x128xbf16, #tpu.memory_space<vmem>>) attributes {dimension_semantics = [#tpu.dimension_semantics<parallel>], iteration_bounds = array<i64: 2>, scalar_prefetch = 0 : i64, scratch_operands = 0 : i64, tpu.core_type = #tpu.core_type<tc>, window_params = [{transform_indices = @transform_0, window_bounds = array<i64: 1, 104, 12>}, {pipeline_mode = #tpu.pipeline_mode<synchronous>, transform_indices = @transform_1, window_bounds = array<i64: 16, 12, 128>}, {pipeline_mode = #tpu.pipeline_mode<synchronous>, transform_indices = @transform_2, window_bounds = array<i64: 1, 128>}, {pipeline_mode = #tpu.pipeline_mode<synchronous>, transform_indices = @transform_3, window_bounds = array<i64: 1, 128>}, {transform_indices = @transform_4, window_bounds = array<i64: 1, 80, 128>}]} {
    %c0 = arith.constant 0 : index
    %c0_0 = arith.constant 0 : index
    %0 = vector.load %arg3[%c0, %c0_0] : memref<1x128xf32, #tpu.memory_space<vmem>>, vector<1x128xf32>
    %c0_1 = arith.constant 0 : index
    %c0_2 = arith.constant 0 : index
    %1 = vector.load %arg4[%c0_1, %c0_2] : memref<1x128xf32, #tpu.memory_space<vmem>>, vector<1x128xf32>
    %c0_3 = arith.constant 0 : index
    %c0_4 = arith.constant 0 : index
    %c0_5 = arith.constant 0 : index
    %2 = vector.load %arg1[%c0_3, %c0_4, %c0_5] : memref<1x104x12xbf16, #tpu.memory_space<vmem>>, vector<1x80x12xbf16>
    %3 = vector.shape_cast %2 : vector<1x80x12xbf16> to vector<80x12xbf16>
    %c0_6 = arith.constant 0 : index
    %c0_7 = arith.constant 0 : index
    %c0_8 = arith.constant 0 : index
    %4 = vector.load %arg2[%c0_6, %c0_7, %c0_8] : memref<16x12x128xbf16, #tpu.memory_space<vmem>>, vector<1x12x128xbf16>
    %5 = vector.shape_cast %4 : vector<1x12x128xbf16> to vector<12x128xbf16>
    %cst = arith.constant dense<0.000000e+00> : vector<80x128xf32>
    %6 = tpu.matmul %3, %5, %cst {dimension_numbers = #tpu.dot_dimension_numbers<[1], [0], [0], [1], [0, 0, 1, 1], [], []>} : vector<80x12xbf16>, vector<12x128xbf16>, vector<80x128xf32> -> vector<80x128xf32>
    %c0_9 = arith.constant 0 : index
    %c1 = arith.constant 1 : index
    %c0_10 = arith.constant 0 : index
    %7 = vector.load %arg1[%c0_9, %c1, %c0_10] : memref<1x104x12xbf16, #tpu.memory_space<vmem>>, vector<1x80x12xbf16>
    %8 = vector.shape_cast %7 : vector<1x80x12xbf16> to vector<80x12xbf16>
    %c1_11 = arith.constant 1 : index
    %c0_12 = arith.constant 0 : index
    %c0_13 = arith.constant 0 : index
    %9 = vector.load %arg2[%c1_11, %c0_12, %c0_13] : memref<16x12x128xbf16, #tpu.memory_space<vmem>>, vector<1x12x128xbf16>
    %10 = vector.shape_cast %9 : vector<1x12x128xbf16> to vector<12x128xbf16>
    %cst_14 = arith.constant dense<0.000000e+00> : vector<80x128xf32>
    %11 = tpu.matmul %8, %10, %cst_14 {dimension_numbers = #tpu.dot_dimension_numbers<[1], [0], [0], [1], [0, 0, 1, 1], [], []>} : vector<80x12xbf16>, vector<12x128xbf16>, vector<80x128xf32> -> vector<80x128xf32>
    %12 = arith.addf %6, %11 : vector<80x128xf32>
    %c0_15 = arith.constant 0 : index
    %c10 = arith.constant 10 : index
    %c0_16 = arith.constant 0 : index
    %13 = vector.load %arg1[%c0_15, %c10, %c0_16] : memref<1x104x12xbf16, #tpu.memory_space<vmem>>, vector<1x80x12xbf16>
    %14 = vector.shape_cast %13 : vector<1x80x12xbf16> to vector<80x12xbf16>
    %c2 = arith.constant 2 : index
    %c0_17 = arith.constant 0 : index
    %c0_18 = arith.constant 0 : index
    %15 = vector.load %arg2[%c2, %c0_17, %c0_18] : memref<16x12x128xbf16, #tpu.memory_space<vmem>>, vector<1x12x128xbf16>
    %16 = vector.shape_cast %15 : vector<1x12x128xbf16> to vector<12x128xbf16>
    %cst_19 = arith.constant dense<0.000000e+00> : vector<80x128xf32>
    %17 = tpu.matmul %14, %16, %cst_19 {dimension_numbers = #tpu.dot_dimension_numbers<[1], [0], [0], [1], [0, 0, 1, 1], [], []>} : vector<80x12xbf16>, vector<12x128xbf16>, vector<80x128xf32> -> vector<80x128xf32>
    %18 = arith.addf %12, %17 : vector<80x128xf32>
    %c0_20 = arith.constant 0 : index
    %c11 = arith.constant 11 : index
    %c0_21 = arith.constant 0 : index
    %19 = vector.load %arg1[%c0_20, %c11, %c0_21] : memref<1x104x12xbf16, #tpu.memory_space<vmem>>, vector<1x80x12xbf16>
    %20 = vector.shape_cast %19 : vector<1x80x12xbf16> to vector<80x12xbf16>
    %c3 = arith.constant 3 : index
    %c0_22 = arith.constant 0 : index
    %c0_23 = arith.constant 0 : index
    %21 = vector.load %arg2[%c3, %c0_22, %c0_23] : memref<16x12x128xbf16, #tpu.memory_space<vmem>>, vector<1x12x128xbf16>
    %22 = vector.shape_cast %21 : vector<1x12x128xbf16> to vector<12x128xbf16>
    %cst_24 = arith.constant dense<0.000000e+00> : vector<80x128xf32>
    %23 = tpu.matmul %20, %22, %cst_24 {dimension_numbers = #tpu.dot_dimension_numbers<[1], [0], [0], [1], [0, 0, 1, 1], [], []>} : vector<80x12xbf16>, vector<12x128xbf16>, vector<80x128xf32> -> vector<80x128xf32>
    %24 = arith.addf %18, %23 : vector<80x128xf32>
    %25 = vector.broadcast %0 : vector<1x128xf32> to vector<80x128xf32>
    %26 = arith.mulf %24, %25 : vector<80x128xf32>
    %27 = vector.broadcast %1 : vector<1x128xf32> to vector<80x128xf32>
    %28 = arith.addf %26, %27 : vector<80x128xf32>
    %c0_25 = arith.constant 0 : index
    %c1_26 = arith.constant 1 : index
    %c0_27 = arith.constant 0 : index
    %29 = vector.load %arg1[%c0_25, %c1_26, %c0_27] : memref<1x104x12xbf16, #tpu.memory_space<vmem>>, vector<1x80x12xbf16>
    %30 = vector.shape_cast %29 : vector<1x80x12xbf16> to vector<80x12xbf16>
    %c4 = arith.constant 4 : index
    %c0_28 = arith.constant 0 : index
    %c0_29 = arith.constant 0 : index
    %31 = vector.load %arg2[%c4, %c0_28, %c0_29] : memref<16x12x128xbf16, #tpu.memory_space<vmem>>, vector<1x12x128xbf16>
    %32 = vector.shape_cast %31 : vector<1x12x128xbf16> to vector<12x128xbf16>
    %cst_30 = arith.constant dense<0.000000e+00> : vector<80x128xf32>
    %33 = tpu.matmul %30, %32, %cst_30 {dimension_numbers = #tpu.dot_dimension_numbers<[1], [0], [0], [1], [0, 0, 1, 1], [], []>} : vector<80x12xbf16>, vector<12x128xbf16>, vector<80x128xf32> -> vector<80x128xf32>
    %c0_31 = arith.constant 0 : index
    %c2_32 = arith.constant 2 : index
    %c0_33 = arith.constant 0 : index
    %34 = vector.load %arg1[%c0_31, %c2_32, %c0_33] : memref<1x104x12xbf16, #tpu.memory_space<vmem>>, vector<1x80x12xbf16>
    %35 = vector.shape_cast %34 : vector<1x80x12xbf16> to vector<80x12xbf16>
    %c5 = arith.constant 5 : index
    %c0_34 = arith.constant 0 : index
    %c0_35 = arith.constant 0 : index
    %36 = vector.load %arg2[%c5, %c0_34, %c0_35] : memref<16x12x128xbf16, #tpu.memory_space<vmem>>, vector<1x12x128xbf16>
    %37 = vector.shape_cast %36 : vector<1x12x128xbf16> to vector<12x128xbf16>
    %cst_36 = arith.constant dense<0.000000e+00> : vector<80x128xf32>
    %38 = tpu.matmul %35, %37, %cst_36 {dimension_numbers = #tpu.dot_dimension_numbers<[1], [0], [0], [1], [0, 0, 1, 1], [], []>} : vector<80x12xbf16>, vector<12x128xbf16>, vector<80x128xf32> -> vector<80x128xf32>
    %39 = arith.addf %33, %38 : vector<80x128xf32>
    %c0_37 = arith.constant 0 : index
    %c11_38 = arith.constant 11 : index
    %c0_39 = arith.constant 0 : index
    %40 = vector.load %arg1[%c0_37, %c11_38, %c0_39] : memref<1x104x12xbf16, #tpu.memory_space<vmem>>, vector<1x80x12xbf16>
    %41 = vector.shape_cast %40 : vector<1x80x12xbf16> to vector<80x12xbf16>
    %c6 = arith.constant 6 : index
    %c0_40 = arith.constant 0 : index
    %c0_41 = arith.constant 0 : index
    %42 = vector.load %arg2[%c6, %c0_40, %c0_41] : memref<16x12x128xbf16, #tpu.memory_space<vmem>>, vector<1x12x128xbf16>
    %43 = vector.shape_cast %42 : vector<1x12x128xbf16> to vector<12x128xbf16>
    %cst_42 = arith.constant dense<0.000000e+00> : vector<80x128xf32>
    %44 = tpu.matmul %41, %43, %cst_42 {dimension_numbers = #tpu.dot_dimension_numbers<[1], [0], [0], [1], [0, 0, 1, 1], [], []>} : vector<80x12xbf16>, vector<12x128xbf16>, vector<80x128xf32> -> vector<80x128xf32>
    %45 = arith.addf %39, %44 : vector<80x128xf32>
    %c0_43 = arith.constant 0 : index
    %c12 = arith.constant 12 : index
    %c0_44 = arith.constant 0 : index
    %46 = vector.load %arg1[%c0_43, %c12, %c0_44] : memref<1x104x12xbf16, #tpu.memory_space<vmem>>, vector<1x80x12xbf16>
    %47 = vector.shape_cast %46 : vector<1x80x12xbf16> to vector<80x12xbf16>
    %c7 = arith.constant 7 : index
    %c0_45 = arith.constant 0 : index
    %c0_46 = arith.constant 0 : index
    %48 = vector.load %arg2[%c7, %c0_45, %c0_46] : memref<16x12x128xbf16, #tpu.memory_space<vmem>>, vector<1x12x128xbf16>
    %49 = vector.shape_cast %48 : vector<1x12x128xbf16> to vector<12x128xbf16>
    %cst_47 = arith.constant dense<0.000000e+00> : vector<80x128xf32>
    %50 = tpu.matmul %47, %49, %cst_47 {dimension_numbers = #tpu.dot_dimension_numbers<[1], [0], [0], [1], [0, 0, 1, 1], [], []>} : vector<80x12xbf16>, vector<12x128xbf16>, vector<80x128xf32> -> vector<80x128xf32>
    %51 = arith.addf %45, %50 : vector<80x128xf32>
    %52 = vector.broadcast %0 : vector<1x128xf32> to vector<80x128xf32>
    %53 = arith.mulf %51, %52 : vector<80x128xf32>
    %54 = vector.broadcast %1 : vector<1x128xf32> to vector<80x128xf32>
    %55 = arith.addf %53, %54 : vector<80x128xf32>
    %56 = arith.maximumf %28, %55 : vector<80x128xf32>
    %c0_48 = arith.constant 0 : index
    %c10_49 = arith.constant 10 : index
    %c0_50 = arith.constant 0 : index
    %57 = vector.load %arg1[%c0_48, %c10_49, %c0_50] : memref<1x104x12xbf16, #tpu.memory_space<vmem>>, vector<1x80x12xbf16>
    %58 = vector.shape_cast %57 : vector<1x80x12xbf16> to vector<80x12xbf16>
    %c8 = arith.constant 8 : index
    %c0_51 = arith.constant 0 : index
    %c0_52 = arith.constant 0 : index
    %59 = vector.load %arg2[%c8, %c0_51, %c0_52] : memref<16x12x128xbf16, #tpu.memory_space<vmem>>, vector<1x12x128xbf16>
    %60 = vector.shape_cast %59 : vector<1x12x128xbf16> to vector<12x128xbf16>
    %cst_53 = arith.constant dense<0.000000e+00> : vector<80x128xf32>
    %61 = tpu.matmul %58, %60, %cst_53 {dimension_numbers = #tpu.dot_dimension_numbers<[1], [0], [0], [1], [0, 0, 1, 1], [], []>} : vector<80x12xbf16>, vector<12x128xbf16>, vector<80x128xf32> -> vector<80x128xf32>
    %c0_54 = arith.constant 0 : index
    %c11_55 = arith.constant 11 : index
    %c0_56 = arith.constant 0 : index
    %62 = vector.load %arg1[%c0_54, %c11_55, %c0_56] : memref<1x104x12xbf16, #tpu.memory_space<vmem>>, vector<1x80x12xbf16>
    %63 = vector.shape_cast %62 : vector<1x80x12xbf16> to vector<80x12xbf16>
    %c9 = arith.constant 9 : index
    %c0_57 = arith.constant 0 : index
    %c0_58 = arith.constant 0 : index
    %64 = vector.load %arg2[%c9, %c0_57, %c0_58] : memref<16x12x128xbf16, #tpu.memory_space<vmem>>, vector<1x12x128xbf16>
    %65 = vector.shape_cast %64 : vector<1x12x128xbf16> to vector<12x128xbf16>
    %cst_59 = arith.constant dense<0.000000e+00> : vector<80x128xf32>
    %66 = tpu.matmul %63, %65, %cst_59 {dimension_numbers = #tpu.dot_dimension_numbers<[1], [0], [0], [1], [0, 0, 1, 1], [], []>} : vector<80x12xbf16>, vector<12x128xbf16>, vector<80x128xf32> -> vector<80x128xf32>
    %67 = arith.addf %61, %66 : vector<80x128xf32>
    %c0_60 = arith.constant 0 : index
    %c20 = arith.constant 20 : index
    %c0_61 = arith.constant 0 : index
    %68 = vector.load %arg1[%c0_60, %c20, %c0_61] : memref<1x104x12xbf16, #tpu.memory_space<vmem>>, vector<1x80x12xbf16>
    %69 = vector.shape_cast %68 : vector<1x80x12xbf16> to vector<80x12xbf16>
    %c10_62 = arith.constant 10 : index
    %c0_63 = arith.constant 0 : index
    %c0_64 = arith.constant 0 : index
    %70 = vector.load %arg2[%c10_62, %c0_63, %c0_64] : memref<16x12x128xbf16, #tpu.memory_space<vmem>>, vector<1x12x128xbf16>
    %71 = vector.shape_cast %70 : vector<1x12x128xbf16> to vector<12x128xbf16>
    %cst_65 = arith.constant dense<0.000000e+00> : vector<80x128xf32>
    %72 = tpu.matmul %69, %71, %cst_65 {dimension_numbers = #tpu.dot_dimension_numbers<[1], [0], [0], [1], [0, 0, 1, 1], [], []>} : vector<80x12xbf16>, vector<12x128xbf16>, vector<80x128xf32> -> vector<80x128xf32>
    %73 = arith.addf %67, %72 : vector<80x128xf32>
    %c0_66 = arith.constant 0 : index
    %c21 = arith.constant 21 : index
    %c0_67 = arith.constant 0 : index
    %74 = vector.load %arg1[%c0_66, %c21, %c0_67] : memref<1x104x12xbf16, #tpu.memory_space<vmem>>, vector<1x80x12xbf16>
    %75 = vector.shape_cast %74 : vector<1x80x12xbf16> to vector<80x12xbf16>
    %c11_68 = arith.constant 11 : index
    %c0_69 = arith.constant 0 : index
    %c0_70 = arith.constant 0 : index
    %76 = vector.load %arg2[%c11_68, %c0_69, %c0_70] : memref<16x12x128xbf16, #tpu.memory_space<vmem>>, vector<1x12x128xbf16>
    %77 = vector.shape_cast %76 : vector<1x12x128xbf16> to vector<12x128xbf16>
    %cst_71 = arith.constant dense<0.000000e+00> : vector<80x128xf32>
    %78 = tpu.matmul %75, %77, %cst_71 {dimension_numbers = #tpu.dot_dimension_numbers<[1], [0], [0], [1], [0, 0, 1, 1], [], []>} : vector<80x12xbf16>, vector<12x128xbf16>, vector<80x128xf32> -> vector<80x128xf32>
    %79 = arith.addf %73, %78 : vector<80x128xf32>
    %80 = vector.broadcast %0 : vector<1x128xf32> to vector<80x128xf32>
    %81 = arith.mulf %79, %80 : vector<80x128xf32>
    %82 = vector.broadcast %1 : vector<1x128xf32> to vector<80x128xf32>
    %83 = arith.addf %81, %82 : vector<80x128xf32>
    %84 = arith.maximumf %56, %83 : vector<80x128xf32>
    %c0_72 = arith.constant 0 : index
    %c11_73 = arith.constant 11 : index
    %c0_74 = arith.constant 0 : index
    %85 = vector.load %arg1[%c0_72, %c11_73, %c0_74] : memref<1x104x12xbf16, #tpu.memory_space<vmem>>, vector<1x80x12xbf16>
    %86 = vector.shape_cast %85 : vector<1x80x12xbf16> to vector<80x12xbf16>
    %c12_75 = arith.constant 12 : index
    %c0_76 = arith.constant 0 : index
    %c0_77 = arith.constant 0 : index
    %87 = vector.load %arg2[%c12_75, %c0_76, %c0_77] : memref<16x12x128xbf16, #tpu.memory_space<vmem>>, vector<1x12x128xbf16>
    %88 = vector.shape_cast %87 : vector<1x12x128xbf16> to vector<12x128xbf16>
    %cst_78 = arith.constant dense<0.000000e+00> : vector<80x128xf32>
    %89 = tpu.matmul %86, %88, %cst_78 {dimension_numbers = #tpu.dot_dimension_numbers<[1], [0], [0], [1], [0, 0, 1, 1], [], []>} : vector<80x12xbf16>, vector<12x128xbf16>, vector<80x128xf32> -> vector<80x128xf32>
    %c0_79 = arith.constant 0 : index
    %c12_80 = arith.constant 12 : index
    %c0_81 = arith.constant 0 : index
    %90 = vector.load %arg1[%c0_79, %c12_80, %c0_81] : memref<1x104x12xbf16, #tpu.memory_space<vmem>>, vector<1x80x12xbf16>
    %91 = vector.shape_cast %90 : vector<1x80x12xbf16> to vector<80x12xbf16>
    %c13 = arith.constant 13 : index
    %c0_82 = arith.constant 0 : index
    %c0_83 = arith.constant 0 : index
    %92 = vector.load %arg2[%c13, %c0_82, %c0_83] : memref<16x12x128xbf16, #tpu.memory_space<vmem>>, vector<1x12x128xbf16>
    %93 = vector.shape_cast %92 : vector<1x12x128xbf16> to vector<12x128xbf16>
    %cst_84 = arith.constant dense<0.000000e+00> : vector<80x128xf32>
    %94 = tpu.matmul %91, %93, %cst_84 {dimension_numbers = #tpu.dot_dimension_numbers<[1], [0], [0], [1], [0, 0, 1, 1], [], []>} : vector<80x12xbf16>, vector<12x128xbf16>, vector<80x128xf32> -> vector<80x128xf32>
    %95 = arith.addf %89, %94 : vector<80x128xf32>
    %c0_85 = arith.constant 0 : index
    %c21_86 = arith.constant 21 : index
    %c0_87 = arith.constant 0 : index
    %96 = vector.load %arg1[%c0_85, %c21_86, %c0_87] : memref<1x104x12xbf16, #tpu.memory_space<vmem>>, vector<1x80x12xbf16>
    %97 = vector.shape_cast %96 : vector<1x80x12xbf16> to vector<80x12xbf16>
    %c14 = arith.constant 14 : index
    %c0_88 = arith.constant 0 : index
    %c0_89 = arith.constant 0 : index
    %98 = vector.load %arg2[%c14, %c0_88, %c0_89] : memref<16x12x128xbf16, #tpu.memory_space<vmem>>, vector<1x12x128xbf16>
    %99 = vector.shape_cast %98 : vector<1x12x128xbf16> to vector<12x128xbf16>
    %cst_90 = arith.constant dense<0.000000e+00> : vector<80x128xf32>
    %100 = tpu.matmul %97, %99, %cst_90 {dimension_numbers = #tpu.dot_dimension_numbers<[1], [0], [0], [1], [0, 0, 1, 1], [], []>} : vector<80x12xbf16>, vector<12x128xbf16>, vector<80x128xf32> -> vector<80x128xf32>
    %101 = arith.addf %95, %100 : vector<80x128xf32>
    %c0_91 = arith.constant 0 : index
    %c22 = arith.constant 22 : index
    %c0_92 = arith.constant 0 : index
    %102 = vector.load %arg1[%c0_91, %c22, %c0_92] : memref<1x104x12xbf16, #tpu.memory_space<vmem>>, vector<1x80x12xbf16>
    %103 = vector.shape_cast %102 : vector<1x80x12xbf16> to vector<80x12xbf16>
    %c15 = arith.constant 15 : index
    %c0_93 = arith.constant 0 : index
    %c0_94 = arith.constant 0 : index
    %104 = vector.load %arg2[%c15, %c0_93, %c0_94] : memref<16x12x128xbf16, #tpu.memory_space<vmem>>, vector<1x12x128xbf16>
    %105 = vector.shape_cast %104 : vector<1x12x128xbf16> to vector<12x128xbf16>
    %cst_95 = arith.constant dense<0.000000e+00> : vector<80x128xf32>
    %106 = tpu.matmul %103, %105, %cst_95 {dimension_numbers = #tpu.dot_dimension_numbers<[1], [0], [0], [1], [0, 0, 1, 1], [], []>} : vector<80x12xbf16>, vector<12x128xbf16>, vector<80x128xf32> -> vector<80x128xf32>
    %107 = arith.addf %101, %106 : vector<80x128xf32>
    %108 = vector.broadcast %0 : vector<1x128xf32> to vector<80x128xf32>
    %109 = arith.mulf %107, %108 : vector<80x128xf32>
    %110 = vector.broadcast %1 : vector<1x128xf32> to vector<80x128xf32>
    %111 = arith.addf %109, %110 : vector<80x128xf32>
    %112 = arith.maximumf %84, %111 : vector<80x128xf32>
    %cst_96 = arith.constant 0.000000e+00 : f32
    %113 = vector.broadcast %cst_96 : f32 to vector<80x128xf32>
    %114 = arith.maximumf %112, %113 : vector<80x128xf32>
    %115 = arith.truncf %114 : vector<80x128xf32> to vector<80x128xbf16>
    %c0_97 = arith.constant 0 : index
    %c0_98 = arith.constant 0 : index
    %c0_99 = arith.constant 0 : index
    %116 = vector.load %arg5[%c0_97, %c0_98, %c0_99] : memref<1x80x128xbf16, #tpu.memory_space<vmem>>, vector<1x80x128xbf16>
    %117 = vector.shape_cast %116 : vector<1x80x128xbf16> to vector<80x128xbf16>
    %118 = vector.shape_cast %115 : vector<80x128xbf16> to vector<1x80x128xbf16>
    tpu.vector_store %arg5[%c0_97, %c0_98, %c0_99], %118 {strides = array<i32>} : memref<1x80x128xbf16, #tpu.memory_space<vmem>>, vector<1x80x128xbf16>,
    return
  }
  func.func @transform_0(%arg0: i32) -> (i32, i32, i32) {
    %c0_i32 = arith.constant 0 : i32
    %c0_i32_0 = arith.constant 0 : i32
    %c0_i32_1 = arith.constant 0 : i32
    return %arg0, %c0_i32, %c0_i32_0 : i32, i32, i32
  }
  func.func @transform_1(%arg0: i32) -> (i32, i32, i32) {
    %c0_i32 = arith.constant 0 : i32
    %c0_i32_0 = arith.constant 0 : i32
    %c0_i32_1 = arith.constant 0 : i32
    %c0_i32_2 = arith.constant 0 : i32
    return %c0_i32, %c0_i32_0, %c0_i32_1 : i32, i32, i32
  }
  func.func @transform_2(%arg0: i32) -> (i32, i32) {
    %c0_i32 = arith.constant 0 : i32
    %c0_i32_0 = arith.constant 0 : i32
    %c0_i32_1 = arith.constant 0 : i32
    return %c0_i32, %c0_i32_0 : i32, i32
  }
  func.func @transform_3(%arg0: i32) -> (i32, i32) {
    %c0_i32 = arith.constant 0 : i32
    %c0_i32_0 = arith.constant 0 : i32
    %c0_i32_1 = arith.constant 0 : i32
    return %c0_i32, %c0_i32_0 : i32, i32
  }
  func.func @transform_4(%arg0: i32) -> (i32, i32, i32) {
    %c0_i32 = arith.constant 0 : i32
    %c0_i32_0 = arith.constant 0 : i32
    %c0_i32_1 = arith.constant 0 : i32
    return %arg0, %c0_i32, %c0_i32_0 : i32, i32, i32
  }
}

module attributes {stable_mosaic.version = 11 : i64} {
  func.func @_conv_bn_relu_pool_kernel(%arg0: i32, %arg1: memref<1x40x128xbf16, #tpu.memory_space<vmem>>, %arg2: memref<16x128x128xbf16, #tpu.memory_space<vmem>>, %arg3: memref<1x128xf32, #tpu.memory_space<vmem>>, %arg4: memref<1x128xf32, #tpu.memory_space<vmem>>, %arg5: memref<1x24x128xbf16, #tpu.memory_space<vmem>>) attributes {dimension_semantics = [#tpu.dimension_semantics<parallel>], iteration_bounds = array<i64: 2>, scalar_prefetch = 0 : i64, scratch_operands = 0 : i64, tpu.core_type = #tpu.core_type<tc>, window_params = [{transform_indices = @transform_0, window_bounds = array<i64: 1, 40, 128>}, {pipeline_mode = #tpu.pipeline_mode<synchronous>, transform_indices = @transform_1, window_bounds = array<i64: 16, 128, 128>}, {pipeline_mode = #tpu.pipeline_mode<synchronous>, transform_indices = @transform_2, window_bounds = array<i64: 1, 128>}, {pipeline_mode = #tpu.pipeline_mode<synchronous>, transform_indices = @transform_3, window_bounds = array<i64: 1, 128>}, {transform_indices = @transform_4, window_bounds = array<i64: 1, 24, 128>}]} {
    %c0 = arith.constant 0 : index
    %c0_0 = arith.constant 0 : index
    %0 = vector.load %arg3[%c0, %c0_0] : memref<1x128xf32, #tpu.memory_space<vmem>>, vector<1x128xf32>
    %c0_1 = arith.constant 0 : index
    %c0_2 = arith.constant 0 : index
    %1 = vector.load %arg4[%c0_1, %c0_2] : memref<1x128xf32, #tpu.memory_space<vmem>>, vector<1x128xf32>
    %c0_3 = arith.constant 0 : index
    %c0_4 = arith.constant 0 : index
    %c0_5 = arith.constant 0 : index
    %2 = vector.load %arg1[%c0_3, %c0_4, %c0_5] : memref<1x40x128xbf16, #tpu.memory_space<vmem>>, vector<1x24x128xbf16>
    %3 = vector.shape_cast %2 : vector<1x24x128xbf16> to vector<24x128xbf16>
    %c0_6 = arith.constant 0 : index
    %c0_7 = arith.constant 0 : index
    %c0_8 = arith.constant 0 : index
    %4 = vector.load %arg2[%c0_6, %c0_7, %c0_8] : memref<16x128x128xbf16, #tpu.memory_space<vmem>>, vector<1x128x128xbf16>
    %5 = vector.shape_cast %4 : vector<1x128x128xbf16> to vector<128x128xbf16>
    %cst = arith.constant dense<0.000000e+00> : vector<24x128xf32>
    %6 = tpu.matmul %3, %5, %cst {dimension_numbers = #tpu.dot_dimension_numbers<[1], [0], [0], [1], [0, 0, 1, 1], [], []>} : vector<24x128xbf16>, vector<128x128xbf16>, vector<24x128xf32> -> vector<24x128xf32>
    %c0_9 = arith.constant 0 : index
    %c1 = arith.constant 1 : index
    %c0_10 = arith.constant 0 : index
    %7 = vector.load %arg1[%c0_9, %c1, %c0_10] : memref<1x40x128xbf16, #tpu.memory_space<vmem>>, vector<1x24x128xbf16>
    %8 = vector.shape_cast %7 : vector<1x24x128xbf16> to vector<24x128xbf16>
    %c1_11 = arith.constant 1 : index
    %c0_12 = arith.constant 0 : index
    %c0_13 = arith.constant 0 : index
    %9 = vector.load %arg2[%c1_11, %c0_12, %c0_13] : memref<16x128x128xbf16, #tpu.memory_space<vmem>>, vector<1x128x128xbf16>
    %10 = vector.shape_cast %9 : vector<1x128x128xbf16> to vector<128x128xbf16>
    %cst_14 = arith.constant dense<0.000000e+00> : vector<24x128xf32>
    %11 = tpu.matmul %8, %10, %cst_14 {dimension_numbers = #tpu.dot_dimension_numbers<[1], [0], [0], [1], [0, 0, 1, 1], [], []>} : vector<24x128xbf16>, vector<128x128xbf16>, vector<24x128xf32> -> vector<24x128xf32>
    %12 = arith.addf %6, %11 : vector<24x128xf32>
    %c0_15 = arith.constant 0 : index
    %c6 = arith.constant 6 : index
    %c0_16 = arith.constant 0 : index
    %13 = vector.load %arg1[%c0_15, %c6, %c0_16] : memref<1x40x128xbf16, #tpu.memory_space<vmem>>, vector<1x24x128xbf16>
    %14 = vector.shape_cast %13 : vector<1x24x128xbf16> to vector<24x128xbf16>
    %c2 = arith.constant 2 : index
    %c0_17 = arith.constant 0 : index
    %c0_18 = arith.constant 0 : index
    %15 = vector.load %arg2[%c2, %c0_17, %c0_18] : memref<16x128x128xbf16, #tpu.memory_space<vmem>>, vector<1x128x128xbf16>
    %16 = vector.shape_cast %15 : vector<1x128x128xbf16> to vector<128x128xbf16>
    %cst_19 = arith.constant dense<0.000000e+00> : vector<24x128xf32>
    %17 = tpu.matmul %14, %16, %cst_19 {dimension_numbers = #tpu.dot_dimension_numbers<[1], [0], [0], [1], [0, 0, 1, 1], [], []>} : vector<24x128xbf16>, vector<128x128xbf16>, vector<24x128xf32> -> vector<24x128xf32>
    %18 = arith.addf %12, %17 : vector<24x128xf32>
    %c0_20 = arith.constant 0 : index
    %c7 = arith.constant 7 : index
    %c0_21 = arith.constant 0 : index
    %19 = vector.load %arg1[%c0_20, %c7, %c0_21] : memref<1x40x128xbf16, #tpu.memory_space<vmem>>, vector<1x24x128xbf16>
    %20 = vector.shape_cast %19 : vector<1x24x128xbf16> to vector<24x128xbf16>
    %c3 = arith.constant 3 : index
    %c0_22 = arith.constant 0 : index
    %c0_23 = arith.constant 0 : index
    %21 = vector.load %arg2[%c3, %c0_22, %c0_23] : memref<16x128x128xbf16, #tpu.memory_space<vmem>>, vector<1x128x128xbf16>
    %22 = vector.shape_cast %21 : vector<1x128x128xbf16> to vector<128x128xbf16>
    %cst_24 = arith.constant dense<0.000000e+00> : vector<24x128xf32>
    %23 = tpu.matmul %20, %22, %cst_24 {dimension_numbers = #tpu.dot_dimension_numbers<[1], [0], [0], [1], [0, 0, 1, 1], [], []>} : vector<24x128xbf16>, vector<128x128xbf16>, vector<24x128xf32> -> vector<24x128xf32>
    %24 = arith.addf %18, %23 : vector<24x128xf32>
    %25 = vector.broadcast %0 : vector<1x128xf32> to vector<24x128xf32>
    %26 = arith.mulf %24, %25 : vector<24x128xf32>
    %27 = vector.broadcast %1 : vector<1x128xf32> to vector<24x128xf32>
    %28 = arith.addf %26, %27 : vector<24x128xf32>
    %c0_25 = arith.constant 0 : index
    %c1_26 = arith.constant 1 : index
    %c0_27 = arith.constant 0 : index
    %29 = vector.load %arg1[%c0_25, %c1_26, %c0_27] : memref<1x40x128xbf16, #tpu.memory_space<vmem>>, vector<1x24x128xbf16>
    %30 = vector.shape_cast %29 : vector<1x24x128xbf16> to vector<24x128xbf16>
    %c4 = arith.constant 4 : index
    %c0_28 = arith.constant 0 : index
    %c0_29 = arith.constant 0 : index
    %31 = vector.load %arg2[%c4, %c0_28, %c0_29] : memref<16x128x128xbf16, #tpu.memory_space<vmem>>, vector<1x128x128xbf16>
    %32 = vector.shape_cast %31 : vector<1x128x128xbf16> to vector<128x128xbf16>
    %cst_30 = arith.constant dense<0.000000e+00> : vector<24x128xf32>
    %33 = tpu.matmul %30, %32, %cst_30 {dimension_numbers = #tpu.dot_dimension_numbers<[1], [0], [0], [1], [0, 0, 1, 1], [], []>} : vector<24x128xbf16>, vector<128x128xbf16>, vector<24x128xf32> -> vector<24x128xf32>
    %c0_31 = arith.constant 0 : index
    %c2_32 = arith.constant 2 : index
    %c0_33 = arith.constant 0 : index
    %34 = vector.load %arg1[%c0_31, %c2_32, %c0_33] : memref<1x40x128xbf16, #tpu.memory_space<vmem>>, vector<1x24x128xbf16>
    %35 = vector.shape_cast %34 : vector<1x24x128xbf16> to vector<24x128xbf16>
    %c5 = arith.constant 5 : index
    %c0_34 = arith.constant 0 : index
    %c0_35 = arith.constant 0 : index
    %36 = vector.load %arg2[%c5, %c0_34, %c0_35] : memref<16x128x128xbf16, #tpu.memory_space<vmem>>, vector<1x128x128xbf16>
    %37 = vector.shape_cast %36 : vector<1x128x128xbf16> to vector<128x128xbf16>
    %cst_36 = arith.constant dense<0.000000e+00> : vector<24x128xf32>
    %38 = tpu.matmul %35, %37, %cst_36 {dimension_numbers = #tpu.dot_dimension_numbers<[1], [0], [0], [1], [0, 0, 1, 1], [], []>} : vector<24x128xbf16>, vector<128x128xbf16>, vector<24x128xf32> -> vector<24x128xf32>
    %39 = arith.addf %33, %38 : vector<24x128xf32>
    %c0_37 = arith.constant 0 : index
    %c7_38 = arith.constant 7 : index
    %c0_39 = arith.constant 0 : index
    %40 = vector.load %arg1[%c0_37, %c7_38, %c0_39] : memref<1x40x128xbf16, #tpu.memory_space<vmem>>, vector<1x24x128xbf16>
    %41 = vector.shape_cast %40 : vector<1x24x128xbf16> to vector<24x128xbf16>
    %c6_40 = arith.constant 6 : index
    %c0_41 = arith.constant 0 : index
    %c0_42 = arith.constant 0 : index
    %42 = vector.load %arg2[%c6_40, %c0_41, %c0_42] : memref<16x128x128xbf16, #tpu.memory_space<vmem>>, vector<1x128x128xbf16>
    %43 = vector.shape_cast %42 : vector<1x128x128xbf16> to vector<128x128xbf16>
    %cst_43 = arith.constant dense<0.000000e+00> : vector<24x128xf32>
    %44 = tpu.matmul %41, %43, %cst_43 {dimension_numbers = #tpu.dot_dimension_numbers<[1], [0], [0], [1], [0, 0, 1, 1], [], []>} : vector<24x128xbf16>, vector<128x128xbf16>, vector<24x128xf32> -> vector<24x128xf32>
    %45 = arith.addf %39, %44 : vector<24x128xf32>
    %c0_44 = arith.constant 0 : index
    %c8 = arith.constant 8 : index
    %c0_45 = arith.constant 0 : index
    %46 = vector.load %arg1[%c0_44, %c8, %c0_45] : memref<1x40x128xbf16, #tpu.memory_space<vmem>>, vector<1x24x128xbf16>
    %47 = vector.shape_cast %46 : vector<1x24x128xbf16> to vector<24x128xbf16>
    %c7_46 = arith.constant 7 : index
    %c0_47 = arith.constant 0 : index
    %c0_48 = arith.constant 0 : index
    %48 = vector.load %arg2[%c7_46, %c0_47, %c0_48] : memref<16x128x128xbf16, #tpu.memory_space<vmem>>, vector<1x128x128xbf16>
    %49 = vector.shape_cast %48 : vector<1x128x128xbf16> to vector<128x128xbf16>
    %cst_49 = arith.constant dense<0.000000e+00> : vector<24x128xf32>
    %50 = tpu.matmul %47, %49, %cst_49 {dimension_numbers = #tpu.dot_dimension_numbers<[1], [0], [0], [1], [0, 0, 1, 1], [], []>} : vector<24x128xbf16>, vector<128x128xbf16>, vector<24x128xf32> -> vector<24x128xf32>
    %51 = arith.addf %45, %50 : vector<24x128xf32>
    %52 = vector.broadcast %0 : vector<1x128xf32> to vector<24x128xf32>
    %53 = arith.mulf %51, %52 : vector<24x128xf32>
    %54 = vector.broadcast %1 : vector<1x128xf32> to vector<24x128xf32>
    %55 = arith.addf %53, %54 : vector<24x128xf32>
    %56 = arith.maximumf %28, %55 : vector<24x128xf32>
    %c0_50 = arith.constant 0 : index
    %c6_51 = arith.constant 6 : index
    %c0_52 = arith.constant 0 : index
    %57 = vector.load %arg1[%c0_50, %c6_51, %c0_52] : memref<1x40x128xbf16, #tpu.memory_space<vmem>>, vector<1x24x128xbf16>
    %58 = vector.shape_cast %57 : vector<1x24x128xbf16> to vector<24x128xbf16>
    %c8_53 = arith.constant 8 : index
    %c0_54 = arith.constant 0 : index
    %c0_55 = arith.constant 0 : index
    %59 = vector.load %arg2[%c8_53, %c0_54, %c0_55] : memref<16x128x128xbf16, #tpu.memory_space<vmem>>, vector<1x128x128xbf16>
    %60 = vector.shape_cast %59 : vector<1x128x128xbf16> to vector<128x128xbf16>
    %cst_56 = arith.constant dense<0.000000e+00> : vector<24x128xf32>
    %61 = tpu.matmul %58, %60, %cst_56 {dimension_numbers = #tpu.dot_dimension_numbers<[1], [0], [0], [1], [0, 0, 1, 1], [], []>} : vector<24x128xbf16>, vector<128x128xbf16>, vector<24x128xf32> -> vector<24x128xf32>
    %c0_57 = arith.constant 0 : index
    %c7_58 = arith.constant 7 : index
    %c0_59 = arith.constant 0 : index
    %62 = vector.load %arg1[%c0_57, %c7_58, %c0_59] : memref<1x40x128xbf16, #tpu.memory_space<vmem>>, vector<1x24x128xbf16>
    %63 = vector.shape_cast %62 : vector<1x24x128xbf16> to vector<24x128xbf16>
    %c9 = arith.constant 9 : index
    %c0_60 = arith.constant 0 : index
    %c0_61 = arith.constant 0 : index
    %64 = vector.load %arg2[%c9, %c0_60, %c0_61] : memref<16x128x128xbf16, #tpu.memory_space<vmem>>, vector<1x128x128xbf16>
    %65 = vector.shape_cast %64 : vector<1x128x128xbf16> to vector<128x128xbf16>
    %cst_62 = arith.constant dense<0.000000e+00> : vector<24x128xf32>
    %66 = tpu.matmul %63, %65, %cst_62 {dimension_numbers = #tpu.dot_dimension_numbers<[1], [0], [0], [1], [0, 0, 1, 1], [], []>} : vector<24x128xbf16>, vector<128x128xbf16>, vector<24x128xf32> -> vector<24x128xf32>
    %67 = arith.addf %61, %66 : vector<24x128xf32>
    %c0_63 = arith.constant 0 : index
    %c12 = arith.constant 12 : index
    %c0_64 = arith.constant 0 : index
    %68 = vector.load %arg1[%c0_63, %c12, %c0_64] : memref<1x40x128xbf16, #tpu.memory_space<vmem>>, vector<1x24x128xbf16>
    %69 = vector.shape_cast %68 : vector<1x24x128xbf16> to vector<24x128xbf16>
    %c10 = arith.constant 10 : index
    %c0_65 = arith.constant 0 : index
    %c0_66 = arith.constant 0 : index
    %70 = vector.load %arg2[%c10, %c0_65, %c0_66] : memref<16x128x128xbf16, #tpu.memory_space<vmem>>, vector<1x128x128xbf16>
    %71 = vector.shape_cast %70 : vector<1x128x128xbf16> to vector<128x128xbf16>
    %cst_67 = arith.constant dense<0.000000e+00> : vector<24x128xf32>
    %72 = tpu.matmul %69, %71, %cst_67 {dimension_numbers = #tpu.dot_dimension_numbers<[1], [0], [0], [1], [0, 0, 1, 1], [], []>} : vector<24x128xbf16>, vector<128x128xbf16>, vector<24x128xf32> -> vector<24x128xf32>
    %73 = arith.addf %67, %72 : vector<24x128xf32>
    %c0_68 = arith.constant 0 : index
    %c13 = arith.constant 13 : index
    %c0_69 = arith.constant 0 : index
    %74 = vector.load %arg1[%c0_68, %c13, %c0_69] : memref<1x40x128xbf16, #tpu.memory_space<vmem>>, vector<1x24x128xbf16>
    %75 = vector.shape_cast %74 : vector<1x24x128xbf16> to vector<24x128xbf16>
    %c11 = arith.constant 11 : index
    %c0_70 = arith.constant 0 : index
    %c0_71 = arith.constant 0 : index
    %76 = vector.load %arg2[%c11, %c0_70, %c0_71] : memref<16x128x128xbf16, #tpu.memory_space<vmem>>, vector<1x128x128xbf16>
    %77 = vector.shape_cast %76 : vector<1x128x128xbf16> to vector<128x128xbf16>
    %cst_72 = arith.constant dense<0.000000e+00> : vector<24x128xf32>
    %78 = tpu.matmul %75, %77, %cst_72 {dimension_numbers = #tpu.dot_dimension_numbers<[1], [0], [0], [1], [0, 0, 1, 1], [], []>} : vector<24x128xbf16>, vector<128x128xbf16>, vector<24x128xf32> -> vector<24x128xf32>
    %79 = arith.addf %73, %78 : vector<24x128xf32>
    %80 = vector.broadcast %0 : vector<1x128xf32> to vector<24x128xf32>
    %81 = arith.mulf %79, %80 : vector<24x128xf32>
    %82 = vector.broadcast %1 : vector<1x128xf32> to vector<24x128xf32>
    %83 = arith.addf %81, %82 : vector<24x128xf32>
    %84 = arith.maximumf %56, %83 : vector<24x128xf32>
    %c0_73 = arith.constant 0 : index
    %c7_74 = arith.constant 7 : index
    %c0_75 = arith.constant 0 : index
    %85 = vector.load %arg1[%c0_73, %c7_74, %c0_75] : memref<1x40x128xbf16, #tpu.memory_space<vmem>>, vector<1x24x128xbf16>
    %86 = vector.shape_cast %85 : vector<1x24x128xbf16> to vector<24x128xbf16>
    %c12_76 = arith.constant 12 : index
    %c0_77 = arith.constant 0 : index
    %c0_78 = arith.constant 0 : index
    %87 = vector.load %arg2[%c12_76, %c0_77, %c0_78] : memref<16x128x128xbf16, #tpu.memory_space<vmem>>, vector<1x128x128xbf16>
    %88 = vector.shape_cast %87 : vector<1x128x128xbf16> to vector<128x128xbf16>
    %cst_79 = arith.constant dense<0.000000e+00> : vector<24x128xf32>
    %89 = tpu.matmul %86, %88, %cst_79 {dimension_numbers = #tpu.dot_dimension_numbers<[1], [0], [0], [1], [0, 0, 1, 1], [], []>} : vector<24x128xbf16>, vector<128x128xbf16>, vector<24x128xf32> -> vector<24x128xf32>
    %c0_80 = arith.constant 0 : index
    %c8_81 = arith.constant 8 : index
    %c0_82 = arith.constant 0 : index
    %90 = vector.load %arg1[%c0_80, %c8_81, %c0_82] : memref<1x40x128xbf16, #tpu.memory_space<vmem>>, vector<1x24x128xbf16>
    %91 = vector.shape_cast %90 : vector<1x24x128xbf16> to vector<24x128xbf16>
    %c13_83 = arith.constant 13 : index
    %c0_84 = arith.constant 0 : index
    %c0_85 = arith.constant 0 : index
    %92 = vector.load %arg2[%c13_83, %c0_84, %c0_85] : memref<16x128x128xbf16, #tpu.memory_space<vmem>>, vector<1x128x128xbf16>
    %93 = vector.shape_cast %92 : vector<1x128x128xbf16> to vector<128x128xbf16>
    %cst_86 = arith.constant dense<0.000000e+00> : vector<24x128xf32>
    %94 = tpu.matmul %91, %93, %cst_86 {dimension_numbers = #tpu.dot_dimension_numbers<[1], [0], [0], [1], [0, 0, 1, 1], [], []>} : vector<24x128xbf16>, vector<128x128xbf16>, vector<24x128xf32> -> vector<24x128xf32>
    %95 = arith.addf %89, %94 : vector<24x128xf32>
    %c0_87 = arith.constant 0 : index
    %c13_88 = arith.constant 13 : index
    %c0_89 = arith.constant 0 : index
    %96 = vector.load %arg1[%c0_87, %c13_88, %c0_89] : memref<1x40x128xbf16, #tpu.memory_space<vmem>>, vector<1x24x128xbf16>
    %97 = vector.shape_cast %96 : vector<1x24x128xbf16> to vector<24x128xbf16>
    %c14 = arith.constant 14 : index
    %c0_90 = arith.constant 0 : index
    %c0_91 = arith.constant 0 : index
    %98 = vector.load %arg2[%c14, %c0_90, %c0_91] : memref<16x128x128xbf16, #tpu.memory_space<vmem>>, vector<1x128x128xbf16>
    %99 = vector.shape_cast %98 : vector<1x128x128xbf16> to vector<128x128xbf16>
    %cst_92 = arith.constant dense<0.000000e+00> : vector<24x128xf32>
    %100 = tpu.matmul %97, %99, %cst_92 {dimension_numbers = #tpu.dot_dimension_numbers<[1], [0], [0], [1], [0, 0, 1, 1], [], []>} : vector<24x128xbf16>, vector<128x128xbf16>, vector<24x128xf32> -> vector<24x128xf32>
    %101 = arith.addf %95, %100 : vector<24x128xf32>
    %c0_93 = arith.constant 0 : index
    %c14_94 = arith.constant 14 : index
    %c0_95 = arith.constant 0 : index
    %102 = vector.load %arg1[%c0_93, %c14_94, %c0_95] : memref<1x40x128xbf16, #tpu.memory_space<vmem>>, vector<1x24x128xbf16>
    %103 = vector.shape_cast %102 : vector<1x24x128xbf16> to vector<24x128xbf16>
    %c15 = arith.constant 15 : index
    %c0_96 = arith.constant 0 : index
    %c0_97 = arith.constant 0 : index
    %104 = vector.load %arg2[%c15, %c0_96, %c0_97] : memref<16x128x128xbf16, #tpu.memory_space<vmem>>, vector<1x128x128xbf16>
    %105 = vector.shape_cast %104 : vector<1x128x128xbf16> to vector<128x128xbf16>
    %cst_98 = arith.constant dense<0.000000e+00> : vector<24x128xf32>
    %106 = tpu.matmul %103, %105, %cst_98 {dimension_numbers = #tpu.dot_dimension_numbers<[1], [0], [0], [1], [0, 0, 1, 1], [], []>} : vector<24x128xbf16>, vector<128x128xbf16>, vector<24x128xf32> -> vector<24x128xf32>
    %107 = arith.addf %101, %106 : vector<24x128xf32>
    %108 = vector.broadcast %0 : vector<1x128xf32> to vector<24x128xf32>
    %109 = arith.mulf %107, %108 : vector<24x128xf32>
    %110 = vector.broadcast %1 : vector<1x128xf32> to vector<24x128xf32>
    %111 = arith.addf %109, %110 : vector<24x128xf32>
    %112 = arith.maximumf %84, %111 : vector<24x128xf32>
    %cst_99 = arith.constant 0.000000e+00 : f32
    %113 = vector.broadcast %cst_99 : f32 to vector<24x128xf32>
    %114 = arith.maximumf %112, %113 : vector<24x128xf32>
    %115 = arith.truncf %114 : vector<24x128xf32> to vector<24x128xbf16>
    %c0_100 = arith.constant 0 : index
    %c0_101 = arith.constant 0 : index
    %c0_102 = arith.constant 0 : index
    %116 = vector.load %arg5[%c0_100, %c0_101, %c0_102] : memref<1x24x128xbf16, #tpu.memory_space<vmem>>, vector<1x24x128xbf16>
    %117 = vector.shape_cast %116 : vector<1x24x128xbf16> to vector<24x128xbf16>
    %118 = vector.shape_cast %115 : vector<24x128xbf16> to vector<1x24x128xbf16>
    tpu.vector_store %arg5[%c0_100, %c0_101, %c0_102], %118 {strides = array<i32>} : memref<1x24x128xbf16, #tpu.memory_space<vmem>>, vector<1x24x128xbf16>,
    return
  }
  func.func @transform_0(%arg0: i32) -> (i32, i32, i32) {
    %c0_i32 = arith.constant 0 : i32
    %c0_i32_0 = arith.constant 0 : i32
    %c0_i32_1 = arith.constant 0 : i32
    return %arg0, %c0_i32, %c0_i32_0 : i32, i32, i32
  }
  func.func @transform_1(%arg0: i32) -> (i32, i32, i32) {
    %c0_i32 = arith.constant 0 : i32
    %c0_i32_0 = arith.constant 0 : i32
    %c0_i32_1 = arith.constant 0 : i32
    %c0_i32_2 = arith.constant 0 : i32
    return %c0_i32, %c0_i32_0, %c0_i32_1 : i32, i32, i32
  }
  func.func @transform_2(%arg0: i32) -> (i32, i32) {
    %c0_i32 = arith.constant 0 : i32
    %c0_i32_0 = arith.constant 0 : i32
    %c0_i32_1 = arith.constant 0 : i32
    return %c0_i32, %c0_i32_0 : i32, i32
  }
  func.func @transform_3(%arg0: i32) -> (i32, i32) {
    %c0_i32 = arith.constant 0 : i32
    %c0_i32_0 = arith.constant 0 : i32
    %c0_i32_1 = arith.constant 0 : i32
    return %c0_i32, %c0_i32_0 : i32, i32
  }
  func.func @transform_4(%arg0: i32) -> (i32, i32, i32) {
    %c0_i32 = arith.constant 0 : i32
    %c0_i32_0 = arith.constant 0 : i32
    %c0_i32_1 = arith.constant 0 : i32
    return %arg0, %c0_i32, %c0_i32_0 : i32, i32, i32
  }
}

module attributes {stable_mosaic.version = 11 : i64} {
  func.func @_conv_bn_relu_pool_kernel(%arg0: i32, %arg1: memref<1x24x128xbf16, #tpu.memory_space<vmem>>, %arg2: memref<16x128x128xbf16, #tpu.memory_space<vmem>>, %arg3: memref<1x128xf32, #tpu.memory_space<vmem>>, %arg4: memref<1x128xf32, #tpu.memory_space<vmem>>, %arg5: memref<1x8x128xbf16, #tpu.memory_space<vmem>>) attributes {dimension_semantics = [#tpu.dimension_semantics<parallel>], iteration_bounds = array<i64: 2>, scalar_prefetch = 0 : i64, scratch_operands = 0 : i64, tpu.core_type = #tpu.core_type<tc>, window_params = [{transform_indices = @transform_0, window_bounds = array<i64: 1, 24, 128>}, {pipeline_mode = #tpu.pipeline_mode<synchronous>, transform_indices = @transform_1, window_bounds = array<i64: 16, 128, 128>}, {pipeline_mode = #tpu.pipeline_mode<synchronous>, transform_indices = @transform_2, window_bounds = array<i64: 1, 128>}, {pipeline_mode = #tpu.pipeline_mode<synchronous>, transform_indices = @transform_3, window_bounds = array<i64: 1, 128>}, {transform_indices = @transform_4, window_bounds = array<i64: 1, 8, 128>}]} {
    %c0 = arith.constant 0 : index
    %c0_0 = arith.constant 0 : index
    %0 = vector.load %arg3[%c0, %c0_0] : memref<1x128xf32, #tpu.memory_space<vmem>>, vector<1x128xf32>
    %c0_1 = arith.constant 0 : index
    %c0_2 = arith.constant 0 : index
    %1 = vector.load %arg4[%c0_1, %c0_2] : memref<1x128xf32, #tpu.memory_space<vmem>>, vector<1x128xf32>
    %c0_3 = arith.constant 0 : index
    %c0_4 = arith.constant 0 : index
    %c0_5 = arith.constant 0 : index
    %2 = vector.load %arg1[%c0_3, %c0_4, %c0_5] : memref<1x24x128xbf16, #tpu.memory_space<vmem>>, vector<1x8x128xbf16>
    %3 = vector.shape_cast %2 : vector<1x8x128xbf16> to vector<8x128xbf16>
    %c0_6 = arith.constant 0 : index
    %c0_7 = arith.constant 0 : index
    %c0_8 = arith.constant 0 : index
    %4 = vector.load %arg2[%c0_6, %c0_7, %c0_8] : memref<16x128x128xbf16, #tpu.memory_space<vmem>>, vector<1x128x128xbf16>
    %5 = vector.shape_cast %4 : vector<1x128x128xbf16> to vector<128x128xbf16>
    %cst = arith.constant dense<0.000000e+00> : vector<8x128xf32>
    %6 = tpu.matmul %3, %5, %cst {dimension_numbers = #tpu.dot_dimension_numbers<[1], [0], [0], [1], [0, 0, 1, 1], [], []>} : vector<8x128xbf16>, vector<128x128xbf16>, vector<8x128xf32> -> vector<8x128xf32>
    %c0_9 = arith.constant 0 : index
    %c1 = arith.constant 1 : index
    %c0_10 = arith.constant 0 : index
    %7 = vector.load %arg1[%c0_9, %c1, %c0_10] : memref<1x24x128xbf16, #tpu.memory_space<vmem>>, vector<1x8x128xbf16>
    %8 = vector.shape_cast %7 : vector<1x8x128xbf16> to vector<8x128xbf16>
    %c1_11 = arith.constant 1 : index
    %c0_12 = arith.constant 0 : index
    %c0_13 = arith.constant 0 : index
    %9 = vector.load %arg2[%c1_11, %c0_12, %c0_13] : memref<16x128x128xbf16, #tpu.memory_space<vmem>>, vector<1x128x128xbf16>
    %10 = vector.shape_cast %9 : vector<1x128x128xbf16> to vector<128x128xbf16>
    %cst_14 = arith.constant dense<0.000000e+00> : vector<8x128xf32>
    %11 = tpu.matmul %8, %10, %cst_14 {dimension_numbers = #tpu.dot_dimension_numbers<[1], [0], [0], [1], [0, 0, 1, 1], [], []>} : vector<8x128xbf16>, vector<128x128xbf16>, vector<8x128xf32> -> vector<8x128xf32>
    %12 = arith.addf %6, %11 : vector<8x128xf32>
    %c0_15 = arith.constant 0 : index
    %c4 = arith.constant 4 : index
    %c0_16 = arith.constant 0 : index
    %13 = vector.load %arg1[%c0_15, %c4, %c0_16] : memref<1x24x128xbf16, #tpu.memory_space<vmem>>, vector<1x8x128xbf16>
    %14 = vector.shape_cast %13 : vector<1x8x128xbf16> to vector<8x128xbf16>
    %c2 = arith.constant 2 : index
    %c0_17 = arith.constant 0 : index
    %c0_18 = arith.constant 0 : index
    %15 = vector.load %arg2[%c2, %c0_17, %c0_18] : memref<16x128x128xbf16, #tpu.memory_space<vmem>>, vector<1x128x128xbf16>
    %16 = vector.shape_cast %15 : vector<1x128x128xbf16> to vector<128x128xbf16>
    %cst_19 = arith.constant dense<0.000000e+00> : vector<8x128xf32>
    %17 = tpu.matmul %14, %16, %cst_19 {dimension_numbers = #tpu.dot_dimension_numbers<[1], [0], [0], [1], [0, 0, 1, 1], [], []>} : vector<8x128xbf16>, vector<128x128xbf16>, vector<8x128xf32> -> vector<8x128xf32>
    %18 = arith.addf %12, %17 : vector<8x128xf32>
    %c0_20 = arith.constant 0 : index
    %c5 = arith.constant 5 : index
    %c0_21 = arith.constant 0 : index
    %19 = vector.load %arg1[%c0_20, %c5, %c0_21] : memref<1x24x128xbf16, #tpu.memory_space<vmem>>, vector<1x8x128xbf16>
    %20 = vector.shape_cast %19 : vector<1x8x128xbf16> to vector<8x128xbf16>
    %c3 = arith.constant 3 : index
    %c0_22 = arith.constant 0 : index
    %c0_23 = arith.constant 0 : index
    %21 = vector.load %arg2[%c3, %c0_22, %c0_23] : memref<16x128x128xbf16, #tpu.memory_space<vmem>>, vector<1x128x128xbf16>
    %22 = vector.shape_cast %21 : vector<1x128x128xbf16> to vector<128x128xbf16>
    %cst_24 = arith.constant dense<0.000000e+00> : vector<8x128xf32>
    %23 = tpu.matmul %20, %22, %cst_24 {dimension_numbers = #tpu.dot_dimension_numbers<[1], [0], [0], [1], [0, 0, 1, 1], [], []>} : vector<8x128xbf16>, vector<128x128xbf16>, vector<8x128xf32> -> vector<8x128xf32>
    %24 = arith.addf %18, %23 : vector<8x128xf32>
    %25 = vector.broadcast %0 : vector<1x128xf32> to vector<8x128xf32>
    %26 = arith.mulf %24, %25 : vector<8x128xf32>
    %27 = vector.broadcast %1 : vector<1x128xf32> to vector<8x128xf32>
    %28 = arith.addf %26, %27 : vector<8x128xf32>
    %c0_25 = arith.constant 0 : index
    %c1_26 = arith.constant 1 : index
    %c0_27 = arith.constant 0 : index
    %29 = vector.load %arg1[%c0_25, %c1_26, %c0_27] : memref<1x24x128xbf16, #tpu.memory_space<vmem>>, vector<1x8x128xbf16>
    %30 = vector.shape_cast %29 : vector<1x8x128xbf16> to vector<8x128xbf16>
    %c4_28 = arith.constant 4 : index
    %c0_29 = arith.constant 0 : index
    %c0_30 = arith.constant 0 : index
    %31 = vector.load %arg2[%c4_28, %c0_29, %c0_30] : memref<16x128x128xbf16, #tpu.memory_space<vmem>>, vector<1x128x128xbf16>
    %32 = vector.shape_cast %31 : vector<1x128x128xbf16> to vector<128x128xbf16>
    %cst_31 = arith.constant dense<0.000000e+00> : vector<8x128xf32>
    %33 = tpu.matmul %30, %32, %cst_31 {dimension_numbers = #tpu.dot_dimension_numbers<[1], [0], [0], [1], [0, 0, 1, 1], [], []>} : vector<8x128xbf16>, vector<128x128xbf16>, vector<8x128xf32> -> vector<8x128xf32>
    %c0_32 = arith.constant 0 : index
    %c2_33 = arith.constant 2 : index
    %c0_34 = arith.constant 0 : index
    %34 = vector.load %arg1[%c0_32, %c2_33, %c0_34] : memref<1x24x128xbf16, #tpu.memory_space<vmem>>, vector<1x8x128xbf16>
    %35 = vector.shape_cast %34 : vector<1x8x128xbf16> to vector<8x128xbf16>
    %c5_35 = arith.constant 5 : index
    %c0_36 = arith.constant 0 : index
    %c0_37 = arith.constant 0 : index
    %36 = vector.load %arg2[%c5_35, %c0_36, %c0_37] : memref<16x128x128xbf16, #tpu.memory_space<vmem>>, vector<1x128x128xbf16>
    %37 = vector.shape_cast %36 : vector<1x128x128xbf16> to vector<128x128xbf16>
    %cst_38 = arith.constant dense<0.000000e+00> : vector<8x128xf32>
    %38 = tpu.matmul %35, %37, %cst_38 {dimension_numbers = #tpu.dot_dimension_numbers<[1], [0], [0], [1], [0, 0, 1, 1], [], []>} : vector<8x128xbf16>, vector<128x128xbf16>, vector<8x128xf32> -> vector<8x128xf32>
    %39 = arith.addf %33, %38 : vector<8x128xf32>
    %c0_39 = arith.constant 0 : index
    %c5_40 = arith.constant 5 : index
    %c0_41 = arith.constant 0 : index
    %40 = vector.load %arg1[%c0_39, %c5_40, %c0_41] : memref<1x24x128xbf16, #tpu.memory_space<vmem>>, vector<1x8x128xbf16>
    %41 = vector.shape_cast %40 : vector<1x8x128xbf16> to vector<8x128xbf16>
    %c6 = arith.constant 6 : index
    %c0_42 = arith.constant 0 : index
    %c0_43 = arith.constant 0 : index
    %42 = vector.load %arg2[%c6, %c0_42, %c0_43] : memref<16x128x128xbf16, #tpu.memory_space<vmem>>, vector<1x128x128xbf16>
    %43 = vector.shape_cast %42 : vector<1x128x128xbf16> to vector<128x128xbf16>
    %cst_44 = arith.constant dense<0.000000e+00> : vector<8x128xf32>
    %44 = tpu.matmul %41, %43, %cst_44 {dimension_numbers = #tpu.dot_dimension_numbers<[1], [0], [0], [1], [0, 0, 1, 1], [], []>} : vector<8x128xbf16>, vector<128x128xbf16>, vector<8x128xf32> -> vector<8x128xf32>
    %45 = arith.addf %39, %44 : vector<8x128xf32>
    %c0_45 = arith.constant 0 : index
    %c6_46 = arith.constant 6 : index
    %c0_47 = arith.constant 0 : index
    %46 = vector.load %arg1[%c0_45, %c6_46, %c0_47] : memref<1x24x128xbf16, #tpu.memory_space<vmem>>, vector<1x8x128xbf16>
    %47 = vector.shape_cast %46 : vector<1x8x128xbf16> to vector<8x128xbf16>
    %c7 = arith.constant 7 : index
    %c0_48 = arith.constant 0 : index
    %c0_49 = arith.constant 0 : index
    %48 = vector.load %arg2[%c7, %c0_48, %c0_49] : memref<16x128x128xbf16, #tpu.memory_space<vmem>>, vector<1x128x128xbf16>
    %49 = vector.shape_cast %48 : vector<1x128x128xbf16> to vector<128x128xbf16>
    %cst_50 = arith.constant dense<0.000000e+00> : vector<8x128xf32>
    %50 = tpu.matmul %47, %49, %cst_50 {dimension_numbers = #tpu.dot_dimension_numbers<[1], [0], [0], [1], [0, 0, 1, 1], [], []>} : vector<8x128xbf16>, vector<128x128xbf16>, vector<8x128xf32> -> vector<8x128xf32>
    %51 = arith.addf %45, %50 : vector<8x128xf32>
    %52 = vector.broadcast %0 : vector<1x128xf32> to vector<8x128xf32>
    %53 = arith.mulf %51, %52 : vector<8x128xf32>
    %54 = vector.broadcast %1 : vector<1x128xf32> to vector<8x128xf32>
    %55 = arith.addf %53, %54 : vector<8x128xf32>
    %56 = arith.maximumf %28, %55 : vector<8x128xf32>
    %c0_51 = arith.constant 0 : index
    %c4_52 = arith.constant 4 : index
    %c0_53 = arith.constant 0 : index
    %57 = vector.load %arg1[%c0_51, %c4_52, %c0_53] : memref<1x24x128xbf16, #tpu.memory_space<vmem>>, vector<1x8x128xbf16>
    %58 = vector.shape_cast %57 : vector<1x8x128xbf16> to vector<8x128xbf16>
    %c8 = arith.constant 8 : index
    %c0_54 = arith.constant 0 : index
    %c0_55 = arith.constant 0 : index
    %59 = vector.load %arg2[%c8, %c0_54, %c0_55] : memref<16x128x128xbf16, #tpu.memory_space<vmem>>, vector<1x128x128xbf16>
    %60 = vector.shape_cast %59 : vector<1x128x128xbf16> to vector<128x128xbf16>
    %cst_56 = arith.constant dense<0.000000e+00> : vector<8x128xf32>
    %61 = tpu.matmul %58, %60, %cst_56 {dimension_numbers = #tpu.dot_dimension_numbers<[1], [0], [0], [1], [0, 0, 1, 1], [], []>} : vector<8x128xbf16>, vector<128x128xbf16>, vector<8x128xf32> -> vector<8x128xf32>
    %c0_57 = arith.constant 0 : index
    %c5_58 = arith.constant 5 : index
    %c0_59 = arith.constant 0 : index
    %62 = vector.load %arg1[%c0_57, %c5_58, %c0_59] : memref<1x24x128xbf16, #tpu.memory_space<vmem>>, vector<1x8x128xbf16>
    %63 = vector.shape_cast %62 : vector<1x8x128xbf16> to vector<8x128xbf16>
    %c9 = arith.constant 9 : index
    %c0_60 = arith.constant 0 : index
    %c0_61 = arith.constant 0 : index
    %64 = vector.load %arg2[%c9, %c0_60, %c0_61] : memref<16x128x128xbf16, #tpu.memory_space<vmem>>, vector<1x128x128xbf16>
    %65 = vector.shape_cast %64 : vector<1x128x128xbf16> to vector<128x128xbf16>
    %cst_62 = arith.constant dense<0.000000e+00> : vector<8x128xf32>
    %66 = tpu.matmul %63, %65, %cst_62 {dimension_numbers = #tpu.dot_dimension_numbers<[1], [0], [0], [1], [0, 0, 1, 1], [], []>} : vector<8x128xbf16>, vector<128x128xbf16>, vector<8x128xf32> -> vector<8x128xf32>
    %67 = arith.addf %61, %66 : vector<8x128xf32>
    %c0_63 = arith.constant 0 : index
    %c8_64 = arith.constant 8 : index
    %c0_65 = arith.constant 0 : index
    %68 = vector.load %arg1[%c0_63, %c8_64, %c0_65] : memref<1x24x128xbf16, #tpu.memory_space<vmem>>, vector<1x8x128xbf16>
    %69 = vector.shape_cast %68 : vector<1x8x128xbf16> to vector<8x128xbf16>
    %c10 = arith.constant 10 : index
    %c0_66 = arith.constant 0 : index
    %c0_67 = arith.constant 0 : index
    %70 = vector.load %arg2[%c10, %c0_66, %c0_67] : memref<16x128x128xbf16, #tpu.memory_space<vmem>>, vector<1x128x128xbf16>
    %71 = vector.shape_cast %70 : vector<1x128x128xbf16> to vector<128x128xbf16>
    %cst_68 = arith.constant dense<0.000000e+00> : vector<8x128xf32>
    %72 = tpu.matmul %69, %71, %cst_68 {dimension_numbers = #tpu.dot_dimension_numbers<[1], [0], [0], [1], [0, 0, 1, 1], [], []>} : vector<8x128xbf16>, vector<128x128xbf16>, vector<8x128xf32> -> vector<8x128xf32>
    %73 = arith.addf %67, %72 : vector<8x128xf32>
    %c0_69 = arith.constant 0 : index
    %c9_70 = arith.constant 9 : index
    %c0_71 = arith.constant 0 : index
    %74 = vector.load %arg1[%c0_69, %c9_70, %c0_71] : memref<1x24x128xbf16, #tpu.memory_space<vmem>>, vector<1x8x128xbf16>
    %75 = vector.shape_cast %74 : vector<1x8x128xbf16> to vector<8x128xbf16>
    %c11 = arith.constant 11 : index
    %c0_72 = arith.constant 0 : index
    %c0_73 = arith.constant 0 : index
    %76 = vector.load %arg2[%c11, %c0_72, %c0_73] : memref<16x128x128xbf16, #tpu.memory_space<vmem>>, vector<1x128x128xbf16>
    %77 = vector.shape_cast %76 : vector<1x128x128xbf16> to vector<128x128xbf16>
    %cst_74 = arith.constant dense<0.000000e+00> : vector<8x128xf32>
    %78 = tpu.matmul %75, %77, %cst_74 {dimension_numbers = #tpu.dot_dimension_numbers<[1], [0], [0], [1], [0, 0, 1, 1], [], []>} : vector<8x128xbf16>, vector<128x128xbf16>, vector<8x128xf32> -> vector<8x128xf32>
    %79 = arith.addf %73, %78 : vector<8x128xf32>
    %80 = vector.broadcast %0 : vector<1x128xf32> to vector<8x128xf32>
    %81 = arith.mulf %79, %80 : vector<8x128xf32>
    %82 = vector.broadcast %1 : vector<1x128xf32> to vector<8x128xf32>
    %83 = arith.addf %81, %82 : vector<8x128xf32>
    %84 = arith.maximumf %56, %83 : vector<8x128xf32>
    %c0_75 = arith.constant 0 : index
    %c5_76 = arith.constant 5 : index
    %c0_77 = arith.constant 0 : index
    %85 = vector.load %arg1[%c0_75, %c5_76, %c0_77] : memref<1x24x128xbf16, #tpu.memory_space<vmem>>, vector<1x8x128xbf16>
    %86 = vector.shape_cast %85 : vector<1x8x128xbf16> to vector<8x128xbf16>
    %c12 = arith.constant 12 : index
    %c0_78 = arith.constant 0 : index
    %c0_79 = arith.constant 0 : index
    %87 = vector.load %arg2[%c12, %c0_78, %c0_79] : memref<16x128x128xbf16, #tpu.memory_space<vmem>>, vector<1x128x128xbf16>
    %88 = vector.shape_cast %87 : vector<1x128x128xbf16> to vector<128x128xbf16>
    %cst_80 = arith.constant dense<0.000000e+00> : vector<8x128xf32>
    %89 = tpu.matmul %86, %88, %cst_80 {dimension_numbers = #tpu.dot_dimension_numbers<[1], [0], [0], [1], [0, 0, 1, 1], [], []>} : vector<8x128xbf16>, vector<128x128xbf16>, vector<8x128xf32> -> vector<8x128xf32>
    %c0_81 = arith.constant 0 : index
    %c6_82 = arith.constant 6 : index
    %c0_83 = arith.constant 0 : index
    %90 = vector.load %arg1[%c0_81, %c6_82, %c0_83] : memref<1x24x128xbf16, #tpu.memory_space<vmem>>, vector<1x8x128xbf16>
    %91 = vector.shape_cast %90 : vector<1x8x128xbf16> to vector<8x128xbf16>
    %c13 = arith.constant 13 : index
    %c0_84 = arith.constant 0 : index
    %c0_85 = arith.constant 0 : index
    %92 = vector.load %arg2[%c13, %c0_84, %c0_85] : memref<16x128x128xbf16, #tpu.memory_space<vmem>>, vector<1x128x128xbf16>
    %93 = vector.shape_cast %92 : vector<1x128x128xbf16> to vector<128x128xbf16>
    %cst_86 = arith.constant dense<0.000000e+00> : vector<8x128xf32>
    %94 = tpu.matmul %91, %93, %cst_86 {dimension_numbers = #tpu.dot_dimension_numbers<[1], [0], [0], [1], [0, 0, 1, 1], [], []>} : vector<8x128xbf16>, vector<128x128xbf16>, vector<8x128xf32> -> vector<8x128xf32>
    %95 = arith.addf %89, %94 : vector<8x128xf32>
    %c0_87 = arith.constant 0 : index
    %c9_88 = arith.constant 9 : index
    %c0_89 = arith.constant 0 : index
    %96 = vector.load %arg1[%c0_87, %c9_88, %c0_89] : memref<1x24x128xbf16, #tpu.memory_space<vmem>>, vector<1x8x128xbf16>
    %97 = vector.shape_cast %96 : vector<1x8x128xbf16> to vector<8x128xbf16>
    %c14 = arith.constant 14 : index
    %c0_90 = arith.constant 0 : index
    %c0_91 = arith.constant 0 : index
    %98 = vector.load %arg2[%c14, %c0_90, %c0_91] : memref<16x128x128xbf16, #tpu.memory_space<vmem>>, vector<1x128x128xbf16>
    %99 = vector.shape_cast %98 : vector<1x128x128xbf16> to vector<128x128xbf16>
    %cst_92 = arith.constant dense<0.000000e+00> : vector<8x128xf32>
    %100 = tpu.matmul %97, %99, %cst_92 {dimension_numbers = #tpu.dot_dimension_numbers<[1], [0], [0], [1], [0, 0, 1, 1], [], []>} : vector<8x128xbf16>, vector<128x128xbf16>, vector<8x128xf32> -> vector<8x128xf32>
    %101 = arith.addf %95, %100 : vector<8x128xf32>
    %c0_93 = arith.constant 0 : index
    %c10_94 = arith.constant 10 : index
    %c0_95 = arith.constant 0 : index
    %102 = vector.load %arg1[%c0_93, %c10_94, %c0_95] : memref<1x24x128xbf16, #tpu.memory_space<vmem>>, vector<1x8x128xbf16>
    %103 = vector.shape_cast %102 : vector<1x8x128xbf16> to vector<8x128xbf16>
    %c15 = arith.constant 15 : index
    %c0_96 = arith.constant 0 : index
    %c0_97 = arith.constant 0 : index
    %104 = vector.load %arg2[%c15, %c0_96, %c0_97] : memref<16x128x128xbf16, #tpu.memory_space<vmem>>, vector<1x128x128xbf16>
    %105 = vector.shape_cast %104 : vector<1x128x128xbf16> to vector<128x128xbf16>
    %cst_98 = arith.constant dense<0.000000e+00> : vector<8x128xf32>
    %106 = tpu.matmul %103, %105, %cst_98 {dimension_numbers = #tpu.dot_dimension_numbers<[1], [0], [0], [1], [0, 0, 1, 1], [], []>} : vector<8x128xbf16>, vector<128x128xbf16>, vector<8x128xf32> -> vector<8x128xf32>
    %107 = arith.addf %101, %106 : vector<8x128xf32>
    %108 = vector.broadcast %0 : vector<1x128xf32> to vector<8x128xf32>
    %109 = arith.mulf %107, %108 : vector<8x128xf32>
    %110 = vector.broadcast %1 : vector<1x128xf32> to vector<8x128xf32>
    %111 = arith.addf %109, %110 : vector<8x128xf32>
    %112 = arith.maximumf %84, %111 : vector<8x128xf32>
    %cst_99 = arith.constant 0.000000e+00 : f32
    %113 = vector.broadcast %cst_99 : f32 to vector<8x128xf32>
    %114 = arith.maximumf %112, %113 : vector<8x128xf32>
    %115 = arith.truncf %114 : vector<8x128xf32> to vector<8x128xbf16>
    %c0_100 = arith.constant 0 : index
    %c0_101 = arith.constant 0 : index
    %c0_102 = arith.constant 0 : index
    %116 = vector.load %arg5[%c0_100, %c0_101, %c0_102] : memref<1x8x128xbf16, #tpu.memory_space<vmem>>, vector<1x8x128xbf16>
    %117 = vector.shape_cast %116 : vector<1x8x128xbf16> to vector<8x128xbf16>
    %118 = vector.shape_cast %115 : vector<8x128xbf16> to vector<1x8x128xbf16>
    tpu.vector_store %arg5[%c0_100, %c0_101, %c0_102], %118 {strides = array<i32>} : memref<1x8x128xbf16, #tpu.memory_space<vmem>>, vector<1x8x128xbf16>,
    return
  }
  func.func @transform_0(%arg0: i32) -> (i32, i32, i32) {
    %c0_i32 = arith.constant 0 : i32
    %c0_i32_0 = arith.constant 0 : i32
    %c0_i32_1 = arith.constant 0 : i32
    return %arg0, %c0_i32, %c0_i32_0 : i32, i32, i32
  }
  func.func @transform_1(%arg0: i32) -> (i32, i32, i32) {
    %c0_i32 = arith.constant 0 : i32
    %c0_i32_0 = arith.constant 0 : i32
    %c0_i32_1 = arith.constant 0 : i32
    %c0_i32_2 = arith.constant 0 : i32
    return %c0_i32, %c0_i32_0, %c0_i32_1 : i32, i32, i32
  }
  func.func @transform_2(%arg0: i32) -> (i32, i32) {
    %c0_i32 = arith.constant 0 : i32
    %c0_i32_0 = arith.constant 0 : i32
    %c0_i32_1 = arith.constant 0 : i32
    return %c0_i32, %c0_i32_0 : i32, i32
  }
  func.func @transform_3(%arg0: i32) -> (i32, i32) {
    %c0_i32 = arith.constant 0 : i32
    %c0_i32_0 = arith.constant 0 : i32
    %c0_i32_1 = arith.constant 0 : i32
    return %c0_i32, %c0_i32_0 : i32, i32
  }
  func.func @transform_4(%arg0: i32) -> (i32, i32, i32) {
    %c0_i32 = arith.constant 0 : i32
    %c0_i32_0 = arith.constant 0 : i32
    %c0_i32_1 = arith.constant 0 : i32
    return %arg0, %c0_i32, %c0_i32_0 : i32, i32, i32
  }
}

module attributes {stable_mosaic.version = 11 : i64} {
  func.func @_conv_bn_relu_pool_kernel(%arg0: i32, %arg1: memref<1x16x128xbf16, #tpu.memory_space<vmem>>, %arg2: memref<16x128x128xbf16, #tpu.memory_space<vmem>>, %arg3: memref<1x128xf32, #tpu.memory_space<vmem>>, %arg4: memref<1x128xf32, #tpu.memory_space<vmem>>, %arg5: memref<1x3x128xf32, #tpu.memory_space<vmem>>) attributes {dimension_semantics = [#tpu.dimension_semantics<parallel>], iteration_bounds = array<i64: 2>, scalar_prefetch = 0 : i64, scratch_operands = 0 : i64, tpu.core_type = #tpu.core_type<tc>, window_params = [{transform_indices = @transform_0, window_bounds = array<i64: 1, 16, 128>}, {pipeline_mode = #tpu.pipeline_mode<synchronous>, transform_indices = @transform_1, window_bounds = array<i64: 16, 128, 128>}, {pipeline_mode = #tpu.pipeline_mode<synchronous>, transform_indices = @transform_2, window_bounds = array<i64: 1, 128>}, {pipeline_mode = #tpu.pipeline_mode<synchronous>, transform_indices = @transform_3, window_bounds = array<i64: 1, 128>}, {transform_indices = @transform_4, window_bounds = array<i64: 1, 3, 128>}]} {
    %c0 = arith.constant 0 : index
    %c0_0 = arith.constant 0 : index
    %0 = vector.load %arg3[%c0, %c0_0] : memref<1x128xf32, #tpu.memory_space<vmem>>, vector<1x128xf32>
    %c0_1 = arith.constant 0 : index
    %c0_2 = arith.constant 0 : index
    %1 = vector.load %arg4[%c0_1, %c0_2] : memref<1x128xf32, #tpu.memory_space<vmem>>, vector<1x128xf32>
    %c0_3 = arith.constant 0 : index
    %c0_4 = arith.constant 0 : index
    %c0_5 = arith.constant 0 : index
    %2 = vector.load %arg1[%c0_3, %c0_4, %c0_5] : memref<1x16x128xbf16, #tpu.memory_space<vmem>>, vector<1x3x128xbf16>
    %3 = vector.shape_cast %2 : vector<1x3x128xbf16> to vector<3x128xbf16>
    %c0_6 = arith.constant 0 : index
    %c0_7 = arith.constant 0 : index
    %c0_8 = arith.constant 0 : index
    %4 = vector.load %arg2[%c0_6, %c0_7, %c0_8] : memref<16x128x128xbf16, #tpu.memory_space<vmem>>, vector<1x128x128xbf16>
    %5 = vector.shape_cast %4 : vector<1x128x128xbf16> to vector<128x128xbf16>
    %cst = arith.constant dense<0.000000e+00> : vector<3x128xf32>
    %6 = tpu.matmul %3, %5, %cst {dimension_numbers = #tpu.dot_dimension_numbers<[1], [0], [0], [1], [0, 0, 1, 1], [], []>} : vector<3x128xbf16>, vector<128x128xbf16>, vector<3x128xf32> -> vector<3x128xf32>
    %c0_9 = arith.constant 0 : index
    %c1 = arith.constant 1 : index
    %c0_10 = arith.constant 0 : index
    %7 = vector.load %arg1[%c0_9, %c1, %c0_10] : memref<1x16x128xbf16, #tpu.memory_space<vmem>>, vector<1x3x128xbf16>
    %8 = vector.shape_cast %7 : vector<1x3x128xbf16> to vector<3x128xbf16>
    %c1_11 = arith.constant 1 : index
    %c0_12 = arith.constant 0 : index
    %c0_13 = arith.constant 0 : index
    %9 = vector.load %arg2[%c1_11, %c0_12, %c0_13] : memref<16x128x128xbf16, #tpu.memory_space<vmem>>, vector<1x128x128xbf16>
    %10 = vector.shape_cast %9 : vector<1x128x128xbf16> to vector<128x128xbf16>
    %cst_14 = arith.constant dense<0.000000e+00> : vector<3x128xf32>
    %11 = tpu.matmul %8, %10, %cst_14 {dimension_numbers = #tpu.dot_dimension_numbers<[1], [0], [0], [1], [0, 0, 1, 1], [], []>} : vector<3x128xbf16>, vector<128x128xbf16>, vector<3x128xf32> -> vector<3x128xf32>
    %12 = arith.addf %6, %11 : vector<3x128xf32>
    %c0_15 = arith.constant 0 : index
    %c3 = arith.constant 3 : index
    %c0_16 = arith.constant 0 : index
    %13 = vector.load %arg1[%c0_15, %c3, %c0_16] : memref<1x16x128xbf16, #tpu.memory_space<vmem>>, vector<1x3x128xbf16>
    %14 = vector.shape_cast %13 : vector<1x3x128xbf16> to vector<3x128xbf16>
    %c2 = arith.constant 2 : index
    %c0_17 = arith.constant 0 : index
    %c0_18 = arith.constant 0 : index
    %15 = vector.load %arg2[%c2, %c0_17, %c0_18] : memref<16x128x128xbf16, #tpu.memory_space<vmem>>, vector<1x128x128xbf16>
    %16 = vector.shape_cast %15 : vector<1x128x128xbf16> to vector<128x128xbf16>
    %cst_19 = arith.constant dense<0.000000e+00> : vector<3x128xf32>
    %17 = tpu.matmul %14, %16, %cst_19 {dimension_numbers = #tpu.dot_dimension_numbers<[1], [0], [0], [1], [0, 0, 1, 1], [], []>} : vector<3x128xbf16>, vector<128x128xbf16>, vector<3x128xf32> -> vector<3x128xf32>
    %18 = arith.addf %12, %17 : vector<3x128xf32>
    %c0_20 = arith.constant 0 : index
    %c4 = arith.constant 4 : index
    %c0_21 = arith.constant 0 : index
    %19 = vector.load %arg1[%c0_20, %c4, %c0_21] : memref<1x16x128xbf16, #tpu.memory_space<vmem>>, vector<1x3x128xbf16>
    %20 = vector.shape_cast %19 : vector<1x3x128xbf16> to vector<3x128xbf16>
    %c3_22 = arith.constant 3 : index
    %c0_23 = arith.constant 0 : index
    %c0_24 = arith.constant 0 : index
    %21 = vector.load %arg2[%c3_22, %c0_23, %c0_24] : memref<16x128x128xbf16, #tpu.memory_space<vmem>>, vector<1x128x128xbf16>
    %22 = vector.shape_cast %21 : vector<1x128x128xbf16> to vector<128x128xbf16>
    %cst_25 = arith.constant dense<0.000000e+00> : vector<3x128xf32>
    %23 = tpu.matmul %20, %22, %cst_25 {dimension_numbers = #tpu.dot_dimension_numbers<[1], [0], [0], [1], [0, 0, 1, 1], [], []>} : vector<3x128xbf16>, vector<128x128xbf16>, vector<3x128xf32> -> vector<3x128xf32>
    %24 = arith.addf %18, %23 : vector<3x128xf32>
    %25 = vector.broadcast %0 : vector<1x128xf32> to vector<3x128xf32>
    %26 = arith.mulf %24, %25 : vector<3x128xf32>
    %27 = vector.broadcast %1 : vector<1x128xf32> to vector<3x128xf32>
    %28 = arith.addf %26, %27 : vector<3x128xf32>
    %c0_26 = arith.constant 0 : index
    %c1_27 = arith.constant 1 : index
    %c0_28 = arith.constant 0 : index
    %29 = vector.load %arg1[%c0_26, %c1_27, %c0_28] : memref<1x16x128xbf16, #tpu.memory_space<vmem>>, vector<1x3x128xbf16>
    %30 = vector.shape_cast %29 : vector<1x3x128xbf16> to vector<3x128xbf16>
    %c4_29 = arith.constant 4 : index
    %c0_30 = arith.constant 0 : index
    %c0_31 = arith.constant 0 : index
    %31 = vector.load %arg2[%c4_29, %c0_30, %c0_31] : memref<16x128x128xbf16, #tpu.memory_space<vmem>>, vector<1x128x128xbf16>
    %32 = vector.shape_cast %31 : vector<1x128x128xbf16> to vector<128x128xbf16>
    %cst_32 = arith.constant dense<0.000000e+00> : vector<3x128xf32>
    %33 = tpu.matmul %30, %32, %cst_32 {dimension_numbers = #tpu.dot_dimension_numbers<[1], [0], [0], [1], [0, 0, 1, 1], [], []>} : vector<3x128xbf16>, vector<128x128xbf16>, vector<3x128xf32> -> vector<3x128xf32>
    %c0_33 = arith.constant 0 : index
    %c2_34 = arith.constant 2 : index
    %c0_35 = arith.constant 0 : index
    %34 = vector.load %arg1[%c0_33, %c2_34, %c0_35] : memref<1x16x128xbf16, #tpu.memory_space<vmem>>, vector<1x3x128xbf16>
    %35 = vector.shape_cast %34 : vector<1x3x128xbf16> to vector<3x128xbf16>
    %c5 = arith.constant 5 : index
    %c0_36 = arith.constant 0 : index
    %c0_37 = arith.constant 0 : index
    %36 = vector.load %arg2[%c5, %c0_36, %c0_37] : memref<16x128x128xbf16, #tpu.memory_space<vmem>>, vector<1x128x128xbf16>
    %37 = vector.shape_cast %36 : vector<1x128x128xbf16> to vector<128x128xbf16>
    %cst_38 = arith.constant dense<0.000000e+00> : vector<3x128xf32>
    %38 = tpu.matmul %35, %37, %cst_38 {dimension_numbers = #tpu.dot_dimension_numbers<[1], [0], [0], [1], [0, 0, 1, 1], [], []>} : vector<3x128xbf16>, vector<128x128xbf16>, vector<3x128xf32> -> vector<3x128xf32>
    %39 = arith.addf %33, %38 : vector<3x128xf32>
    %c0_39 = arith.constant 0 : index
    %c4_40 = arith.constant 4 : index
    %c0_41 = arith.constant 0 : index
    %40 = vector.load %arg1[%c0_39, %c4_40, %c0_41] : memref<1x16x128xbf16, #tpu.memory_space<vmem>>, vector<1x3x128xbf16>
    %41 = vector.shape_cast %40 : vector<1x3x128xbf16> to vector<3x128xbf16>
    %c6 = arith.constant 6 : index
    %c0_42 = arith.constant 0 : index
    %c0_43 = arith.constant 0 : index
    %42 = vector.load %arg2[%c6, %c0_42, %c0_43] : memref<16x128x128xbf16, #tpu.memory_space<vmem>>, vector<1x128x128xbf16>
    %43 = vector.shape_cast %42 : vector<1x128x128xbf16> to vector<128x128xbf16>
    %cst_44 = arith.constant dense<0.000000e+00> : vector<3x128xf32>
    %44 = tpu.matmul %41, %43, %cst_44 {dimension_numbers = #tpu.dot_dimension_numbers<[1], [0], [0], [1], [0, 0, 1, 1], [], []>} : vector<3x128xbf16>, vector<128x128xbf16>, vector<3x128xf32> -> vector<3x128xf32>
    %45 = arith.addf %39, %44 : vector<3x128xf32>
    %c0_45 = arith.constant 0 : index
    %c5_46 = arith.constant 5 : index
    %c0_47 = arith.constant 0 : index
    %46 = vector.load %arg1[%c0_45, %c5_46, %c0_47] : memref<1x16x128xbf16, #tpu.memory_space<vmem>>, vector<1x3x128xbf16>
    %47 = vector.shape_cast %46 : vector<1x3x128xbf16> to vector<3x128xbf16>
    %c7 = arith.constant 7 : index
    %c0_48 = arith.constant 0 : index
    %c0_49 = arith.constant 0 : index
    %48 = vector.load %arg2[%c7, %c0_48, %c0_49] : memref<16x128x128xbf16, #tpu.memory_space<vmem>>, vector<1x128x128xbf16>
    %49 = vector.shape_cast %48 : vector<1x128x128xbf16> to vector<128x128xbf16>
    %cst_50 = arith.constant dense<0.000000e+00> : vector<3x128xf32>
    %50 = tpu.matmul %47, %49, %cst_50 {dimension_numbers = #tpu.dot_dimension_numbers<[1], [0], [0], [1], [0, 0, 1, 1], [], []>} : vector<3x128xbf16>, vector<128x128xbf16>, vector<3x128xf32> -> vector<3x128xf32>
    %51 = arith.addf %45, %50 : vector<3x128xf32>
    %52 = vector.broadcast %0 : vector<1x128xf32> to vector<3x128xf32>
    %53 = arith.mulf %51, %52 : vector<3x128xf32>
    %54 = vector.broadcast %1 : vector<1x128xf32> to vector<3x128xf32>
    %55 = arith.addf %53, %54 : vector<3x128xf32>
    %56 = arith.maximumf %28, %55 : vector<3x128xf32>
    %c0_51 = arith.constant 0 : index
    %c3_52 = arith.constant 3 : index
    %c0_53 = arith.constant 0 : index
    %57 = vector.load %arg1[%c0_51, %c3_52, %c0_53] : memref<1x16x128xbf16, #tpu.memory_space<vmem>>, vector<1x3x128xbf16>
    %58 = vector.shape_cast %57 : vector<1x3x128xbf16> to vector<3x128xbf16>
    %c8 = arith.constant 8 : index
    %c0_54 = arith.constant 0 : index
    %c0_55 = arith.constant 0 : index
    %59 = vector.load %arg2[%c8, %c0_54, %c0_55] : memref<16x128x128xbf16, #tpu.memory_space<vmem>>, vector<1x128x128xbf16>
    %60 = vector.shape_cast %59 : vector<1x128x128xbf16> to vector<128x128xbf16>
    %cst_56 = arith.constant dense<0.000000e+00> : vector<3x128xf32>
    %61 = tpu.matmul %58, %60, %cst_56 {dimension_numbers = #tpu.dot_dimension_numbers<[1], [0], [0], [1], [0, 0, 1, 1], [], []>} : vector<3x128xbf16>, vector<128x128xbf16>, vector<3x128xf32> -> vector<3x128xf32>
    %c0_57 = arith.constant 0 : index
    %c4_58 = arith.constant 4 : index
    %c0_59 = arith.constant 0 : index
    %62 = vector.load %arg1[%c0_57, %c4_58, %c0_59] : memref<1x16x128xbf16, #tpu.memory_space<vmem>>, vector<1x3x128xbf16>
    %63 = vector.shape_cast %62 : vector<1x3x128xbf16> to vector<3x128xbf16>
    %c9 = arith.constant 9 : index
    %c0_60 = arith.constant 0 : index
    %c0_61 = arith.constant 0 : index
    %64 = vector.load %arg2[%c9, %c0_60, %c0_61] : memref<16x128x128xbf16, #tpu.memory_space<vmem>>, vector<1x128x128xbf16>
    %65 = vector.shape_cast %64 : vector<1x128x128xbf16> to vector<128x128xbf16>
    %cst_62 = arith.constant dense<0.000000e+00> : vector<3x128xf32>
    %66 = tpu.matmul %63, %65, %cst_62 {dimension_numbers = #tpu.dot_dimension_numbers<[1], [0], [0], [1], [0, 0, 1, 1], [], []>} : vector<3x128xbf16>, vector<128x128xbf16>, vector<3x128xf32> -> vector<3x128xf32>
    %67 = arith.addf %61, %66 : vector<3x128xf32>
    %c0_63 = arith.constant 0 : index
    %c6_64 = arith.constant 6 : index
    %c0_65 = arith.constant 0 : index
    %68 = vector.load %arg1[%c0_63, %c6_64, %c0_65] : memref<1x16x128xbf16, #tpu.memory_space<vmem>>, vector<1x3x128xbf16>
    %69 = vector.shape_cast %68 : vector<1x3x128xbf16> to vector<3x128xbf16>
    %c10 = arith.constant 10 : index
    %c0_66 = arith.constant 0 : index
    %c0_67 = arith.constant 0 : index
    %70 = vector.load %arg2[%c10, %c0_66, %c0_67] : memref<16x128x128xbf16, #tpu.memory_space<vmem>>, vector<1x128x128xbf16>
    %71 = vector.shape_cast %70 : vector<1x128x128xbf16> to vector<128x128xbf16>
    %cst_68 = arith.constant dense<0.000000e+00> : vector<3x128xf32>
    %72 = tpu.matmul %69, %71, %cst_68 {dimension_numbers = #tpu.dot_dimension_numbers<[1], [0], [0], [1], [0, 0, 1, 1], [], []>} : vector<3x128xbf16>, vector<128x128xbf16>, vector<3x128xf32> -> vector<3x128xf32>
    %73 = arith.addf %67, %72 : vector<3x128xf32>
    %c0_69 = arith.constant 0 : index
    %c7_70 = arith.constant 7 : index
    %c0_71 = arith.constant 0 : index
    %74 = vector.load %arg1[%c0_69, %c7_70, %c0_71] : memref<1x16x128xbf16, #tpu.memory_space<vmem>>, vector<1x3x128xbf16>
    %75 = vector.shape_cast %74 : vector<1x3x128xbf16> to vector<3x128xbf16>
    %c11 = arith.constant 11 : index
    %c0_72 = arith.constant 0 : index
    %c0_73 = arith.constant 0 : index
    %76 = vector.load %arg2[%c11, %c0_72, %c0_73] : memref<16x128x128xbf16, #tpu.memory_space<vmem>>, vector<1x128x128xbf16>
    %77 = vector.shape_cast %76 : vector<1x128x128xbf16> to vector<128x128xbf16>
    %cst_74 = arith.constant dense<0.000000e+00> : vector<3x128xf32>
    %78 = tpu.matmul %75, %77, %cst_74 {dimension_numbers = #tpu.dot_dimension_numbers<[1], [0], [0], [1], [0, 0, 1, 1], [], []>} : vector<3x128xbf16>, vector<128x128xbf16>, vector<3x128xf32> -> vector<3x128xf32>
    %79 = arith.addf %73, %78 : vector<3x128xf32>
    %80 = vector.broadcast %0 : vector<1x128xf32> to vector<3x128xf32>
    %81 = arith.mulf %79, %80 : vector<3x128xf32>
    %82 = vector.broadcast %1 : vector<1x128xf32> to vector<3x128xf32>
    %83 = arith.addf %81, %82 : vector<3x128xf32>
    %84 = arith.maximumf %56, %83 : vector<3x128xf32>
    %c0_75 = arith.constant 0 : index
    %c4_76 = arith.constant 4 : index
    %c0_77 = arith.constant 0 : index
    %85 = vector.load %arg1[%c0_75, %c4_76, %c0_77] : memref<1x16x128xbf16, #tpu.memory_space<vmem>>, vector<1x3x128xbf16>
    %86 = vector.shape_cast %85 : vector<1x3x128xbf16> to vector<3x128xbf16>
    %c12 = arith.constant 12 : index
    %c0_78 = arith.constant 0 : index
    %c0_79 = arith.constant 0 : index
    %87 = vector.load %arg2[%c12, %c0_78, %c0_79] : memref<16x128x128xbf16, #tpu.memory_space<vmem>>, vector<1x128x128xbf16>
    %88 = vector.shape_cast %87 : vector<1x128x128xbf16> to vector<128x128xbf16>
    %cst_80 = arith.constant dense<0.000000e+00> : vector<3x128xf32>
    %89 = tpu.matmul %86, %88, %cst_80 {dimension_numbers = #tpu.dot_dimension_numbers<[1], [0], [0], [1], [0, 0, 1, 1], [], []>} : vector<3x128xbf16>, vector<128x128xbf16>, vector<3x128xf32> -> vector<3x128xf32>
    %c0_81 = arith.constant 0 : index
    %c5_82 = arith.constant 5 : index
    %c0_83 = arith.constant 0 : index
    %90 = vector.load %arg1[%c0_81, %c5_82, %c0_83] : memref<1x16x128xbf16, #tpu.memory_space<vmem>>, vector<1x3x128xbf16>
    %91 = vector.shape_cast %90 : vector<1x3x128xbf16> to vector<3x128xbf16>
    %c13 = arith.constant 13 : index
    %c0_84 = arith.constant 0 : index
    %c0_85 = arith.constant 0 : index
    %92 = vector.load %arg2[%c13, %c0_84, %c0_85] : memref<16x128x128xbf16, #tpu.memory_space<vmem>>, vector<1x128x128xbf16>
    %93 = vector.shape_cast %92 : vector<1x128x128xbf16> to vector<128x128xbf16>
    %cst_86 = arith.constant dense<0.000000e+00> : vector<3x128xf32>
    %94 = tpu.matmul %91, %93, %cst_86 {dimension_numbers = #tpu.dot_dimension_numbers<[1], [0], [0], [1], [0, 0, 1, 1], [], []>} : vector<3x128xbf16>, vector<128x128xbf16>, vector<3x128xf32> -> vector<3x128xf32>
    %95 = arith.addf %89, %94 : vector<3x128xf32>
    %c0_87 = arith.constant 0 : index
    %c7_88 = arith.constant 7 : index
    %c0_89 = arith.constant 0 : index
    %96 = vector.load %arg1[%c0_87, %c7_88, %c0_89] : memref<1x16x128xbf16, #tpu.memory_space<vmem>>, vector<1x3x128xbf16>
    %97 = vector.shape_cast %96 : vector<1x3x128xbf16> to vector<3x128xbf16>
    %c14 = arith.constant 14 : index
    %c0_90 = arith.constant 0 : index
    %c0_91 = arith.constant 0 : index
    %98 = vector.load %arg2[%c14, %c0_90, %c0_91] : memref<16x128x128xbf16, #tpu.memory_space<vmem>>, vector<1x128x128xbf16>
    %99 = vector.shape_cast %98 : vector<1x128x128xbf16> to vector<128x128xbf16>
    %cst_92 = arith.constant dense<0.000000e+00> : vector<3x128xf32>
    %100 = tpu.matmul %97, %99, %cst_92 {dimension_numbers = #tpu.dot_dimension_numbers<[1], [0], [0], [1], [0, 0, 1, 1], [], []>} : vector<3x128xbf16>, vector<128x128xbf16>, vector<3x128xf32> -> vector<3x128xf32>
    %101 = arith.addf %95, %100 : vector<3x128xf32>
    %c0_93 = arith.constant 0 : index
    %c8_94 = arith.constant 8 : index
    %c0_95 = arith.constant 0 : index
    %102 = vector.load %arg1[%c0_93, %c8_94, %c0_95] : memref<1x16x128xbf16, #tpu.memory_space<vmem>>, vector<1x3x128xbf16>
    %103 = vector.shape_cast %102 : vector<1x3x128xbf16> to vector<3x128xbf16>
    %c15 = arith.constant 15 : index
    %c0_96 = arith.constant 0 : index
    %c0_97 = arith.constant 0 : index
    %104 = vector.load %arg2[%c15, %c0_96, %c0_97] : memref<16x128x128xbf16, #tpu.memory_space<vmem>>, vector<1x128x128xbf16>
    %105 = vector.shape_cast %104 : vector<1x128x128xbf16> to vector<128x128xbf16>
    %cst_98 = arith.constant dense<0.000000e+00> : vector<3x128xf32>
    %106 = tpu.matmul %103, %105, %cst_98 {dimension_numbers = #tpu.dot_dimension_numbers<[1], [0], [0], [1], [0, 0, 1, 1], [], []>} : vector<3x128xbf16>, vector<128x128xbf16>, vector<3x128xf32> -> vector<3x128xf32>
    %107 = arith.addf %101, %106 : vector<3x128xf32>
    %108 = vector.broadcast %0 : vector<1x128xf32> to vector<3x128xf32>
    %109 = arith.mulf %107, %108 : vector<3x128xf32>
    %110 = vector.broadcast %1 : vector<1x128xf32> to vector<3x128xf32>
    %111 = arith.addf %109, %110 : vector<3x128xf32>
    %112 = arith.maximumf %84, %111 : vector<3x128xf32>
    %cst_99 = arith.constant 0.000000e+00 : f32
    %113 = vector.broadcast %cst_99 : f32 to vector<3x128xf32>
    %114 = arith.maximumf %112, %113 : vector<3x128xf32>
    %c0_100 = arith.constant 0 : index
    %c0_101 = arith.constant 0 : index
    %c0_102 = arith.constant 0 : index
    %115 = vector.load %arg5[%c0_100, %c0_101, %c0_102] : memref<1x3x128xf32, #tpu.memory_space<vmem>>, vector<1x3x128xf32>
    %116 = vector.shape_cast %115 : vector<1x3x128xf32> to vector<3x128xf32>
    %117 = vector.shape_cast %114 : vector<3x128xf32> to vector<1x3x128xf32>
    tpu.vector_store %arg5[%c0_100, %c0_101, %c0_102], %117 {strides = array<i32>} : memref<1x3x128xf32, #tpu.memory_space<vmem>>, vector<1x3x128xf32>,
    return
  }
  func.func @transform_0(%arg0: i32) -> (i32, i32, i32) {
    %c0_i32 = arith.constant 0 : i32
    %c0_i32_0 = arith.constant 0 : i32
    %c0_i32_1 = arith.constant 0 : i32
    return %arg0, %c0_i32, %c0_i32_0 : i32, i32, i32
  }
  func.func @transform_1(%arg0: i32) -> (i32, i32, i32) {
    %c0_i32 = arith.constant 0 : i32
    %c0_i32_0 = arith.constant 0 : i32
    %c0_i32_1 = arith.constant 0 : i32
    %c0_i32_2 = arith.constant 0 : i32
    return %c0_i32, %c0_i32_0, %c0_i32_1 : i32, i32, i32
  }
  func.func @transform_2(%arg0: i32) -> (i32, i32) {
    %c0_i32 = arith.constant 0 : i32
    %c0_i32_0 = arith.constant 0 : i32
    %c0_i32_1 = arith.constant 0 : i32
    return %c0_i32, %c0_i32_0 : i32, i32
  }
  func.func @transform_3(%arg0: i32) -> (i32, i32) {
    %c0_i32 = arith.constant 0 : i32
    %c0_i32_0 = arith.constant 0 : i32
    %c0_i32_1 = arith.constant 0 : i32
    return %c0_i32, %c0_i32_0 : i32, i32
  }
  func.func @transform_4(%arg0: i32) -> (i32, i32, i32) {
    %c0_i32 = arith.constant 0 : i32
    %c0_i32_0 = arith.constant 0 : i32
    %c0_i32_1 = arith.constant 0 : i32
    return %arg0, %c0_i32, %c0_i32_0 : i32, i32, i32
  }
}

</mosaic_0001>

<llo_original>
// kernel: _forward_impl.4
$region0: #{_forward_impl.4}
  #allocation0 [shape = 'u32[]', space=smem, size = 0x4, offset = 0x4, fixed_abs, tag = 'smem constant byte address 0x4 - core index']
  #allocation1 [shape = 'u32[144,128]{1,0:T(1,128)}', space=vmem, size = 0x12000, scoped, tag = 'internal scratch']
  %s0 = inlined_call_operand.vmem [shape: bf16[2,104,12], index: 0, kind: input, shape index: {}]
  %s1 = inlined_call_operand.vmem [shape: bf16[16,12,128], index: 1, kind: input, shape index: {}]
  %s2 = inlined_call_operand.vmem [shape: f32[1,128], index: 2, kind: input, shape index: {}]
  %s3 = inlined_call_operand.vmem [shape: f32[1,128], index: 3, kind: input, shape index: {}]
  %s4 = inlined_call_operand.vmem [shape: bf16[2,80,128], index: 4, kind: output, shape index: {}]
  %s5 = sld [smem:[#allocation0]]
  $region49: #{_forward_impl.4} parent=0
    _
  %s7 = ssub.s32 1, %s5
  %s8 = scalar_select 0, %s7, %s5
  loop: start=0, step=1, limit=4
  $region2: #{_forward_impl.4} parent=0 // loop_pre_header
    _
  $region3: #{_forward_impl.4} parent=0 // loop_header
    %s10 = sphi 0, %s14
    %p11 = scmp.ge.s32.totalorder %s10, 4
    %s20 = sphi 0, %s22
    %s23 = sphi 0, %s20
    %s24 = sphi 0, %s23
    %s40 = sphi 0, %s24
    %s44 = sphi 0, %s44
    %s46 = sphi 0, %s44
    %s47 = sphi 0, %s46
    %s61 = sphi 0, %s47
    %s65 = sphi 0, %s65
    %s67 = sphi 0, %s65
    %s68 = sphi 0, %s67
    %s82 = sphi 0, %s68
    %s86 = sphi 0, %s86
    %s88 = sphi 0, %s86
    %s89 = sphi 0, %s88
    %s103 = sphi 0, %s89
    %s109 = sphi 0, %s111
    %s112 = sphi 0, %s109
    %s113 = sphi 0, %s112
    %s129 = sphi 0, %s113
  $region4: #{_forward_impl.4} parent=0 // loop_header_branch
    %13 = sbr.rel (%p11) target = $region8
  $region5: #{_forward_impl.4} parent=0 // loop_body
    %s15 = ssub.s32 %s10, 1
    %s16 = ssub.s32 %s10, 2
    %s17 = sadd.s32 %s10, 1
    %s18 = ssub.s32 %s10, %s17
    %p19 = scmp.eq.s32.totalorder %s18, 0
    %s21 = sadd.s32 %s20, 1
    %s22 = scalar_select %p19, %s20, %s21
    %p25 = pneg %p19
    %p26 = scmp.eq.s32.totalorder %s10, 1
    %p27 = por %p25, %p26
    %p28 = scmp.ne.s32.totalorder %s20, %s23
    %p29 = scmp.eq.s32.totalorder %s10, 0
    %p30 = por %p28, %p29
    %p31 = scmp.ne.s32.totalorder %s20, %s23
    %p32 = scmp.eq.s32.totalorder %s15, 1
    %p33 = por %p31, %p32
    %p34 = scmp.ne.s32.totalorder %s23, %s24
    %p35 = scmp.eq.s32.totalorder %s15, 0
    %p36 = por %p34, %p35
    %p37 = scmp.ne.s32.totalorder %s23, %s24
    %p38 = scmp.eq.s32.totalorder %s16, 1
    %p39 = por %p37, %p38
    %p41 = scmp.ne.s32.totalorder %s24, %s40
    %p42 = scmp.eq.s32.totalorder %s16, 0
    %p43 = por %p41, %p42
    %s45 = sadd.s32 %s44, 1
    %p48 = scmp.eq.s32.totalorder %s10, 1
    %p49 = scmp.ne.s32.totalorder %s44, %s46
    %p50 = scmp.eq.s32.totalorder %s10, 0
    %p51 = por %p49, %p50
    %p52 = scmp.ne.s32.totalorder %s44, %s46
    %p53 = scmp.eq.s32.totalorder %s15, 1
    %p54 = por %p52, %p53
    %p55 = scmp.ne.s32.totalorder %s46, %s47
    %p56 = scmp.eq.s32.totalorder %s15, 0
    %p57 = por %p55, %p56
    %p58 = scmp.ne.s32.totalorder %s46, %s47
    %p59 = scmp.eq.s32.totalorder %s16, 1
    %p60 = por %p58, %p59
    %p62 = scmp.ne.s32.totalorder %s47, %s61
    %p63 = scmp.eq.s32.totalorder %s16, 0
    %p64 = por %p62, %p63
    %s66 = sadd.s32 %s65, 1
    %p69 = scmp.eq.s32.totalorder %s10, 1
    %p70 = scmp.ne.s32.totalorder %s65, %s67
    %p71 = scmp.eq.s32.totalorder %s10, 0
    %p72 = por %p70, %p71
    %p73 = scmp.ne.s32.totalorder %s65, %s67
    %p74 = scmp.eq.s32.totalorder %s15, 1
    %p75 = por %p73, %p74
    %p76 = scmp.ne.s32.totalorder %s67, %s68
    %p77 = scmp.eq.s32.totalorder %s15, 0
    %p78 = por %p76, %p77
    %p79 = scmp.ne.s32.totalorder %s67, %s68
    %p80 = scmp.eq.s32.totalorder %s16, 1
    %p81 = por %p79, %p80
    %p83 = scmp.ne.s32.totalorder %s68, %s82
    %p84 = scmp.eq.s32.totalorder %s16, 0
    %p85 = por %p83, %p84
    %s87 = sadd.s32 %s86, 1
    %p90 = scmp.eq.s32.totalorder %s10, 1
    %p91 = scmp.ne.s32.totalorder %s86, %s88
    %p92 = scmp.eq.s32.totalorder %s10, 0
    %p93 = por %p91, %p92
    %p94 = scmp.ne.s32.totalorder %s86, %s88
    %p95 = scmp.eq.s32.totalorder %s15, 1
    %p96 = por %p94, %p95
    %p97 = scmp.ne.s32.totalorder %s88, %s89
    %p98 = scmp.eq.s32.totalorder %s15, 0
    %p99 = por %p97, %p98
    %p100 = scmp.ne.s32.totalorder %s88, %s89
    %p101 = scmp.eq.s32.totalorder %s16, 1
    %p102 = por %p100, %p101
    %p104 = scmp.ne.s32.totalorder %s89, %s103
    %p105 = scmp.eq.s32.totalorder %s16, 0
    %p106 = por %p104, %p105
    %s107 = ssub.s32 %s10, %s17
    %p108 = scmp.eq.s32.totalorder %s107, 0
    %s110 = sadd.s32 %s109, 1
    %s111 = scalar_select %p108, %s109, %s110
    %p114 = pneg %p108
    %p115 = scmp.eq.s32.totalorder %s10, 1
    %p116 = por %p114, %p115
    %p117 = scmp.ne.s32.totalorder %s109, %s112
    %p118 = scmp.eq.s32.totalorder %s10, 0
    %p119 = por %p117, %p118
    %p120 = scmp.ne.s32.totalorder %s109, %s112
    %p121 = scmp.eq.s32.totalorder %s15, 1
    %p122 = por %p120, %p121
    %p123 = scmp.ne.s32.totalorder %s112, %s113
    %p124 = scmp.eq.s32.totalorder %s15, 0
    %p125 = por %p123, %p124
    %p126 = scmp.ne.s32.totalorder %s112, %s113
    %p127 = scmp.eq.s32.totalorder %s16, 1
    %p128 = por %p126, %p127
    %p130 = scmp.ne.s32.totalorder %s113, %s129
    %p131 = scmp.eq.s32.totalorder %s16, 0
    %p132 = por %p130, %p131
    %p133 = scmp.le.s32.totalorder 1, %s10
    %p134 = scmp.lt.s32.totalorder %s10, 3
    %p135 = pnand %p133, %p134
    %p136 = pneg %p135
    // Predicated region
    $region9: #{_forward_impl.4} parent=5 // pred_check
      _
    $region10: #{_forward_impl.4} parent=5 // pred_check_branch
      %138 = sbr.rel (%p135) target = $region12
    $region11: #{_forward_impl.4} parent=5 // pred_region
      %s139 = ssub.s32 %s10, 1
      // Predicated region
      $region13: #{_forward_impl.4} parent=11 // pred_check
        %p140 = pneg %p57
      $region14: #{_forward_impl.4} parent=11 // pred_check_branch
        %142 = sbr.rel (%p140) target = $region16
      $region15: #{_forward_impl.4} parent=11 // pred_region
        _
      $region16: #{_forward_impl.4} parent=11 // pred_fallthru
        _
      // Predicated region
      $region17: #{_forward_impl.4} parent=11 // pred_check
        %p143 = pneg %p78
      $region18: #{_forward_impl.4} parent=11 // pred_check_branch
        %145 = sbr.rel (%p143) target = $region20
      $region19: #{_forward_impl.4} parent=11 // pred_region
        _
      $region20: #{_forward_impl.4} parent=11 // pred_fallthru
        _
      // Predicated region
      $region21: #{_forward_impl.4} parent=11 // pred_check
        %p146 = pneg %p99
      $region22: #{_forward_impl.4} parent=11 // pred_check_branch
        %148 = sbr.rel (%p146) target = $region24
      $region23: #{_forward_impl.4} parent=11 // pred_region
        _
      $region24: #{_forward_impl.4} parent=11 // pred_fallthru
        _
    $region12: #{_forward_impl.4} parent=5 // pred_fallthru
      _
    %p149 = scmp.lt.s32.totalorder %s10, 2
    // Predicated region
    $region25: #{_forward_impl.4} parent=5 // pred_check
      %p150 = pneg %p149
    $region26: #{_forward_impl.4} parent=5 // pred_check_branch
      %152 = sbr.rel (%p150) target = $region28
    $region27: #{_forward_impl.4} parent=5 // pred_region
      // Predicated region
      $region29: #{_forward_impl.4} parent=27 // pred_check
        %p153 = pneg %p30
      $region30: #{_forward_impl.4} parent=27 // pred_check_branch
        %155 = sbr.rel (%p153) target = $region32
      $region31: #{_forward_impl.4} parent=27 // pred_region
        %p156 = scmp.lt.s32.totalorder %s10, 1
        %s157 = scalar_select %p156, %s10, 1
        %s158 = smul.addr %s157, 13
        %s159 = smul.addr %s158, 4
        %s160 = scalar_lea.vmem %s0, %s159
      $region32: #{_forward_impl.4} parent=27 // pred_fallthru
        _
    $region28: #{_forward_impl.4} parent=5 // pred_fallthru
      _
    %p161 = scmp.le.s32.totalorder 1, %s10
    %p162 = scmp.lt.s32.totalorder %s10, 3
    %p163 = pnand %p161, %p162
    %p164 = pneg %p163
    // Predicated region
    $region33: #{_forward_impl.4} parent=5 // pred_check
      _
    $region34: #{_forward_impl.4} parent=5 // pred_check_branch
      %166 = sbr.rel (%p163) target = $region36
    $region35: #{_forward_impl.4} parent=5 // pred_region
      %s167 = ssub.s32 %s10, 1
      %p168 = scmp.lt.s32.totalorder %s15, 1
      %s169 = scalar_select %p168, %s15, 1
      %s170 = smul.addr %s169, 13
      %s171 = smul.addr %s170, 4
      %s172 = scalar_lea.vmem %s0, %s171
      %p173 = pneg %p36
      %p174 = pneg %p33
      %p175 = pneg %p57
      %p176 = pneg %p54
      %p177 = pneg %p78
      %p178 = pneg %p75
      %p179 = pneg %p99
      %p180 = pneg %p96
      %p181 = pneg %p125
      %p182 = pneg %p122
      %p183 = scmp.lt.s32.totalorder %s15, 1
      %s184 = scalar_select %p183, %s15, 1
      %s185 = smul.addr %s184, 10
      %s186 = smul.addr %s185, 4
      %s187 = scalar_lea.vmem %s4, %s186
      %p188 = scmp.lt.s32.totalorder %s15, 1
      %s189 = scalar_select %p188, %s15, 1
      %s190 = smul.addr %s189, 13
      %s191 = smul.addr %s190, 4
      %s192 = scalar_lea.vmem %s0, %s191
      %p193 = scmp.lt.s32.totalorder %s15, 1
      %s194 = scalar_select %p193, %s15, 1
      %s195 = smul.addr %s194, 10
      %s196 = smul.addr %s195, 4
      %s197 = scalar_lea.vmem %s4, %s196
      %v199 = vld [vmem:[%s2] sm:$0x1]
      %v200 = vld [vmem:[%s3] sm:$0x1]
      %v201 = vld [vmem:[%s192] sm:$0xf]
      %v202 = vld [vmem:[%s192 + $0x4] sm:$0xf]
      %v203 = vld [vmem:[%s192 + $0x8] sm:$0xf]
      %v204 = vld [vmem:[%s192 + $0xc] sm:$0xf]
      %v205 = vld [vmem:[%s192 + $0x10] sm:$0xf]
      %v206 = vld [vmem:[%s192 + $0x14] sm:$0xf]
      %v207 = vld [vmem:[%s192 + $0x18] sm:$0xf]
      %v208 = vld [vmem:[%s192 + $0x1c] sm:$0xf]
      %v209 = vld [vmem:[%s192 + $0x20] sm:$0xf]
      %v210 = vld [vmem:[%s192 + $0x24] sm:$0xf]
      %v211 = vld [vmem:[%s1] sm:$0xf]
      %v212 = vld [vmem:[%s1 + $0x4] sm:$0x3]
      %v213 = vld [vmem:[%s192 + $0x28] sm:$0x1]
      %s214 = scalar_lea.vmem %s1, 8
      %v215 = vld [vmem:[%s214] sm:$0xf]
      %v216 = vld [vmem:[%s214 + $0x4] sm:$0x3]
      %v228 = vunpack.c.l.b16 %v201
      %v229 = vunpack.c.l.b16 %v202
      %v230 = vunpack.c.l.b16 %v203
      %v231 = vunpack.c.l.b16 %v204
      %v232 = vunpack.c.l.b16 %v205
      %v233 = vunpack.c.l.b16 %v206
      %v234 = vunpack.c.l.b16 %v207
      %v235 = vunpack.c.l.b16 %v208
      %v236 = vunpack.c.l.b16 %v209
      %v237 = vunpack.c.l.b16 %v210
      %v238 = vunpack.c.l.b16 %v213
      %v239 = vpack.c.b16 %v229, %v228
      %v240 = vpack.c.b16 %v231, %v230
      %v241 = vpack.c.b16 %v233, %v232
      %v242 = vpack.c.b16 %v235, %v234
      %v243 = vpack.c.b16 %v237, %v236
      %v244 = vpack.c.b16 %v238, %v238
      %vm245 = vsmask.f32 7424
      %v247 = vshrl.u32 %v239, 16
      %v249 = vshll.u32 %v239, 16
      %v251 = vrot.slane %v249, 1
      %v252 = vor.u32 %v247, %v251
      %v254 = vshll.u32 %v240, 16
      %v256 = vrot.slane %v254, 1
      %v257 = vsel %vm245, %v252, %v256
      %v258 = vshrl.u32 %v240, 16
      %v260 = vor.u32 %v258, %v256
      %v262 = vshll.u32 %v241, 16
      %v264 = vrot.slane %v262, 1
      %v265 = vsel %vm245, %v260, %v264
      %v266 = vshrl.u32 %v241, 16
      %v268 = vor.u32 %v266, %v264
      %v270 = vshll.u32 %v242, 16
      %v272 = vrot.slane %v270, 1
      %v273 = vsel %vm245, %v268, %v272
      %v274 = vshrl.u32 %v242, 16
      %v276 = vor.u32 %v274, %v272
      %v278 = vshll.u32 %v243, 16
      %v280 = vrot.slane %v278, 1
      %v281 = vsel %vm245, %v276, %v280
      %v282 = vshrl.u32 %v243, 16
      %v284 = vor.u32 %v282, %v280
      %v286 = vshll.u32 %v244, 16
      %v288 = vrot.slane %v286, 1
      %v289 = vsel %vm245, %v284, %v288
      %v292 = vunpack.c.l.b16 %v215
      %v293 = vunpack.c.l.b16 %v216
      %v294 = vpack.c.b16 %v293, %v292
      %vm295 = vcmask 97280
      %v297 = vsel %vm295, %v257, 0
      %v300 = vsel %vm295, %v265, 0
      %v303 = vsel %vm295, %v273, 0
      %v306 = vsel %vm295, %v281, 0
      %v309 = vsel %vm295, %v289, 0
      %vm311 = vcmask 1045504
      %v313 = vsel %vm311, %v294, 0
      %315 = vmatprep.subr.bf16.mxu0 0
      %316 = vmatpush1.bf16.msra.mxu0 0
      %317 = vmatprep.subr.bf16.mxu0 0
      %318 = vmatpush1.bf16.msra.mxu0 0
      %319 = vmatprep.subr.bf16.mxu0 0
      %320 = vmatpush1.bf16.msra.mxu0 0
      %321 = vmatprep.subr.bf16.mxu0 0
      %322 = vmatpush1.bf16.msra.mxu0 0
      %323 = vmatprep.subr.bf16.mxu0 0
      %324 = vmatpush1.bf16.msra.mxu0 0
      %325 = vmatprep.subr.bf16.mxu0 0
      %326 = vmatpush1.bf16.msra.mxu0 0
      %327 = vmatprep.subr.bf16.mxu0 0
      %328 = vmatpush1.bf16.msra.mxu0 0
      %329 = vmatprep.subr.bf16.mxu0 0
      %330 = vmatpush1.bf16.msra.mxu0 %v313
      %331 = vmatprep.subr.bf16.mxu0 0
      %332 = vmatpush2.bf16.msra.mxu0 0
      %333 = vmatprep.subr.bf16.mxu0 0
      %334 = vmatpush2.bf16.msra.mxu0 0
      %335 = vmatprep.subr.bf16.mxu0 0
      %336 = vmatpush2.bf16.msra.mxu0 0
      %337 = vmatprep.subr.bf16.mxu0 0
      %338 = vmatpush2.bf16.msra.mxu0 0
      %339 = vmatprep.subr.bf16.mxu0 0
      %340 = vmatpush2.bf16.msra.mxu0 0
      %341 = vmatprep.subr.bf16.mxu0 0
      %342 = vmatpush2.bf16.msra.mxu0 0
      %343 = vmatprep.subr.bf16.mxu0 0
      %344 = vmatpush2.bf16.msra.mxu0 0
      %345 = vmatprep.subr.bf16.mxu0 0
      %346 = vmatpush2.bf16.msra.mxu0 0
      %347 = vmatprep.mubr.bf16.mxu0 0
      %348 = vmatmul.mubr.bf16.gmra.mxu0 %v297
      %v349 = vpop.f32.mrf.mxu0
      %v350 = vadd.f32 0.0, %v349
      %v351 = vpop.f32.mrf.mxu0
      %v352 = vpop.f32.mrf.mxu0
      %v353 = vadd.f32 0.0, %v352
      %v354 = vpop.f32.mrf.mxu0
      %355 = vmatprep.mubr.bf16.mxu0 0
      %356 = vmatmul.mubr.bf16.gmra.mxu0 %v300
      %v357 = vpop.f32.mrf.mxu0
      %v358 = vadd.f32 0.0, %v357
      %v359 = vpop.f32.mrf.mxu0
      %v360 = vpop.f32.mrf.mxu0
      %v361 = vadd.f32 0.0, %v360
      %v362 = vpop.f32.mrf.mxu0
      %363 = vmatprep.mubr.bf16.mxu0 0
      %364 = vmatmul.mubr.bf16.gmra.mxu0 %v303
      %v365 = vpop.f32.mrf.mxu0
      %v366 = vadd.f32 0.0, %v365
      %v367 = vpop.f32.mrf.mxu0
      %v368 = vpop.f32.mrf.mxu0
      %v369 = vadd.f32 0.0, %v368
      %v370 = vpop.f32.mrf.mxu0
      %371 = vmatprep.mubr.bf16.mxu0 0
      %372 = vmatmul.mubr.bf16.gmra.mxu0 %v306
      %v373 = vpop.f32.mrf.mxu0
      %v374 = vadd.f32 0.0, %v373
      %v375 = vpop.f32.mrf.mxu0
      %v376 = vpop.f32.mrf.mxu0
      %v377 = vadd.f32 0.0, %v376
      %v378 = vpop.f32.mrf.mxu0
      %379 = vmatprep.mubr.bf16.mxu0 0
      %380 = vmatmul.mubr.bf16.gmra.mxu0 %v309
      %v381 = vpop.f32.mrf.mxu0
      %v382 = vadd.f32 0.0, %v381
      %v383 = vpop.f32.mrf.mxu0
      %v384 = vpop.f32.mrf.mxu0
      %v385 = vadd.f32 0.0, %v384
      %v386 = vpop.f32.mrf.mxu0
      %387 = vdwg.mxu0
      %v390 = vunpack.c.l.b16 %v211
      %v391 = vunpack.c.l.b16 %v212
      %v392 = vpack.c.b16 %v391, %v390
      %v393 = vsel %vm295, %v239, 0
      %v395 = vsel %vm295, %v240, 0
      %v397 = vsel %vm295, %v241, 0
      %v399 = vsel %vm295, %v242, 0
      %v401 = vsel %vm295, %v243, 0
      %v404 = vsel %vm311, %v392, 0
      %406 = vmatprep.subr.bf16.mxu0 0
      %407 = vmatpush1.bf16.msra.mxu0 0
      %408 = vmatprep.subr.bf16.mxu0 0
      %409 = vmatpush1.bf16.msra.mxu0 0
      %410 = vmatprep.subr.bf16.mxu0 0
      %411 = vmatpush1.bf16.msra.mxu0 0
      %412 = vmatprep.subr.bf16.mxu0 0
      %413 = vmatpush1.bf16.msra.mxu0 0
      %414 = vmatprep.subr.bf16.mxu0 0
      %415 = vmatpush1.bf16.msra.mxu0 0
      %416 = vmatprep.subr.bf16.mxu0 0
      %417 = vmatpush1.bf16.msra.mxu0 0
      %418 = vmatprep.subr.bf16.mxu0 0
      %419 = vmatpush1.bf16.msra.mxu0 0
      %420 = vmatprep.subr.bf16.mxu0 0
      %421 = vmatpush1.bf16.msra.mxu0 %v404
      %422 = vmatprep.subr.bf16.mxu0 0
      %423 = vmatpush2.bf16.msra.mxu0 0
      %424 = vmatprep.subr.bf16.mxu0 0
      %425 = vmatpush2.bf16.msra.mxu0 0
      %426 = vmatprep.subr.bf16.mxu0 0
      %427 = vmatpush2.bf16.msra.mxu0 0
      %428 = vmatprep.subr.bf16.mxu0 0
      %429 = vmatpush2.bf16.msra.mxu0 0
      %430 = vmatprep.subr.bf16.mxu0 0
      %431 = vmatpush2.bf16.msra.mxu0 0
      %432 = vmatprep.subr.bf16.mxu0 0
      %433 = vmatpush2.bf16.msra.mxu0 0
      %434 = vmatprep.subr.bf16.mxu0 0
      %435 = vmatpush2.bf16.msra.mxu0 0
      %436 = vmatprep.subr.bf16.mxu0 0
      %437 = vmatpush2.bf16.msra.mxu0 0
      %438 = vmatprep.mubr.bf16.mxu0 0
      %439 = vmatmul.mubr.bf16.gmra.mxu0 %v393
      %v440 = vpop.f32.mrf.mxu0
      %v441 = vadd.f32 %v350, %v440
      %v442 = vpop.f32.mrf.mxu0
      %v443 = vpop.f32.mrf.mxu0
      %v444 = vadd.f32 %v353, %v443
      %v445 = vpop.f32.mrf.mxu0
      %446 = vmatprep.mubr.bf16.mxu0 0
      %447 = vmatmul.mubr.bf16.gmra.mxu0 %v395
      %v448 = vpop.f32.mrf.mxu0
      %v449 = vadd.f32 %v358, %v448
      %v450 = vpop.f32.mrf.mxu0
      %v451 = vpop.f32.mrf.mxu0
      %v452 = vadd.f32 %v361, %v451
      %v453 = vpop.f32.mrf.mxu0
      %454 = vmatprep.mubr.bf16.mxu0 0
      %455 = vmatmul.mubr.bf16.gmra.mxu0 %v397
      %v456 = vpop.f32.mrf.mxu0
      %v457 = vadd.f32 %v366, %v456
      %v458 = vpop.f32.mrf.mxu0
      %v459 = vpop.f32.mrf.mxu0
      %v460 = vadd.f32 %v369, %v459
      %v461 = vpop.f32.mrf.mxu0
      %462 = vmatprep.mubr.bf16.mxu0 0
      %463 = vmatmul.mubr.bf16.gmra.mxu0 %v399
      %v464 = vpop.f32.mrf.mxu0
      %v465 = vadd.f32 %v374, %v464
      %v466 = vpop.f32.mrf.mxu0
      %v467 = vpop.f32.mrf.mxu0
      %v468 = vadd.f32 %v377, %v467
      %v469 = vpop.f32.mrf.mxu0
      %470 = vmatprep.mubr.bf16.mxu0 0
      %471 = vmatmul.mubr.bf16.gmra.mxu0 %v401
      %v472 = vpop.f32.mrf.mxu0
      %v473 = vadd.f32 %v382, %v472
      %v474 = vpop.f32.mrf.mxu0
      %v475 = vpop.f32.mrf.mxu0
      %v476 = vadd.f32 %v385, %v475
      %v477 = vpop.f32.mrf.mxu0
      %478 = vdwg.mxu0
      %v479 = vld [vmem:[%s192 + $0x4] sm:$0xe]
      %v480 = vld [vmem:[%s192 + $0x8] sm:$0xf]
      %v481 = vld [vmem:[%s192 + $0xc] sm:$0xf]
      %v482 = vld [vmem:[%s192 + $0x10] sm:$0xf]
      %v483 = vld [vmem:[%s192 + $0x14] sm:$0xf]
      %v484 = vld [vmem:[%s192 + $0x18] sm:$0xf]
      %v485 = vld [vmem:[%s192 + $0x1c] sm:$0xf]
      %v486 = vld [vmem:[%s192 + $0x20] sm:$0xf]
      %v487 = vld [vmem:[%s192 + $0x24] sm:$0xf]
      %v488 = vld [vmem:[%s192 + $0x28] sm:$0xf]
      %v489 = vld [vmem:[%s192 + $0x2c] sm:$0x1]
      %s490 = scalar_lea.vmem %s1, 16
      %v491 = vld [vmem:[%s490] sm:$0xf]
      %v492 = vld [vmem:[%s490 + $0x4] sm:$0x3]
      %v504 = vunpack.c.l.b16 %v479
      %v505 = vunpack.c.l.b16 %v480
      %v506 = vunpack.c.l.b16 %v481
      %v507 = vunpack.c.l.b16 %v482
      %v508 = vunpack.c.l.b16 %v483
      %v509 = vunpack.c.l.b16 %v484
      %v510 = vunpack.c.l.b16 %v485
      %v511 = vunpack.c.l.b16 %v486
      %v512 = vunpack.c.l.b16 %v487
      %v513 = vunpack.c.l.b16 %v488
      %v514 = vunpack.c.l.b16 %v489
      %v515 = vpack.c.b16 %v505, %v504
      %v516 = vpack.c.b16 %v507, %v506
      %v517 = vpack.c.b16 %v509, %v508
      %v518 = vpack.c.b16 %v511, %v510
      %v519 = vpack.c.b16 %v513, %v512
      %v520 = vpack.c.b16 %v514, %v514
      %vm521 = vcmask 1046528
      %v522 = vrot.slane %v515, 1
      %v523 = vrot.slane %v516, 1
      %v524 = vsel %vm521, %v522, %v523
      %v525 = vrot.slane %v517, 1
      %v526 = vsel %vm521, %v523, %v525
      %v527 = vrot.slane %v518, 1
      %v528 = vsel %vm521, %v525, %v527
      %v529 = vrot.slane %v519, 1
      %v530 = vsel %vm521, %v527, %v529
      %v531 = vrot.slane %v520, 1
      %v532 = vsel %vm521, %v529, %v531
      %v535 = vunpack.c.l.b16 %v491
      %v536 = vunpack.c.l.b16 %v492
      %v537 = vpack.c.b16 %v536, %v535
      %v539 = vsel %vm295, %v524, 0
      %v542 = vsel %vm295, %v526, 0
      %v545 = vsel %vm295, %v528, 0
      %v548 = vsel %vm295, %v530, 0
      %v551 = vsel %vm295, %v532, 0
      %v554 = vsel %vm311, %v537, 0
      %556 = vmatprep.subr.bf16.mxu0 0
      %557 = vmatpush1.bf16.msra.mxu0 0
      %558 = vmatprep.subr.bf16.mxu0 0
      %559 = vmatpush1.bf16.msra.mxu0 0
      %560 = vmatprep.subr.bf16.mxu0 0
      %561 = vmatpush1.bf16.msra.mxu0 0
      %562 = vmatprep.subr.bf16.mxu0 0
      %563 = vmatpush1.bf16.msra.mxu0 0
      %564 = vmatprep.subr.bf16.mxu0 0
      %565 = vmatpush1.bf16.msra.mxu0 0
      %566 = vmatprep.subr.bf16.mxu0 0
      %567 = vmatpush1.bf16.msra.mxu0 0
      %568 = vmatprep.subr.bf16.mxu0 0
      %569 = vmatpush1.bf16.msra.mxu0 0
      %570 = vmatprep.subr.bf16.mxu0 0
      %571 = vmatpush1.bf16.msra.mxu0 %v554
      %572 = vmatprep.subr.bf16.mxu0 0
      %573 = vmatpush2.bf16.msra.mxu0 0
      %574 = vmatprep.subr.bf16.mxu0 0
      %575 = vmatpush2.bf16.msra.mxu0 0
      %576 = vmatprep.subr.bf16.mxu0 0
      %577 = vmatpush2.bf16.msra.mxu0 0
      %578 = vmatprep.subr.bf16.mxu0 0
      %579 = vmatpush2.bf16.msra.mxu0 0
      %580 = vmatprep.subr.bf16.mxu0 0
      %581 = vmatpush2.bf16.msra.mxu0 0
      %582 = vmatprep.subr.bf16.mxu0 0
      %583 = vmatpush2.bf16.msra.mxu0 0
      %584 = vmatprep.subr.bf16.mxu0 0
      %585 = vmatpush2.bf16.msra.mxu0 0
      %586 = vmatprep.subr.bf16.mxu0 0
      %587 = vmatpush2.bf16.msra.mxu0 0
      %588 = vmatprep.mubr.bf16.mxu0 0
      %589 = vmatmul.mubr.bf16.gmra.mxu0 %v539
      %v590 = vpop.f32.mrf.mxu0
      %v591 = vadd.f32 0.0, %v590
      %v592 = vpop.f32.mrf.mxu0
      %v593 = vpop.f32.mrf.mxu0
      %v594 = vadd.f32 0.0, %v593
      %v595 = vpop.f32.mrf.mxu0
      %596 = vmatprep.mubr.bf16.mxu0 0
      %597 = vmatmul.mubr.bf16.gmra.mxu0 %v542
      %v598 = vpop.f32.mrf.mxu0
      %v599 = vadd.f32 0.0, %v598
      %v600 = vpop.f32.mrf.mxu0
      %v601 = vpop.f32.mrf.mxu0
      %v602 = vadd.f32 0.0, %v601
      %v603 = vpop.f32.mrf.mxu0
      %604 = vmatprep.mubr.bf16.mxu0 0
      %605 = vmatmul.mubr.bf16.gmra.mxu0 %v545
      %v606 = vpop.f32.mrf.mxu0
      %v607 = vadd.f32 0.0, %v606
      %v608 = vpop.f32.mrf.mxu0
      %v609 = vpop.f32.mrf.mxu0
      %v610 = vadd.f32 0.0, %v609
      %v611 = vpop.f32.mrf.mxu0
      %612 = vmatprep.mubr.bf16.mxu0 0
      %613 = vmatmul.mubr.bf16.gmra.mxu0 %v548
      %v614 = vpop.f32.mrf.mxu0
      %v615 = vadd.f32 0.0, %v614
      %v616 = vpop.f32.mrf.mxu0
      %v617 = vpop.f32.mrf.mxu0
      %v618 = vadd.f32 0.0, %v617
      %v619 = vpop.f32.mrf.mxu0
      %620 = vmatprep.mubr.bf16.mxu0 0
      %621 = vmatmul.mubr.bf16.gmra.mxu0 %v551
      %v622 = vpop.f32.mrf.mxu0
      %v623 = vadd.f32 0.0, %v622
      %v624 = vpop.f32.mrf.mxu0
      %v625 = vpop.f32.mrf.mxu0
      %v626 = vadd.f32 0.0, %v625
      %v627 = vpop.f32.mrf.mxu0
      %628 = vdwg.mxu0
      %v629 = vadd.f32 %v441, %v591
      %v630 = vadd.f32 %v444, %v594
      %v631 = vadd.f32 %v449, %v599
      %v632 = vadd.f32 %v452, %v602
      %v633 = vadd.f32 %v457, %v607
      %v634 = vadd.f32 %v460, %v610
      %v635 = vadd.f32 %v465, %v615
      %v636 = vadd.f32 %v468, %v618
      %v637 = vadd.f32 %v473, %v623
      %v638 = vadd.f32 %v476, %v626
      %v639 = vld [vmem:[%s192 + $0x2c] sm:$0x3]
      %s640 = scalar_lea.vmem %s1, 24
      %v641 = vld [vmem:[%s640] sm:$0xf]
      %v642 = vld [vmem:[%s640 + $0x4] sm:$0x3]
      %v644 = vunpack.c.l.b16 %v639
      %v645 = vpack.c.b16 %v644, %v644
      %vm646 = vsmask.f32 6400
      %v648 = vshrl.u32 %v515, 16
      %v650 = vrot.slane %v648, 1
      %v651 = vshll.u32 %v515, 16
      %v653 = vrot.slane %v651, 2
      %v654 = vor.u32 %v650, %v653
      %v656 = vshrl.u32 %v516, 16
      %v658 = vrot.slane %v656, 1
      %v659 = vshll.u32 %v516, 16
      %v661 = vrot.slane %v659, 2
      %v662 = vor.u32 %v658, %v661
      %v663 = vsel %vm646, %v654, %v662
      %v665 = vshrl.u32 %v517, 16
      %v667 = vrot.slane %v665, 1
      %v668 = vshll.u32 %v517, 16
      %v670 = vrot.slane %v668, 2
      %v671 = vor.u32 %v667, %v670
      %v672 = vsel %vm646, %v662, %v671
      %v674 = vshrl.u32 %v518, 16
      %v676 = vrot.slane %v674, 1
      %v677 = vshll.u32 %v518, 16
      %v679 = vrot.slane %v677, 2
      %v680 = vor.u32 %v676, %v679
      %v681 = vsel %vm646, %v671, %v680
      %v683 = vshrl.u32 %v519, 16
      %v685 = vrot.slane %v683, 1
      %v686 = vshll.u32 %v519, 16
      %v688 = vrot.slane %v686, 2
      %v689 = vor.u32 %v685, %v688
      %v690 = vsel %vm646, %v680, %v689
      %v692 = vshrl.u32 %v645, 16
      %v694 = vrot.slane %v692, 1
      %v695 = vshll.u32 %v645, 16
      %v697 = vrot.slane %v695, 2
      %v698 = vor.u32 %v694, %v697
      %v699 = vsel %vm646, %v689, %v698
      %v702 = vunpack.c.l.b16 %v641
      %v703 = vunpack.c.l.b16 %v642
      %v704 = vpack.c.b16 %v703, %v702
      %v706 = vsel %vm295, %v663, 0
      %v709 = vsel %vm295, %v672, 0
      %v712 = vsel %vm295, %v681, 0
      %v715 = vsel %vm295, %v690, 0
      %v718 = vsel %vm295, %v699, 0
      %v721 = vsel %vm311, %v704, 0
      %723 = vmatprep.subr.bf16.mxu0 0
      %724 = vmatpush1.bf16.msra.mxu0 0
      %725 = vmatprep.subr.bf16.mxu0 0
      %726 = vmatpush1.bf16.msra.mxu0 0
      %727 = vmatprep.subr.bf16.mxu0 0
      %728 = vmatpush1.bf16.msra.mxu0 0
      %729 = vmatprep.subr.bf16.mxu0 0
      %730 = vmatpush1.bf16.msra.mxu0 0
      %731 = vmatprep.subr.bf16.mxu0 0
      %732 = vmatpush1.bf16.msra.mxu0 0
      %733 = vmatprep.subr.bf16.mxu0 0
      %734 = vmatpush1.bf16.msra.mxu0 0
      %735 = vmatprep.subr.bf16.mxu0 0
      %736 = vmatpush1.bf16.msra.mxu0 0
      %737 = vmatprep.subr.bf16.mxu0 0
      %738 = vmatpush1.bf16.msra.mxu0 %v721
      %739 = vmatprep.subr.bf16.mxu0 0
      %740 = vmatpush2.bf16.msra.mxu0 0
      %741 = vmatprep.subr.bf16.mxu0 0
      %742 = vmatpush2.bf16.msra.mxu0 0
      %743 = vmatprep.subr.bf16.mxu0 0
      %744 = vmatpush2.bf16.msra.mxu0 0
      %745 = vmatprep.subr.bf16.mxu0 0
      %746 = vmatpush2.bf16.msra.mxu0 0
      %747 = vmatprep.subr.bf16.mxu0 0
      %748 = vmatpush2.bf16.msra.mxu0 0
      %749 = vmatprep.subr.bf16.mxu0 0
      %750 = vmatpush2.bf16.msra.mxu0 0
      %751 = vmatprep.subr.bf16.mxu0 0
      %752 = vmatpush2.bf16.msra.mxu0 0
      %753 = vmatprep.subr.bf16.mxu0 0
      %754 = vmatpush2.bf16.msra.mxu0 0
      %755 = vmatprep.mubr.bf16.mxu0 0
      %756 = vmatmul.mubr.bf16.gmra.mxu0 %v706
      %v757 = vpop.f32.mrf.mxu0
      %v758 = vadd.f32 0.0, %v757
      %v759 = vpop.f32.mrf.mxu0
      %v760 = vpop.f32.mrf.mxu0
      %v761 = vadd.f32 0.0, %v760
      %v762 = vpop.f32.mrf.mxu0
      %763 = vmatprep.mubr.bf16.mxu0 0
      %764 = vmatmul.mubr.bf16.gmra.mxu0 %v709
      %v765 = vpop.f32.mrf.mxu0
      %v766 = vadd.f32 0.0, %v765
      %v767 = vpop.f32.mrf.mxu0
      %v768 = vpop.f32.mrf.mxu0
      %v769 = vadd.f32 0.0, %v768
      %v770 = vpop.f32.mrf.mxu0
      %771 = vmatprep.mubr.bf16.mxu0 0
      %772 = vmatmul.mubr.bf16.gmra.mxu0 %v712
      %v773 = vpop.f32.mrf.mxu0
      %v774 = vadd.f32 0.0, %v773
      %v775 = vpop.f32.mrf.mxu0
      %v776 = vpop.f32.mrf.mxu0
      %v777 = vadd.f32 0.0, %v776
      %v778 = vpop.f32.mrf.mxu0
      %779 = vmatprep.mubr.bf16.mxu0 0
      %780 = vmatmul.mubr.bf16.gmra.mxu0 %v715
      %v781 = vpop.f32.mrf.mxu0
      %v782 = vadd.f32 0.0, %v781
      %v783 = vpop.f32.mrf.mxu0
      %v784 = vpop.f32.mrf.mxu0
      %v785 = vadd.f32 0.0, %v784
      %v786 = vpop.f32.mrf.mxu0
      %787 = vmatprep.mubr.bf16.mxu0 0
      %788 = vmatmul.mubr.bf16.gmra.mxu0 %v718
      %v789 = vpop.f32.mrf.mxu0
      %v790 = vadd.f32 0.0, %v789
      %v791 = vpop.f32.mrf.mxu0
      %v792 = vpop.f32.mrf.mxu0
      %v793 = vadd.f32 0.0, %v792
      %v794 = vpop.f32.mrf.mxu0
      %795 = vdwg.mxu0
      %v796 = vadd.f32 %v629, %v758
      %v797 = vadd.f32 %v630, %v761
      %v798 = vadd.f32 %v631, %v766
      %v799 = vadd.f32 %v632, %v769
      %v800 = vadd.f32 %v633, %v774
      %v801 = vadd.f32 %v634, %v777
      %v802 = vadd.f32 %v635, %v782
      %v803 = vadd.f32 %v636, %v785
      %v804 = vadd.f32 %v637, %v790
      %v805 = vadd.f32 %v638, %v793
      %v807 = vlaneseq
      %v808 = vshrl.u32 %v807, 7
      %v809 = vsub.s32 0, %v808
      %v810 = vrot.slane %v199, %v809
      %v812 = vmul.f32 %v796, %v810
      %v813 = vmul.f32 %v797, %v810
      %v814 = vmul.f32 %v798, %v810
      %v815 = vmul.f32 %v799, %v810
      %v816 = vmul.f32 %v800, %v810
      %v817 = vmul.f32 %v801, %v810
      %v818 = vmul.f32 %v802, %v810
      %v819 = vmul.f32 %v803, %v810
      %v820 = vmul.f32 %v804, %v810
      %v821 = vmul.f32 %v805, %v810
      %v823 = vlaneseq
      %v824 = vshrl.u32 %v823, 7
      %v825 = vsub.s32 0, %v824
      %v826 = vrot.slane %v200, %v825
      %v828 = vadd.f32 %v812, %v826
      %v829 = vadd.f32 %v813, %v826
      %v830 = vadd.f32 %v814, %v826
      %v831 = vadd.f32 %v815, %v826
      %v832 = vadd.f32 %v816, %v826
      %v833 = vadd.f32 %v817, %v826
      %v834 = vadd.f32 %v818, %v826
      %v835 = vadd.f32 %v819, %v826
      %v836 = vadd.f32 %v820, %v826
      %v837 = vadd.f32 %v821, %v826
      %s838 = scalar_lea.vmem %s1, 32
      %v839 = vld [vmem:[%s838] sm:$0xf]
      %v840 = vld [vmem:[%s838 + $0x4] sm:$0x3]
      %v841 = vld [vmem:[%s192] sm:$0xe]
      %s842 = scalar_lea.vmem %s1, 40
      %v843 = vld [vmem:[%s842] sm:$0xf]
      %v844 = vld [vmem:[%s842 + $0x4] sm:$0x3]
      %v846 = vunpack.c.l.b16 %v841
      %v847 = vpack.c.b16 %v229, %v846
      %v848 = vrot.slane %v847, 1
      %v849 = vrot.slane %v240, 1
      %v850 = vsel %vm521, %v848, %v849
      %v851 = vrot.slane %v241, 1
      %v852 = vsel %vm521, %v849, %v851
      %v853 = vrot.slane %v242, 1
      %v854 = vsel %vm521, %v851, %v853
      %v855 = vrot.slane %v243, 1
      %v856 = vsel %vm521, %v853, %v855
      %v857 = vrot.slane %v244, 1
      %v858 = vsel %vm521, %v855, %v857
      %v861 = vunpack.c.l.b16 %v843
      %v862 = vunpack.c.l.b16 %v844
      %v863 = vpack.c.b16 %v862, %v861
      %v865 = vsel %vm295, %v850, 0
      %v868 = vsel %vm295, %v852, 0
      %v871 = vsel %vm295, %v854, 0
      %v874 = vsel %vm295, %v856, 0
      %v877 = vsel %vm295, %v858, 0
      %v880 = vsel %vm311, %v863, 0
      %882 = vmatprep.subr.bf16.mxu0 0
      %883 = vmatpush1.bf16.msra.mxu0 0
      %884 = vmatprep.subr.bf16.mxu0 0
      %885 = vmatpush1.bf16.msra.mxu0 0
      %886 = vmatprep.subr.bf16.mxu0 0
      %887 = vmatpush1.bf16.msra.mxu0 0
      %888 = vmatprep.subr.bf16.mxu0 0
      %889 = vmatpush1.bf16.msra.mxu0 0
      %890 = vmatprep.subr.bf16.mxu0 0
      %891 = vmatpush1.bf16.msra.mxu0 0
      %892 = vmatprep.subr.bf16.mxu0 0
      %893 = vmatpush1.bf16.msra.mxu0 0
      %894 = vmatprep.subr.bf16.mxu0 0
      %895 = vmatpush1.bf16.msra.mxu0 0
      %896 = vmatprep.subr.bf16.mxu0 0
      %897 = vmatpush1.bf16.msra.mxu0 %v880
      %898 = vmatprep.subr.bf16.mxu0 0
      %899 = vmatpush2.bf16.msra.mxu0 0
      %900 = vmatprep.subr.bf16.mxu0 0
      %901 = vmatpush2.bf16.msra.mxu0 0
      %902 = vmatprep.subr.bf16.mxu0 0
      %903 = vmatpush2.bf16.msra.mxu0 0
      %904 = vmatprep.subr.bf16.mxu0 0
      %905 = vmatpush2.bf16.msra.mxu0 0
      %906 = vmatprep.subr.bf16.mxu0 0
      %907 = vmatpush2.bf16.msra.mxu0 0
      %908 = vmatprep.subr.bf16.mxu0 0
      %909 = vmatpush2.bf16.msra.mxu0 0
      %910 = vmatprep.subr.bf16.mxu0 0
      %911 = vmatpush2.bf16.msra.mxu0 0
      %912 = vmatprep.subr.bf16.mxu0 0
      %913 = vmatpush2.bf16.msra.mxu0 0
      %914 = vmatprep.mubr.bf16.mxu0 0
      %915 = vmatmul.mubr.bf16.gmra.mxu0 %v865
      %v916 = vpop.f32.mrf.mxu0
      %v917 = vadd.f32 0.0, %v916
      %v918 = vpop.f32.mrf.mxu0
      %v919 = vpop.f32.mrf.mxu0
      %v920 = vadd.f32 0.0, %v919
      %v921 = vpop.f32.mrf.mxu0
      %922 = vmatprep.mubr.bf16.mxu0 0
      %923 = vmatmul.mubr.bf16.gmra.mxu0 %v868
      %v924 = vpop.f32.mrf.mxu0
      %v925 = vadd.f32 0.0, %v924
      %v926 = vpop.f32.mrf.mxu0
      %v927 = vpop.f32.mrf.mxu0
      %v928 = vadd.f32 0.0, %v927
      %v929 = vpop.f32.mrf.mxu0
      %930 = vmatprep.mubr.bf16.mxu0 0
      %931 = vmatmul.mubr.bf16.gmra.mxu0 %v871
      %v932 = vpop.f32.mrf.mxu0
      %v933 = vadd.f32 0.0, %v932
      %v934 = vpop.f32.mrf.mxu0
      %v935 = vpop.f32.mrf.mxu0
      %v936 = vadd.f32 0.0, %v935
      %v937 = vpop.f32.mrf.mxu0
      %938 = vmatprep.mubr.bf16.mxu0 0
      %939 = vmatmul.mubr.bf16.gmra.mxu0 %v874
      %v940 = vpop.f32.mrf.mxu0
      %v941 = vadd.f32 0.0, %v940
      %v942 = vpop.f32.mrf.mxu0
      %v943 = vpop.f32.mrf.mxu0
      %v944 = vadd.f32 0.0, %v943
      %v945 = vpop.f32.mrf.mxu0
      %946 = vmatprep.mubr.bf16.mxu0 0
      %947 = vmatmul.mubr.bf16.gmra.mxu0 %v877
      %v948 = vpop.f32.mrf.mxu0
      %v949 = vadd.f32 0.0, %v948
      %v950 = vpop.f32.mrf.mxu0
      %v951 = vpop.f32.mrf.mxu0
      %v952 = vadd.f32 0.0, %v951
      %v953 = vpop.f32.mrf.mxu0
      %954 = vdwg.mxu0
      %v957 = vunpack.c.l.b16 %v839
      %v958 = vunpack.c.l.b16 %v840
      %v959 = vpack.c.b16 %v958, %v957
      %v961 = vsel %vm311, %v959, 0
      %963 = vmatprep.subr.bf16.mxu0 0
      %964 = vmatpush1.bf16.msra.mxu0 0
      %965 = vmatprep.subr.bf16.mxu0 0
      %966 = vmatpush1.bf16.msra.mxu0 0
      %967 = vmatprep.subr.bf16.mxu0 0
      %968 = vmatpush1.bf16.msra.mxu0 0
      %969 = vmatprep.subr.bf16.mxu0 0
      %970 = vmatpush1.bf16.msra.mxu0 0
      %971 = vmatprep.subr.bf16.mxu0 0
      %972 = vmatpush1.bf16.msra.mxu0 0
      %973 = vmatprep.subr.bf16.mxu0 0
      %974 = vmatpush1.bf16.msra.mxu0 0
      %975 = vmatprep.subr.bf16.mxu0 0
      %976 = vmatpush1.bf16.msra.mxu0 0
      %977 = vmatprep.subr.bf16.mxu0 0
      %978 = vmatpush1.bf16.msra.mxu0 %v961
      %979 = vmatprep.subr.bf16.mxu0 0
      %980 = vmatpush2.bf16.msra.mxu0 0
      %981 = vmatprep.subr.bf16.mxu0 0
      %982 = vmatpush2.bf16.msra.mxu0 0
      %983 = vmatprep.subr.bf16.mxu0 0
      %984 = vmatpush2.bf16.msra.mxu0 0
      %985 = vmatprep.subr.bf16.mxu0 0
      %986 = vmatpush2.bf16.msra.mxu0 0
      %987 = vmatprep.subr.bf16.mxu0 0
      %988 = vmatpush2.bf16.msra.mxu0 0
      %989 = vmatprep.subr.bf16.mxu0 0
      %990 = vmatpush2.bf16.msra.mxu0 0
      %991 = vmatprep.subr.bf16.mxu0 0
      %992 = vmatpush2.bf16.msra.mxu0 0
      %993 = vmatprep.subr.bf16.mxu0 0
      %994 = vmatpush2.bf16.msra.mxu0 0
      %995 = vmatprep.mubr.bf16.mxu0 0
      %996 = vmatmul.mubr.bf16.gmra.mxu0 %v297
      %v997 = vpop.f32.mrf.mxu0
      %v998 = vadd.f32 %v917, %v997
      %v999 = vpop.f32.mrf.mxu0
      %v1000 = vpop.f32.mrf.mxu0
      %v1001 = vadd.f32 %v920, %v1000
      %v1002 = vpop.f32.mrf.mxu0
      %1003 = vmatprep.mubr.bf16.mxu0 0
      %1004 = vmatmul.mubr.bf16.gmra.mxu0 %v300
      %v1005 = vpop.f32.mrf.mxu0
      %v1006 = vadd.f32 %v925, %v1005
      %v1007 = vpop.f32.mrf.mxu0
      %v1008 = vpop.f32.mrf.mxu0
      %v1009 = vadd.f32 %v928, %v1008
      %v1010 = vpop.f32.mrf.mxu0
      %1011 = vmatprep.mubr.bf16.mxu0 0
      %1012 = vmatmul.mubr.bf16.gmra.mxu0 %v303
      %v1013 = vpop.f32.mrf.mxu0
      %v1014 = vadd.f32 %v933, %v1013
      %v1015 = vpop.f32.mrf.mxu0
      %v1016 = vpop.f32.mrf.mxu0
      %v1017 = vadd.f32 %v936, %v1016
      %v1018 = vpop.f32.mrf.mxu0
      %1019 = vmatprep.mubr.bf16.mxu0 0
      %1020 = vmatmul.mubr.bf16.gmra.mxu0 %v306
      %v1021 = vpop.f32.mrf.mxu0
      %v1022 = vadd.f32 %v941, %v1021
      %v1023 = vpop.f32.mrf.mxu0
      %v1024 = vpop.f32.mrf.mxu0
      %v1025 = vadd.f32 %v944, %v1024
      %v1026 = vpop.f32.mrf.mxu0
      %1027 = vmatprep.mubr.bf16.mxu0 0
      %1028 = vmatmul.mubr.bf16.gmra.mxu0 %v309
      %v1029 = vpop.f32.mrf.mxu0
      %v1030 = vadd.f32 %v949, %v1029
      %v1031 = vpop.f32.mrf.mxu0
      %v1032 = vpop.f32.mrf.mxu0
      %v1033 = vadd.f32 %v952, %v1032
      %v1034 = vpop.f32.mrf.mxu0
      %1035 = vdwg.mxu0
      %s1036 = scalar_lea.vmem %s1, 48
      %v1037 = vld [vmem:[%s1036] sm:$0xf]
      %v1038 = vld [vmem:[%s1036 + $0x4] sm:$0x3]
      %v1041 = vunpack.c.l.b16 %v1037
      %v1042 = vunpack.c.l.b16 %v1038
      %v1043 = vpack.c.b16 %v1042, %v1041
      %v1045 = vsel %vm311, %v1043, 0
      %1047 = vmatprep.subr.bf16.mxu0 0
      %1048 = vmatpush1.bf16.msra.mxu0 0
      %1049 = vmatprep.subr.bf16.mxu0 0
      %1050 = vmatpush1.bf16.msra.mxu0 0
      %1051 = vmatprep.subr.bf16.mxu0 0
      %1052 = vmatpush1.bf16.msra.mxu0 0
      %1053 = vmatprep.subr.bf16.mxu0 0
      %1054 = vmatpush1.bf16.msra.mxu0 0
      %1055 = vmatprep.subr.bf16.mxu0 0
      %1056 = vmatpush1.bf16.msra.mxu0 0
      %1057 = vmatprep.subr.bf16.mxu0 0
      %1058 = vmatpush1.bf16.msra.mxu0 0
      %1059 = vmatprep.subr.bf16.mxu0 0
      %1060 = vmatpush1.bf16.msra.mxu0 0
      %1061 = vmatprep.subr.bf16.mxu0 0
      %1062 = vmatpush1.bf16.msra.mxu0 %v1045
      %1063 = vmatprep.subr.bf16.mxu0 0
      %1064 = vmatpush2.bf16.msra.mxu0 0
      %1065 = vmatprep.subr.bf16.mxu0 0
      %1066 = vmatpush2.bf16.msra.mxu0 0
      %1067 = vmatprep.subr.bf16.mxu0 0
      %1068 = vmatpush2.bf16.msra.mxu0 0
      %1069 = vmatprep.subr.bf16.mxu0 0
      %1070 = vmatpush2.bf16.msra.mxu0 0
      %1071 = vmatprep.subr.bf16.mxu0 0
      %1072 = vmatpush2.bf16.msra.mxu0 0
      %1073 = vmatprep.subr.bf16.mxu0 0
      %1074 = vmatpush2.bf16.msra.mxu0 0
      %1075 = vmatprep.subr.bf16.mxu0 0
      %1076 = vmatpush2.bf16.msra.mxu0 0
      %1077 = vmatprep.subr.bf16.mxu0 0
      %1078 = vmatpush2.bf16.msra.mxu0 0
      %1079 = vmatprep.mubr.bf16.mxu0 0
      %1080 = vmatmul.mubr.bf16.gmra.mxu0 %v706
      %v1081 = vpop.f32.mrf.mxu0
      %v1082 = vadd.f32 0.0, %v1081
      %v1083 = vpop.f32.mrf.mxu0
      %v1084 = vpop.f32.mrf.mxu0
      %v1085 = vadd.f32 0.0, %v1084
      %v1086 = vpop.f32.mrf.mxu0
      %1087 = vmatprep.mubr.bf16.mxu0 0
      %1088 = vmatmul.mubr.bf16.gmra.mxu0 %v709
      %v1089 = vpop.f32.mrf.mxu0
      %v1090 = vadd.f32 0.0, %v1089
      %v1091 = vpop.f32.mrf.mxu0
      %v1092 = vpop.f32.mrf.mxu0
      %v1093 = vadd.f32 0.0, %v1092
      %v1094 = vpop.f32.mrf.mxu0
      %1095 = vmatprep.mubr.bf16.mxu0 0
      %1096 = vmatmul.mubr.bf16.gmra.mxu0 %v712
      %v1097 = vpop.f32.mrf.mxu0
      %v1098 = vadd.f32 0.0, %v1097
      %v1099 = vpop.f32.mrf.mxu0
      %v1100 = vpop.f32.mrf.mxu0
      %v1101 = vadd.f32 0.0, %v1100
      %v1102 = vpop.f32.mrf.mxu0
      %1103 = vmatprep.mubr.bf16.mxu0 0
      %1104 = vmatmul.mubr.bf16.gmra.mxu0 %v715
      %v1105 = vpop.f32.mrf.mxu0
      %v1106 = vadd.f32 0.0, %v1105
      %v1107 = vpop.f32.mrf.mxu0
      %v1108 = vpop.f32.mrf.mxu0
      %v1109 = vadd.f32 0.0, %v1108
      %v1110 = vpop.f32.mrf.mxu0
      %1111 = vmatprep.mubr.bf16.mxu0 0
      %1112 = vmatmul.mubr.bf16.gmra.mxu0 %v718
      %v1113 = vpop.f32.mrf.mxu0
      %v1114 = vadd.f32 0.0, %v1113
      %v1115 = vpop.f32.mrf.mxu0
      %v1116 = vpop.f32.mrf.mxu0
      %v1117 = vadd.f32 0.0, %v1116
      %v1118 = vpop.f32.mrf.mxu0
      %1119 = vdwg.mxu0
      %v1120 = vadd.f32 %v998, %v1082
      %v1121 = vadd.f32 %v1001, %v1085
      %v1122 = vadd.f32 %v1006, %v1090
      %v1123 = vadd.f32 %v1009, %v1093
      %v1124 = vadd.f32 %v1014, %v1098
      %v1125 = vadd.f32 %v1017, %v1101
      %v1126 = vadd.f32 %v1022, %v1106
      %v1127 = vadd.f32 %v1025, %v1109
      %v1128 = vadd.f32 %v1030, %v1114
      %v1129 = vadd.f32 %v1033, %v1117
      %v1130 = vld [vmem:[%s192 + $0x4] sm:$0xc]
      %s1131 = scalar_lea.vmem %s1, 56
      %v1132 = vld [vmem:[%s1131] sm:$0xf]
      %v1133 = vld [vmem:[%s1131 + $0x4] sm:$0x3]
      %v1135 = vunpack.c.l.b16 %v1130
      %v1136 = vpack.c.b16 %v505, %v1135
      %vm1137 = vcmask 1045504
      %v1138 = vrot.slane %v1136, 2
      %v1139 = vrot.slane %v516, 2
      %v1140 = vsel %vm1137, %v1138, %v1139
      %v1141 = vrot.slane %v517, 2
      %v1142 = vsel %vm1137, %v1139, %v1141
      %v1143 = vrot.slane %v518, 2
      %v1144 = vsel %vm1137, %v1141, %v1143
      %v1145 = vrot.slane %v519, 2
      %v1146 = vsel %vm1137, %v1143, %v1145
      %v1147 = vrot.slane %v645, 2
      %v1148 = vsel %vm1137, %v1145, %v1147
      %v1151 = vunpack.c.l.b16 %v1132
      %v1152 = vunpack.c.l.b16 %v1133
      %v1153 = vpack.c.b16 %v1152, %v1151
      %v1155 = vsel %vm295, %v1140, 0
      %v1158 = vsel %vm295, %v1142, 0
      %v1161 = vsel %vm295, %v1144, 0
      %v1164 = vsel %vm295, %v1146, 0
      %v1167 = vsel %vm295, %v1148, 0
      %v1170 = vsel %vm311, %v1153, 0
      %1172 = vmatprep.subr.bf16.mxu0 0
      %1173 = vmatpush1.bf16.msra.mxu0 0
      %1174 = vmatprep.subr.bf16.mxu0 0
      %1175 = vmatpush1.bf16.msra.mxu0 0
      %1176 = vmatprep.subr.bf16.mxu0 0
      %1177 = vmatpush1.bf16.msra.mxu0 0
      %1178 = vmatprep.subr.bf16.mxu0 0
      %1179 = vmatpush1.bf16.msra.mxu0 0
      %1180 = vmatprep.subr.bf16.mxu0 0
      %1181 = vmatpush1.bf16.msra.mxu0 0
      %1182 = vmatprep.subr.bf16.mxu0 0
      %1183 = vmatpush1.bf16.msra.mxu0 0
      %1184 = vmatprep.subr.bf16.mxu0 0
      %1185 = vmatpush1.bf16.msra.mxu0 0
      %1186 = vmatprep.subr.bf16.mxu0 0
      %1187 = vmatpush1.bf16.msra.mxu0 %v1170
      %1188 = vmatprep.subr.bf16.mxu0 0
      %1189 = vmatpush2.bf16.msra.mxu0 0
      %1190 = vmatprep.subr.bf16.mxu0 0
      %1191 = vmatpush2.bf16.msra.mxu0 0
      %1192 = vmatprep.subr.bf16.mxu0 0
      %1193 = vmatpush2.bf16.msra.mxu0 0
      %1194 = vmatprep.subr.bf16.mxu0 0
      %1195 = vmatpush2.bf16.msra.mxu0 0
      %1196 = vmatprep.subr.bf16.mxu0 0
      %1197 = vmatpush2.bf16.msra.mxu0 0
      %1198 = vmatprep.subr.bf16.mxu0 0
      %1199 = vmatpush2.bf16.msra.mxu0 0
      %1200 = vmatprep.subr.bf16.mxu0 0
      %1201 = vmatpush2.bf16.msra.mxu0 0
      %1202 = vmatprep.subr.bf16.mxu0 0
      %1203 = vmatpush2.bf16.msra.mxu0 0
      %1204 = vmatprep.mubr.bf16.mxu0 0
      %1205 = vmatmul.mubr.bf16.gmra.mxu0 %v1155
      %v1206 = vpop.f32.mrf.mxu0
      %v1207 = vadd.f32 0.0, %v1206
      %v1208 = vpop.f32.mrf.mxu0
      %v1209 = vpop.f32.mrf.mxu0
      %v1210 = vadd.f32 0.0, %v1209
      %v1211 = vpop.f32.mrf.mxu0
      %1212 = vmatprep.mubr.bf16.mxu0 0
      %1213 = vmatmul.mubr.bf16.gmra.mxu0 %v1158
      %v1214 = vpop.f32.mrf.mxu0
      %v1215 = vadd.f32 0.0, %v1214
      %v1216 = vpop.f32.mrf.mxu0
      %v1217 = vpop.f32.mrf.mxu0
      %v1218 = vadd.f32 0.0, %v1217
      %v1219 = vpop.f32.mrf.mxu0
      %1220 = vmatprep.mubr.bf16.mxu0 0
      %1221 = vmatmul.mubr.bf16.gmra.mxu0 %v1161
      %v1222 = vpop.f32.mrf.mxu0
      %v1223 = vadd.f32 0.0, %v1222
      %v1224 = vpop.f32.mrf.mxu0
      %v1225 = vpop.f32.mrf.mxu0
      %v1226 = vadd.f32 0.0, %v1225
      %v1227 = vpop.f32.mrf.mxu0
      %1228 = vmatprep.mubr.bf16.mxu0 0
      %1229 = vmatmul.mubr.bf16.gmra.mxu0 %v1164
      %v1230 = vpop.f32.mrf.mxu0
      %v1231 = vadd.f32 0.0, %v1230
      %v1232 = vpop.f32.mrf.mxu0
      %v1233 = vpop.f32.mrf.mxu0
      %v1234 = vadd.f32 0.0, %v1233
      %v1235 = vpop.f32.mrf.mxu0
      %1236 = vmatprep.mubr.bf16.mxu0 0
      %1237 = vmatmul.mubr.bf16.gmra.mxu0 %v1167
      %v1238 = vpop.f32.mrf.mxu0
      %v1239 = vadd.f32 0.0, %v1238
      %v1240 = vpop.f32.mrf.mxu0
      %v1241 = vpop.f32.mrf.mxu0
      %v1242 = vadd.f32 0.0, %v1241
      %v1243 = vpop.f32.mrf.mxu0
      %1244 = vdwg.mxu0
      %v1245 = vadd.f32 %v1120, %v1207
      %v1246 = vadd.f32 %v1121, %v1210
      %v1247 = vadd.f32 %v1122, %v1215
      %v1248 = vadd.f32 %v1123, %v1218
      %v1249 = vadd.f32 %v1124, %v1223
      %v1250 = vadd.f32 %v1125, %v1226
      %v1251 = vadd.f32 %v1126, %v1231
      %v1252 = vadd.f32 %v1127, %v1234
      %v1253 = vadd.f32 %v1128, %v1239
      %v1254 = vadd.f32 %v1129, %v1242
      %v1255 = vmul.f32 %v1245, %v810
      %v1256 = vmul.f32 %v1246, %v810
      %v1257 = vmul.f32 %v1247, %v810
      %v1258 = vmul.f32 %v1248, %v810
      %v1259 = vmul.f32 %v1249, %v810
      %v1260 = vmul.f32 %v1250, %v810
      %v1261 = vmul.f32 %v1251, %v810
      %v1262 = vmul.f32 %v1252, %v810
      %v1263 = vmul.f32 %v1253, %v810
      %v1264 = vmul.f32 %v1254, %v810
      %v1265 = vadd.f32 %v1255, %v826
      %v1266 = vadd.f32 %v1256, %v826
      %v1267 = vadd.f32 %v1257, %v826
      %v1268 = vadd.f32 %v1258, %v826
      %v1269 = vadd.f32 %v1259, %v826
      %v1270 = vadd.f32 %v1260, %v826
      %v1271 = vadd.f32 %v1261, %v826
      %v1272 = vadd.f32 %v1262, %v826
      %v1273 = vadd.f32 %v1263, %v826
      %v1274 = vadd.f32 %v1264, %v826
      %v1275 = vmax.f32 %v828, %v1265
      %v1276 = vmax.f32 %v829, %v1266
      %v1277 = vmax.f32 %v830, %v1267
      %v1278 = vmax.f32 %v831, %v1268
      %v1279 = vmax.f32 %v832, %v1269
      %v1280 = vmax.f32 %v833, %v1270
      %v1281 = vmax.f32 %v834, %v1271
      %v1282 = vmax.f32 %v835, %v1272
      %v1283 = vmax.f32 %v836, %v1273
      %v1284 = vmax.f32 %v837, %v1274
      %s1285 = scalar_lea.vmem %s1, 64
      %v1286 = vld [vmem:[%s1285] sm:$0xf]
      %v1287 = vld [vmem:[%s1285 + $0x4] sm:$0x3]
      %s1288 = scalar_lea.vmem %s1, 72
      %v1289 = vld [vmem:[%s1288] sm:$0xf]
      %v1290 = vld [vmem:[%s1288 + $0x4] sm:$0x3]
      %v1293 = vunpack.c.l.b16 %v1289
      %v1294 = vunpack.c.l.b16 %v1290
      %v1295 = vpack.c.b16 %v1294, %v1293
      %v1297 = vsel %vm311, %v1295, 0
      %1299 = vmatprep.subr.bf16.mxu0 0
      %1300 = vmatpush1.bf16.msra.mxu0 0
      %1301 = vmatprep.subr.bf16.mxu0 0
      %1302 = vmatpush1.bf16.msra.mxu0 0
      %1303 = vmatprep.subr.bf16.mxu0 0
      %1304 = vmatpush1.bf16.msra.mxu0 0
      %1305 = vmatprep.subr.bf16.mxu0 0
      %1306 = vmatpush1.bf16.msra.mxu0 0
      %1307 = vmatprep.subr.bf16.mxu0 0
      %1308 = vmatpush1.bf16.msra.mxu0 0
      %1309 = vmatprep.subr.bf16.mxu0 0
      %1310 = vmatpush1.bf16.msra.mxu0 0
      %1311 = vmatprep.subr.bf16.mxu0 0
      %1312 = vmatpush1.bf16.msra.mxu0 0
      %1313 = vmatprep.subr.bf16.mxu0 0
      %1314 = vmatpush1.bf16.msra.mxu0 %v1297
      %1315 = vmatprep.subr.bf16.mxu0 0
      %1316 = vmatpush2.bf16.msra.mxu0 0
      %1317 = vmatprep.subr.bf16.mxu0 0
      %1318 = vmatpush2.bf16.msra.mxu0 0
      %1319 = vmatprep.subr.bf16.mxu0 0
      %1320 = vmatpush2.bf16.msra.mxu0 0
      %1321 = vmatprep.subr.bf16.mxu0 0
      %1322 = vmatpush2.bf16.msra.mxu0 0
      %1323 = vmatprep.subr.bf16.mxu0 0
      %1324 = vmatpush2.bf16.msra.mxu0 0
      %1325 = vmatprep.subr.bf16.mxu0 0
      %1326 = vmatpush2.bf16.msra.mxu0 0
      %1327 = vmatprep.subr.bf16.mxu0 0
      %1328 = vmatpush2.bf16.msra.mxu0 0
      %1329 = vmatprep.subr.bf16.mxu0 0
      %1330 = vmatpush2.bf16.msra.mxu0 0
      %1331 = vmatprep.mubr.bf16.mxu0 0
      %1332 = vmatmul.mubr.bf16.gmra.mxu0 %v706
      %v1333 = vpop.f32.mrf.mxu0
      %v1334 = vadd.f32 0.0, %v1333
      %v1335 = vpop.f32.mrf.mxu0
      %v1336 = vpop.f32.mrf.mxu0
      %v1337 = vadd.f32 0.0, %v1336
      %v1338 = vpop.f32.mrf.mxu0
      %1339 = vmatprep.mubr.bf16.mxu0 0
      %1340 = vmatmul.mubr.bf16.gmra.mxu0 %v709
      %v1341 = vpop.f32.mrf.mxu0
      %v1342 = vadd.f32 0.0, %v1341
      %v1343 = vpop.f32.mrf.mxu0
      %v1344 = vpop.f32.mrf.mxu0
      %v1345 = vadd.f32 0.0, %v1344
      %v1346 = vpop.f32.mrf.mxu0
      %1347 = vmatprep.mubr.bf16.mxu0 0
      %1348 = vmatmul.mubr.bf16.gmra.mxu0 %v712
      %v1349 = vpop.f32.mrf.mxu0
      %v1350 = vadd.f32 0.0, %v1349
      %v1351 = vpop.f32.mrf.mxu0
      %v1352 = vpop.f32.mrf.mxu0
      %v1353 = vadd.f32 0.0, %v1352
      %v1354 = vpop.f32.mrf.mxu0
      %1355 = vmatprep.mubr.bf16.mxu0 0
      %1356 = vmatmul.mubr.bf16.gmra.mxu0 %v715
      %v1357 = vpop.f32.mrf.mxu0
      %v1358 = vadd.f32 0.0, %v1357
      %v1359 = vpop.f32.mrf.mxu0
      %v1360 = vpop.f32.mrf.mxu0
      %v1361 = vadd.f32 0.0, %v1360
      %v1362 = vpop.f32.mrf.mxu0
      %1363 = vmatprep.mubr.bf16.mxu0 0
      %1364 = vmatmul.mubr.bf16.gmra.mxu0 %v718
      %v1365 = vpop.f32.mrf.mxu0
      %v1366 = vadd.f32 0.0, %v1365
      %v1367 = vpop.f32.mrf.mxu0
      %v1368 = vpop.f32.mrf.mxu0
      %v1369 = vadd.f32 0.0, %v1368
      %v1370 = vpop.f32.mrf.mxu0
      %1371 = vdwg.mxu0
      %v1374 = vunpack.c.l.b16 %v1286
      %v1375 = vunpack.c.l.b16 %v1287
      %v1376 = vpack.c.b16 %v1375, %v1374
      %v1378 = vsel %vm311, %v1376, 0
      %1380 = vmatprep.subr.bf16.mxu0 0
      %1381 = vmatpush1.bf16.msra.mxu0 0
      %1382 = vmatprep.subr.bf16.mxu0 0
      %1383 = vmatpush1.bf16.msra.mxu0 0
      %1384 = vmatprep.subr.bf16.mxu0 0
      %1385 = vmatpush1.bf16.msra.mxu0 0
      %1386 = vmatprep.subr.bf16.mxu0 0
      %1387 = vmatpush1.bf16.msra.mxu0 0
      %1388 = vmatprep.subr.bf16.mxu0 0
      %1389 = vmatpush1.bf16.msra.mxu0 0
      %1390 = vmatprep.subr.bf16.mxu0 0
      %1391 = vmatpush1.bf16.msra.mxu0 0
      %1392 = vmatprep.subr.bf16.mxu0 0
      %1393 = vmatpush1.bf16.msra.mxu0 0
      %1394 = vmatprep.subr.bf16.mxu0 0
      %1395 = vmatpush1.bf16.msra.mxu0 %v1378
      %1396 = vmatprep.subr.bf16.mxu0 0
      %1397 = vmatpush2.bf16.msra.mxu0 0
      %1398 = vmatprep.subr.bf16.mxu0 0
      %1399 = vmatpush2.bf16.msra.mxu0 0
      %1400 = vmatprep.subr.bf16.mxu0 0
      %1401 = vmatpush2.bf16.msra.mxu0 0
      %1402 = vmatprep.subr.bf16.mxu0 0
      %1403 = vmatpush2.bf16.msra.mxu0 0
      %1404 = vmatprep.subr.bf16.mxu0 0
      %1405 = vmatpush2.bf16.msra.mxu0 0
      %1406 = vmatprep.subr.bf16.mxu0 0
      %1407 = vmatpush2.bf16.msra.mxu0 0
      %1408 = vmatprep.subr.bf16.mxu0 0
      %1409 = vmatpush2.bf16.msra.mxu0 0
      %1410 = vmatprep.subr.bf16.mxu0 0
      %1411 = vmatpush2.bf16.msra.mxu0 0
      %1412 = vmatprep.mubr.bf16.mxu0 0
      %1413 = vmatmul.mubr.bf16.gmra.mxu0 %v539
      %v1414 = vpop.f32.mrf.mxu0
      %v1415 = vadd.f32 %v1334, %v1414
      %v1416 = vpop.f32.mrf.mxu0
      %v1417 = vpop.f32.mrf.mxu0
      %v1418 = vadd.f32 %v1337, %v1417
      %v1419 = vpop.f32.mrf.mxu0
      %1420 = vmatprep.mubr.bf16.mxu0 0
      %1421 = vmatmul.mubr.bf16.gmra.mxu0 %v542
      %v1422 = vpop.f32.mrf.mxu0
      %v1423 = vadd.f32 %v1342, %v1422
      %v1424 = vpop.f32.mrf.mxu0
      %v1425 = vpop.f32.mrf.mxu0
      %v1426 = vadd.f32 %v1345, %v1425
      %v1427 = vpop.f32.mrf.mxu0
      %1428 = vmatprep.mubr.bf16.mxu0 0
      %1429 = vmatmul.mubr.bf16.gmra.mxu0 %v545
      %v1430 = vpop.f32.mrf.mxu0
      %v1431 = vadd.f32 %v1350, %v1430
      %v1432 = vpop.f32.mrf.mxu0
      %v1433 = vpop.f32.mrf.mxu0
      %v1434 = vadd.f32 %v1353, %v1433
      %v1435 = vpop.f32.mrf.mxu0
      %1436 = vmatprep.mubr.bf16.mxu0 0
      %1437 = vmatmul.mubr.bf16.gmra.mxu0 %v548
      %v1438 = vpop.f32.mrf.mxu0
      %v1439 = vadd.f32 %v1358, %v1438
      %v1440 = vpop.f32.mrf.mxu0
      %v1441 = vpop.f32.mrf.mxu0
      %v1442 = vadd.f32 %v1361, %v1441
      %v1443 = vpop.f32.mrf.mxu0
      %1444 = vmatprep.mubr.bf16.mxu0 0
      %1445 = vmatmul.mubr.bf16.gmra.mxu0 %v551
      %v1446 = vpop.f32.mrf.mxu0
      %v1447 = vadd.f32 %v1366, %v1446
      %v1448 = vpop.f32.mrf.mxu0
      %v1449 = vpop.f32.mrf.mxu0
      %v1450 = vadd.f32 %v1369, %v1449
      %v1451 = vpop.f32.mrf.mxu0
      %1452 = vdwg.mxu0
      %v1453 = vld [vmem:[%s192 + $0x8] sm:$0xc]
      %v1454 = vld [vmem:[%s192 + $0xc] sm:$0xf]
      %v1455 = vld [vmem:[%s192 + $0x10] sm:$0xf]
      %v1456 = vld [vmem:[%s192 + $0x14] sm:$0xf]
      %v1457 = vld [vmem:[%s192 + $0x18] sm:$0xf]
      %v1458 = vld [vmem:[%s192 + $0x1c] sm:$0xf]
      %v1459 = vld [vmem:[%s192 + $0x20] sm:$0xf]
      %v1460 = vld [vmem:[%s192 + $0x24] sm:$0xf]
      %v1461 = vld [vmem:[%s192 + $0x28] sm:$0xf]
      %v1462 = vld [vmem:[%s192 + $0x2c] sm:$0xf]
      %v1463 = vld [vmem:[%s192 + $0x30] sm:$0x3]
      %s1464 = scalar_lea.vmem %s1, 80
      %v1465 = vld [vmem:[%s1464] sm:$0xf]
      %v1466 = vld [vmem:[%s1464 + $0x4] sm:$0x3]
      %v1478 = vunpack.c.l.b16 %v1453
      %v1479 = vunpack.c.l.b16 %v1454
      %v1480 = vunpack.c.l.b16 %v1455
      %v1481 = vunpack.c.l.b16 %v1456
      %v1482 = vunpack.c.l.b16 %v1457
      %v1483 = vunpack.c.l.b16 %v1458
      %v1484 = vunpack.c.l.b16 %v1459
      %v1485 = vunpack.c.l.b16 %v1460
      %v1486 = vunpack.c.l.b16 %v1461
      %v1487 = vunpack.c.l.b16 %v1462
      %v1488 = vunpack.c.l.b16 %v1463
      %v1489 = vpack.c.b16 %v1479, %v1478
      %v1490 = vpack.c.b16 %v1481, %v1480
      %v1491 = vpack.c.b16 %v1483, %v1482
      %v1492 = vpack.c.b16 %v1485, %v1484
      %v1493 = vpack.c.b16 %v1487, %v1486
      %v1494 = vpack.c.b16 %v1488, %v1488
      %v1495 = vrot.slane %v1489, 2
      %v1496 = vrot.slane %v1490, 2
      %v1497 = vsel %vm1137, %v1495, %v1496
      %v1498 = vrot.slane %v1491, 2
      %v1499 = vsel %vm1137, %v1496, %v1498
      %v1500 = vrot.slane %v1492, 2
      %v1501 = vsel %vm1137, %v1498, %v1500
      %v1502 = vrot.slane %v1493, 2
      %v1503 = vsel %vm1137, %v1500, %v1502
      %v1504 = vrot.slane %v1494, 2
      %v1505 = vsel %vm1137, %v1502, %v1504
      %v1508 = vunpack.c.l.b16 %v1465
      %v1509 = vunpack.c.l.b16 %v1466
      %v1510 = vpack.c.b16 %v1509, %v1508
      %v1512 = vsel %vm295, %v1497, 0
      %v1515 = vsel %vm295, %v1499, 0
      %v1518 = vsel %vm295, %v1501, 0
      %v1521 = vsel %vm295, %v1503, 0
      %v1524 = vsel %vm295, %v1505, 0
      %v1527 = vsel %vm311, %v1510, 0
      %1529 = vmatprep.subr.bf16.mxu0 0
      %1530 = vmatpush1.bf16.msra.mxu0 0
      %1531 = vmatprep.subr.bf16.mxu0 0
      %1532 = vmatpush1.bf16.msra.mxu0 0
      %1533 = vmatprep.subr.bf16.mxu0 0
      %1534 = vmatpush1.bf16.msra.mxu0 0
      %1535 = vmatprep.subr.bf16.mxu0 0
      %1536 = vmatpush1.bf16.msra.mxu0 0
      %1537 = vmatprep.subr.bf16.mxu0 0
      %1538 = vmatpush1.bf16.msra.mxu0 0
      %1539 = vmatprep.subr.bf16.mxu0 0
      %1540 = vmatpush1.bf16.msra.mxu0 0
      %1541 = vmatprep.subr.bf16.mxu0 0
      %1542 = vmatpush1.bf16.msra.mxu0 0
      %1543 = vmatprep.subr.bf16.mxu0 0
      %1544 = vmatpush1.bf16.msra.mxu0 %v1527
      %1545 = vmatprep.subr.bf16.mxu0 0
      %1546 = vmatpush2.bf16.msra.mxu0 0
      %1547 = vmatprep.subr.bf16.mxu0 0
      %1548 = vmatpush2.bf16.msra.mxu0 0
      %1549 = vmatprep.subr.bf16.mxu0 0
      %1550 = vmatpush2.bf16.msra.mxu0 0
      %1551 = vmatprep.subr.bf16.mxu0 0
      %1552 = vmatpush2.bf16.msra.mxu0 0
      %1553 = vmatprep.subr.bf16.mxu0 0
      %1554 = vmatpush2.bf16.msra.mxu0 0
      %1555 = vmatprep.subr.bf16.mxu0 0
      %1556 = vmatpush2.bf16.msra.mxu0 0
      %1557 = vmatprep.subr.bf16.mxu0 0
      %1558 = vmatpush2.bf16.msra.mxu0 0
      %1559 = vmatprep.subr.bf16.mxu0 0
      %1560 = vmatpush2.bf16.msra.mxu0 0
      %1561 = vmatprep.mubr.bf16.mxu0 0
      %1562 = vmatmul.mubr.bf16.gmra.mxu0 %v1512
      %v1563 = vpop.f32.mrf.mxu0
      %v1564 = vadd.f32 0.0, %v1563
      %v1565 = vpop.f32.mrf.mxu0
      %v1566 = vpop.f32.mrf.mxu0
      %v1567 = vadd.f32 0.0, %v1566
      %v1568 = vpop.f32.mrf.mxu0
      %1569 = vmatprep.mubr.bf16.mxu0 0
      %1570 = vmatmul.mubr.bf16.gmra.mxu0 %v1515
      %v1571 = vpop.f32.mrf.mxu0
      %v1572 = vadd.f32 0.0, %v1571
      %v1573 = vpop.f32.mrf.mxu0
      %v1574 = vpop.f32.mrf.mxu0
      %v1575 = vadd.f32 0.0, %v1574
      %v1576 = vpop.f32.mrf.mxu0
      %1577 = vmatprep.mubr.bf16.mxu0 0
      %1578 = vmatmul.mubr.bf16.gmra.mxu0 %v1518
      %v1579 = vpop.f32.mrf.mxu0
      %v1580 = vadd.f32 0.0, %v1579
      %v1581 = vpop.f32.mrf.mxu0
      %v1582 = vpop.f32.mrf.mxu0
      %v1583 = vadd.f32 0.0, %v1582
      %v1584 = vpop.f32.mrf.mxu0
      %1585 = vmatprep.mubr.bf16.mxu0 0
      %1586 = vmatmul.mubr.bf16.gmra.mxu0 %v1521
      %v1587 = vpop.f32.mrf.mxu0
      %v1588 = vadd.f32 0.0, %v1587
      %v1589 = vpop.f32.mrf.mxu0
      %v1590 = vpop.f32.mrf.mxu0
      %v1591 = vadd.f32 0.0, %v1590
      %v1592 = vpop.f32.mrf.mxu0
      %1593 = vmatprep.mubr.bf16.mxu0 0
      %1594 = vmatmul.mubr.bf16.gmra.mxu0 %v1524
      %v1595 = vpop.f32.mrf.mxu0
      %v1596 = vadd.f32 0.0, %v1595
      %v1597 = vpop.f32.mrf.mxu0
      %v1598 = vpop.f32.mrf.mxu0
      %v1599 = vadd.f32 0.0, %v1598
      %v1600 = vpop.f32.mrf.mxu0
      %1601 = vdwg.mxu0
      %v1602 = vadd.f32 %v1415, %v1564
      %v1603 = vadd.f32 %v1418, %v1567
      %v1604 = vadd.f32 %v1423, %v1572
      %v1605 = vadd.f32 %v1426, %v1575
      %v1606 = vadd.f32 %v1431, %v1580
      %v1607 = vadd.f32 %v1434, %v1583
      %v1608 = vadd.f32 %v1439, %v1588
      %v1609 = vadd.f32 %v1442, %v1591
      %v1610 = vadd.f32 %v1447, %v1596
      %v1611 = vadd.f32 %v1450, %v1599
      %v1612 = vld [vmem:[%s192 + $0x30] sm:$0x7]
      %s1613 = scalar_lea.vmem %s1, 88
      %v1614 = vld [vmem:[%s1613] sm:$0xf]
      %v1615 = vld [vmem:[%s1613 + $0x4] sm:$0x3]
      %v1617 = vunpack.c.l.b16 %v1612
      %v1618 = vpack.c.b16 %v1617, %v1617
      %vm1619 = vsmask.f32 5376
      %v1621 = vshrl.u32 %v1489, 16
      %v1623 = vrot.slane %v1621, 2
      %v1624 = vshll.u32 %v1489, 16
      %v1626 = vrot.slane %v1624, 3
      %v1627 = vor.u32 %v1623, %v1626
      %v1629 = vshrl.u32 %v1490, 16
      %v1631 = vrot.slane %v1629, 2
      %v1632 = vshll.u32 %v1490, 16
      %v1634 = vrot.slane %v1632, 3
      %v1635 = vor.u32 %v1631, %v1634
      %v1636 = vsel %vm1619, %v1627, %v1635
      %v1638 = vshrl.u32 %v1491, 16
      %v1640 = vrot.slane %v1638, 2
      %v1641 = vshll.u32 %v1491, 16
      %v1643 = vrot.slane %v1641, 3
      %v1644 = vor.u32 %v1640, %v1643
      %v1645 = vsel %vm1619, %v1635, %v1644
      %v1647 = vshrl.u32 %v1492, 16
      %v1649 = vrot.slane %v1647, 2
      %v1650 = vshll.u32 %v1492, 16
      %v1652 = vrot.slane %v1650, 3
      %v1653 = vor.u32 %v1649, %v1652
      %v1654 = vsel %vm1619, %v1644, %v1653
      %v1656 = vshrl.u32 %v1493, 16
      %v1658 = vrot.slane %v1656, 2
      %v1659 = vshll.u32 %v1493, 16
      %v1661 = vrot.slane %v1659, 3
      %v1662 = vor.u32 %v1658, %v1661
      %v1663 = vsel %vm1619, %v1653, %v1662
      %v1665 = vshrl.u32 %v1618, 16
      %v1667 = vrot.slane %v1665, 2
      %v1668 = vshll.u32 %v1618, 16
      %v1670 = vrot.slane %v1668, 3
      %v1671 = vor.u32 %v1667, %v1670
      %v1672 = vsel %vm1619, %v1662, %v1671
      %v1675 = vunpack.c.l.b16 %v1614
      %v1676 = vunpack.c.l.b16 %v1615
      %v1677 = vpack.c.b16 %v1676, %v1675
      %v1679 = vsel %vm295, %v1636, 0
      %v1682 = vsel %vm295, %v1645, 0
      %v1685 = vsel %vm295, %v1654, 0
      %v1688 = vsel %vm295, %v1663, 0
      %v1691 = vsel %vm295, %v1672, 0
      %v1694 = vsel %vm311, %v1677, 0
      %1696 = vmatprep.subr.bf16.mxu0 0
      %1697 = vmatpush1.bf16.msra.mxu0 0
      %1698 = vmatprep.subr.bf16.mxu0 0
      %1699 = vmatpush1.bf16.msra.mxu0 0
      %1700 = vmatprep.subr.bf16.mxu0 0
      %1701 = vmatpush1.bf16.msra.mxu0 0
      %1702 = vmatprep.subr.bf16.mxu0 0
      %1703 = vmatpush1.bf16.msra.mxu0 0
      %1704 = vmatprep.subr.bf16.mxu0 0
      %1705 = vmatpush1.bf16.msra.mxu0 0
      %1706 = vmatprep.subr.bf16.mxu0 0
      %1707 = vmatpush1.bf16.msra.mxu0 0
      %1708 = vmatprep.subr.bf16.mxu0 0
      %1709 = vmatpush1.bf16.msra.mxu0 0
      %1710 = vmatprep.subr.bf16.mxu0 0
      %1711 = vmatpush1.bf16.msra.mxu0 %v1694
      %1712 = vmatprep.subr.bf16.mxu0 0
      %1713 = vmatpush2.bf16.msra.mxu0 0
      %1714 = vmatprep.subr.bf16.mxu0 0
      %1715 = vmatpush2.bf16.msra.mxu0 0
      %1716 = vmatprep.subr.bf16.mxu0 0
      %1717 = vmatpush2.bf16.msra.mxu0 0
      %1718 = vmatprep.subr.bf16.mxu0 0
      %1719 = vmatpush2.bf16.msra.mxu0 0
      %1720 = vmatprep.subr.bf16.mxu0 0
      %1721 = vmatpush2.bf16.msra.mxu0 0
      %1722 = vmatprep.subr.bf16.mxu0 0
      %1723 = vmatpush2.bf16.msra.mxu0 0
      %1724 = vmatprep.subr.bf16.mxu0 0
      %1725 = vmatpush2.bf16.msra.mxu0 0
      %1726 = vmatprep.subr.bf16.mxu0 0
      %1727 = vmatpush2.bf16.msra.mxu0 0
      %1728 = vmatprep.mubr.bf16.mxu0 0
      %1729 = vmatmul.mubr.bf16.gmra.mxu0 %v1679
      %v1730 = vpop.f32.mrf.mxu0
      %v1731 = vadd.f32 0.0, %v1730
      %v1732 = vpop.f32.mrf.mxu0
      %v1733 = vpop.f32.mrf.mxu0
      %v1734 = vadd.f32 0.0, %v1733
      %v1735 = vpop.f32.mrf.mxu0
      %1736 = vmatprep.mubr.bf16.mxu0 0
      %1737 = vmatmul.mubr.bf16.gmra.mxu0 %v1682
      %v1738 = vpop.f32.mrf.mxu0
      %v1739 = vadd.f32 0.0, %v1738
      %v1740 = vpop.f32.mrf.mxu0
      %v1741 = vpop.f32.mrf.mxu0
      %v1742 = vadd.f32 0.0, %v1741
      %v1743 = vpop.f32.mrf.mxu0
      %1744 = vmatprep.mubr.bf16.mxu0 0
      %1745 = vmatmul.mubr.bf16.gmra.mxu0 %v1685
      %v1746 = vpop.f32.mrf.mxu0
      %v1747 = vadd.f32 0.0, %v1746
      %v1748 = vpop.f32.mrf.mxu0
      %v1749 = vpop.f32.mrf.mxu0
      %v1750 = vadd.f32 0.0, %v1749
      %v1751 = vpop.f32.mrf.mxu0
      %1752 = vmatprep.mubr.bf16.mxu0 0
      %1753 = vmatmul.mubr.bf16.gmra.mxu0 %v1688
      %v1754 = vpop.f32.mrf.mxu0
      %v1755 = vadd.f32 0.0, %v1754
      %v1756 = vpop.f32.mrf.mxu0
      %v1757 = vpop.f32.mrf.mxu0
      %v1758 = vadd.f32 0.0, %v1757
      %v1759 = vpop.f32.mrf.mxu0
      %1760 = vmatprep.mubr.bf16.mxu0 0
      %1761 = vmatmul.mubr.bf16.gmra.mxu0 %v1691
      %v1762 = vpop.f32.mrf.mxu0
      %v1763 = vadd.f32 0.0, %v1762
      %v1764 = vpop.f32.mrf.mxu0
      %v1765 = vpop.f32.mrf.mxu0
      %v1766 = vadd.f32 0.0, %v1765
      %v1767 = vpop.f32.mrf.mxu0
      %1768 = vdwg.mxu0
      %v1769 = vadd.f32 %v1602, %v1731
      %v1770 = vadd.f32 %v1603, %v1734
      %v1771 = vadd.f32 %v1604, %v1739
      %v1772 = vadd.f32 %v1605, %v1742
      %v1773 = vadd.f32 %v1606, %v1747
      %v1774 = vadd.f32 %v1607, %v1750
      %v1775 = vadd.f32 %v1608, %v1755
      %v1776 = vadd.f32 %v1609, %v1758
      %v1777 = vadd.f32 %v1610, %v1763
      %v1778 = vadd.f32 %v1611, %v1766
      %v1779 = vmul.f32 %v1769, %v810
      %v1780 = vmul.f32 %v1770, %v810
      %v1781 = vmul.f32 %v1771, %v810
      %v1782 = vmul.f32 %v1772, %v810
      %v1783 = vmul.f32 %v1773, %v810
      %v1784 = vmul.f32 %v1774, %v810
      %v1785 = vmul.f32 %v1775, %v810
      %v1786 = vmul.f32 %v1776, %v810
      %v1787 = vmul.f32 %v1777, %v810
      %v1788 = vmul.f32 %v1778, %v810
      %v1789 = vadd.f32 %v1779, %v826
      %v1790 = vadd.f32 %v1780, %v826
      %v1791 = vadd.f32 %v1781, %v826
      %v1792 = vadd.f32 %v1782, %v826
      %v1793 = vadd.f32 %v1783, %v826
      %v1794 = vadd.f32 %v1784, %v826
      %v1795 = vadd.f32 %v1785, %v826
      %v1796 = vadd.f32 %v1786, %v826
      %v1797 = vadd.f32 %v1787, %v826
      %v1798 = vadd.f32 %v1788, %v826
      %v1799 = vmax.f32 %v1275, %v1789
      %v1800 = vmax.f32 %v1276, %v1790
      %v1801 = vmax.f32 %v1277, %v1791
      %v1802 = vmax.f32 %v1278, %v1792
      %v1803 = vmax.f32 %v1279, %v1793
      %v1804 = vmax.f32 %v1280, %v1794
      %v1805 = vmax.f32 %v1281, %v1795
      %v1806 = vmax.f32 %v1282, %v1796
      %v1807 = vmax.f32 %v1283, %v1797
      %v1808 = vmax.f32 %v1284, %v1798
      %s1809 = scalar_lea.vmem %s1, 96
      %v1810 = vld [vmem:[%s1809] sm:$0xf]
      %v1811 = vld [vmem:[%s1809 + $0x4] sm:$0x3]
      %s1812 = scalar_lea.vmem %s1, 104
      %v1813 = vld [vmem:[%s1812] sm:$0xf]
      %v1814 = vld [vmem:[%s1812 + $0x4] sm:$0x3]
      %v1817 = vunpack.c.l.b16 %v1813
      %v1818 = vunpack.c.l.b16 %v1814
      %v1819 = vpack.c.b16 %v1818, %v1817
      %v1821 = vsel %vm311, %v1819, 0
      %1823 = vmatprep.subr.bf16.mxu0 0
      %1824 = vmatpush1.bf16.msra.mxu0 0
      %1825 = vmatprep.subr.bf16.mxu0 0
      %1826 = vmatpush1.bf16.msra.mxu0 0
      %1827 = vmatprep.subr.bf16.mxu0 0
      %1828 = vmatpush1.bf16.msra.mxu0 0
      %1829 = vmatprep.subr.bf16.mxu0 0
      %1830 = vmatpush1.bf16.msra.mxu0 0
      %1831 = vmatprep.subr.bf16.mxu0 0
      %1832 = vmatpush1.bf16.msra.mxu0 0
      %1833 = vmatprep.subr.bf16.mxu0 0
      %1834 = vmatpush1.bf16.msra.mxu0 0
      %1835 = vmatprep.subr.bf16.mxu0 0
      %1836 = vmatpush1.bf16.msra.mxu0 0
      %1837 = vmatprep.subr.bf16.mxu0 0
      %1838 = vmatpush1.bf16.msra.mxu0 %v1821
      %1839 = vmatprep.subr.bf16.mxu0 0
      %1840 = vmatpush2.bf16.msra.mxu0 0
      %1841 = vmatprep.subr.bf16.mxu0 0
      %1842 = vmatpush2.bf16.msra.mxu0 0
      %1843 = vmatprep.subr.bf16.mxu0 0
      %1844 = vmatpush2.bf16.msra.mxu0 0
      %1845 = vmatprep.subr.bf16.mxu0 0
      %1846 = vmatpush2.bf16.msra.mxu0 0
      %1847 = vmatprep.subr.bf16.mxu0 0
      %1848 = vmatpush2.bf16.msra.mxu0 0
      %1849 = vmatprep.subr.bf16.mxu0 0
      %1850 = vmatpush2.bf16.msra.mxu0 0
      %1851 = vmatprep.subr.bf16.mxu0 0
      %1852 = vmatpush2.bf16.msra.mxu0 0
      %1853 = vmatprep.subr.bf16.mxu0 0
      %1854 = vmatpush2.bf16.msra.mxu0 0
      %1855 = vmatprep.mubr.bf16.mxu0 0
      %1856 = vmatmul.mubr.bf16.gmra.mxu0 %v1155
      %v1857 = vpop.f32.mrf.mxu0
      %v1858 = vadd.f32 0.0, %v1857
      %v1859 = vpop.f32.mrf.mxu0
      %v1860 = vpop.f32.mrf.mxu0
      %v1861 = vadd.f32 0.0, %v1860
      %v1862 = vpop.f32.mrf.mxu0
      %1863 = vmatprep.mubr.bf16.mxu0 0
      %1864 = vmatmul.mubr.bf16.gmra.mxu0 %v1158
      %v1865 = vpop.f32.mrf.mxu0
      %v1866 = vadd.f32 0.0, %v1865
      %v1867 = vpop.f32.mrf.mxu0
      %v1868 = vpop.f32.mrf.mxu0
      %v1869 = vadd.f32 0.0, %v1868
      %v1870 = vpop.f32.mrf.mxu0
      %1871 = vmatprep.mubr.bf16.mxu0 0
      %1872 = vmatmul.mubr.bf16.gmra.mxu0 %v1161
      %v1873 = vpop.f32.mrf.mxu0
      %v1874 = vadd.f32 0.0, %v1873
      %v1875 = vpop.f32.mrf.mxu0
      %v1876 = vpop.f32.mrf.mxu0
      %v1877 = vadd.f32 0.0, %v1876
      %v1878 = vpop.f32.mrf.mxu0
      %1879 = vmatprep.mubr.bf16.mxu0 0
      %1880 = vmatmul.mubr.bf16.gmra.mxu0 %v1164
      %v1881 = vpop.f32.mrf.mxu0
      %v1882 = vadd.f32 0.0, %v1881
      %v1883 = vpop.f32.mrf.mxu0
      %v1884 = vpop.f32.mrf.mxu0
      %v1885 = vadd.f32 0.0, %v1884
      %v1886 = vpop.f32.mrf.mxu0
      %1887 = vmatprep.mubr.bf16.mxu0 0
      %1888 = vmatmul.mubr.bf16.gmra.mxu0 %v1167
      %v1889 = vpop.f32.mrf.mxu0
      %v1890 = vadd.f32 0.0, %v1889
      %v1891 = vpop.f32.mrf.mxu0
      %v1892 = vpop.f32.mrf.mxu0
      %v1893 = vadd.f32 0.0, %v1892
      %v1894 = vpop.f32.mrf.mxu0
      %1895 = vdwg.mxu0
      %v1898 = vunpack.c.l.b16 %v1810
      %v1899 = vunpack.c.l.b16 %v1811
      %v1900 = vpack.c.b16 %v1899, %v1898
      %v1902 = vsel %vm311, %v1900, 0
      %1904 = vmatprep.subr.bf16.mxu0 0
      %1905 = vmatpush1.bf16.msra.mxu0 0
      %1906 = vmatprep.subr.bf16.mxu0 0
      %1907 = vmatpush1.bf16.msra.mxu0 0
      %1908 = vmatprep.subr.bf16.mxu0 0
      %1909 = vmatpush1.bf16.msra.mxu0 0
      %1910 = vmatprep.subr.bf16.mxu0 0
      %1911 = vmatpush1.bf16.msra.mxu0 0
      %1912 = vmatprep.subr.bf16.mxu0 0
      %1913 = vmatpush1.bf16.msra.mxu0 0
      %1914 = vmatprep.subr.bf16.mxu0 0
      %1915 = vmatpush1.bf16.msra.mxu0 0
      %1916 = vmatprep.subr.bf16.mxu0 0
      %1917 = vmatpush1.bf16.msra.mxu0 0
      %1918 = vmatprep.subr.bf16.mxu0 0
      %1919 = vmatpush1.bf16.msra.mxu0 %v1902
      %1920 = vmatprep.subr.bf16.mxu0 0
      %1921 = vmatpush2.bf16.msra.mxu0 0
      %1922 = vmatprep.subr.bf16.mxu0 0
      %1923 = vmatpush2.bf16.msra.mxu0 0
      %1924 = vmatprep.subr.bf16.mxu0 0
      %1925 = vmatpush2.bf16.msra.mxu0 0
      %1926 = vmatprep.subr.bf16.mxu0 0
      %1927 = vmatpush2.bf16.msra.mxu0 0
      %1928 = vmatprep.subr.bf16.mxu0 0
      %1929 = vmatpush2.bf16.msra.mxu0 0
      %1930 = vmatprep.subr.bf16.mxu0 0
      %1931 = vmatpush2.bf16.msra.mxu0 0
      %1932 = vmatprep.subr.bf16.mxu0 0
      %1933 = vmatpush2.bf16.msra.mxu0 0
      %1934 = vmatprep.subr.bf16.mxu0 0
      %1935 = vmatpush2.bf16.msra.mxu0 0
      %1936 = vmatprep.mubr.bf16.mxu0 0
      %1937 = vmatmul.mubr.bf16.gmra.mxu0 %v706
      %v1938 = vpop.f32.mrf.mxu0
      %v1939 = vadd.f32 %v1858, %v1938
      %v1940 = vpop.f32.mrf.mxu0
      %v1941 = vpop.f32.mrf.mxu0
      %v1942 = vadd.f32 %v1861, %v1941
      %v1943 = vpop.f32.mrf.mxu0
      %1944 = vmatprep.mubr.bf16.mxu0 0
      %1945 = vmatmul.mubr.bf16.gmra.mxu0 %v709
      %v1946 = vpop.f32.mrf.mxu0
      %v1947 = vadd.f32 %v1866, %v1946
      %v1948 = vpop.f32.mrf.mxu0
      %v1949 = vpop.f32.mrf.mxu0
      %v1950 = vadd.f32 %v1869, %v1949
      %v1951 = vpop.f32.mrf.mxu0
      %1952 = vmatprep.mubr.bf16.mxu0 0
      %1953 = vmatmul.mubr.bf16.gmra.mxu0 %v712
      %v1954 = vpop.f32.mrf.mxu0
      %v1955 = vadd.f32 %v1874, %v1954
      %v1956 = vpop.f32.mrf.mxu0
      %v1957 = vpop.f32.mrf.mxu0
      %v1958 = vadd.f32 %v1877, %v1957
      %v1959 = vpop.f32.mrf.mxu0
      %1960 = vmatprep.mubr.bf16.mxu0 0
      %1961 = vmatmul.mubr.bf16.gmra.mxu0 %v715
      %v1962 = vpop.f32.mrf.mxu0
      %v1963 = vadd.f32 %v1882, %v1962
      %v1964 = vpop.f32.mrf.mxu0
      %v1965 = vpop.f32.mrf.mxu0
      %v1966 = vadd.f32 %v1885, %v1965
      %v1967 = vpop.f32.mrf.mxu0
      %1968 = vmatprep.mubr.bf16.mxu0 0
      %1969 = vmatmul.mubr.bf16.gmra.mxu0 %v718
      %v1970 = vpop.f32.mrf.mxu0
      %v1971 = vadd.f32 %v1890, %v1970
      %v1972 = vpop.f32.mrf.mxu0
      %v1973 = vpop.f32.mrf.mxu0
      %v1974 = vadd.f32 %v1893, %v1973
      %v1975 = vpop.f32.mrf.mxu0
      %1976 = vdwg.mxu0
      %s1977 = scalar_lea.vmem %s1, 112
      %v1978 = vld [vmem:[%s1977] sm:$0xf]
      %v1979 = vld [vmem:[%s1977 + $0x4] sm:$0x3]
      %v1982 = vunpack.c.l.b16 %v1978
      %v1983 = vunpack.c.l.b16 %v1979
      %v1984 = vpack.c.b16 %v1983, %v1982
      %v1986 = vsel %vm311, %v1984, 0
      %1988 = vmatprep.subr.bf16.mxu0 0
      %1989 = vmatpush1.bf16.msra.mxu0 0
      %1990 = vmatprep.subr.bf16.mxu0 0
      %1991 = vmatpush1.bf16.msra.mxu0 0
      %1992 = vmatprep.subr.bf16.mxu0 0
      %1993 = vmatpush1.bf16.msra.mxu0 0
      %1994 = vmatprep.subr.bf16.mxu0 0
      %1995 = vmatpush1.bf16.msra.mxu0 0
      %1996 = vmatprep.subr.bf16.mxu0 0
      %1997 = vmatpush1.bf16.msra.mxu0 0
      %1998 = vmatprep.subr.bf16.mxu0 0
      %1999 = vmatpush1.bf16.msra.mxu0 0
      %2000 = vmatprep.subr.bf16.mxu0 0
      %2001 = vmatpush1.bf16.msra.mxu0 0
      %2002 = vmatprep.subr.bf16.mxu0 0
      %2003 = vmatpush1.bf16.msra.mxu0 %v1986
      %2004 = vmatprep.subr.bf16.mxu0 0
      %2005 = vmatpush2.bf16.msra.mxu0 0
      %2006 = vmatprep.subr.bf16.mxu0 0
      %2007 = vmatpush2.bf16.msra.mxu0 0
      %2008 = vmatprep.subr.bf16.mxu0 0
      %2009 = vmatpush2.bf16.msra.mxu0 0
      %2010 = vmatprep.subr.bf16.mxu0 0
      %2011 = vmatpush2.bf16.msra.mxu0 0
      %2012 = vmatprep.subr.bf16.mxu0 0
      %2013 = vmatpush2.bf16.msra.mxu0 0
      %2014 = vmatprep.subr.bf16.mxu0 0
      %2015 = vmatpush2.bf16.msra.mxu0 0
      %2016 = vmatprep.subr.bf16.mxu0 0
      %2017 = vmatpush2.bf16.msra.mxu0 0
      %2018 = vmatprep.subr.bf16.mxu0 0
      %2019 = vmatpush2.bf16.msra.mxu0 0
      %2020 = vmatprep.mubr.bf16.mxu0 0
      %2021 = vmatmul.mubr.bf16.gmra.mxu0 %v1679
      %v2022 = vpop.f32.mrf.mxu0
      %v2023 = vadd.f32 0.0, %v2022
      %v2024 = vpop.f32.mrf.mxu0
      %v2025 = vpop.f32.mrf.mxu0
      %v2026 = vadd.f32 0.0, %v2025
      %v2027 = vpop.f32.mrf.mxu0
      %2028 = vmatprep.mubr.bf16.mxu0 0
      %2029 = vmatmul.mubr.bf16.gmra.mxu0 %v1682
      %v2030 = vpop.f32.mrf.mxu0
      %v2031 = vadd.f32 0.0, %v2030
      %v2032 = vpop.f32.mrf.mxu0
      %v2033 = vpop.f32.mrf.mxu0
      %v2034 = vadd.f32 0.0, %v2033
      %v2035 = vpop.f32.mrf.mxu0
      %2036 = vmatprep.mubr.bf16.mxu0 0
      %2037 = vmatmul.mubr.bf16.gmra.mxu0 %v1685
      %v2038 = vpop.f32.mrf.mxu0
      %v2039 = vadd.f32 0.0, %v2038
      %v2040 = vpop.f32.mrf.mxu0
      %v2041 = vpop.f32.mrf.mxu0
      %v2042 = vadd.f32 0.0, %v2041
      %v2043 = vpop.f32.mrf.mxu0
      %2044 = vmatprep.mubr.bf16.mxu0 0
      %2045 = vmatmul.mubr.bf16.gmra.mxu0 %v1688
      %v2046 = vpop.f32.mrf.mxu0
      %v2047 = vadd.f32 0.0, %v2046
      %v2048 = vpop.f32.mrf.mxu0
      %v2049 = vpop.f32.mrf.mxu0
      %v2050 = vadd.f32 0.0, %v2049
      %v2051 = vpop.f32.mrf.mxu0
      %2052 = vmatprep.mubr.bf16.mxu0 0
      %2053 = vmatmul.mubr.bf16.gmra.mxu0 %v1691
      %v2054 = vpop.f32.mrf.mxu0
      %v2055 = vadd.f32 0.0, %v2054
      %v2056 = vpop.f32.mrf.mxu0
      %v2057 = vpop.f32.mrf.mxu0
      %v2058 = vadd.f32 0.0, %v2057
      %v2059 = vpop.f32.mrf.mxu0
      %2060 = vdwg.mxu0
      %v2061 = vadd.f32 %v1939, %v2023
      %v2062 = vadd.f32 %v1942, %v2026
      %v2063 = vadd.f32 %v1947, %v2031
      %v2064 = vadd.f32 %v1950, %v2034
      %v2065 = vadd.f32 %v1955, %v2039
      %v2066 = vadd.f32 %v1958, %v2042
      %v2067 = vadd.f32 %v1963, %v2047
      %v2068 = vadd.f32 %v1966, %v2050
      %v2069 = vadd.f32 %v1971, %v2055
      %v2070 = vadd.f32 %v1974, %v2058
      %v2071 = vld [vmem:[%s192 + $0x8] sm:$0x8]
      %s2072 = scalar_lea.vmem %s1, 120
      %v2073 = vld [vmem:[%s2072] sm:$0xf]
      %v2074 = vld [vmem:[%s2072 + $0x4] sm:$0x3]
      %v2076 = vunpack.c.l.b16 %v2071
      %v2077 = vpack.c.b16 %v1479, %v2076
      %vm2078 = vcmask 1044480
      %v2079 = vrot.slane %v2077, 3
      %v2080 = vrot.slane %v1490, 3
      %v2081 = vsel %vm2078, %v2079, %v2080
      %v2082 = vrot.slane %v1491, 3
      %v2083 = vsel %vm2078, %v2080, %v2082
      %v2084 = vrot.slane %v1492, 3
      %v2085 = vsel %vm2078, %v2082, %v2084
      %v2086 = vrot.slane %v1493, 3
      %v2087 = vsel %vm2078, %v2084, %v2086
      %v2088 = vrot.slane %v1618, 3
      %v2089 = vsel %vm2078, %v2086, %v2088
      %v2092 = vunpack.c.l.b16 %v2073
      %v2093 = vunpack.c.l.b16 %v2074
      %v2094 = vpack.c.b16 %v2093, %v2092
      %v2096 = vsel %vm295, %v2081, 0
      %v2099 = vsel %vm295, %v2083, 0
      %v2102 = vsel %vm295, %v2085, 0
      %v2105 = vsel %vm295, %v2087, 0
      %v2108 = vsel %vm295, %v2089, 0
      %v2111 = vsel %vm311, %v2094, 0
      %2113 = vmatprep.subr.bf16.mxu0 0
      %2114 = vmatpush1.bf16.msra.mxu0 0
      %2115 = vmatprep.subr.bf16.mxu0 0
      %2116 = vmatpush1.bf16.msra.mxu0 0
      %2117 = vmatprep.subr.bf16.mxu0 0
      %2118 = vmatpush1.bf16.msra.mxu0 0
      %2119 = vmatprep.subr.bf16.mxu0 0
      %2120 = vmatpush1.bf16.msra.mxu0 0
      %2121 = vmatprep.subr.bf16.mxu0 0
      %2122 = vmatpush1.bf16.msra.mxu0 0
      %2123 = vmatprep.subr.bf16.mxu0 0
      %2124 = vmatpush1.bf16.msra.mxu0 0
      %2125 = vmatprep.subr.bf16.mxu0 0
      %2126 = vmatpush1.bf16.msra.mxu0 0
      %2127 = vmatprep.subr.bf16.mxu0 0
      %2128 = vmatpush1.bf16.msra.mxu0 %v2111
      %2129 = vmatprep.subr.bf16.mxu0 0
      %2130 = vmatpush2.bf16.msra.mxu0 0
      %2131 = vmatprep.subr.bf16.mxu0 0
      %2132 = vmatpush2.bf16.msra.mxu0 0
      %2133 = vmatprep.subr.bf16.mxu0 0
      %2134 = vmatpush2.bf16.msra.mxu0 0
      %2135 = vmatprep.subr.bf16.mxu0 0
      %2136 = vmatpush2.bf16.msra.mxu0 0
      %2137 = vmatprep.subr.bf16.mxu0 0
      %2138 = vmatpush2.bf16.msra.mxu0 0
      %2139 = vmatprep.subr.bf16.mxu0 0
      %2140 = vmatpush2.bf16.msra.mxu0 0
      %2141 = vmatprep.subr.bf16.mxu0 0
      %2142 = vmatpush2.bf16.msra.mxu0 0
      %2143 = vmatprep.subr.bf16.mxu0 0
      %2144 = vmatpush2.bf16.msra.mxu0 0
      %2145 = vmatprep.mubr.bf16.mxu0 0
      %2146 = vmatmul.mubr.bf16.gmra.mxu0 %v2096
      %v2147 = vpop.f32.mrf.mxu0
      %v2148 = vadd.f32 0.0, %v2147
      %v2149 = vpop.f32.mrf.mxu0
      %v2150 = vpop.f32.mrf.mxu0
      %v2151 = vadd.f32 0.0, %v2150
      %v2152 = vpop.f32.mrf.mxu0
      %2153 = vmatprep.mubr.bf16.mxu0 0
      %2154 = vmatmul.mubr.bf16.gmra.mxu0 %v2099
      %v2155 = vpop.f32.mrf.mxu0
      %v2156 = vadd.f32 0.0, %v2155
      %v2157 = vpop.f32.mrf.mxu0
      %v2158 = vpop.f32.mrf.mxu0
      %v2159 = vadd.f32 0.0, %v2158
      %v2160 = vpop.f32.mrf.mxu0
      %2161 = vmatprep.mubr.bf16.mxu0 0
      %2162 = vmatmul.mubr.bf16.gmra.mxu0 %v2102
      %v2163 = vpop.f32.mrf.mxu0
      %v2164 = vadd.f32 0.0, %v2163
      %v2165 = vpop.f32.mrf.mxu0
      %v2166 = vpop.f32.mrf.mxu0
      %v2167 = vadd.f32 0.0, %v2166
      %v2168 = vpop.f32.mrf.mxu0
      %2169 = vmatprep.mubr.bf16.mxu0 0
      %2170 = vmatmul.mubr.bf16.gmra.mxu0 %v2105
      %v2171 = vpop.f32.mrf.mxu0
      %v2172 = vadd.f32 0.0, %v2171
      %v2173 = vpop.f32.mrf.mxu0
      %v2174 = vpop.f32.mrf.mxu0
      %v2175 = vadd.f32 0.0, %v2174
      %v2176 = vpop.f32.mrf.mxu0
      %2177 = vmatprep.mubr.bf16.mxu0 0
      %2178 = vmatmul.mubr.bf16.gmra.mxu0 %v2108
      %v2179 = vpop.f32.mrf.mxu0
      %v2180 = vadd.f32 0.0, %v2179
      %v2181 = vpop.f32.mrf.mxu0
      %v2182 = vpop.f32.mrf.mxu0
      %v2183 = vadd.f32 0.0, %v2182
      %v2184 = vpop.f32.mrf.mxu0
      %2185 = vdwg.mxu0
      %v2186 = vadd.f32 %v2061, %v2148
      %v2187 = vadd.f32 %v2062, %v2151
      %v2188 = vadd.f32 %v2063, %v2156
      %v2189 = vadd.f32 %v2064, %v2159
      %v2190 = vadd.f32 %v2065, %v2164
      %v2191 = vadd.f32 %v2066, %v2167
      %v2192 = vadd.f32 %v2067, %v2172
      %v2193 = vadd.f32 %v2068, %v2175
      %v2194 = vadd.f32 %v2069, %v2180
      %v2195 = vadd.f32 %v2070, %v2183
      %v2196 = vmul.f32 %v2186, %v810
      %v2197 = vmul.f32 %v2187, %v810
      %v2198 = vmul.f32 %v2188, %v810
      %v2199 = vmul.f32 %v2189, %v810
      %v2200 = vmul.f32 %v2190, %v810
      %v2201 = vmul.f32 %v2191, %v810
      %v2202 = vmul.f32 %v2192, %v810
      %v2203 = vmul.f32 %v2193, %v810
      %v2204 = vmul.f32 %v2194, %v810
      %v2205 = vmul.f32 %v2195, %v810
      %v2206 = vadd.f32 %v2196, %v826
      %v2207 = vadd.f32 %v2197, %v826
      %v2208 = vadd.f32 %v2198, %v826
      %v2209 = vadd.f32 %v2199, %v826
      %v2210 = vadd.f32 %v2200, %v826
      %v2211 = vadd.f32 %v2201, %v826
      %v2212 = vadd.f32 %v2202, %v826
      %v2213 = vadd.f32 %v2203, %v826
      %v2214 = vadd.f32 %v2204, %v826
      %v2215 = vadd.f32 %v2205, %v826
      %v2216 = vmax.f32 %v1799, %v2206
      %v2217 = vmax.f32 %v1800, %v2207
      %v2218 = vmax.f32 %v1801, %v2208
      %v2219 = vmax.f32 %v1802, %v2209
      %v2220 = vmax.f32 %v1803, %v2210
      %v2221 = vmax.f32 %v1804, %v2211
      %v2222 = vmax.f32 %v1805, %v2212
      %v2223 = vmax.f32 %v1806, %v2213
      %v2224 = vmax.f32 %v1807, %v2214
      %v2225 = vmax.f32 %v1808, %v2215
      %v2226 = vmax.f32 %v2216, 0.0
      %v2227 = vmax.f32 %v2217, 0.0
      %v2228 = vmax.f32 %v2218, 0.0
      %v2229 = vmax.f32 %v2219, 0.0
      %v2230 = vmax.f32 %v2220, 0.0
      %v2231 = vmax.f32 %v2221, 0.0
      %v2232 = vmax.f32 %v2222, 0.0
      %v2233 = vmax.f32 %v2223, 0.0
      %v2234 = vmax.f32 %v2224, 0.0
      %v2235 = vmax.f32 %v2225, 0.0
      %v2236 = vpack.c.bf16 %v2227, %v2226
      %v2237 = vpack.c.bf16 %v2229, %v2228
      %v2238 = vpack.c.bf16 %v2231, %v2230
      %v2239 = vpack.c.bf16 %v2233, %v2232
      %v2240 = vpack.c.bf16 %v2235, %v2234
      %v2246 = vunpack.c.l.b16 %v2236
      %v2247 = vunpack.c.h.b16 %v2236
      %v2248 = vunpack.c.l.b16 %v2237
      %v2249 = vunpack.c.h.b16 %v2237
      %v2250 = vunpack.c.l.b16 %v2238
      %v2251 = vunpack.c.h.b16 %v2238
      %v2252 = vunpack.c.l.b16 %v2239
      %v2253 = vunpack.c.h.b16 %v2239
      %v2254 = vunpack.c.l.b16 %v2240
      %v2255 = vunpack.c.h.b16 %v2240
      %v2256 = vpack.c.b16 %v2246, %v2246
      %v2257 = vpack.c.b16 %v2247, %v2247
      %v2258 = vpack.c.b16 %v2248, %v2248
      %v2259 = vpack.c.b16 %v2249, %v2249
      %v2260 = vpack.c.b16 %v2250, %v2250
      %v2261 = vpack.c.b16 %v2251, %v2251
      %v2262 = vpack.c.b16 %v2252, %v2252
      %v2263 = vpack.c.b16 %v2253, %v2253
      %v2264 = vpack.c.b16 %v2254, %v2254
      %v2265 = vpack.c.b16 %v2255, %v2255
      %2276 = vst [vmem:[%s197] sm:$0xf] %v2256
      %2277 = vst [vmem:[%s197 + $0x4] sm:$0xf] %v2257
      %2278 = vst [vmem:[%s197 + $0x8] sm:$0xf] %v2258
      %2279 = vst [vmem:[%s197 + $0xc] sm:$0xf] %v2259
      %2280 = vst [vmem:[%s197 + $0x10] sm:$0xf] %v2260
      %2281 = vst [vmem:[%s197 + $0x14] sm:$0xf] %v2261
      %2282 = vst [vmem:[%s197 + $0x18] sm:$0xf] %v2262
      %2283 = vst [vmem:[%s197 + $0x1c] sm:$0xf] %v2263
      %2284 = vst [vmem:[%s197 + $0x20] sm:$0xf] %v2264
      %2285 = vst [vmem:[%s197 + $0x24] sm:$0xf] %v2265
      %p2286 = scmp.lt.s32.totalorder %s15, 1
      %s2287 = scalar_select %p2286, %s15, 1
      %s2288 = smul.addr %s2287, 10
      %s2289 = smul.addr %s2288, 4
      %s2290 = scalar_lea.vmem %s4, %s2289
      // Predicated region
      $region37: #{_forward_impl.4} parent=35 // pred_check
        %p2291 = pneg %p122
      $region38: #{_forward_impl.4} parent=35 // pred_check_branch
        %2293 = sbr.rel (%p2291) target = $region40
      $region39: #{_forward_impl.4} parent=35 // pred_region
        _
      $region40: #{_forward_impl.4} parent=35 // pred_fallthru
        _
    $region36: #{_forward_impl.4} parent=5 // pred_fallthru
      _
    %p2294 = scmp.le.s32.totalorder 2, %s10
    // Predicated region
    $region41: #{_forward_impl.4} parent=5 // pred_check
      %p2295 = pneg %p2294
    $region42: #{_forward_impl.4} parent=5 // pred_check_branch
      %2297 = sbr.rel (%p2295) target = $region44
    $region43: #{_forward_impl.4} parent=5 // pred_region
      %s2298 = ssub.s32 %s10, 2
      // Predicated region
      $region45: #{_forward_impl.4} parent=43 // pred_check
        %p2299 = pneg %p128
      $region46: #{_forward_impl.4} parent=43 // pred_check_branch
        %2301 = sbr.rel (%p2299) target = $region48
      $region47: #{_forward_impl.4} parent=43 // pred_region
        %p2302 = scmp.lt.s32.totalorder %s16, 1
        %s2303 = scalar_select %p2302, %s16, 1
        %s2304 = smul.addr %s2303, 10
        %s2305 = smul.addr %s2304, 4
        %s2306 = scalar_lea.vmem %s4, %s2305
      $region48: #{_forward_impl.4} parent=43 // pred_fallthru
        _
    $region44: #{_forward_impl.4} parent=5 // pred_fallthru
      _
  $region6: #{_forward_impl.4} parent=0 // loop_footer
    %s14 = sadd.s32 1, %s10
  $region7: #{_forward_impl.4} parent=0 // loop_footer_branch
    %9 = sbr.rel target = $region3
  $region8: #{_forward_impl.4} parent=0 // loop_exit
    _

// kernel: _forward_impl.5
$region0: #{_forward_impl.5}
  #allocation0 [shape = 'u32[]', space=smem, size = 0x4, offset = 0x4, fixed_abs, tag = 'smem constant byte address 0x4 - core index']
  #allocation1 [shape = 'u32[144,128]{1,0:T(1,128)}', space=vmem, size = 0x12000, scoped, tag = 'internal scratch']
  %s0 = inlined_call_operand.vmem [shape: bf16[2,40,128], index: 0, kind: input, shape index: {}]
  %s1 = inlined_call_operand.vmem [shape: bf16[16,128,128], index: 1, kind: input, shape index: {}]
  %s2 = inlined_call_operand.vmem [shape: f32[1,128], index: 2, kind: input, shape index: {}]
  %s3 = inlined_call_operand.vmem [shape: f32[1,128], index: 3, kind: input, shape index: {}]
  %s4 = inlined_call_operand.vmem [shape: bf16[2,24,128], index: 4, kind: output, shape index: {}]
  %s5 = sld [smem:[#allocation0]]
  $region49: #{_forward_impl.5} parent=0
    _
  %s7 = ssub.s32 1, %s5
  %s8 = scalar_select 0, %s7, %s5
  loop: start=0, step=1, limit=4
  $region2: #{_forward_impl.5} parent=0 // loop_pre_header
    _
  $region3: #{_forward_impl.5} parent=0 // loop_header
    %s10 = sphi 0, %s14
    %p11 = scmp.ge.s32.totalorder %s10, 4
    %s20 = sphi 0, %s22
    %s23 = sphi 0, %s20
    %s24 = sphi 0, %s23
    %s40 = sphi 0, %s24
    %s44 = sphi 0, %s44
    %s46 = sphi 0, %s44
    %s47 = sphi 0, %s46
    %s61 = sphi 0, %s47
    %s65 = sphi 0, %s65
    %s67 = sphi 0, %s65
    %s68 = sphi 0, %s67
    %s82 = sphi 0, %s68
    %s86 = sphi 0, %s86
    %s88 = sphi 0, %s86
    %s89 = sphi 0, %s88
    %s103 = sphi 0, %s89
    %s109 = sphi 0, %s111
    %s112 = sphi 0, %s109
    %s113 = sphi 0, %s112
    %s129 = sphi 0, %s113
  $region4: #{_forward_impl.5} parent=0 // loop_header_branch
    %13 = sbr.rel (%p11) target = $region8
  $region5: #{_forward_impl.5} parent=0 // loop_body
    %s15 = ssub.s32 %s10, 1
    %s16 = ssub.s32 %s10, 2
    %s17 = sadd.s32 %s10, 1
    %s18 = ssub.s32 %s10, %s17
    %p19 = scmp.eq.s32.totalorder %s18, 0
    %s21 = sadd.s32 %s20, 1
    %s22 = scalar_select %p19, %s20, %s21
    %p25 = pneg %p19
    %p26 = scmp.eq.s32.totalorder %s10, 1
    %p27 = por %p25, %p26
    %p28 = scmp.ne.s32.totalorder %s20, %s23
    %p29 = scmp.eq.s32.totalorder %s10, 0
    %p30 = por %p28, %p29
    %p31 = scmp.ne.s32.totalorder %s20, %s23
    %p32 = scmp.eq.s32.totalorder %s15, 1
    %p33 = por %p31, %p32
    %p34 = scmp.ne.s32.totalorder %s23, %s24
    %p35 = scmp.eq.s32.totalorder %s15, 0
    %p36 = por %p34, %p35
    %p37 = scmp.ne.s32.totalorder %s23, %s24
    %p38 = scmp.eq.s32.totalorder %s16, 1
    %p39 = por %p37, %p38
    %p41 = scmp.ne.s32.totalorder %s24, %s40
    %p42 = scmp.eq.s32.totalorder %s16, 0
    %p43 = por %p41, %p42
    %s45 = sadd.s32 %s44, 1
    %p48 = scmp.eq.s32.totalorder %s10, 1
    %p49 = scmp.ne.s32.totalorder %s44, %s46
    %p50 = scmp.eq.s32.totalorder %s10, 0
    %p51 = por %p49, %p50
    %p52 = scmp.ne.s32.totalorder %s44, %s46
    %p53 = scmp.eq.s32.totalorder %s15, 1
    %p54 = por %p52, %p53
    %p55 = scmp.ne.s32.totalorder %s46, %s47
    %p56 = scmp.eq.s32.totalorder %s15, 0
    %p57 = por %p55, %p56
    %p58 = scmp.ne.s32.totalorder %s46, %s47
    %p59 = scmp.eq.s32.totalorder %s16, 1
    %p60 = por %p58, %p59
    %p62 = scmp.ne.s32.totalorder %s47, %s61
    %p63 = scmp.eq.s32.totalorder %s16, 0
    %p64 = por %p62, %p63
    %s66 = sadd.s32 %s65, 1
    %p69 = scmp.eq.s32.totalorder %s10, 1
    %p70 = scmp.ne.s32.totalorder %s65, %s67
    %p71 = scmp.eq.s32.totalorder %s10, 0
    %p72 = por %p70, %p71
    %p73 = scmp.ne.s32.totalorder %s65, %s67
    %p74 = scmp.eq.s32.totalorder %s15, 1
    %p75 = por %p73, %p74
    %p76 = scmp.ne.s32.totalorder %s67, %s68
    %p77 = scmp.eq.s32.totalorder %s15, 0
    %p78 = por %p76, %p77
    %p79 = scmp.ne.s32.totalorder %s67, %s68
    %p80 = scmp.eq.s32.totalorder %s16, 1
    %p81 = por %p79, %p80
    %p83 = scmp.ne.s32.totalorder %s68, %s82
    %p84 = scmp.eq.s32.totalorder %s16, 0
    %p85 = por %p83, %p84
    %s87 = sadd.s32 %s86, 1
    %p90 = scmp.eq.s32.totalorder %s10, 1
    %p91 = scmp.ne.s32.totalorder %s86, %s88
    %p92 = scmp.eq.s32.totalorder %s10, 0
    %p93 = por %p91, %p92
    %p94 = scmp.ne.s32.totalorder %s86, %s88
    %p95 = scmp.eq.s32.totalorder %s15, 1
    %p96 = por %p94, %p95
    %p97 = scmp.ne.s32.totalorder %s88, %s89
    %p98 = scmp.eq.s32.totalorder %s15, 0
    %p99 = por %p97, %p98
    %p100 = scmp.ne.s32.totalorder %s88, %s89
    %p101 = scmp.eq.s32.totalorder %s16, 1
    %p102 = por %p100, %p101
    %p104 = scmp.ne.s32.totalorder %s89, %s103
    %p105 = scmp.eq.s32.totalorder %s16, 0
    %p106 = por %p104, %p105
    %s107 = ssub.s32 %s10, %s17
    %p108 = scmp.eq.s32.totalorder %s107, 0
    %s110 = sadd.s32 %s109, 1
    %s111 = scalar_select %p108, %s109, %s110
    %p114 = pneg %p108
    %p115 = scmp.eq.s32.totalorder %s10, 1
    %p116 = por %p114, %p115
    %p117 = scmp.ne.s32.totalorder %s109, %s112
    %p118 = scmp.eq.s32.totalorder %s10, 0
    %p119 = por %p117, %p118
    %p120 = scmp.ne.s32.totalorder %s109, %s112
    %p121 = scmp.eq.s32.totalorder %s15, 1
    %p122 = por %p120, %p121
    %p123 = scmp.ne.s32.totalorder %s112, %s113
    %p124 = scmp.eq.s32.totalorder %s15, 0
    %p125 = por %p123, %p124
    %p126 = scmp.ne.s32.totalorder %s112, %s113
    %p127 = scmp.eq.s32.totalorder %s16, 1
    %p128 = por %p126, %p127
    %p130 = scmp.ne.s32.totalorder %s113, %s129
    %p131 = scmp.eq.s32.totalorder %s16, 0
    %p132 = por %p130, %p131
    %p133 = scmp.le.s32.totalorder 1, %s10
    %p134 = scmp.lt.s32.totalorder %s10, 3
    %p135 = pnand %p133, %p134
    %p136 = pneg %p135
    // Predicated region
    $region9: #{_forward_impl.5} parent=5 // pred_check
      _
    $region10: #{_forward_impl.5} parent=5 // pred_check_branch
      %138 = sbr.rel (%p135) target = $region12
    $region11: #{_forward_impl.5} parent=5 // pred_region
      %s139 = ssub.s32 %s10, 1
      // Predicated region
      $region13: #{_forward_impl.5} parent=11 // pred_check
        %p140 = pneg %p57
      $region14: #{_forward_impl.5} parent=11 // pred_check_branch
        %142 = sbr.rel (%p140) target = $region16
      $region15: #{_forward_impl.5} parent=11 // pred_region
        _
      $region16: #{_forward_impl.5} parent=11 // pred_fallthru
        _
      // Predicated region
      $region17: #{_forward_impl.5} parent=11 // pred_check
        %p143 = pneg %p78
      $region18: #{_forward_impl.5} parent=11 // pred_check_branch
        %145 = sbr.rel (%p143) target = $region20
      $region19: #{_forward_impl.5} parent=11 // pred_region
        _
      $region20: #{_forward_impl.5} parent=11 // pred_fallthru
        _
      // Predicated region
      $region21: #{_forward_impl.5} parent=11 // pred_check
        %p146 = pneg %p99
      $region22: #{_forward_impl.5} parent=11 // pred_check_branch
        %148 = sbr.rel (%p146) target = $region24
      $region23: #{_forward_impl.5} parent=11 // pred_region
        _
      $region24: #{_forward_impl.5} parent=11 // pred_fallthru
        _
    $region12: #{_forward_impl.5} parent=5 // pred_fallthru
      _
    %p149 = scmp.lt.s32.totalorder %s10, 2
    // Predicated region
    $region25: #{_forward_impl.5} parent=5 // pred_check
      %p150 = pneg %p149
    $region26: #{_forward_impl.5} parent=5 // pred_check_branch
      %152 = sbr.rel (%p150) target = $region28
    $region27: #{_forward_impl.5} parent=5 // pred_region
      // Predicated region
      $region29: #{_forward_impl.5} parent=27 // pred_check
        %p153 = pneg %p30
      $region30: #{_forward_impl.5} parent=27 // pred_check_branch
        %155 = sbr.rel (%p153) target = $region32
      $region31: #{_forward_impl.5} parent=27 // pred_region
        %p156 = scmp.lt.s32.totalorder %s10, 1
        %s157 = scalar_select %p156, %s10, 1
        %s158 = smul.addr %s157, 5
        %s159 = smul.addr %s158, 4
        %s160 = scalar_lea.vmem %s0, %s159
      $region32: #{_forward_impl.5} parent=27 // pred_fallthru
        _
    $region28: #{_forward_impl.5} parent=5 // pred_fallthru
      _
    %p161 = scmp.le.s32.totalorder 1, %s10
    %p162 = scmp.lt.s32.totalorder %s10, 3
    %p163 = pnand %p161, %p162
    %p164 = pneg %p163
    // Predicated region
    $region33: #{_forward_impl.5} parent=5 // pred_check
      _
    $region34: #{_forward_impl.5} parent=5 // pred_check_branch
      %166 = sbr.rel (%p163) target = $region36
    $region35: #{_forward_impl.5} parent=5 // pred_region
      %s167 = ssub.s32 %s10, 1
      %p168 = scmp.lt.s32.totalorder %s15, 1
      %s169 = scalar_select %p168, %s15, 1
      %s170 = smul.addr %s169, 5
      %s171 = smul.addr %s170, 4
      %s172 = scalar_lea.vmem %s0, %s171
      %p173 = pneg %p36
      %p174 = pneg %p33
      %p175 = pneg %p57
      %p176 = pneg %p54
      %p177 = pneg %p78
      %p178 = pneg %p75
      %p179 = pneg %p99
      %p180 = pneg %p96
      %p181 = pneg %p125
      %p182 = pneg %p122
      %p183 = scmp.lt.s32.totalorder %s15, 1
      %s184 = scalar_select %p183, %s15, 1
      %s185 = smul.addr %s184, 3
      %s186 = smul.addr %s185, 4
      %s187 = scalar_lea.vmem %s4, %s186
      %p188 = scmp.lt.s32.totalorder %s15, 1
      %s189 = scalar_select %p188, %s15, 1
      %s190 = smul.addr %s189, 5
      %s191 = smul.addr %s190, 4
      %s192 = scalar_lea.vmem %s0, %s191
      %p193 = scmp.lt.s32.totalorder %s15, 1
      %s194 = scalar_select %p193, %s15, 1
      %s195 = smul.addr %s194, 3
      %s196 = smul.addr %s195, 4
      %s197 = scalar_lea.vmem %s4, %s196
      %v199 = vld [vmem:[%s2] sm:$0x1]
      %v200 = vld [vmem:[%s3] sm:$0x1]
      %v201 = vld [vmem:[%s192] sm:$0xf]
      %v202 = vld [vmem:[%s192 + $0x4] sm:$0xf]
      %v203 = vld [vmem:[%s192 + $0x8] sm:$0xf]
      %v204 = vld [vmem:[%s1] sm:$0xf]
      %v205 = vld [vmem:[%s1 + $0x4] sm:$0xf]
      %v206 = vld [vmem:[%s1 + $0x8] sm:$0xf]
      %v207 = vld [vmem:[%s1 + $0xc] sm:$0xf]
      %v208 = vld [vmem:[%s1 + $0x10] sm:$0xf]
      %v209 = vld [vmem:[%s1 + $0x14] sm:$0xf]
      %v210 = vld [vmem:[%s1 + $0x18] sm:$0xf]
      %v211 = vld [vmem:[%s1 + $0x1c] sm:$0xf]
      %v212 = vld [vmem:[%s1 + $0x20] sm:$0xf]
      %v213 = vld [vmem:[%s1 + $0x24] sm:$0xf]
      %v214 = vld [vmem:[%s1 + $0x28] sm:$0xf]
      %v215 = vld [vmem:[%s1 + $0x2c] sm:$0xf]
      %v216 = vld [vmem:[%s1 + $0x30] sm:$0xf]
      %v217 = vld [vmem:[%s1 + $0x34] sm:$0xf]
      %v218 = vld [vmem:[%s1 + $0x38] sm:$0xf]
      %v219 = vld [vmem:[%s1 + $0x3c] sm:$0xf]
      %v220 = vld [vmem:[%s192 + $0xc] sm:$0x1]
      %s221 = scalar_lea.vmem %s1, 64
      %v222 = vld [vmem:[%s221] sm:$0xf]
      %v223 = vld [vmem:[%s221 + $0x4] sm:$0xf]
      %v224 = vld [vmem:[%s221 + $0x8] sm:$0xf]
      %v225 = vld [vmem:[%s221 + $0xc] sm:$0xf]
      %v226 = vld [vmem:[%s221 + $0x10] sm:$0xf]
      %v227 = vld [vmem:[%s221 + $0x14] sm:$0xf]
      %v228 = vld [vmem:[%s221 + $0x18] sm:$0xf]
      %v229 = vld [vmem:[%s221 + $0x1c] sm:$0xf]
      %v230 = vld [vmem:[%s221 + $0x20] sm:$0xf]
      %v231 = vld [vmem:[%s221 + $0x24] sm:$0xf]
      %v232 = vld [vmem:[%s221 + $0x28] sm:$0xf]
      %v233 = vld [vmem:[%s221 + $0x2c] sm:$0xf]
      %v234 = vld [vmem:[%s221 + $0x30] sm:$0xf]
      %v235 = vld [vmem:[%s221 + $0x34] sm:$0xf]
      %v236 = vld [vmem:[%s221 + $0x38] sm:$0xf]
      %v237 = vld [vmem:[%s221 + $0x3c] sm:$0xf]
      %v242 = vunpack.c.l.b16 %v201
      %v243 = vunpack.c.l.b16 %v202
      %v244 = vunpack.c.l.b16 %v203
      %v245 = vunpack.c.l.b16 %v220
      %v246 = vpack.c.b16 %v243, %v242
      %v247 = vpack.c.b16 %v245, %v244
      %vm248 = vsmask.f32 7424
      %v250 = vshrl.u32 %v246, 16
      %v252 = vshll.u32 %v246, 16
      %v254 = vrot.slane %v252, 1
      %v255 = vor.u32 %v250, %v254
      %v257 = vshll.u32 %v247, 16
      %v259 = vrot.slane %v257, 1
      %v260 = vsel %vm248, %v255, %v259
      %v261 = vshrl.u32 %v247, 16
      %v263 = vor.u32 %v261, %v259
      %v282 = vunpack.c.l.b16 %v222
      %v283 = vunpack.c.l.b16 %v223
      %v284 = vunpack.c.l.b16 %v224
      %v285 = vunpack.c.l.b16 %v225
      %v286 = vunpack.c.l.b16 %v226
      %v287 = vunpack.c.l.b16 %v227
      %v288 = vunpack.c.l.b16 %v228
      %v289 = vunpack.c.l.b16 %v229
      %v290 = vunpack.c.l.b16 %v230
      %v291 = vunpack.c.l.b16 %v231
      %v292 = vunpack.c.l.b16 %v232
      %v293 = vunpack.c.l.b16 %v233
      %v294 = vunpack.c.l.b16 %v234
      %v295 = vunpack.c.l.b16 %v235
      %v296 = vunpack.c.l.b16 %v236
      %v297 = vunpack.c.l.b16 %v237
      %v298 = vpack.c.b16 %v283, %v282
      %v299 = vpack.c.b16 %v285, %v284
      %v300 = vpack.c.b16 %v287, %v286
      %v301 = vpack.c.b16 %v289, %v288
      %v302 = vpack.c.b16 %v291, %v290
      %v303 = vpack.c.b16 %v293, %v292
      %v304 = vpack.c.b16 %v295, %v294
      %v305 = vpack.c.b16 %v297, %v296
      %314 = vmatprep.subr.bf16.mxu0 0
      %315 = vmatpush1.bf16.msra.mxu0 %v305
      %316 = vmatprep.subr.bf16.mxu0 0
      %317 = vmatpush1.bf16.msra.mxu0 %v304
      %318 = vmatprep.subr.bf16.mxu0 0
      %319 = vmatpush1.bf16.msra.mxu0 %v303
      %320 = vmatprep.subr.bf16.mxu0 0
      %321 = vmatpush1.bf16.msra.mxu0 %v302
      %322 = vmatprep.subr.bf16.mxu0 0
      %323 = vmatpush1.bf16.msra.mxu0 %v301
      %324 = vmatprep.subr.bf16.mxu0 0
      %325 = vmatpush1.bf16.msra.mxu0 %v300
      %326 = vmatprep.subr.bf16.mxu0 0
      %327 = vmatpush1.bf16.msra.mxu0 %v299
      %328 = vmatprep.subr.bf16.mxu0 0
      %329 = vmatpush1.bf16.msra.mxu0 %v298
      %330 = vmatprep.subr.bf16.mxu0 0
      %331 = vmatpush2.bf16.msra.mxu0 0
      %332 = vmatprep.subr.bf16.mxu0 0
      %333 = vmatpush2.bf16.msra.mxu0 0
      %334 = vmatprep.subr.bf16.mxu0 0
      %335 = vmatpush2.bf16.msra.mxu0 0
      %336 = vmatprep.subr.bf16.mxu0 0
      %337 = vmatpush2.bf16.msra.mxu0 0
      %338 = vmatprep.subr.bf16.mxu0 0
      %339 = vmatpush2.bf16.msra.mxu0 0
      %340 = vmatprep.subr.bf16.mxu0 0
      %341 = vmatpush2.bf16.msra.mxu0 0
      %342 = vmatprep.subr.bf16.mxu0 0
      %343 = vmatpush2.bf16.msra.mxu0 0
      %344 = vmatprep.subr.bf16.mxu0 0
      %345 = vmatpush2.bf16.msra.mxu0 0
      %346 = vmatprep.mubr.bf16.mxu0 0
      %347 = vmatmul.mubr.bf16.gmra.mxu0 %v260
      %v348 = vpop.f32.mrf.mxu0
      %v349 = vadd.f32 0.0, %v348
      %v350 = vpop.f32.mrf.mxu0
      %v351 = vpop.f32.mrf.mxu0
      %v352 = vadd.f32 0.0, %v351
      %v353 = vpop.f32.mrf.mxu0
      %354 = vmatprep.mubr.bf16.mxu0 0
      %355 = vmatmul.mubr.bf16.gmra.mxu0 %v263
      %v356 = vpop.f32.mrf.mxu0
      %v357 = vadd.f32 0.0, %v356
      %v358 = vpop.f32.mrf.mxu0
      %v359 = vpop.f32.mrf.mxu0
      %v360 = vpop.f32.mrf.mxu0
      %361 = vdwg.mxu0
      %v362 = vpack.c.b16 %v244, %v244
      %v381 = vunpack.c.l.b16 %v204
      %v382 = vunpack.c.l.b16 %v205
      %v383 = vunpack.c.l.b16 %v206
      %v384 = vunpack.c.l.b16 %v207
      %v385 = vunpack.c.l.b16 %v208
      %v386 = vunpack.c.l.b16 %v209
      %v387 = vunpack.c.l.b16 %v210
      %v388 = vunpack.c.l.b16 %v211
      %v389 = vunpack.c.l.b16 %v212
      %v390 = vunpack.c.l.b16 %v213
      %v391 = vunpack.c.l.b16 %v214
      %v392 = vunpack.c.l.b16 %v215
      %v393 = vunpack.c.l.b16 %v216
      %v394 = vunpack.c.l.b16 %v217
      %v395 = vunpack.c.l.b16 %v218
      %v396 = vunpack.c.l.b16 %v219
      %v397 = vpack.c.b16 %v382, %v381
      %v398 = vpack.c.b16 %v384, %v383
      %v399 = vpack.c.b16 %v386, %v385
      %v400 = vpack.c.b16 %v388, %v387
      %v401 = vpack.c.b16 %v390, %v389
      %v402 = vpack.c.b16 %v392, %v391
      %v403 = vpack.c.b16 %v394, %v393
      %v404 = vpack.c.b16 %v396, %v395
      %413 = vmatprep.subr.bf16.mxu0 0
      %414 = vmatpush1.bf16.msra.mxu0 %v404
      %415 = vmatprep.subr.bf16.mxu0 0
      %416 = vmatpush1.bf16.msra.mxu0 %v403
      %417 = vmatprep.subr.bf16.mxu0 0
      %418 = vmatpush1.bf16.msra.mxu0 %v402
      %419 = vmatprep.subr.bf16.mxu0 0
      %420 = vmatpush1.bf16.msra.mxu0 %v401
      %421 = vmatprep.subr.bf16.mxu0 0
      %422 = vmatpush1.bf16.msra.mxu0 %v400
      %423 = vmatprep.subr.bf16.mxu0 0
      %424 = vmatpush1.bf16.msra.mxu0 %v399
      %425 = vmatprep.subr.bf16.mxu0 0
      %426 = vmatpush1.bf16.msra.mxu0 %v398
      %427 = vmatprep.subr.bf16.mxu0 0
      %428 = vmatpush1.bf16.msra.mxu0 %v397
      %429 = vmatprep.subr.bf16.mxu0 0
      %430 = vmatpush2.bf16.msra.mxu0 0
      %431 = vmatprep.subr.bf16.mxu0 0
      %432 = vmatpush2.bf16.msra.mxu0 0
      %433 = vmatprep.subr.bf16.mxu0 0
      %434 = vmatpush2.bf16.msra.mxu0 0
      %435 = vmatprep.subr.bf16.mxu0 0
      %436 = vmatpush2.bf16.msra.mxu0 0
      %437 = vmatprep.subr.bf16.mxu0 0
      %438 = vmatpush2.bf16.msra.mxu0 0
      %439 = vmatprep.subr.bf16.mxu0 0
      %440 = vmatpush2.bf16.msra.mxu0 0
      %441 = vmatprep.subr.bf16.mxu0 0
      %442 = vmatpush2.bf16.msra.mxu0 0
      %443 = vmatprep.subr.bf16.mxu0 0
      %444 = vmatpush2.bf16.msra.mxu0 0
      %445 = vmatprep.mubr.bf16.mxu0 0
      %446 = vmatmul.mubr.bf16.gmra.mxu0 %v246
      %v447 = vpop.f32.mrf.mxu0
      %v448 = vadd.f32 %v349, %v447
      %v449 = vpop.f32.mrf.mxu0
      %v450 = vpop.f32.mrf.mxu0
      %v451 = vadd.f32 %v352, %v450
      %v452 = vpop.f32.mrf.mxu0
      %453 = vmatprep.mubr.bf16.mxu0 0
      %454 = vmatmul.mubr.bf16.gmra.mxu0 %v362
      %v455 = vpop.f32.mrf.mxu0
      %v456 = vadd.f32 %v357, %v455
      %v457 = vpop.f32.mrf.mxu0
      %v458 = vpop.f32.mrf.mxu0
      %v459 = vpop.f32.mrf.mxu0
      %460 = vdwg.mxu0
      %v461 = vld [vmem:[%s192] sm:$0x8]
      %v462 = vld [vmem:[%s192 + $0xc] sm:$0x7]
      %s463 = scalar_lea.vmem %s1, 128
      %v464 = vld [vmem:[%s463] sm:$0xf]
      %v465 = vld [vmem:[%s463 + $0x4] sm:$0xf]
      %v466 = vld [vmem:[%s463 + $0x8] sm:$0xf]
      %v467 = vld [vmem:[%s463 + $0xc] sm:$0xf]
      %v468 = vld [vmem:[%s463 + $0x10] sm:$0xf]
      %v469 = vld [vmem:[%s463 + $0x14] sm:$0xf]
      %v470 = vld [vmem:[%s463 + $0x18] sm:$0xf]
      %v471 = vld [vmem:[%s463 + $0x1c] sm:$0xf]
      %v472 = vld [vmem:[%s463 + $0x20] sm:$0xf]
      %v473 = vld [vmem:[%s463 + $0x24] sm:$0xf]
      %v474 = vld [vmem:[%s463 + $0x28] sm:$0xf]
      %v475 = vld [vmem:[%s463 + $0x2c] sm:$0xf]
      %v476 = vld [vmem:[%s463 + $0x30] sm:$0xf]
      %v477 = vld [vmem:[%s463 + $0x34] sm:$0xf]
      %v478 = vld [vmem:[%s463 + $0x38] sm:$0xf]
      %v479 = vld [vmem:[%s463 + $0x3c] sm:$0xf]
      %v482 = vunpack.c.l.b16 %v461
      %v483 = vunpack.c.l.b16 %v462
      %v484 = vpack.c.b16 %v243, %v482
      %v485 = vpack.c.b16 %v483, %v244
      %vm486 = vcmask 1044480
      %v487 = vrot.slane %v484, 3
      %v488 = vrot.slane %v485, 3
      %v489 = vsel %vm486, %v487, %v488
      %v508 = vunpack.c.l.b16 %v464
      %v509 = vunpack.c.l.b16 %v465
      %v510 = vunpack.c.l.b16 %v466
      %v511 = vunpack.c.l.b16 %v467
      %v512 = vunpack.c.l.b16 %v468
      %v513 = vunpack.c.l.b16 %v469
      %v514 = vunpack.c.l.b16 %v470
      %v515 = vunpack.c.l.b16 %v471
      %v516 = vunpack.c.l.b16 %v472
      %v517 = vunpack.c.l.b16 %v473
      %v518 = vunpack.c.l.b16 %v474
      %v519 = vunpack.c.l.b16 %v475
      %v520 = vunpack.c.l.b16 %v476
      %v521 = vunpack.c.l.b16 %v477
      %v522 = vunpack.c.l.b16 %v478
      %v523 = vunpack.c.l.b16 %v479
      %v524 = vpack.c.b16 %v509, %v508
      %v525 = vpack.c.b16 %v511, %v510
      %v526 = vpack.c.b16 %v513, %v512
      %v527 = vpack.c.b16 %v515, %v514
      %v528 = vpack.c.b16 %v517, %v516
      %v529 = vpack.c.b16 %v519, %v518
      %v530 = vpack.c.b16 %v521, %v520
      %v531 = vpack.c.b16 %v523, %v522
      %540 = vmatprep.subr.bf16.mxu0 0
      %541 = vmatpush1.bf16.msra.mxu0 %v531
      %542 = vmatprep.subr.bf16.mxu0 0
      %543 = vmatpush1.bf16.msra.mxu0 %v530
      %544 = vmatprep.subr.bf16.mxu0 0
      %545 = vmatpush1.bf16.msra.mxu0 %v529
      %546 = vmatprep.subr.bf16.mxu0 0
      %547 = vmatpush1.bf16.msra.mxu0 %v528
      %548 = vmatprep.subr.bf16.mxu0 0
      %549 = vmatpush1.bf16.msra.mxu0 %v527
      %550 = vmatprep.subr.bf16.mxu0 0
      %551 = vmatpush1.bf16.msra.mxu0 %v526
      %552 = vmatprep.subr.bf16.mxu0 0
      %553 = vmatpush1.bf16.msra.mxu0 %v525
      %554 = vmatprep.subr.bf16.mxu0 0
      %555 = vmatpush1.bf16.msra.mxu0 %v524
      %556 = vmatprep.subr.bf16.mxu0 0
      %557 = vmatpush2.bf16.msra.mxu0 0
      %558 = vmatprep.subr.bf16.mxu0 0
      %559 = vmatpush2.bf16.msra.mxu0 0
      %560 = vmatprep.subr.bf16.mxu0 0
      %561 = vmatpush2.bf16.msra.mxu0 0
      %562 = vmatprep.subr.bf16.mxu0 0
      %563 = vmatpush2.bf16.msra.mxu0 0
      %564 = vmatprep.subr.bf16.mxu0 0
      %565 = vmatpush2.bf16.msra.mxu0 0
      %566 = vmatprep.subr.bf16.mxu0 0
      %567 = vmatpush2.bf16.msra.mxu0 0
      %568 = vmatprep.subr.bf16.mxu0 0
      %569 = vmatpush2.bf16.msra.mxu0 0
      %570 = vmatprep.subr.bf16.mxu0 0
      %571 = vmatpush2.bf16.msra.mxu0 0
      %572 = vmatprep.mubr.bf16.mxu0 0
      %573 = vmatmul.mubr.bf16.gmra.mxu0 %v489
      %v574 = vpop.f32.mrf.mxu0
      %v575 = vadd.f32 0.0, %v574
      %v576 = vpop.f32.mrf.mxu0
      %v577 = vpop.f32.mrf.mxu0
      %v578 = vadd.f32 0.0, %v577
      %v579 = vpop.f32.mrf.mxu0
      %580 = vmatprep.mubr.bf16.mxu0 0
      %581 = vmatmul.mubr.bf16.gmra.mxu0 %v488
      %v582 = vpop.f32.mrf.mxu0
      %v583 = vadd.f32 0.0, %v582
      %v584 = vpop.f32.mrf.mxu0
      %v585 = vpop.f32.mrf.mxu0
      %v586 = vpop.f32.mrf.mxu0
      %587 = vdwg.mxu0
      %v588 = vadd.f32 %v448, %v575
      %v589 = vadd.f32 %v451, %v578
      %v590 = vadd.f32 %v456, %v583
      %v591 = vld [vmem:[%s192 + $0xc] sm:$0xf]
      %s592 = scalar_lea.vmem %s1, 192
      %v593 = vld [vmem:[%s592] sm:$0xf]
      %v594 = vld [vmem:[%s592 + $0x4] sm:$0xf]
      %v595 = vld [vmem:[%s592 + $0x8] sm:$0xf]
      %v596 = vld [vmem:[%s592 + $0xc] sm:$0xf]
      %v597 = vld [vmem:[%s592 + $0x10] sm:$0xf]
      %v598 = vld [vmem:[%s592 + $0x14] sm:$0xf]
      %v599 = vld [vmem:[%s592 + $0x18] sm:$0xf]
      %v600 = vld [vmem:[%s592 + $0x1c] sm:$0xf]
      %v601 = vld [vmem:[%s592 + $0x20] sm:$0xf]
      %v602 = vld [vmem:[%s592 + $0x24] sm:$0xf]
      %v603 = vld [vmem:[%s592 + $0x28] sm:$0xf]
      %v604 = vld [vmem:[%s592 + $0x2c] sm:$0xf]
      %v605 = vld [vmem:[%s592 + $0x30] sm:$0xf]
      %v606 = vld [vmem:[%s592 + $0x34] sm:$0xf]
      %v607 = vld [vmem:[%s592 + $0x38] sm:$0xf]
      %v608 = vld [vmem:[%s592 + $0x3c] sm:$0xf]
      %v610 = vunpack.c.l.b16 %v591
      %v611 = vpack.c.b16 %v610, %v244
      %vm612 = vsmask.f32 4352
      %v614 = vshrl.u32 %v484, 16
      %v616 = vrot.slane %v614, 3
      %v617 = vshll.u32 %v484, 16
      %v619 = vrot.slane %v617, 4
      %v620 = vor.u32 %v616, %v619
      %v622 = vshrl.u32 %v611, 16
      %v624 = vrot.slane %v622, 3
      %v625 = vshll.u32 %v611, 16
      %v627 = vrot.slane %v625, 4
      %v628 = vor.u32 %v624, %v627
      %v629 = vsel %vm612, %v620, %v628
      %v648 = vunpack.c.l.b16 %v593
      %v649 = vunpack.c.l.b16 %v594
      %v650 = vunpack.c.l.b16 %v595
      %v651 = vunpack.c.l.b16 %v596
      %v652 = vunpack.c.l.b16 %v597
      %v653 = vunpack.c.l.b16 %v598
      %v654 = vunpack.c.l.b16 %v599
      %v655 = vunpack.c.l.b16 %v600
      %v656 = vunpack.c.l.b16 %v601
      %v657 = vunpack.c.l.b16 %v602
      %v658 = vunpack.c.l.b16 %v603
      %v659 = vunpack.c.l.b16 %v604
      %v660 = vunpack.c.l.b16 %v605
      %v661 = vunpack.c.l.b16 %v606
      %v662 = vunpack.c.l.b16 %v607
      %v663 = vunpack.c.l.b16 %v608
      %v664 = vpack.c.b16 %v649, %v648
      %v665 = vpack.c.b16 %v651, %v650
      %v666 = vpack.c.b16 %v653, %v652
      %v667 = vpack.c.b16 %v655, %v654
      %v668 = vpack.c.b16 %v657, %v656
      %v669 = vpack.c.b16 %v659, %v658
      %v670 = vpack.c.b16 %v661, %v660
      %v671 = vpack.c.b16 %v663, %v662
      %680 = vmatprep.subr.bf16.mxu0 0
      %681 = vmatpush1.bf16.msra.mxu0 %v671
      %682 = vmatprep.subr.bf16.mxu0 0
      %683 = vmatpush1.bf16.msra.mxu0 %v670
      %684 = vmatprep.subr.bf16.mxu0 0
      %685 = vmatpush1.bf16.msra.mxu0 %v669
      %686 = vmatprep.subr.bf16.mxu0 0
      %687 = vmatpush1.bf16.msra.mxu0 %v668
      %688 = vmatprep.subr.bf16.mxu0 0
      %689 = vmatpush1.bf16.msra.mxu0 %v667
      %690 = vmatprep.subr.bf16.mxu0 0
      %691 = vmatpush1.bf16.msra.mxu0 %v666
      %692 = vmatprep.subr.bf16.mxu0 0
      %693 = vmatpush1.bf16.msra.mxu0 %v665
      %694 = vmatprep.subr.bf16.mxu0 0
      %695 = vmatpush1.bf16.msra.mxu0 %v664
      %696 = vmatprep.subr.bf16.mxu0 0
      %697 = vmatpush2.bf16.msra.mxu0 0
      %698 = vmatprep.subr.bf16.mxu0 0
      %699 = vmatpush2.bf16.msra.mxu0 0
      %700 = vmatprep.subr.bf16.mxu0 0
      %701 = vmatpush2.bf16.msra.mxu0 0
      %702 = vmatprep.subr.bf16.mxu0 0
      %703 = vmatpush2.bf16.msra.mxu0 0
      %704 = vmatprep.subr.bf16.mxu0 0
      %705 = vmatpush2.bf16.msra.mxu0 0
      %706 = vmatprep.subr.bf16.mxu0 0
      %707 = vmatpush2.bf16.msra.mxu0 0
      %708 = vmatprep.subr.bf16.mxu0 0
      %709 = vmatpush2.bf16.msra.mxu0 0
      %710 = vmatprep.subr.bf16.mxu0 0
      %711 = vmatpush2.bf16.msra.mxu0 0
      %712 = vmatprep.mubr.bf16.mxu0 0
      %713 = vmatmul.mubr.bf16.gmra.mxu0 %v629
      %v714 = vpop.f32.mrf.mxu0
      %v715 = vadd.f32 0.0, %v714
      %v716 = vpop.f32.mrf.mxu0
      %v717 = vpop.f32.mrf.mxu0
      %v718 = vadd.f32 0.0, %v717
      %v719 = vpop.f32.mrf.mxu0
      %720 = vmatprep.mubr.bf16.mxu0 0
      %721 = vmatmul.mubr.bf16.gmra.mxu0 %v628
      %v722 = vpop.f32.mrf.mxu0
      %v723 = vadd.f32 0.0, %v722
      %v724 = vpop.f32.mrf.mxu0
      %v725 = vpop.f32.mrf.mxu0
      %v726 = vpop.f32.mrf.mxu0
      %727 = vdwg.mxu0
      %v728 = vadd.f32 %v588, %v715
      %v729 = vadd.f32 %v589, %v718
      %v730 = vadd.f32 %v590, %v723
      %v732 = vlaneseq
      %v733 = vshrl.u32 %v732, 7
      %v734 = vsub.s32 0, %v733
      %v735 = vrot.slane %v199, %v734
      %v737 = vmul.f32 %v728, %v735
      %v738 = vmul.f32 %v729, %v735
      %v739 = vmul.f32 %v730, %v735
      %v741 = vlaneseq
      %v742 = vshrl.u32 %v741, 7
      %v743 = vsub.s32 0, %v742
      %v744 = vrot.slane %v200, %v743
      %v746 = vadd.f32 %v737, %v744
      %v747 = vadd.f32 %v738, %v744
      %v748 = vadd.f32 %v739, %v744
      %s749 = scalar_lea.vmem %s1, 256
      %v750 = vld [vmem:[%s749] sm:$0xf]
      %v751 = vld [vmem:[%s749 + $0x4] sm:$0xf]
      %v752 = vld [vmem:[%s749 + $0x8] sm:$0xf]
      %v753 = vld [vmem:[%s749 + $0xc] sm:$0xf]
      %v754 = vld [vmem:[%s749 + $0x10] sm:$0xf]
      %v755 = vld [vmem:[%s749 + $0x14] sm:$0xf]
      %v756 = vld [vmem:[%s749 + $0x18] sm:$0xf]
      %v757 = vld [vmem:[%s749 + $0x1c] sm:$0xf]
      %v758 = vld [vmem:[%s749 + $0x20] sm:$0xf]
      %v759 = vld [vmem:[%s749 + $0x24] sm:$0xf]
      %v760 = vld [vmem:[%s749 + $0x28] sm:$0xf]
      %v761 = vld [vmem:[%s749 + $0x2c] sm:$0xf]
      %v762 = vld [vmem:[%s749 + $0x30] sm:$0xf]
      %v763 = vld [vmem:[%s749 + $0x34] sm:$0xf]
      %v764 = vld [vmem:[%s749 + $0x38] sm:$0xf]
      %v765 = vld [vmem:[%s749 + $0x3c] sm:$0xf]
      %v766 = vld [vmem:[%s192] sm:$0xe]
      %s767 = scalar_lea.vmem %s1, 320
      %v768 = vld [vmem:[%s767] sm:$0xf]
      %v769 = vld [vmem:[%s767 + $0x4] sm:$0xf]
      %v770 = vld [vmem:[%s767 + $0x8] sm:$0xf]
      %v771 = vld [vmem:[%s767 + $0xc] sm:$0xf]
      %v772 = vld [vmem:[%s767 + $0x10] sm:$0xf]
      %v773 = vld [vmem:[%s767 + $0x14] sm:$0xf]
      %v774 = vld [vmem:[%s767 + $0x18] sm:$0xf]
      %v775 = vld [vmem:[%s767 + $0x1c] sm:$0xf]
      %v776 = vld [vmem:[%s767 + $0x20] sm:$0xf]
      %v777 = vld [vmem:[%s767 + $0x24] sm:$0xf]
      %v778 = vld [vmem:[%s767 + $0x28] sm:$0xf]
      %v779 = vld [vmem:[%s767 + $0x2c] sm:$0xf]
      %v780 = vld [vmem:[%s767 + $0x30] sm:$0xf]
      %v781 = vld [vmem:[%s767 + $0x34] sm:$0xf]
      %v782 = vld [vmem:[%s767 + $0x38] sm:$0xf]
      %v783 = vld [vmem:[%s767 + $0x3c] sm:$0xf]
      %v785 = vunpack.c.l.b16 %v766
      %v786 = vpack.c.b16 %v243, %v785
      %vm787 = vcmask 1046528
      %v788 = vrot.slane %v786, 1
      %v789 = vrot.slane %v247, 1
      %v790 = vsel %vm787, %v788, %v789
      %v809 = vunpack.c.l.b16 %v768
      %v810 = vunpack.c.l.b16 %v769
      %v811 = vunpack.c.l.b16 %v770
      %v812 = vunpack.c.l.b16 %v771
      %v813 = vunpack.c.l.b16 %v772
      %v814 = vunpack.c.l.b16 %v773
      %v815 = vunpack.c.l.b16 %v774
      %v816 = vunpack.c.l.b16 %v775
      %v817 = vunpack.c.l.b16 %v776
      %v818 = vunpack.c.l.b16 %v777
      %v819 = vunpack.c.l.b16 %v778
      %v820 = vunpack.c.l.b16 %v779
      %v821 = vunpack.c.l.b16 %v780
      %v822 = vunpack.c.l.b16 %v781
      %v823 = vunpack.c.l.b16 %v782
      %v824 = vunpack.c.l.b16 %v783
      %v825 = vpack.c.b16 %v810, %v809
      %v826 = vpack.c.b16 %v812, %v811
      %v827 = vpack.c.b16 %v814, %v813
      %v828 = vpack.c.b16 %v816, %v815
      %v829 = vpack.c.b16 %v818, %v817
      %v830 = vpack.c.b16 %v820, %v819
      %v831 = vpack.c.b16 %v822, %v821
      %v832 = vpack.c.b16 %v824, %v823
      %841 = vmatprep.subr.bf16.mxu0 0
      %842 = vmatpush1.bf16.msra.mxu0 %v832
      %843 = vmatprep.subr.bf16.mxu0 0
      %844 = vmatpush1.bf16.msra.mxu0 %v831
      %845 = vmatprep.subr.bf16.mxu0 0
      %846 = vmatpush1.bf16.msra.mxu0 %v830
      %847 = vmatprep.subr.bf16.mxu0 0
      %848 = vmatpush1.bf16.msra.mxu0 %v829
      %849 = vmatprep.subr.bf16.mxu0 0
      %850 = vmatpush1.bf16.msra.mxu0 %v828
      %851 = vmatprep.subr.bf16.mxu0 0
      %852 = vmatpush1.bf16.msra.mxu0 %v827
      %853 = vmatprep.subr.bf16.mxu0 0
      %854 = vmatpush1.bf16.msra.mxu0 %v826
      %855 = vmatprep.subr.bf16.mxu0 0
      %856 = vmatpush1.bf16.msra.mxu0 %v825
      %857 = vmatprep.subr.bf16.mxu0 0
      %858 = vmatpush2.bf16.msra.mxu0 0
      %859 = vmatprep.subr.bf16.mxu0 0
      %860 = vmatpush2.bf16.msra.mxu0 0
      %861 = vmatprep.subr.bf16.mxu0 0
      %862 = vmatpush2.bf16.msra.mxu0 0
      %863 = vmatprep.subr.bf16.mxu0 0
      %864 = vmatpush2.bf16.msra.mxu0 0
      %865 = vmatprep.subr.bf16.mxu0 0
      %866 = vmatpush2.bf16.msra.mxu0 0
      %867 = vmatprep.subr.bf16.mxu0 0
      %868 = vmatpush2.bf16.msra.mxu0 0
      %869 = vmatprep.subr.bf16.mxu0 0
      %870 = vmatpush2.bf16.msra.mxu0 0
      %871 = vmatprep.subr.bf16.mxu0 0
      %872 = vmatpush2.bf16.msra.mxu0 0
      %873 = vmatprep.mubr.bf16.mxu0 0
      %874 = vmatmul.mubr.bf16.gmra.mxu0 %v790
      %v875 = vpop.f32.mrf.mxu0
      %v876 = vadd.f32 0.0, %v875
      %v877 = vpop.f32.mrf.mxu0
      %v878 = vpop.f32.mrf.mxu0
      %v879 = vadd.f32 0.0, %v878
      %v880 = vpop.f32.mrf.mxu0
      %881 = vmatprep.mubr.bf16.mxu0 0
      %882 = vmatmul.mubr.bf16.gmra.mxu0 %v789
      %v883 = vpop.f32.mrf.mxu0
      %v884 = vadd.f32 0.0, %v883
      %v885 = vpop.f32.mrf.mxu0
      %v886 = vpop.f32.mrf.mxu0
      %v887 = vpop.f32.mrf.mxu0
      %888 = vdwg.mxu0
      %v905 = vunpack.c.l.b16 %v750
      %v906 = vunpack.c.l.b16 %v751
      %v907 = vunpack.c.l.b16 %v752
      %v908 = vunpack.c.l.b16 %v753
      %v909 = vunpack.c.l.b16 %v754
      %v910 = vunpack.c.l.b16 %v755
      %v911 = vunpack.c.l.b16 %v756
      %v912 = vunpack.c.l.b16 %v757
      %v913 = vunpack.c.l.b16 %v758
      %v914 = vunpack.c.l.b16 %v759
      %v915 = vunpack.c.l.b16 %v760
      %v916 = vunpack.c.l.b16 %v761
      %v917 = vunpack.c.l.b16 %v762
      %v918 = vunpack.c.l.b16 %v763
      %v919 = vunpack.c.l.b16 %v764
      %v920 = vunpack.c.l.b16 %v765
      %v921 = vpack.c.b16 %v906, %v905
      %v922 = vpack.c.b16 %v908, %v907
      %v923 = vpack.c.b16 %v910, %v909
      %v924 = vpack.c.b16 %v912, %v911
      %v925 = vpack.c.b16 %v914, %v913
      %v926 = vpack.c.b16 %v916, %v915
      %v927 = vpack.c.b16 %v918, %v917
      %v928 = vpack.c.b16 %v920, %v919
      %937 = vmatprep.subr.bf16.mxu0 0
      %938 = vmatpush1.bf16.msra.mxu0 %v928
      %939 = vmatprep.subr.bf16.mxu0 0
      %940 = vmatpush1.bf16.msra.mxu0 %v927
      %941 = vmatprep.subr.bf16.mxu0 0
      %942 = vmatpush1.bf16.msra.mxu0 %v926
      %943 = vmatprep.subr.bf16.mxu0 0
      %944 = vmatpush1.bf16.msra.mxu0 %v925
      %945 = vmatprep.subr.bf16.mxu0 0
      %946 = vmatpush1.bf16.msra.mxu0 %v924
      %947 = vmatprep.subr.bf16.mxu0 0
      %948 = vmatpush1.bf16.msra.mxu0 %v923
      %949 = vmatprep.subr.bf16.mxu0 0
      %950 = vmatpush1.bf16.msra.mxu0 %v922
      %951 = vmatprep.subr.bf16.mxu0 0
      %952 = vmatpush1.bf16.msra.mxu0 %v921
      %953 = vmatprep.subr.bf16.mxu0 0
      %954 = vmatpush2.bf16.msra.mxu0 0
      %955 = vmatprep.subr.bf16.mxu0 0
      %956 = vmatpush2.bf16.msra.mxu0 0
      %957 = vmatprep.subr.bf16.mxu0 0
      %958 = vmatpush2.bf16.msra.mxu0 0
      %959 = vmatprep.subr.bf16.mxu0 0
      %960 = vmatpush2.bf16.msra.mxu0 0
      %961 = vmatprep.subr.bf16.mxu0 0
      %962 = vmatpush2.bf16.msra.mxu0 0
      %963 = vmatprep.subr.bf16.mxu0 0
      %964 = vmatpush2.bf16.msra.mxu0 0
      %965 = vmatprep.subr.bf16.mxu0 0
      %966 = vmatpush2.bf16.msra.mxu0 0
      %967 = vmatprep.subr.bf16.mxu0 0
      %968 = vmatpush2.bf16.msra.mxu0 0
      %969 = vmatprep.mubr.bf16.mxu0 0
      %970 = vmatmul.mubr.bf16.gmra.mxu0 %v260
      %v971 = vpop.f32.mrf.mxu0
      %v972 = vadd.f32 %v876, %v971
      %v973 = vpop.f32.mrf.mxu0
      %v974 = vpop.f32.mrf.mxu0
      %v975 = vadd.f32 %v879, %v974
      %v976 = vpop.f32.mrf.mxu0
      %977 = vmatprep.mubr.bf16.mxu0 0
      %978 = vmatmul.mubr.bf16.gmra.mxu0 %v263
      %v979 = vpop.f32.mrf.mxu0
      %v980 = vadd.f32 %v884, %v979
      %v981 = vpop.f32.mrf.mxu0
      %v982 = vpop.f32.mrf.mxu0
      %v983 = vpop.f32.mrf.mxu0
      %984 = vdwg.mxu0
      %s985 = scalar_lea.vmem %s1, 384
      %v986 = vld [vmem:[%s985] sm:$0xf]
      %v987 = vld [vmem:[%s985 + $0x4] sm:$0xf]
      %v988 = vld [vmem:[%s985 + $0x8] sm:$0xf]
      %v989 = vld [vmem:[%s985 + $0xc] sm:$0xf]
      %v990 = vld [vmem:[%s985 + $0x10] sm:$0xf]
      %v991 = vld [vmem:[%s985 + $0x14] sm:$0xf]
      %v992 = vld [vmem:[%s985 + $0x18] sm:$0xf]
      %v993 = vld [vmem:[%s985 + $0x1c] sm:$0xf]
      %v994 = vld [vmem:[%s985 + $0x20] sm:$0xf]
      %v995 = vld [vmem:[%s985 + $0x24] sm:$0xf]
      %v996 = vld [vmem:[%s985 + $0x28] sm:$0xf]
      %v997 = vld [vmem:[%s985 + $0x2c] sm:$0xf]
      %v998 = vld [vmem:[%s985 + $0x30] sm:$0xf]
      %v999 = vld [vmem:[%s985 + $0x34] sm:$0xf]
      %v1000 = vld [vmem:[%s985 + $0x38] sm:$0xf]
      %v1001 = vld [vmem:[%s985 + $0x3c] sm:$0xf]
      %v1018 = vunpack.c.l.b16 %v986
      %v1019 = vunpack.c.l.b16 %v987
      %v1020 = vunpack.c.l.b16 %v988
      %v1021 = vunpack.c.l.b16 %v989
      %v1022 = vunpack.c.l.b16 %v990
      %v1023 = vunpack.c.l.b16 %v991
      %v1024 = vunpack.c.l.b16 %v992
      %v1025 = vunpack.c.l.b16 %v993
      %v1026 = vunpack.c.l.b16 %v994
      %v1027 = vunpack.c.l.b16 %v995
      %v1028 = vunpack.c.l.b16 %v996
      %v1029 = vunpack.c.l.b16 %v997
      %v1030 = vunpack.c.l.b16 %v998
      %v1031 = vunpack.c.l.b16 %v999
      %v1032 = vunpack.c.l.b16 %v1000
      %v1033 = vunpack.c.l.b16 %v1001
      %v1034 = vpack.c.b16 %v1019, %v1018
      %v1035 = vpack.c.b16 %v1021, %v1020
      %v1036 = vpack.c.b16 %v1023, %v1022
      %v1037 = vpack.c.b16 %v1025, %v1024
      %v1038 = vpack.c.b16 %v1027, %v1026
      %v1039 = vpack.c.b16 %v1029, %v1028
      %v1040 = vpack.c.b16 %v1031, %v1030
      %v1041 = vpack.c.b16 %v1033, %v1032
      %1050 = vmatprep.subr.bf16.mxu0 0
      %1051 = vmatpush1.bf16.msra.mxu0 %v1041
      %1052 = vmatprep.subr.bf16.mxu0 0
      %1053 = vmatpush1.bf16.msra.mxu0 %v1040
      %1054 = vmatprep.subr.bf16.mxu0 0
      %1055 = vmatpush1.bf16.msra.mxu0 %v1039
      %1056 = vmatprep.subr.bf16.mxu0 0
      %1057 = vmatpush1.bf16.msra.mxu0 %v1038
      %1058 = vmatprep.subr.bf16.mxu0 0
      %1059 = vmatpush1.bf16.msra.mxu0 %v1037
      %1060 = vmatprep.subr.bf16.mxu0 0
      %1061 = vmatpush1.bf16.msra.mxu0 %v1036
      %1062 = vmatprep.subr.bf16.mxu0 0
      %1063 = vmatpush1.bf16.msra.mxu0 %v1035
      %1064 = vmatprep.subr.bf16.mxu0 0
      %1065 = vmatpush1.bf16.msra.mxu0 %v1034
      %1066 = vmatprep.subr.bf16.mxu0 0
      %1067 = vmatpush2.bf16.msra.mxu0 0
      %1068 = vmatprep.subr.bf16.mxu0 0
      %1069 = vmatpush2.bf16.msra.mxu0 0
      %1070 = vmatprep.subr.bf16.mxu0 0
      %1071 = vmatpush2.bf16.msra.mxu0 0
      %1072 = vmatprep.subr.bf16.mxu0 0
      %1073 = vmatpush2.bf16.msra.mxu0 0
      %1074 = vmatprep.subr.bf16.mxu0 0
      %1075 = vmatpush2.bf16.msra.mxu0 0
      %1076 = vmatprep.subr.bf16.mxu0 0
      %1077 = vmatpush2.bf16.msra.mxu0 0
      %1078 = vmatprep.subr.bf16.mxu0 0
      %1079 = vmatpush2.bf16.msra.mxu0 0
      %1080 = vmatprep.subr.bf16.mxu0 0
      %1081 = vmatpush2.bf16.msra.mxu0 0
      %1082 = vmatprep.mubr.bf16.mxu0 0
      %1083 = vmatmul.mubr.bf16.gmra.mxu0 %v629
      %v1084 = vpop.f32.mrf.mxu0
      %v1085 = vadd.f32 0.0, %v1084
      %v1086 = vpop.f32.mrf.mxu0
      %v1087 = vpop.f32.mrf.mxu0
      %v1088 = vadd.f32 0.0, %v1087
      %v1089 = vpop.f32.mrf.mxu0
      %1090 = vmatprep.mubr.bf16.mxu0 0
      %1091 = vmatmul.mubr.bf16.gmra.mxu0 %v628
      %v1092 = vpop.f32.mrf.mxu0
      %v1093 = vadd.f32 0.0, %v1092
      %v1094 = vpop.f32.mrf.mxu0
      %v1095 = vpop.f32.mrf.mxu0
      %v1096 = vpop.f32.mrf.mxu0
      %1097 = vdwg.mxu0
      %v1098 = vadd.f32 %v972, %v1085
      %v1099 = vadd.f32 %v975, %v1088
      %v1100 = vadd.f32 %v980, %v1093
      %s1101 = scalar_lea.vmem %s1, 448
      %v1102 = vld [vmem:[%s1101] sm:$0xf]
      %v1103 = vld [vmem:[%s1101 + $0x4] sm:$0xf]
      %v1104 = vld [vmem:[%s1101 + $0x8] sm:$0xf]
      %v1105 = vld [vmem:[%s1101 + $0xc] sm:$0xf]
      %v1106 = vld [vmem:[%s1101 + $0x10] sm:$0xf]
      %v1107 = vld [vmem:[%s1101 + $0x14] sm:$0xf]
      %v1108 = vld [vmem:[%s1101 + $0x18] sm:$0xf]
      %v1109 = vld [vmem:[%s1101 + $0x1c] sm:$0xf]
      %v1110 = vld [vmem:[%s1101 + $0x20] sm:$0xf]
      %v1111 = vld [vmem:[%s1101 + $0x24] sm:$0xf]
      %v1112 = vld [vmem:[%s1101 + $0x28] sm:$0xf]
      %v1113 = vld [vmem:[%s1101 + $0x2c] sm:$0xf]
      %v1114 = vld [vmem:[%s1101 + $0x30] sm:$0xf]
      %v1115 = vld [vmem:[%s1101 + $0x34] sm:$0xf]
      %v1116 = vld [vmem:[%s1101 + $0x38] sm:$0xf]
      %v1117 = vld [vmem:[%s1101 + $0x3c] sm:$0xf]
      %v1118 = vpack.c.b16 %v244, %v243
      %v1119 = vpack.c.b16 %v610, %v610
      %v1138 = vunpack.c.l.b16 %v1102
      %v1139 = vunpack.c.l.b16 %v1103
      %v1140 = vunpack.c.l.b16 %v1104
      %v1141 = vunpack.c.l.b16 %v1105
      %v1142 = vunpack.c.l.b16 %v1106
      %v1143 = vunpack.c.l.b16 %v1107
      %v1144 = vunpack.c.l.b16 %v1108
      %v1145 = vunpack.c.l.b16 %v1109
      %v1146 = vunpack.c.l.b16 %v1110
      %v1147 = vunpack.c.l.b16 %v1111
      %v1148 = vunpack.c.l.b16 %v1112
      %v1149 = vunpack.c.l.b16 %v1113
      %v1150 = vunpack.c.l.b16 %v1114
      %v1151 = vunpack.c.l.b16 %v1115
      %v1152 = vunpack.c.l.b16 %v1116
      %v1153 = vunpack.c.l.b16 %v1117
      %v1154 = vpack.c.b16 %v1139, %v1138
      %v1155 = vpack.c.b16 %v1141, %v1140
      %v1156 = vpack.c.b16 %v1143, %v1142
      %v1157 = vpack.c.b16 %v1145, %v1144
      %v1158 = vpack.c.b16 %v1147, %v1146
      %v1159 = vpack.c.b16 %v1149, %v1148
      %v1160 = vpack.c.b16 %v1151, %v1150
      %v1161 = vpack.c.b16 %v1153, %v1152
      %1170 = vmatprep.subr.bf16.mxu0 0
      %1171 = vmatpush1.bf16.msra.mxu0 %v1161
      %1172 = vmatprep.subr.bf16.mxu0 0
      %1173 = vmatpush1.bf16.msra.mxu0 %v1160
      %1174 = vmatprep.subr.bf16.mxu0 0
      %1175 = vmatpush1.bf16.msra.mxu0 %v1159
      %1176 = vmatprep.subr.bf16.mxu0 0
      %1177 = vmatpush1.bf16.msra.mxu0 %v1158
      %1178 = vmatprep.subr.bf16.mxu0 0
      %1179 = vmatpush1.bf16.msra.mxu0 %v1157
      %1180 = vmatprep.subr.bf16.mxu0 0
      %1181 = vmatpush1.bf16.msra.mxu0 %v1156
      %1182 = vmatprep.subr.bf16.mxu0 0
      %1183 = vmatpush1.bf16.msra.mxu0 %v1155
      %1184 = vmatprep.subr.bf16.mxu0 0
      %1185 = vmatpush1.bf16.msra.mxu0 %v1154
      %1186 = vmatprep.subr.bf16.mxu0 0
      %1187 = vmatpush2.bf16.msra.mxu0 0
      %1188 = vmatprep.subr.bf16.mxu0 0
      %1189 = vmatpush2.bf16.msra.mxu0 0
      %1190 = vmatprep.subr.bf16.mxu0 0
      %1191 = vmatpush2.bf16.msra.mxu0 0
      %1192 = vmatprep.subr.bf16.mxu0 0
      %1193 = vmatpush2.bf16.msra.mxu0 0
      %1194 = vmatprep.subr.bf16.mxu0 0
      %1195 = vmatpush2.bf16.msra.mxu0 0
      %1196 = vmatprep.subr.bf16.mxu0 0
      %1197 = vmatpush2.bf16.msra.mxu0 0
      %1198 = vmatprep.subr.bf16.mxu0 0
      %1199 = vmatpush2.bf16.msra.mxu0 0
      %1200 = vmatprep.subr.bf16.mxu0 0
      %1201 = vmatpush2.bf16.msra.mxu0 0
      %1202 = vmatprep.mubr.bf16.mxu0 0
      %1203 = vmatmul.mubr.bf16.gmra.mxu0 %v1118
      %v1204 = vpop.f32.mrf.mxu0
      %v1205 = vadd.f32 0.0, %v1204
      %v1206 = vpop.f32.mrf.mxu0
      %v1207 = vpop.f32.mrf.mxu0
      %v1208 = vadd.f32 0.0, %v1207
      %v1209 = vpop.f32.mrf.mxu0
      %1210 = vmatprep.mubr.bf16.mxu0 0
      %1211 = vmatmul.mubr.bf16.gmra.mxu0 %v1119
      %v1212 = vpop.f32.mrf.mxu0
      %v1213 = vadd.f32 0.0, %v1212
      %v1214 = vpop.f32.mrf.mxu0
      %v1215 = vpop.f32.mrf.mxu0
      %v1216 = vpop.f32.mrf.mxu0
      %1217 = vdwg.mxu0
      %v1218 = vadd.f32 %v1098, %v1205
      %v1219 = vadd.f32 %v1099, %v1208
      %v1220 = vadd.f32 %v1100, %v1213
      %v1221 = vmul.f32 %v1218, %v735
      %v1222 = vmul.f32 %v1219, %v735
      %v1223 = vmul.f32 %v1220, %v735
      %v1224 = vadd.f32 %v1221, %v744
      %v1225 = vadd.f32 %v1222, %v744
      %v1226 = vadd.f32 %v1223, %v744
      %v1227 = vmax.f32 %v746, %v1224
      %v1228 = vmax.f32 %v747, %v1225
      %v1229 = vmax.f32 %v748, %v1226
      %s1230 = scalar_lea.vmem %s1, 512
      %v1231 = vld [vmem:[%s1230] sm:$0xf]
      %v1232 = vld [vmem:[%s1230 + $0x4] sm:$0xf]
      %v1233 = vld [vmem:[%s1230 + $0x8] sm:$0xf]
      %v1234 = vld [vmem:[%s1230 + $0xc] sm:$0xf]
      %v1235 = vld [vmem:[%s1230 + $0x10] sm:$0xf]
      %v1236 = vld [vmem:[%s1230 + $0x14] sm:$0xf]
      %v1237 = vld [vmem:[%s1230 + $0x18] sm:$0xf]
      %v1238 = vld [vmem:[%s1230 + $0x1c] sm:$0xf]
      %v1239 = vld [vmem:[%s1230 + $0x20] sm:$0xf]
      %v1240 = vld [vmem:[%s1230 + $0x24] sm:$0xf]
      %v1241 = vld [vmem:[%s1230 + $0x28] sm:$0xf]
      %v1242 = vld [vmem:[%s1230 + $0x2c] sm:$0xf]
      %v1243 = vld [vmem:[%s1230 + $0x30] sm:$0xf]
      %v1244 = vld [vmem:[%s1230 + $0x34] sm:$0xf]
      %v1245 = vld [vmem:[%s1230 + $0x38] sm:$0xf]
      %v1246 = vld [vmem:[%s1230 + $0x3c] sm:$0xf]
      %s1247 = scalar_lea.vmem %s1, 576
      %v1248 = vld [vmem:[%s1247] sm:$0xf]
      %v1249 = vld [vmem:[%s1247 + $0x4] sm:$0xf]
      %v1250 = vld [vmem:[%s1247 + $0x8] sm:$0xf]
      %v1251 = vld [vmem:[%s1247 + $0xc] sm:$0xf]
      %v1252 = vld [vmem:[%s1247 + $0x10] sm:$0xf]
      %v1253 = vld [vmem:[%s1247 + $0x14] sm:$0xf]
      %v1254 = vld [vmem:[%s1247 + $0x18] sm:$0xf]
      %v1255 = vld [vmem:[%s1247 + $0x1c] sm:$0xf]
      %v1256 = vld [vmem:[%s1247 + $0x20] sm:$0xf]
      %v1257 = vld [vmem:[%s1247 + $0x24] sm:$0xf]
      %v1258 = vld [vmem:[%s1247 + $0x28] sm:$0xf]
      %v1259 = vld [vmem:[%s1247 + $0x2c] sm:$0xf]
      %v1260 = vld [vmem:[%s1247 + $0x30] sm:$0xf]
      %v1261 = vld [vmem:[%s1247 + $0x34] sm:$0xf]
      %v1262 = vld [vmem:[%s1247 + $0x38] sm:$0xf]
      %v1263 = vld [vmem:[%s1247 + $0x3c] sm:$0xf]
      %v1280 = vunpack.c.l.b16 %v1248
      %v1281 = vunpack.c.l.b16 %v1249
      %v1282 = vunpack.c.l.b16 %v1250
      %v1283 = vunpack.c.l.b16 %v1251
      %v1284 = vunpack.c.l.b16 %v1252
      %v1285 = vunpack.c.l.b16 %v1253
      %v1286 = vunpack.c.l.b16 %v1254
      %v1287 = vunpack.c.l.b16 %v1255
      %v1288 = vunpack.c.l.b16 %v1256
      %v1289 = vunpack.c.l.b16 %v1257
      %v1290 = vunpack.c.l.b16 %v1258
      %v1291 = vunpack.c.l.b16 %v1259
      %v1292 = vunpack.c.l.b16 %v1260
      %v1293 = vunpack.c.l.b16 %v1261
      %v1294 = vunpack.c.l.b16 %v1262
      %v1295 = vunpack.c.l.b16 %v1263
      %v1296 = vpack.c.b16 %v1281, %v1280
      %v1297 = vpack.c.b16 %v1283, %v1282
      %v1298 = vpack.c.b16 %v1285, %v1284
      %v1299 = vpack.c.b16 %v1287, %v1286
      %v1300 = vpack.c.b16 %v1289, %v1288
      %v1301 = vpack.c.b16 %v1291, %v1290
      %v1302 = vpack.c.b16 %v1293, %v1292
      %v1303 = vpack.c.b16 %v1295, %v1294
      %1312 = vmatprep.subr.bf16.mxu0 0
      %1313 = vmatpush1.bf16.msra.mxu0 %v1303
      %1314 = vmatprep.subr.bf16.mxu0 0
      %1315 = vmatpush1.bf16.msra.mxu0 %v1302
      %1316 = vmatprep.subr.bf16.mxu0 0
      %1317 = vmatpush1.bf16.msra.mxu0 %v1301
      %1318 = vmatprep.subr.bf16.mxu0 0
      %1319 = vmatpush1.bf16.msra.mxu0 %v1300
      %1320 = vmatprep.subr.bf16.mxu0 0
      %1321 = vmatpush1.bf16.msra.mxu0 %v1299
      %1322 = vmatprep.subr.bf16.mxu0 0
      %1323 = vmatpush1.bf16.msra.mxu0 %v1298
      %1324 = vmatprep.subr.bf16.mxu0 0
      %1325 = vmatpush1.bf16.msra.mxu0 %v1297
      %1326 = vmatprep.subr.bf16.mxu0 0
      %1327 = vmatpush1.bf16.msra.mxu0 %v1296
      %1328 = vmatprep.subr.bf16.mxu0 0
      %1329 = vmatpush2.bf16.msra.mxu0 0
      %1330 = vmatprep.subr.bf16.mxu0 0
      %1331 = vmatpush2.bf16.msra.mxu0 0
      %1332 = vmatprep.subr.bf16.mxu0 0
      %1333 = vmatpush2.bf16.msra.mxu0 0
      %1334 = vmatprep.subr.bf16.mxu0 0
      %1335 = vmatpush2.bf16.msra.mxu0 0
      %1336 = vmatprep.subr.bf16.mxu0 0
      %1337 = vmatpush2.bf16.msra.mxu0 0
      %1338 = vmatprep.subr.bf16.mxu0 0
      %1339 = vmatpush2.bf16.msra.mxu0 0
      %1340 = vmatprep.subr.bf16.mxu0 0
      %1341 = vmatpush2.bf16.msra.mxu0 0
      %1342 = vmatprep.subr.bf16.mxu0 0
      %1343 = vmatpush2.bf16.msra.mxu0 0
      %1344 = vmatprep.mubr.bf16.mxu0 0
      %1345 = vmatmul.mubr.bf16.gmra.mxu0 %v629
      %v1346 = vpop.f32.mrf.mxu0
      %v1347 = vadd.f32 0.0, %v1346
      %v1348 = vpop.f32.mrf.mxu0
      %v1349 = vpop.f32.mrf.mxu0
      %v1350 = vadd.f32 0.0, %v1349
      %v1351 = vpop.f32.mrf.mxu0
      %1352 = vmatprep.mubr.bf16.mxu0 0
      %1353 = vmatmul.mubr.bf16.gmra.mxu0 %v628
      %v1354 = vpop.f32.mrf.mxu0
      %v1355 = vadd.f32 0.0, %v1354
      %v1356 = vpop.f32.mrf.mxu0
      %v1357 = vpop.f32.mrf.mxu0
      %v1358 = vpop.f32.mrf.mxu0
      %1359 = vdwg.mxu0
      %v1376 = vunpack.c.l.b16 %v1231
      %v1377 = vunpack.c.l.b16 %v1232
      %v1378 = vunpack.c.l.b16 %v1233
      %v1379 = vunpack.c.l.b16 %v1234
      %v1380 = vunpack.c.l.b16 %v1235
      %v1381 = vunpack.c.l.b16 %v1236
      %v1382 = vunpack.c.l.b16 %v1237
      %v1383 = vunpack.c.l.b16 %v1238
      %v1384 = vunpack.c.l.b16 %v1239
      %v1385 = vunpack.c.l.b16 %v1240
      %v1386 = vunpack.c.l.b16 %v1241
      %v1387 = vunpack.c.l.b16 %v1242
      %v1388 = vunpack.c.l.b16 %v1243
      %v1389 = vunpack.c.l.b16 %v1244
      %v1390 = vunpack.c.l.b16 %v1245
      %v1391 = vunpack.c.l.b16 %v1246
      %v1392 = vpack.c.b16 %v1377, %v1376
      %v1393 = vpack.c.b16 %v1379, %v1378
      %v1394 = vpack.c.b16 %v1381, %v1380
      %v1395 = vpack.c.b16 %v1383, %v1382
      %v1396 = vpack.c.b16 %v1385, %v1384
      %v1397 = vpack.c.b16 %v1387, %v1386
      %v1398 = vpack.c.b16 %v1389, %v1388
      %v1399 = vpack.c.b16 %v1391, %v1390
      %1408 = vmatprep.subr.bf16.mxu0 0
      %1409 = vmatpush1.bf16.msra.mxu0 %v1399
      %1410 = vmatprep.subr.bf16.mxu0 0
      %1411 = vmatpush1.bf16.msra.mxu0 %v1398
      %1412 = vmatprep.subr.bf16.mxu0 0
      %1413 = vmatpush1.bf16.msra.mxu0 %v1397
      %1414 = vmatprep.subr.bf16.mxu0 0
      %1415 = vmatpush1.bf16.msra.mxu0 %v1396
      %1416 = vmatprep.subr.bf16.mxu0 0
      %1417 = vmatpush1.bf16.msra.mxu0 %v1395
      %1418 = vmatprep.subr.bf16.mxu0 0
      %1419 = vmatpush1.bf16.msra.mxu0 %v1394
      %1420 = vmatprep.subr.bf16.mxu0 0
      %1421 = vmatpush1.bf16.msra.mxu0 %v1393
      %1422 = vmatprep.subr.bf16.mxu0 0
      %1423 = vmatpush1.bf16.msra.mxu0 %v1392
      %1424 = vmatprep.subr.bf16.mxu0 0
      %1425 = vmatpush2.bf16.msra.mxu0 0
      %1426 = vmatprep.subr.bf16.mxu0 0
      %1427 = vmatpush2.bf16.msra.mxu0 0
      %1428 = vmatprep.subr.bf16.mxu0 0
      %1429 = vmatpush2.bf16.msra.mxu0 0
      %1430 = vmatprep.subr.bf16.mxu0 0
      %1431 = vmatpush2.bf16.msra.mxu0 0
      %1432 = vmatprep.subr.bf16.mxu0 0
      %1433 = vmatpush2.bf16.msra.mxu0 0
      %1434 = vmatprep.subr.bf16.mxu0 0
      %1435 = vmatpush2.bf16.msra.mxu0 0
      %1436 = vmatprep.subr.bf16.mxu0 0
      %1437 = vmatpush2.bf16.msra.mxu0 0
      %1438 = vmatprep.subr.bf16.mxu0 0
      %1439 = vmatpush2.bf16.msra.mxu0 0
      %1440 = vmatprep.mubr.bf16.mxu0 0
      %1441 = vmatmul.mubr.bf16.gmra.mxu0 %v489
      %v1442 = vpop.f32.mrf.mxu0
      %v1443 = vadd.f32 %v1347, %v1442
      %v1444 = vpop.f32.mrf.mxu0
      %v1445 = vpop.f32.mrf.mxu0
      %v1446 = vadd.f32 %v1350, %v1445
      %v1447 = vpop.f32.mrf.mxu0
      %1448 = vmatprep.mubr.bf16.mxu0 0
      %1449 = vmatmul.mubr.bf16.gmra.mxu0 %v488
      %v1450 = vpop.f32.mrf.mxu0
      %v1451 = vadd.f32 %v1355, %v1450
      %v1452 = vpop.f32.mrf.mxu0
      %v1453 = vpop.f32.mrf.mxu0
      %v1454 = vpop.f32.mrf.mxu0
      %1455 = vdwg.mxu0
      %v1456 = vld [vmem:[%s192 + $0x4] sm:$0xc]
      %v1457 = vld [vmem:[%s192 + $0x8] sm:$0xf]
      %v1458 = vld [vmem:[%s192 + $0xc] sm:$0xf]
      %v1459 = vld [vmem:[%s192 + $0x10] sm:$0x3]
      %s1460 = scalar_lea.vmem %s1, 640
      %v1461 = vld [vmem:[%s1460] sm:$0xf]
      %v1462 = vld [vmem:[%s1460 + $0x4] sm:$0xf]
      %v1463 = vld [vmem:[%s1460 + $0x8] sm:$0xf]
      %v1464 = vld [vmem:[%s1460 + $0xc] sm:$0xf]
      %v1465 = vld [vmem:[%s1460 + $0x10] sm:$0xf]
      %v1466 = vld [vmem:[%s1460 + $0x14] sm:$0xf]
      %v1467 = vld [vmem:[%s1460 + $0x18] sm:$0xf]
      %v1468 = vld [vmem:[%s1460 + $0x1c] sm:$0xf]
      %v1469 = vld [vmem:[%s1460 + $0x20] sm:$0xf]
      %v1470 = vld [vmem:[%s1460 + $0x24] sm:$0xf]
      %v1471 = vld [vmem:[%s1460 + $0x28] sm:$0xf]
      %v1472 = vld [vmem:[%s1460 + $0x2c] sm:$0xf]
      %v1473 = vld [vmem:[%s1460 + $0x30] sm:$0xf]
      %v1474 = vld [vmem:[%s1460 + $0x34] sm:$0xf]
      %v1475 = vld [vmem:[%s1460 + $0x38] sm:$0xf]
      %v1476 = vld [vmem:[%s1460 + $0x3c] sm:$0xf]
      %v1481 = vunpack.c.l.b16 %v1456
      %v1482 = vunpack.c.l.b16 %v1457
      %v1483 = vunpack.c.l.b16 %v1458
      %v1484 = vunpack.c.l.b16 %v1459
      %v1485 = vpack.c.b16 %v1482, %v1481
      %v1486 = vpack.c.b16 %v1484, %v1483
      %vm1487 = vcmask 1045504
      %v1488 = vrot.slane %v1485, 2
      %v1489 = vrot.slane %v1486, 2
      %v1490 = vsel %vm1487, %v1488, %v1489
      %v1509 = vunpack.c.l.b16 %v1461
      %v1510 = vunpack.c.l.b16 %v1462
      %v1511 = vunpack.c.l.b16 %v1463
      %v1512 = vunpack.c.l.b16 %v1464
      %v1513 = vunpack.c.l.b16 %v1465
      %v1514 = vunpack.c.l.b16 %v1466
      %v1515 = vunpack.c.l.b16 %v1467
      %v1516 = vunpack.c.l.b16 %v1468
      %v1517 = vunpack.c.l.b16 %v1469
      %v1518 = vunpack.c.l.b16 %v1470
      %v1519 = vunpack.c.l.b16 %v1471
      %v1520 = vunpack.c.l.b16 %v1472
      %v1521 = vunpack.c.l.b16 %v1473
      %v1522 = vunpack.c.l.b16 %v1474
      %v1523 = vunpack.c.l.b16 %v1475
      %v1524 = vunpack.c.l.b16 %v1476
      %v1525 = vpack.c.b16 %v1510, %v1509
      %v1526 = vpack.c.b16 %v1512, %v1511
      %v1527 = vpack.c.b16 %v1514, %v1513
      %v1528 = vpack.c.b16 %v1516, %v1515
      %v1529 = vpack.c.b16 %v1518, %v1517
      %v1530 = vpack.c.b16 %v1520, %v1519
      %v1531 = vpack.c.b16 %v1522, %v1521
      %v1532 = vpack.c.b16 %v1524, %v1523
      %1541 = vmatprep.subr.bf16.mxu0 0
      %1542 = vmatpush1.bf16.msra.mxu0 %v1532
      %1543 = vmatprep.subr.bf16.mxu0 0
      %1544 = vmatpush1.bf16.msra.mxu0 %v1531
      %1545 = vmatprep.subr.bf16.mxu0 0
      %1546 = vmatpush1.bf16.msra.mxu0 %v1530
      %1547 = vmatprep.subr.bf16.mxu0 0
      %1548 = vmatpush1.bf16.msra.mxu0 %v1529
      %1549 = vmatprep.subr.bf16.mxu0 0
      %1550 = vmatpush1.bf16.msra.mxu0 %v1528
      %1551 = vmatprep.subr.bf16.mxu0 0
      %1552 = vmatpush1.bf16.msra.mxu0 %v1527
      %1553 = vmatprep.subr.bf16.mxu0 0
      %1554 = vmatpush1.bf16.msra.mxu0 %v1526
      %1555 = vmatprep.subr.bf16.mxu0 0
      %1556 = vmatpush1.bf16.msra.mxu0 %v1525
      %1557 = vmatprep.subr.bf16.mxu0 0
      %1558 = vmatpush2.bf16.msra.mxu0 0
      %1559 = vmatprep.subr.bf16.mxu0 0
      %1560 = vmatpush2.bf16.msra.mxu0 0
      %1561 = vmatprep.subr.bf16.mxu0 0
      %1562 = vmatpush2.bf16.msra.mxu0 0
      %1563 = vmatprep.subr.bf16.mxu0 0
      %1564 = vmatpush2.bf16.msra.mxu0 0
      %1565 = vmatprep.subr.bf16.mxu0 0
      %1566 = vmatpush2.bf16.msra.mxu0 0
      %1567 = vmatprep.subr.bf16.mxu0 0
      %1568 = vmatpush2.bf16.msra.mxu0 0
      %1569 = vmatprep.subr.bf16.mxu0 0
      %1570 = vmatpush2.bf16.msra.mxu0 0
      %1571 = vmatprep.subr.bf16.mxu0 0
      %1572 = vmatpush2.bf16.msra.mxu0 0
      %1573 = vmatprep.mubr.bf16.mxu0 0
      %1574 = vmatmul.mubr.bf16.gmra.mxu0 %v1490
      %v1575 = vpop.f32.mrf.mxu0
      %v1576 = vadd.f32 0.0, %v1575
      %v1577 = vpop.f32.mrf.mxu0
      %v1578 = vpop.f32.mrf.mxu0
      %v1579 = vadd.f32 0.0, %v1578
      %v1580 = vpop.f32.mrf.mxu0
      %1581 = vmatprep.mubr.bf16.mxu0 0
      %1582 = vmatmul.mubr.bf16.gmra.mxu0 %v1489
      %v1583 = vpop.f32.mrf.mxu0
      %v1584 = vadd.f32 0.0, %v1583
      %v1585 = vpop.f32.mrf.mxu0
      %v1586 = vpop.f32.mrf.mxu0
      %v1587 = vpop.f32.mrf.mxu0
      %1588 = vdwg.mxu0
      %v1589 = vadd.f32 %v1443, %v1576
      %v1590 = vadd.f32 %v1446, %v1579
      %v1591 = vadd.f32 %v1451, %v1584
      %v1592 = vld [vmem:[%s192 + $0x10] sm:$0x7]
      %s1593 = scalar_lea.vmem %s1, 704
      %v1594 = vld [vmem:[%s1593] sm:$0xf]
      %v1595 = vld [vmem:[%s1593 + $0x4] sm:$0xf]
      %v1596 = vld [vmem:[%s1593 + $0x8] sm:$0xf]
      %v1597 = vld [vmem:[%s1593 + $0xc] sm:$0xf]
      %v1598 = vld [vmem:[%s1593 + $0x10] sm:$0xf]
      %v1599 = vld [vmem:[%s1593 + $0x14] sm:$0xf]
      %v1600 = vld [vmem:[%s1593 + $0x18] sm:$0xf]
      %v1601 = vld [vmem:[%s1593 + $0x1c] sm:$0xf]
      %v1602 = vld [vmem:[%s1593 + $0x20] sm:$0xf]
      %v1603 = vld [vmem:[%s1593 + $0x24] sm:$0xf]
      %v1604 = vld [vmem:[%s1593 + $0x28] sm:$0xf]
      %v1605 = vld [vmem:[%s1593 + $0x2c] sm:$0xf]
      %v1606 = vld [vmem:[%s1593 + $0x30] sm:$0xf]
      %v1607 = vld [vmem:[%s1593 + $0x34] sm:$0xf]
      %v1608 = vld [vmem:[%s1593 + $0x38] sm:$0xf]
      %v1609 = vld [vmem:[%s1593 + $0x3c] sm:$0xf]
      %v1611 = vunpack.c.l.b16 %v1592
      %v1612 = vpack.c.b16 %v1611, %v1483
      %vm1613 = vsmask.f32 5376
      %v1615 = vshrl.u32 %v1485, 16
      %v1617 = vrot.slane %v1615, 2
      %v1618 = vshll.u32 %v1485, 16
      %v1620 = vrot.slane %v1618, 3
      %v1621 = vor.u32 %v1617, %v1620
      %v1623 = vshrl.u32 %v1612, 16
      %v1625 = vrot.slane %v1623, 2
      %v1626 = vshll.u32 %v1612, 16
      %v1628 = vrot.slane %v1626, 3
      %v1629 = vor.u32 %v1625, %v1628
      %v1630 = vsel %vm1613, %v1621, %v1629
      %v1649 = vunpack.c.l.b16 %v1594
      %v1650 = vunpack.c.l.b16 %v1595
      %v1651 = vunpack.c.l.b16 %v1596
      %v1652 = vunpack.c.l.b16 %v1597
      %v1653 = vunpack.c.l.b16 %v1598
      %v1654 = vunpack.c.l.b16 %v1599
      %v1655 = vunpack.c.l.b16 %v1600
      %v1656 = vunpack.c.l.b16 %v1601
      %v1657 = vunpack.c.l.b16 %v1602
      %v1658 = vunpack.c.l.b16 %v1603
      %v1659 = vunpack.c.l.b16 %v1604
      %v1660 = vunpack.c.l.b16 %v1605
      %v1661 = vunpack.c.l.b16 %v1606
      %v1662 = vunpack.c.l.b16 %v1607
      %v1663 = vunpack.c.l.b16 %v1608
      %v1664 = vunpack.c.l.b16 %v1609
      %v1665 = vpack.c.b16 %v1650, %v1649
      %v1666 = vpack.c.b16 %v1652, %v1651
      %v1667 = vpack.c.b16 %v1654, %v1653
      %v1668 = vpack.c.b16 %v1656, %v1655
      %v1669 = vpack.c.b16 %v1658, %v1657
      %v1670 = vpack.c.b16 %v1660, %v1659
      %v1671 = vpack.c.b16 %v1662, %v1661
      %v1672 = vpack.c.b16 %v1664, %v1663
      %1681 = vmatprep.subr.bf16.mxu0 0
      %1682 = vmatpush1.bf16.msra.mxu0 %v1672
      %1683 = vmatprep.subr.bf16.mxu0 0
      %1684 = vmatpush1.bf16.msra.mxu0 %v1671
      %1685 = vmatprep.subr.bf16.mxu0 0
      %1686 = vmatpush1.bf16.msra.mxu0 %v1670
      %1687 = vmatprep.subr.bf16.mxu0 0
      %1688 = vmatpush1.bf16.msra.mxu0 %v1669
      %1689 = vmatprep.subr.bf16.mxu0 0
      %1690 = vmatpush1.bf16.msra.mxu0 %v1668
      %1691 = vmatprep.subr.bf16.mxu0 0
      %1692 = vmatpush1.bf16.msra.mxu0 %v1667
      %1693 = vmatprep.subr.bf16.mxu0 0
      %1694 = vmatpush1.bf16.msra.mxu0 %v1666
      %1695 = vmatprep.subr.bf16.mxu0 0
      %1696 = vmatpush1.bf16.msra.mxu0 %v1665
      %1697 = vmatprep.subr.bf16.mxu0 0
      %1698 = vmatpush2.bf16.msra.mxu0 0
      %1699 = vmatprep.subr.bf16.mxu0 0
      %1700 = vmatpush2.bf16.msra.mxu0 0
      %1701 = vmatprep.subr.bf16.mxu0 0
      %1702 = vmatpush2.bf16.msra.mxu0 0
      %1703 = vmatprep.subr.bf16.mxu0 0
      %1704 = vmatpush2.bf16.msra.mxu0 0
      %1705 = vmatprep.subr.bf16.mxu0 0
      %1706 = vmatpush2.bf16.msra.mxu0 0
      %1707 = vmatprep.subr.bf16.mxu0 0
      %1708 = vmatpush2.bf16.msra.mxu0 0
      %1709 = vmatprep.subr.bf16.mxu0 0
      %1710 = vmatpush2.bf16.msra.mxu0 0
      %1711 = vmatprep.subr.bf16.mxu0 0
      %1712 = vmatpush2.bf16.msra.mxu0 0
      %1713 = vmatprep.mubr.bf16.mxu0 0
      %1714 = vmatmul.mubr.bf16.gmra.mxu0 %v1630
      %v1715 = vpop.f32.mrf.mxu0
      %v1716 = vadd.f32 0.0, %v1715
      %v1717 = vpop.f32.mrf.mxu0
      %v1718 = vpop.f32.mrf.mxu0
      %v1719 = vadd.f32 0.0, %v1718
      %v1720 = vpop.f32.mrf.mxu0
      %1721 = vmatprep.mubr.bf16.mxu0 0
      %1722 = vmatmul.mubr.bf16.gmra.mxu0 %v1629
      %v1723 = vpop.f32.mrf.mxu0
      %v1724 = vadd.f32 0.0, %v1723
      %v1725 = vpop.f32.mrf.mxu0
      %v1726 = vpop.f32.mrf.mxu0
      %v1727 = vpop.f32.mrf.mxu0
      %1728 = vdwg.mxu0
      %v1729 = vadd.f32 %v1589, %v1716
      %v1730 = vadd.f32 %v1590, %v1719
      %v1731 = vadd.f32 %v1591, %v1724
      %v1732 = vmul.f32 %v1729, %v735
      %v1733 = vmul.f32 %v1730, %v735
      %v1734 = vmul.f32 %v1731, %v735
      %v1735 = vadd.f32 %v1732, %v744
      %v1736 = vadd.f32 %v1733, %v744
      %v1737 = vadd.f32 %v1734, %v744
      %v1738 = vmax.f32 %v1227, %v1735
      %v1739 = vmax.f32 %v1228, %v1736
      %v1740 = vmax.f32 %v1229, %v1737
      %s1741 = scalar_lea.vmem %s1, 768
      %v1742 = vld [vmem:[%s1741] sm:$0xf]
      %v1743 = vld [vmem:[%s1741 + $0x4] sm:$0xf]
      %v1744 = vld [vmem:[%s1741 + $0x8] sm:$0xf]
      %v1745 = vld [vmem:[%s1741 + $0xc] sm:$0xf]
      %v1746 = vld [vmem:[%s1741 + $0x10] sm:$0xf]
      %v1747 = vld [vmem:[%s1741 + $0x14] sm:$0xf]
      %v1748 = vld [vmem:[%s1741 + $0x18] sm:$0xf]
      %v1749 = vld [vmem:[%s1741 + $0x1c] sm:$0xf]
      %v1750 = vld [vmem:[%s1741 + $0x20] sm:$0xf]
      %v1751 = vld [vmem:[%s1741 + $0x24] sm:$0xf]
      %v1752 = vld [vmem:[%s1741 + $0x28] sm:$0xf]
      %v1753 = vld [vmem:[%s1741 + $0x2c] sm:$0xf]
      %v1754 = vld [vmem:[%s1741 + $0x30] sm:$0xf]
      %v1755 = vld [vmem:[%s1741 + $0x34] sm:$0xf]
      %v1756 = vld [vmem:[%s1741 + $0x38] sm:$0xf]
      %v1757 = vld [vmem:[%s1741 + $0x3c] sm:$0xf]
      %s1758 = scalar_lea.vmem %s1, 832
      %v1759 = vld [vmem:[%s1758] sm:$0xf]
      %v1760 = vld [vmem:[%s1758 + $0x4] sm:$0xf]
      %v1761 = vld [vmem:[%s1758 + $0x8] sm:$0xf]
      %v1762 = vld [vmem:[%s1758 + $0xc] sm:$0xf]
      %v1763 = vld [vmem:[%s1758 + $0x10] sm:$0xf]
      %v1764 = vld [vmem:[%s1758 + $0x14] sm:$0xf]
      %v1765 = vld [vmem:[%s1758 + $0x18] sm:$0xf]
      %v1766 = vld [vmem:[%s1758 + $0x1c] sm:$0xf]
      %v1767 = vld [vmem:[%s1758 + $0x20] sm:$0xf]
      %v1768 = vld [vmem:[%s1758 + $0x24] sm:$0xf]
      %v1769 = vld [vmem:[%s1758 + $0x28] sm:$0xf]
      %v1770 = vld [vmem:[%s1758 + $0x2c] sm:$0xf]
      %v1771 = vld [vmem:[%s1758 + $0x30] sm:$0xf]
      %v1772 = vld [vmem:[%s1758 + $0x34] sm:$0xf]
      %v1773 = vld [vmem:[%s1758 + $0x38] sm:$0xf]
      %v1774 = vld [vmem:[%s1758 + $0x3c] sm:$0xf]
      %v1791 = vunpack.c.l.b16 %v1759
      %v1792 = vunpack.c.l.b16 %v1760
      %v1793 = vunpack.c.l.b16 %v1761
      %v1794 = vunpack.c.l.b16 %v1762
      %v1795 = vunpack.c.l.b16 %v1763
      %v1796 = vunpack.c.l.b16 %v1764
      %v1797 = vunpack.c.l.b16 %v1765
      %v1798 = vunpack.c.l.b16 %v1766
      %v1799 = vunpack.c.l.b16 %v1767
      %v1800 = vunpack.c.l.b16 %v1768
      %v1801 = vunpack.c.l.b16 %v1769
      %v1802 = vunpack.c.l.b16 %v1770
      %v1803 = vunpack.c.l.b16 %v1771
      %v1804 = vunpack.c.l.b16 %v1772
      %v1805 = vunpack.c.l.b16 %v1773
      %v1806 = vunpack.c.l.b16 %v1774
      %v1807 = vpack.c.b16 %v1792, %v1791
      %v1808 = vpack.c.b16 %v1794, %v1793
      %v1809 = vpack.c.b16 %v1796, %v1795
      %v1810 = vpack.c.b16 %v1798, %v1797
      %v1811 = vpack.c.b16 %v1800, %v1799
      %v1812 = vpack.c.b16 %v1802, %v1801
      %v1813 = vpack.c.b16 %v1804, %v1803
      %v1814 = vpack.c.b16 %v1806, %v1805
      %1823 = vmatprep.subr.bf16.mxu0 0
      %1824 = vmatpush1.bf16.msra.mxu0 %v1814
      %1825 = vmatprep.subr.bf16.mxu0 0
      %1826 = vmatpush1.bf16.msra.mxu0 %v1813
      %1827 = vmatprep.subr.bf16.mxu0 0
      %1828 = vmatpush1.bf16.msra.mxu0 %v1812
      %1829 = vmatprep.subr.bf16.mxu0 0
      %1830 = vmatpush1.bf16.msra.mxu0 %v1811
      %1831 = vmatprep.subr.bf16.mxu0 0
      %1832 = vmatpush1.bf16.msra.mxu0 %v1810
      %1833 = vmatprep.subr.bf16.mxu0 0
      %1834 = vmatpush1.bf16.msra.mxu0 %v1809
      %1835 = vmatprep.subr.bf16.mxu0 0
      %1836 = vmatpush1.bf16.msra.mxu0 %v1808
      %1837 = vmatprep.subr.bf16.mxu0 0
      %1838 = vmatpush1.bf16.msra.mxu0 %v1807
      %1839 = vmatprep.subr.bf16.mxu0 0
      %1840 = vmatpush2.bf16.msra.mxu0 0
      %1841 = vmatprep.subr.bf16.mxu0 0
      %1842 = vmatpush2.bf16.msra.mxu0 0
      %1843 = vmatprep.subr.bf16.mxu0 0
      %1844 = vmatpush2.bf16.msra.mxu0 0
      %1845 = vmatprep.subr.bf16.mxu0 0
      %1846 = vmatpush2.bf16.msra.mxu0 0
      %1847 = vmatprep.subr.bf16.mxu0 0
      %1848 = vmatpush2.bf16.msra.mxu0 0
      %1849 = vmatprep.subr.bf16.mxu0 0
      %1850 = vmatpush2.bf16.msra.mxu0 0
      %1851 = vmatprep.subr.bf16.mxu0 0
      %1852 = vmatpush2.bf16.msra.mxu0 0
      %1853 = vmatprep.subr.bf16.mxu0 0
      %1854 = vmatpush2.bf16.msra.mxu0 0
      %1855 = vmatprep.mubr.bf16.mxu0 0
      %1856 = vmatmul.mubr.bf16.gmra.mxu0 %v1118
      %v1857 = vpop.f32.mrf.mxu0
      %v1858 = vadd.f32 0.0, %v1857
      %v1859 = vpop.f32.mrf.mxu0
      %v1860 = vpop.f32.mrf.mxu0
      %v1861 = vadd.f32 0.0, %v1860
      %v1862 = vpop.f32.mrf.mxu0
      %1863 = vmatprep.mubr.bf16.mxu0 0
      %1864 = vmatmul.mubr.bf16.gmra.mxu0 %v1119
      %v1865 = vpop.f32.mrf.mxu0
      %v1866 = vadd.f32 0.0, %v1865
      %v1867 = vpop.f32.mrf.mxu0
      %v1868 = vpop.f32.mrf.mxu0
      %v1869 = vpop.f32.mrf.mxu0
      %1870 = vdwg.mxu0
      %v1887 = vunpack.c.l.b16 %v1742
      %v1888 = vunpack.c.l.b16 %v1743
      %v1889 = vunpack.c.l.b16 %v1744
      %v1890 = vunpack.c.l.b16 %v1745
      %v1891 = vunpack.c.l.b16 %v1746
      %v1892 = vunpack.c.l.b16 %v1747
      %v1893 = vunpack.c.l.b16 %v1748
      %v1894 = vunpack.c.l.b16 %v1749
      %v1895 = vunpack.c.l.b16 %v1750
      %v1896 = vunpack.c.l.b16 %v1751
      %v1897 = vunpack.c.l.b16 %v1752
      %v1898 = vunpack.c.l.b16 %v1753
      %v1899 = vunpack.c.l.b16 %v1754
      %v1900 = vunpack.c.l.b16 %v1755
      %v1901 = vunpack.c.l.b16 %v1756
      %v1902 = vunpack.c.l.b16 %v1757
      %v1903 = vpack.c.b16 %v1888, %v1887
      %v1904 = vpack.c.b16 %v1890, %v1889
      %v1905 = vpack.c.b16 %v1892, %v1891
      %v1906 = vpack.c.b16 %v1894, %v1893
      %v1907 = vpack.c.b16 %v1896, %v1895
      %v1908 = vpack.c.b16 %v1898, %v1897
      %v1909 = vpack.c.b16 %v1900, %v1899
      %v1910 = vpack.c.b16 %v1902, %v1901
      %1919 = vmatprep.subr.bf16.mxu0 0
      %1920 = vmatpush1.bf16.msra.mxu0 %v1910
      %1921 = vmatprep.subr.bf16.mxu0 0
      %1922 = vmatpush1.bf16.msra.mxu0 %v1909
      %1923 = vmatprep.subr.bf16.mxu0 0
      %1924 = vmatpush1.bf16.msra.mxu0 %v1908
      %1925 = vmatprep.subr.bf16.mxu0 0
      %1926 = vmatpush1.bf16.msra.mxu0 %v1907
      %1927 = vmatprep.subr.bf16.mxu0 0
      %1928 = vmatpush1.bf16.msra.mxu0 %v1906
      %1929 = vmatprep.subr.bf16.mxu0 0
      %1930 = vmatpush1.bf16.msra.mxu0 %v1905
      %1931 = vmatprep.subr.bf16.mxu0 0
      %1932 = vmatpush1.bf16.msra.mxu0 %v1904
      %1933 = vmatprep.subr.bf16.mxu0 0
      %1934 = vmatpush1.bf16.msra.mxu0 %v1903
      %1935 = vmatprep.subr.bf16.mxu0 0
      %1936 = vmatpush2.bf16.msra.mxu0 0
      %1937 = vmatprep.subr.bf16.mxu0 0
      %1938 = vmatpush2.bf16.msra.mxu0 0
      %1939 = vmatprep.subr.bf16.mxu0 0
      %1940 = vmatpush2.bf16.msra.mxu0 0
      %1941 = vmatprep.subr.bf16.mxu0 0
      %1942 = vmatpush2.bf16.msra.mxu0 0
      %1943 = vmatprep.subr.bf16.mxu0 0
      %1944 = vmatpush2.bf16.msra.mxu0 0
      %1945 = vmatprep.subr.bf16.mxu0 0
      %1946 = vmatpush2.bf16.msra.mxu0 0
      %1947 = vmatprep.subr.bf16.mxu0 0
      %1948 = vmatpush2.bf16.msra.mxu0 0
      %1949 = vmatprep.subr.bf16.mxu0 0
      %1950 = vmatpush2.bf16.msra.mxu0 0
      %1951 = vmatprep.mubr.bf16.mxu0 0
      %1952 = vmatmul.mubr.bf16.gmra.mxu0 %v629
      %v1953 = vpop.f32.mrf.mxu0
      %v1954 = vadd.f32 %v1858, %v1953
      %v1955 = vpop.f32.mrf.mxu0
      %v1956 = vpop.f32.mrf.mxu0
      %v1957 = vadd.f32 %v1861, %v1956
      %v1958 = vpop.f32.mrf.mxu0
      %1959 = vmatprep.mubr.bf16.mxu0 0
      %1960 = vmatmul.mubr.bf16.gmra.mxu0 %v628
      %v1961 = vpop.f32.mrf.mxu0
      %v1962 = vadd.f32 %v1866, %v1961
      %v1963 = vpop.f32.mrf.mxu0
      %v1964 = vpop.f32.mrf.mxu0
      %v1965 = vpop.f32.mrf.mxu0
      %1966 = vdwg.mxu0
      %s1967 = scalar_lea.vmem %s1, 896
      %v1968 = vld [vmem:[%s1967] sm:$0xf]
      %v1969 = vld [vmem:[%s1967 + $0x4] sm:$0xf]
      %v1970 = vld [vmem:[%s1967 + $0x8] sm:$0xf]
      %v1971 = vld [vmem:[%s1967 + $0xc] sm:$0xf]
      %v1972 = vld [vmem:[%s1967 + $0x10] sm:$0xf]
      %v1973 = vld [vmem:[%s1967 + $0x14] sm:$0xf]
      %v1974 = vld [vmem:[%s1967 + $0x18] sm:$0xf]
      %v1975 = vld [vmem:[%s1967 + $0x1c] sm:$0xf]
      %v1976 = vld [vmem:[%s1967 + $0x20] sm:$0xf]
      %v1977 = vld [vmem:[%s1967 + $0x24] sm:$0xf]
      %v1978 = vld [vmem:[%s1967 + $0x28] sm:$0xf]
      %v1979 = vld [vmem:[%s1967 + $0x2c] sm:$0xf]
      %v1980 = vld [vmem:[%s1967 + $0x30] sm:$0xf]
      %v1981 = vld [vmem:[%s1967 + $0x34] sm:$0xf]
      %v1982 = vld [vmem:[%s1967 + $0x38] sm:$0xf]
      %v1983 = vld [vmem:[%s1967 + $0x3c] sm:$0xf]
      %v2000 = vunpack.c.l.b16 %v1968
      %v2001 = vunpack.c.l.b16 %v1969
      %v2002 = vunpack.c.l.b16 %v1970
      %v2003 = vunpack.c.l.b16 %v1971
      %v2004 = vunpack.c.l.b16 %v1972
      %v2005 = vunpack.c.l.b16 %v1973
      %v2006 = vunpack.c.l.b16 %v1974
      %v2007 = vunpack.c.l.b16 %v1975
      %v2008 = vunpack.c.l.b16 %v1976
      %v2009 = vunpack.c.l.b16 %v1977
      %v2010 = vunpack.c.l.b16 %v1978
      %v2011 = vunpack.c.l.b16 %v1979
      %v2012 = vunpack.c.l.b16 %v1980
      %v2013 = vunpack.c.l.b16 %v1981
      %v2014 = vunpack.c.l.b16 %v1982
      %v2015 = vunpack.c.l.b16 %v1983
      %v2016 = vpack.c.b16 %v2001, %v2000
      %v2017 = vpack.c.b16 %v2003, %v2002
      %v2018 = vpack.c.b16 %v2005, %v2004
      %v2019 = vpack.c.b16 %v2007, %v2006
      %v2020 = vpack.c.b16 %v2009, %v2008
      %v2021 = vpack.c.b16 %v2011, %v2010
      %v2022 = vpack.c.b16 %v2013, %v2012
      %v2023 = vpack.c.b16 %v2015, %v2014
      %2032 = vmatprep.subr.bf16.mxu0 0
      %2033 = vmatpush1.bf16.msra.mxu0 %v2023
      %2034 = vmatprep.subr.bf16.mxu0 0
      %2035 = vmatpush1.bf16.msra.mxu0 %v2022
      %2036 = vmatprep.subr.bf16.mxu0 0
      %2037 = vmatpush1.bf16.msra.mxu0 %v2021
      %2038 = vmatprep.subr.bf16.mxu0 0
      %2039 = vmatpush1.bf16.msra.mxu0 %v2020
      %2040 = vmatprep.subr.bf16.mxu0 0
      %2041 = vmatpush1.bf16.msra.mxu0 %v2019
      %2042 = vmatprep.subr.bf16.mxu0 0
      %2043 = vmatpush1.bf16.msra.mxu0 %v2018
      %2044 = vmatprep.subr.bf16.mxu0 0
      %2045 = vmatpush1.bf16.msra.mxu0 %v2017
      %2046 = vmatprep.subr.bf16.mxu0 0
      %2047 = vmatpush1.bf16.msra.mxu0 %v2016
      %2048 = vmatprep.subr.bf16.mxu0 0
      %2049 = vmatpush2.bf16.msra.mxu0 0
      %2050 = vmatprep.subr.bf16.mxu0 0
      %2051 = vmatpush2.bf16.msra.mxu0 0
      %2052 = vmatprep.subr.bf16.mxu0 0
      %2053 = vmatpush2.bf16.msra.mxu0 0
      %2054 = vmatprep.subr.bf16.mxu0 0
      %2055 = vmatpush2.bf16.msra.mxu0 0
      %2056 = vmatprep.subr.bf16.mxu0 0
      %2057 = vmatpush2.bf16.msra.mxu0 0
      %2058 = vmatprep.subr.bf16.mxu0 0
      %2059 = vmatpush2.bf16.msra.mxu0 0
      %2060 = vmatprep.subr.bf16.mxu0 0
      %2061 = vmatpush2.bf16.msra.mxu0 0
      %2062 = vmatprep.subr.bf16.mxu0 0
      %2063 = vmatpush2.bf16.msra.mxu0 0
      %2064 = vmatprep.mubr.bf16.mxu0 0
      %2065 = vmatmul.mubr.bf16.gmra.mxu0 %v1630
      %v2066 = vpop.f32.mrf.mxu0
      %v2067 = vadd.f32 0.0, %v2066
      %v2068 = vpop.f32.mrf.mxu0
      %v2069 = vpop.f32.mrf.mxu0
      %v2070 = vadd.f32 0.0, %v2069
      %v2071 = vpop.f32.mrf.mxu0
      %2072 = vmatprep.mubr.bf16.mxu0 0
      %2073 = vmatmul.mubr.bf16.gmra.mxu0 %v1629
      %v2074 = vpop.f32.mrf.mxu0
      %v2075 = vadd.f32 0.0, %v2074
      %v2076 = vpop.f32.mrf.mxu0
      %v2077 = vpop.f32.mrf.mxu0
      %v2078 = vpop.f32.mrf.mxu0
      %2079 = vdwg.mxu0
      %v2080 = vadd.f32 %v1954, %v2067
      %v2081 = vadd.f32 %v1957, %v2070
      %v2082 = vadd.f32 %v1962, %v2075
      %v2083 = vld [vmem:[%s192 + $0x4] sm:$0x8]
      %s2084 = scalar_lea.vmem %s1, 960
      %v2085 = vld [vmem:[%s2084] sm:$0xf]
      %v2086 = vld [vmem:[%s2084 + $0x4] sm:$0xf]
      %v2087 = vld [vmem:[%s2084 + $0x8] sm:$0xf]
      %v2088 = vld [vmem:[%s2084 + $0xc] sm:$0xf]
      %v2089 = vld [vmem:[%s2084 + $0x10] sm:$0xf]
      %v2090 = vld [vmem:[%s2084 + $0x14] sm:$0xf]
      %v2091 = vld [vmem:[%s2084 + $0x18] sm:$0xf]
      %v2092 = vld [vmem:[%s2084 + $0x1c] sm:$0xf]
      %v2093 = vld [vmem:[%s2084 + $0x20] sm:$0xf]
      %v2094 = vld [vmem:[%s2084 + $0x24] sm:$0xf]
      %v2095 = vld [vmem:[%s2084 + $0x28] sm:$0xf]
      %v2096 = vld [vmem:[%s2084 + $0x2c] sm:$0xf]
      %v2097 = vld [vmem:[%s2084 + $0x30] sm:$0xf]
      %v2098 = vld [vmem:[%s2084 + $0x34] sm:$0xf]
      %v2099 = vld [vmem:[%s2084 + $0x38] sm:$0xf]
      %v2100 = vld [vmem:[%s2084 + $0x3c] sm:$0xf]
      %v2102 = vunpack.c.l.b16 %v2083
      %v2103 = vpack.c.b16 %v1482, %v2102
      %v2104 = vrot.slane %v2103, 3
      %v2105 = vrot.slane %v1612, 3
      %v2106 = vsel %vm486, %v2104, %v2105
      %v2125 = vunpack.c.l.b16 %v2085
      %v2126 = vunpack.c.l.b16 %v2086
      %v2127 = vunpack.c.l.b16 %v2087
      %v2128 = vunpack.c.l.b16 %v2088
      %v2129 = vunpack.c.l.b16 %v2089
      %v2130 = vunpack.c.l.b16 %v2090
      %v2131 = vunpack.c.l.b16 %v2091
      %v2132 = vunpack.c.l.b16 %v2092
      %v2133 = vunpack.c.l.b16 %v2093
      %v2134 = vunpack.c.l.b16 %v2094
      %v2135 = vunpack.c.l.b16 %v2095
      %v2136 = vunpack.c.l.b16 %v2096
      %v2137 = vunpack.c.l.b16 %v2097
      %v2138 = vunpack.c.l.b16 %v2098
      %v2139 = vunpack.c.l.b16 %v2099
      %v2140 = vunpack.c.l.b16 %v2100
      %v2141 = vpack.c.b16 %v2126, %v2125
      %v2142 = vpack.c.b16 %v2128, %v2127
      %v2143 = vpack.c.b16 %v2130, %v2129
      %v2144 = vpack.c.b16 %v2132, %v2131
      %v2145 = vpack.c.b16 %v2134, %v2133
      %v2146 = vpack.c.b16 %v2136, %v2135
      %v2147 = vpack.c.b16 %v2138, %v2137
      %v2148 = vpack.c.b16 %v2140, %v2139
      %2157 = vmatprep.subr.bf16.mxu0 0
      %2158 = vmatpush1.bf16.msra.mxu0 %v2148
      %2159 = vmatprep.subr.bf16.mxu0 0
      %2160 = vmatpush1.bf16.msra.mxu0 %v2147
      %2161 = vmatprep.subr.bf16.mxu0 0
      %2162 = vmatpush1.bf16.msra.mxu0 %v2146
      %2163 = vmatprep.subr.bf16.mxu0 0
      %2164 = vmatpush1.bf16.msra.mxu0 %v2145
      %2165 = vmatprep.subr.bf16.mxu0 0
      %2166 = vmatpush1.bf16.msra.mxu0 %v2144
      %2167 = vmatprep.subr.bf16.mxu0 0
      %2168 = vmatpush1.bf16.msra.mxu0 %v2143
      %2169 = vmatprep.subr.bf16.mxu0 0
      %2170 = vmatpush1.bf16.msra.mxu0 %v2142
      %2171 = vmatprep.subr.bf16.mxu0 0
      %2172 = vmatpush1.bf16.msra.mxu0 %v2141
      %2173 = vmatprep.subr.bf16.mxu0 0
      %2174 = vmatpush2.bf16.msra.mxu0 0
      %2175 = vmatprep.subr.bf16.mxu0 0
      %2176 = vmatpush2.bf16.msra.mxu0 0
      %2177 = vmatprep.subr.bf16.mxu0 0
      %2178 = vmatpush2.bf16.msra.mxu0 0
      %2179 = vmatprep.subr.bf16.mxu0 0
      %2180 = vmatpush2.bf16.msra.mxu0 0
      %2181 = vmatprep.subr.bf16.mxu0 0
      %2182 = vmatpush2.bf16.msra.mxu0 0
      %2183 = vmatprep.subr.bf16.mxu0 0
      %2184 = vmatpush2.bf16.msra.mxu0 0
      %2185 = vmatprep.subr.bf16.mxu0 0
      %2186 = vmatpush2.bf16.msra.mxu0 0
      %2187 = vmatprep.subr.bf16.mxu0 0
      %2188 = vmatpush2.bf16.msra.mxu0 0
      %2189 = vmatprep.mubr.bf16.mxu0 0
      %2190 = vmatmul.mubr.bf16.gmra.mxu0 %v2106
      %v2191 = vpop.f32.mrf.mxu0
      %v2192 = vadd.f32 0.0, %v2191
      %v2193 = vpop.f32.mrf.mxu0
      %v2194 = vpop.f32.mrf.mxu0
      %v2195 = vadd.f32 0.0, %v2194
      %v2196 = vpop.f32.mrf.mxu0
      %2197 = vmatprep.mubr.bf16.mxu0 0
      %2198 = vmatmul.mubr.bf16.gmra.mxu0 %v2105
      %v2199 = vpop.f32.mrf.mxu0
      %v2200 = vadd.f32 0.0, %v2199
      %v2201 = vpop.f32.mrf.mxu0
      %v2202 = vpop.f32.mrf.mxu0
      %v2203 = vpop.f32.mrf.mxu0
      %2204 = vdwg.mxu0
      %v2205 = vadd.f32 %v2080, %v2192
      %v2206 = vadd.f32 %v2081, %v2195
      %v2207 = vadd.f32 %v2082, %v2200
      %v2208 = vmul.f32 %v2205, %v735
      %v2209 = vmul.f32 %v2206, %v735
      %v2210 = vmul.f32 %v2207, %v735
      %v2211 = vadd.f32 %v2208, %v744
      %v2212 = vadd.f32 %v2209, %v744
      %v2213 = vadd.f32 %v2210, %v744
      %v2214 = vmax.f32 %v1738, %v2211
      %v2215 = vmax.f32 %v1739, %v2212
      %v2216 = vmax.f32 %v1740, %v2213
      %v2217 = vmax.f32 %v2214, 0.0
      %v2218 = vmax.f32 %v2215, 0.0
      %v2219 = vmax.f32 %v2216, 0.0
      %v2220 = vpack.c.bf16 %v2218, %v2217
      %v2221 = vpack.c.bf16 %v2219, %v2219
      %v2224 = vunpack.c.l.b16 %v2220
      %v2225 = vunpack.c.h.b16 %v2220
      %v2226 = vunpack.c.l.b16 %v2221
      %v2227 = vpack.c.b16 %v2224, %v2224
      %v2228 = vpack.c.b16 %v2225, %v2225
      %v2229 = vpack.c.b16 %v2226, %v2226
      %2233 = vst [vmem:[%s197] sm:$0xf] %v2227
      %2234 = vst [vmem:[%s197 + $0x4] sm:$0xf] %v2228
      %2235 = vst [vmem:[%s197 + $0x8] sm:$0xf] %v2229
      %p2236 = scmp.lt.s32.totalorder %s15, 1
      %s2237 = scalar_select %p2236, %s15, 1
      %s2238 = smul.addr %s2237, 3
      %s2239 = smul.addr %s2238, 4
      %s2240 = scalar_lea.vmem %s4, %s2239
      // Predicated region
      $region37: #{_forward_impl.5} parent=35 // pred_check
        %p2241 = pneg %p122
      $region38: #{_forward_impl.5} parent=35 // pred_check_branch
        %2243 = sbr.rel (%p2241) target = $region40
      $region39: #{_forward_impl.5} parent=35 // pred_region
        _
      $region40: #{_forward_impl.5} parent=35 // pred_fallthru
        _
    $region36: #{_forward_impl.5} parent=5 // pred_fallthru
      _
    %p2244 = scmp.le.s32.totalorder 2, %s10
    // Predicated region
    $region41: #{_forward_impl.5} parent=5 // pred_check
      %p2245 = pneg %p2244
    $region42: #{_forward_impl.5} parent=5 // pred_check_branch
      %2247 = sbr.rel (%p2245) target = $region44
    $region43: #{_forward_impl.5} parent=5 // pred_region
      %s2248 = ssub.s32 %s10, 2
      // Predicated region
      $region45: #{_forward_impl.5} parent=43 // pred_check
        %p2249 = pneg %p128
      $region46: #{_forward_impl.5} parent=43 // pred_check_branch
        %2251 = sbr.rel (%p2249) target = $region48
      $region47: #{_forward_impl.5} parent=43 // pred_region
        %p2252 = scmp.lt.s32.totalorder %s16, 1
        %s2253 = scalar_select %p2252, %s16, 1
        %s2254 = smul.addr %s2253, 3
        %s2255 = smul.addr %s2254, 4
        %s2256 = scalar_lea.vmem %s4, %s2255
      $region48: #{_forward_impl.5} parent=43 // pred_fallthru
        _
    $region44: #{_forward_impl.5} parent=5 // pred_fallthru
      _
  $region6: #{_forward_impl.5} parent=0 // loop_footer
    %s14 = sadd.s32 1, %s10
  $region7: #{_forward_impl.5} parent=0 // loop_footer_branch
    %9 = sbr.rel target = $region3
  $region8: #{_forward_impl.5} parent=0 // loop_exit
    _

// kernel: _forward_impl.6
$region0: #{_forward_impl.6}
  #allocation0 [shape = 'u32[]', space=smem, size = 0x4, offset = 0x4, fixed_abs, tag = 'smem constant byte address 0x4 - core index']
  #allocation1 [shape = 'u32[144,128]{1,0:T(1,128)}', space=vmem, size = 0x12000, scoped, tag = 'internal scratch']
  %s0 = inlined_call_operand.vmem [shape: bf16[2,24,128], index: 0, kind: input, shape index: {}]
  %s1 = inlined_call_operand.vmem [shape: bf16[16,128,128], index: 1, kind: input, shape index: {}]
  %s2 = inlined_call_operand.vmem [shape: f32[1,128], index: 2, kind: input, shape index: {}]
  %s3 = inlined_call_operand.vmem [shape: f32[1,128], index: 3, kind: input, shape index: {}]
  %s4 = inlined_call_operand.vmem [shape: bf16[2,8,128], index: 4, kind: output, shape index: {}]
  %s5 = sld [smem:[#allocation0]]
  $region49: #{_forward_impl.6} parent=0
    _
  %s7 = ssub.s32 1, %s5
  %s8 = scalar_select 0, %s7, %s5
  loop: start=0, step=1, limit=4
  $region2: #{_forward_impl.6} parent=0 // loop_pre_header
    _
  $region3: #{_forward_impl.6} parent=0 // loop_header
    %s10 = sphi 0, %s14
    %p11 = scmp.ge.s32.totalorder %s10, 4
    %s20 = sphi 0, %s22
    %s23 = sphi 0, %s20
    %s24 = sphi 0, %s23
    %s40 = sphi 0, %s24
    %s44 = sphi 0, %s44
    %s46 = sphi 0, %s44
    %s47 = sphi 0, %s46
    %s61 = sphi 0, %s47
    %s65 = sphi 0, %s65
    %s67 = sphi 0, %s65
    %s68 = sphi 0, %s67
    %s82 = sphi 0, %s68
    %s86 = sphi 0, %s86
    %s88 = sphi 0, %s86
    %s89 = sphi 0, %s88
    %s103 = sphi 0, %s89
    %s109 = sphi 0, %s111
    %s112 = sphi 0, %s109
    %s113 = sphi 0, %s112
    %s129 = sphi 0, %s113
  $region4: #{_forward_impl.6} parent=0 // loop_header_branch
    %13 = sbr.rel (%p11) target = $region8
  $region5: #{_forward_impl.6} parent=0 // loop_body
    %s15 = ssub.s32 %s10, 1
    %s16 = ssub.s32 %s10, 2
    %s17 = sadd.s32 %s10, 1
    %s18 = ssub.s32 %s10, %s17
    %p19 = scmp.eq.s32.totalorder %s18, 0
    %s21 = sadd.s32 %s20, 1
    %s22 = scalar_select %p19, %s20, %s21
    %p25 = pneg %p19
    %p26 = scmp.eq.s32.totalorder %s10, 1
    %p27 = por %p25, %p26
    %p28 = scmp.ne.s32.totalorder %s20, %s23
    %p29 = scmp.eq.s32.totalorder %s10, 0
    %p30 = por %p28, %p29
    %p31 = scmp.ne.s32.totalorder %s20, %s23
    %p32 = scmp.eq.s32.totalorder %s15, 1
    %p33 = por %p31, %p32
    %p34 = scmp.ne.s32.totalorder %s23, %s24
    %p35 = scmp.eq.s32.totalorder %s15, 0
    %p36 = por %p34, %p35
    %p37 = scmp.ne.s32.totalorder %s23, %s24
    %p38 = scmp.eq.s32.totalorder %s16, 1
    %p39 = por %p37, %p38
    %p41 = scmp.ne.s32.totalorder %s24, %s40
    %p42 = scmp.eq.s32.totalorder %s16, 0
    %p43 = por %p41, %p42
    %s45 = sadd.s32 %s44, 1
    %p48 = scmp.eq.s32.totalorder %s10, 1
    %p49 = scmp.ne.s32.totalorder %s44, %s46
    %p50 = scmp.eq.s32.totalorder %s10, 0
    %p51 = por %p49, %p50
    %p52 = scmp.ne.s32.totalorder %s44, %s46
    %p53 = scmp.eq.s32.totalorder %s15, 1
    %p54 = por %p52, %p53
    %p55 = scmp.ne.s32.totalorder %s46, %s47
    %p56 = scmp.eq.s32.totalorder %s15, 0
    %p57 = por %p55, %p56
    %p58 = scmp.ne.s32.totalorder %s46, %s47
    %p59 = scmp.eq.s32.totalorder %s16, 1
    %p60 = por %p58, %p59
    %p62 = scmp.ne.s32.totalorder %s47, %s61
    %p63 = scmp.eq.s32.totalorder %s16, 0
    %p64 = por %p62, %p63
    %s66 = sadd.s32 %s65, 1
    %p69 = scmp.eq.s32.totalorder %s10, 1
    %p70 = scmp.ne.s32.totalorder %s65, %s67
    %p71 = scmp.eq.s32.totalorder %s10, 0
    %p72 = por %p70, %p71
    %p73 = scmp.ne.s32.totalorder %s65, %s67
    %p74 = scmp.eq.s32.totalorder %s15, 1
    %p75 = por %p73, %p74
    %p76 = scmp.ne.s32.totalorder %s67, %s68
    %p77 = scmp.eq.s32.totalorder %s15, 0
    %p78 = por %p76, %p77
    %p79 = scmp.ne.s32.totalorder %s67, %s68
    %p80 = scmp.eq.s32.totalorder %s16, 1
    %p81 = por %p79, %p80
    %p83 = scmp.ne.s32.totalorder %s68, %s82
    %p84 = scmp.eq.s32.totalorder %s16, 0
    %p85 = por %p83, %p84
    %s87 = sadd.s32 %s86, 1
    %p90 = scmp.eq.s32.totalorder %s10, 1
    %p91 = scmp.ne.s32.totalorder %s86, %s88
    %p92 = scmp.eq.s32.totalorder %s10, 0
    %p93 = por %p91, %p92
    %p94 = scmp.ne.s32.totalorder %s86, %s88
    %p95 = scmp.eq.s32.totalorder %s15, 1
    %p96 = por %p94, %p95
    %p97 = scmp.ne.s32.totalorder %s88, %s89
    %p98 = scmp.eq.s32.totalorder %s15, 0
    %p99 = por %p97, %p98
    %p100 = scmp.ne.s32.totalorder %s88, %s89
    %p101 = scmp.eq.s32.totalorder %s16, 1
    %p102 = por %p100, %p101
    %p104 = scmp.ne.s32.totalorder %s89, %s103
    %p105 = scmp.eq.s32.totalorder %s16, 0
    %p106 = por %p104, %p105
    %s107 = ssub.s32 %s10, %s17
    %p108 = scmp.eq.s32.totalorder %s107, 0
    %s110 = sadd.s32 %s109, 1
    %s111 = scalar_select %p108, %s109, %s110
    %p114 = pneg %p108
    %p115 = scmp.eq.s32.totalorder %s10, 1
    %p116 = por %p114, %p115
    %p117 = scmp.ne.s32.totalorder %s109, %s112
    %p118 = scmp.eq.s32.totalorder %s10, 0
    %p119 = por %p117, %p118
    %p120 = scmp.ne.s32.totalorder %s109, %s112
    %p121 = scmp.eq.s32.totalorder %s15, 1
    %p122 = por %p120, %p121
    %p123 = scmp.ne.s32.totalorder %s112, %s113
    %p124 = scmp.eq.s32.totalorder %s15, 0
    %p125 = por %p123, %p124
    %p126 = scmp.ne.s32.totalorder %s112, %s113
    %p127 = scmp.eq.s32.totalorder %s16, 1
    %p128 = por %p126, %p127
    %p130 = scmp.ne.s32.totalorder %s113, %s129
    %p131 = scmp.eq.s32.totalorder %s16, 0
    %p132 = por %p130, %p131
    %p133 = scmp.le.s32.totalorder 1, %s10
    %p134 = scmp.lt.s32.totalorder %s10, 3
    %p135 = pnand %p133, %p134
    %p136 = pneg %p135
    // Predicated region
    $region9: #{_forward_impl.6} parent=5 // pred_check
      _
    $region10: #{_forward_impl.6} parent=5 // pred_check_branch
      %138 = sbr.rel (%p135) target = $region12
    $region11: #{_forward_impl.6} parent=5 // pred_region
      %s139 = ssub.s32 %s10, 1
      // Predicated region
      $region13: #{_forward_impl.6} parent=11 // pred_check
        %p140 = pneg %p57
      $region14: #{_forward_impl.6} parent=11 // pred_check_branch
        %142 = sbr.rel (%p140) target = $region16
      $region15: #{_forward_impl.6} parent=11 // pred_region
        _
      $region16: #{_forward_impl.6} parent=11 // pred_fallthru
        _
      // Predicated region
      $region17: #{_forward_impl.6} parent=11 // pred_check
        %p143 = pneg %p78
      $region18: #{_forward_impl.6} parent=11 // pred_check_branch
        %145 = sbr.rel (%p143) target = $region20
      $region19: #{_forward_impl.6} parent=11 // pred_region
        _
      $region20: #{_forward_impl.6} parent=11 // pred_fallthru
        _
      // Predicated region
      $region21: #{_forward_impl.6} parent=11 // pred_check
        %p146 = pneg %p99
      $region22: #{_forward_impl.6} parent=11 // pred_check_branch
        %148 = sbr.rel (%p146) target = $region24
      $region23: #{_forward_impl.6} parent=11 // pred_region
        _
      $region24: #{_forward_impl.6} parent=11 // pred_fallthru
        _
    $region12: #{_forward_impl.6} parent=5 // pred_fallthru
      _
    %p149 = scmp.lt.s32.totalorder %s10, 2
    // Predicated region
    $region25: #{_forward_impl.6} parent=5 // pred_check
      %p150 = pneg %p149
    $region26: #{_forward_impl.6} parent=5 // pred_check_branch
      %152 = sbr.rel (%p150) target = $region28
    $region27: #{_forward_impl.6} parent=5 // pred_region
      // Predicated region
      $region29: #{_forward_impl.6} parent=27 // pred_check
        %p153 = pneg %p30
      $region30: #{_forward_impl.6} parent=27 // pred_check_branch
        %155 = sbr.rel (%p153) target = $region32
      $region31: #{_forward_impl.6} parent=27 // pred_region
        %p156 = scmp.lt.s32.totalorder %s10, 1
        %s157 = scalar_select %p156, %s10, 1
        %s158 = smul.addr %s157, 3
        %s159 = smul.addr %s158, 4
        %s160 = scalar_lea.vmem %s0, %s159
      $region32: #{_forward_impl.6} parent=27 // pred_fallthru
        _
    $region28: #{_forward_impl.6} parent=5 // pred_fallthru
      _
    %p161 = scmp.le.s32.totalorder 1, %s10
    %p162 = scmp.lt.s32.totalorder %s10, 3
    %p163 = pnand %p161, %p162
    %p164 = pneg %p163
    // Predicated region
    $region33: #{_forward_impl.6} parent=5 // pred_check
      _
    $region34: #{_forward_impl.6} parent=5 // pred_check_branch
      %166 = sbr.rel (%p163) target = $region36
    $region35: #{_forward_impl.6} parent=5 // pred_region
      %s167 = ssub.s32 %s10, 1
      %p168 = scmp.lt.s32.totalorder %s15, 1
      %s169 = scalar_select %p168, %s15, 1
      %s170 = smul.addr %s169, 3
      %s171 = smul.addr %s170, 4
      %s172 = scalar_lea.vmem %s0, %s171
      %p173 = pneg %p36
      %p174 = pneg %p33
      %p175 = pneg %p57
      %p176 = pneg %p54
      %p177 = pneg %p78
      %p178 = pneg %p75
      %p179 = pneg %p99
      %p180 = pneg %p96
      %p181 = pneg %p125
      %p182 = pneg %p122
      %p183 = scmp.lt.s32.totalorder %s15, 1
      %s184 = scalar_select %p183, %s15, 1
      %s185 = smul.addr %s184, 4
      %s186 = scalar_lea.vmem %s4, %s185
      %p187 = scmp.lt.s32.totalorder %s15, 1
      %s188 = scalar_select %p187, %s15, 1
      %s189 = smul.addr %s188, 3
      %s190 = smul.addr %s189, 4
      %s191 = scalar_lea.vmem %s0, %s190
      %p192 = scmp.lt.s32.totalorder %s15, 1
      %s193 = scalar_select %p192, %s15, 1
      %s194 = smul.addr %s193, 4
      %s195 = scalar_lea.vmem %s4, %s194
      %v197 = vld [vmem:[%s2] sm:$0x1]
      %v198 = vld [vmem:[%s3] sm:$0x1]
      %v199 = vld [vmem:[%s191] sm:$0xf]
      %v200 = vld [vmem:[%s1] sm:$0xf]
      %v201 = vld [vmem:[%s1 + $0x4] sm:$0xf]
      %v202 = vld [vmem:[%s1 + $0x8] sm:$0xf]
      %v203 = vld [vmem:[%s1 + $0xc] sm:$0xf]
      %v204 = vld [vmem:[%s1 + $0x10] sm:$0xf]
      %v205 = vld [vmem:[%s1 + $0x14] sm:$0xf]
      %v206 = vld [vmem:[%s1 + $0x18] sm:$0xf]
      %v207 = vld [vmem:[%s1 + $0x1c] sm:$0xf]
      %v208 = vld [vmem:[%s1 + $0x20] sm:$0xf]
      %v209 = vld [vmem:[%s1 + $0x24] sm:$0xf]
      %v210 = vld [vmem:[%s1 + $0x28] sm:$0xf]
      %v211 = vld [vmem:[%s1 + $0x2c] sm:$0xf]
      %v212 = vld [vmem:[%s1 + $0x30] sm:$0xf]
      %v213 = vld [vmem:[%s1 + $0x34] sm:$0xf]
      %v214 = vld [vmem:[%s1 + $0x38] sm:$0xf]
      %v215 = vld [vmem:[%s1 + $0x3c] sm:$0xf]
      %v216 = vld [vmem:[%s191 + $0x4] sm:$0x1]
      %s217 = scalar_lea.vmem %s1, 64
      %v218 = vld [vmem:[%s217] sm:$0xf]
      %v219 = vld [vmem:[%s217 + $0x4] sm:$0xf]
      %v220 = vld [vmem:[%s217 + $0x8] sm:$0xf]
      %v221 = vld [vmem:[%s217 + $0xc] sm:$0xf]
      %v222 = vld [vmem:[%s217 + $0x10] sm:$0xf]
      %v223 = vld [vmem:[%s217 + $0x14] sm:$0xf]
      %v224 = vld [vmem:[%s217 + $0x18] sm:$0xf]
      %v225 = vld [vmem:[%s217 + $0x1c] sm:$0xf]
      %v226 = vld [vmem:[%s217 + $0x20] sm:$0xf]
      %v227 = vld [vmem:[%s217 + $0x24] sm:$0xf]
      %v228 = vld [vmem:[%s217 + $0x28] sm:$0xf]
      %v229 = vld [vmem:[%s217 + $0x2c] sm:$0xf]
      %v230 = vld [vmem:[%s217 + $0x30] sm:$0xf]
      %v231 = vld [vmem:[%s217 + $0x34] sm:$0xf]
      %v232 = vld [vmem:[%s217 + $0x38] sm:$0xf]
      %v233 = vld [vmem:[%s217 + $0x3c] sm:$0xf]
      %v236 = vunpack.c.l.b16 %v199
      %v237 = vunpack.c.l.b16 %v216
      %v238 = vpack.c.b16 %v237, %v236
      %v240 = vshrl.u32 %v238, 16
      %v242 = vshll.u32 %v238, 16
      %v244 = vrot.slane %v242, 1
      %v245 = vor.u32 %v240, %v244
      %v263 = vunpack.c.l.b16 %v218
      %v264 = vunpack.c.l.b16 %v219
      %v265 = vunpack.c.l.b16 %v220
      %v266 = vunpack.c.l.b16 %v221
      %v267 = vunpack.c.l.b16 %v222
      %v268 = vunpack.c.l.b16 %v223
      %v269 = vunpack.c.l.b16 %v224
      %v270 = vunpack.c.l.b16 %v225
      %v271 = vunpack.c.l.b16 %v226
      %v272 = vunpack.c.l.b16 %v227
      %v273 = vunpack.c.l.b16 %v228
      %v274 = vunpack.c.l.b16 %v229
      %v275 = vunpack.c.l.b16 %v230
      %v276 = vunpack.c.l.b16 %v231
      %v277 = vunpack.c.l.b16 %v232
      %v278 = vunpack.c.l.b16 %v233
      %v279 = vpack.c.b16 %v264, %v263
      %v280 = vpack.c.b16 %v266, %v265
      %v281 = vpack.c.b16 %v268, %v267
      %v282 = vpack.c.b16 %v270, %v269
      %v283 = vpack.c.b16 %v272, %v271
      %v284 = vpack.c.b16 %v274, %v273
      %v285 = vpack.c.b16 %v276, %v275
      %v286 = vpack.c.b16 %v278, %v277
      %295 = vmatprep.subr.bf16.mxu0 0
      %296 = vmatpush1.bf16.msra.mxu0 %v286
      %297 = vmatprep.subr.bf16.mxu0 0
      %298 = vmatpush1.bf16.msra.mxu0 %v285
      %299 = vmatprep.subr.bf16.mxu0 0
      %300 = vmatpush1.bf16.msra.mxu0 %v284
      %301 = vmatprep.subr.bf16.mxu0 0
      %302 = vmatpush1.bf16.msra.mxu0 %v283
      %303 = vmatprep.subr.bf16.mxu0 0
      %304 = vmatpush1.bf16.msra.mxu0 %v282
      %305 = vmatprep.subr.bf16.mxu0 0
      %306 = vmatpush1.bf16.msra.mxu0 %v281
      %307 = vmatprep.subr.bf16.mxu0 0
      %308 = vmatpush1.bf16.msra.mxu0 %v280
      %309 = vmatprep.subr.bf16.mxu0 0
      %310 = vmatpush1.bf16.msra.mxu0 %v279
      %311 = vmatprep.subr.bf16.mxu0 0
      %312 = vmatpush2.bf16.msra.mxu0 0
      %313 = vmatprep.subr.bf16.mxu0 0
      %314 = vmatpush2.bf16.msra.mxu0 0
      %315 = vmatprep.subr.bf16.mxu0 0
      %316 = vmatpush2.bf16.msra.mxu0 0
      %317 = vmatprep.subr.bf16.mxu0 0
      %318 = vmatpush2.bf16.msra.mxu0 0
      %319 = vmatprep.subr.bf16.mxu0 0
      %320 = vmatpush2.bf16.msra.mxu0 0
      %321 = vmatprep.subr.bf16.mxu0 0
      %322 = vmatpush2.bf16.msra.mxu0 0
      %323 = vmatprep.subr.bf16.mxu0 0
      %324 = vmatpush2.bf16.msra.mxu0 0
      %325 = vmatprep.subr.bf16.mxu0 0
      %326 = vmatpush2.bf16.msra.mxu0 0
      %327 = vmatprep.mubr.bf16.mxu0 0
      %328 = vmatmul.mubr.bf16.gmra.mxu0 %v245
      %v329 = vpop.f32.mrf.mxu0
      %v330 = vadd.f32 0.0, %v329
      %v331 = vpop.f32.mrf.mxu0
      %v332 = vpop.f32.mrf.mxu0
      %v333 = vpop.f32.mrf.mxu0
      %334 = vdwg.mxu0
      %v351 = vunpack.c.l.b16 %v200
      %v352 = vunpack.c.l.b16 %v201
      %v353 = vunpack.c.l.b16 %v202
      %v354 = vunpack.c.l.b16 %v203
      %v355 = vunpack.c.l.b16 %v204
      %v356 = vunpack.c.l.b16 %v205
      %v357 = vunpack.c.l.b16 %v206
      %v358 = vunpack.c.l.b16 %v207
      %v359 = vunpack.c.l.b16 %v208
      %v360 = vunpack.c.l.b16 %v209
      %v361 = vunpack.c.l.b16 %v210
      %v362 = vunpack.c.l.b16 %v211
      %v363 = vunpack.c.l.b16 %v212
      %v364 = vunpack.c.l.b16 %v213
      %v365 = vunpack.c.l.b16 %v214
      %v366 = vunpack.c.l.b16 %v215
      %v367 = vpack.c.b16 %v352, %v351
      %v368 = vpack.c.b16 %v354, %v353
      %v369 = vpack.c.b16 %v356, %v355
      %v370 = vpack.c.b16 %v358, %v357
      %v371 = vpack.c.b16 %v360, %v359
      %v372 = vpack.c.b16 %v362, %v361
      %v373 = vpack.c.b16 %v364, %v363
      %v374 = vpack.c.b16 %v366, %v365
      %383 = vmatprep.subr.bf16.mxu0 0
      %384 = vmatpush1.bf16.msra.mxu0 %v374
      %385 = vmatprep.subr.bf16.mxu0 0
      %386 = vmatpush1.bf16.msra.mxu0 %v373
      %387 = vmatprep.subr.bf16.mxu0 0
      %388 = vmatpush1.bf16.msra.mxu0 %v372
      %389 = vmatprep.subr.bf16.mxu0 0
      %390 = vmatpush1.bf16.msra.mxu0 %v371
      %391 = vmatprep.subr.bf16.mxu0 0
      %392 = vmatpush1.bf16.msra.mxu0 %v370
      %393 = vmatprep.subr.bf16.mxu0 0
      %394 = vmatpush1.bf16.msra.mxu0 %v369
      %395 = vmatprep.subr.bf16.mxu0 0
      %396 = vmatpush1.bf16.msra.mxu0 %v368
      %397 = vmatprep.subr.bf16.mxu0 0
      %398 = vmatpush1.bf16.msra.mxu0 %v367
      %399 = vmatprep.subr.bf16.mxu0 0
      %400 = vmatpush2.bf16.msra.mxu0 0
      %401 = vmatprep.subr.bf16.mxu0 0
      %402 = vmatpush2.bf16.msra.mxu0 0
      %403 = vmatprep.subr.bf16.mxu0 0
      %404 = vmatpush2.bf16.msra.mxu0 0
      %405 = vmatprep.subr.bf16.mxu0 0
      %406 = vmatpush2.bf16.msra.mxu0 0
      %407 = vmatprep.subr.bf16.mxu0 0
      %408 = vmatpush2.bf16.msra.mxu0 0
      %409 = vmatprep.subr.bf16.mxu0 0
      %410 = vmatpush2.bf16.msra.mxu0 0
      %411 = vmatprep.subr.bf16.mxu0 0
      %412 = vmatpush2.bf16.msra.mxu0 0
      %413 = vmatprep.subr.bf16.mxu0 0
      %414 = vmatpush2.bf16.msra.mxu0 0
      %415 = vmatprep.mubr.bf16.mxu0 0
      %416 = vmatmul.mubr.bf16.gmra.mxu0 %v199
      %v417 = vpop.f32.mrf.mxu0
      %v418 = vadd.f32 %v330, %v417
      %v419 = vpop.f32.mrf.mxu0
      %v420 = vpop.f32.mrf.mxu0
      %v421 = vpop.f32.mrf.mxu0
      %422 = vdwg.mxu0
      %v423 = vld [vmem:[%s191] sm:$0xc]
      %v424 = vld [vmem:[%s191 + $0x4] sm:$0x3]
      %s425 = scalar_lea.vmem %s1, 128
      %v426 = vld [vmem:[%s425] sm:$0xf]
      %v427 = vld [vmem:[%s425 + $0x4] sm:$0xf]
      %v428 = vld [vmem:[%s425 + $0x8] sm:$0xf]
      %v429 = vld [vmem:[%s425 + $0xc] sm:$0xf]
      %v430 = vld [vmem:[%s425 + $0x10] sm:$0xf]
      %v431 = vld [vmem:[%s425 + $0x14] sm:$0xf]
      %v432 = vld [vmem:[%s425 + $0x18] sm:$0xf]
      %v433 = vld [vmem:[%s425 + $0x1c] sm:$0xf]
      %v434 = vld [vmem:[%s425 + $0x20] sm:$0xf]
      %v435 = vld [vmem:[%s425 + $0x24] sm:$0xf]
      %v436 = vld [vmem:[%s425 + $0x28] sm:$0xf]
      %v437 = vld [vmem:[%s425 + $0x2c] sm:$0xf]
      %v438 = vld [vmem:[%s425 + $0x30] sm:$0xf]
      %v439 = vld [vmem:[%s425 + $0x34] sm:$0xf]
      %v440 = vld [vmem:[%s425 + $0x38] sm:$0xf]
      %v441 = vld [vmem:[%s425 + $0x3c] sm:$0xf]
      %v444 = vunpack.c.l.b16 %v423
      %v445 = vunpack.c.l.b16 %v424
      %v446 = vpack.c.b16 %v445, %v444
      %v447 = vrot.slane %v446, 2
      %v465 = vunpack.c.l.b16 %v426
      %v466 = vunpack.c.l.b16 %v427
      %v467 = vunpack.c.l.b16 %v428
      %v468 = vunpack.c.l.b16 %v429
      %v469 = vunpack.c.l.b16 %v430
      %v470 = vunpack.c.l.b16 %v431
      %v471 = vunpack.c.l.b16 %v432
      %v472 = vunpack.c.l.b16 %v433
      %v473 = vunpack.c.l.b16 %v434
      %v474 = vunpack.c.l.b16 %v435
      %v475 = vunpack.c.l.b16 %v436
      %v476 = vunpack.c.l.b16 %v437
      %v477 = vunpack.c.l.b16 %v438
      %v478 = vunpack.c.l.b16 %v439
      %v479 = vunpack.c.l.b16 %v440
      %v480 = vunpack.c.l.b16 %v441
      %v481 = vpack.c.b16 %v466, %v465
      %v482 = vpack.c.b16 %v468, %v467
      %v483 = vpack.c.b16 %v470, %v469
      %v484 = vpack.c.b16 %v472, %v471
      %v485 = vpack.c.b16 %v474, %v473
      %v486 = vpack.c.b16 %v476, %v475
      %v487 = vpack.c.b16 %v478, %v477
      %v488 = vpack.c.b16 %v480, %v479
      %497 = vmatprep.subr.bf16.mxu0 0
      %498 = vmatpush1.bf16.msra.mxu0 %v488
      %499 = vmatprep.subr.bf16.mxu0 0
      %500 = vmatpush1.bf16.msra.mxu0 %v487
      %501 = vmatprep.subr.bf16.mxu0 0
      %502 = vmatpush1.bf16.msra.mxu0 %v486
      %503 = vmatprep.subr.bf16.mxu0 0
      %504 = vmatpush1.bf16.msra.mxu0 %v485
      %505 = vmatprep.subr.bf16.mxu0 0
      %506 = vmatpush1.bf16.msra.mxu0 %v484
      %507 = vmatprep.subr.bf16.mxu0 0
      %508 = vmatpush1.bf16.msra.mxu0 %v483
      %509 = vmatprep.subr.bf16.mxu0 0
      %510 = vmatpush1.bf16.msra.mxu0 %v482
      %511 = vmatprep.subr.bf16.mxu0 0
      %512 = vmatpush1.bf16.msra.mxu0 %v481
      %513 = vmatprep.subr.bf16.mxu0 0
      %514 = vmatpush2.bf16.msra.mxu0 0
      %515 = vmatprep.subr.bf16.mxu0 0
      %516 = vmatpush2.bf16.msra.mxu0 0
      %517 = vmatprep.subr.bf16.mxu0 0
      %518 = vmatpush2.bf16.msra.mxu0 0
      %519 = vmatprep.subr.bf16.mxu0 0
      %520 = vmatpush2.bf16.msra.mxu0 0
      %521 = vmatprep.subr.bf16.mxu0 0
      %522 = vmatpush2.bf16.msra.mxu0 0
      %523 = vmatprep.subr.bf16.mxu0 0
      %524 = vmatpush2.bf16.msra.mxu0 0
      %525 = vmatprep.subr.bf16.mxu0 0
      %526 = vmatpush2.bf16.msra.mxu0 0
      %527 = vmatprep.subr.bf16.mxu0 0
      %528 = vmatpush2.bf16.msra.mxu0 0
      %529 = vmatprep.mubr.bf16.mxu0 0
      %530 = vmatmul.mubr.bf16.gmra.mxu0 %v447
      %v531 = vpop.f32.mrf.mxu0
      %v532 = vadd.f32 0.0, %v531
      %v533 = vpop.f32.mrf.mxu0
      %v534 = vpop.f32.mrf.mxu0
      %v535 = vpop.f32.mrf.mxu0
      %536 = vdwg.mxu0
      %v537 = vadd.f32 %v418, %v532
      %v538 = vld [vmem:[%s191 + $0x4] sm:$0x7]
      %s539 = scalar_lea.vmem %s1, 192
      %v540 = vld [vmem:[%s539] sm:$0xf]
      %v541 = vld [vmem:[%s539 + $0x4] sm:$0xf]
      %v542 = vld [vmem:[%s539 + $0x8] sm:$0xf]
      %v543 = vld [vmem:[%s539 + $0xc] sm:$0xf]
      %v544 = vld [vmem:[%s539 + $0x10] sm:$0xf]
      %v545 = vld [vmem:[%s539 + $0x14] sm:$0xf]
      %v546 = vld [vmem:[%s539 + $0x18] sm:$0xf]
      %v547 = vld [vmem:[%s539 + $0x1c] sm:$0xf]
      %v548 = vld [vmem:[%s539 + $0x20] sm:$0xf]
      %v549 = vld [vmem:[%s539 + $0x24] sm:$0xf]
      %v550 = vld [vmem:[%s539 + $0x28] sm:$0xf]
      %v551 = vld [vmem:[%s539 + $0x2c] sm:$0xf]
      %v552 = vld [vmem:[%s539 + $0x30] sm:$0xf]
      %v553 = vld [vmem:[%s539 + $0x34] sm:$0xf]
      %v554 = vld [vmem:[%s539 + $0x38] sm:$0xf]
      %v555 = vld [vmem:[%s539 + $0x3c] sm:$0xf]
      %v557 = vunpack.c.l.b16 %v538
      %v558 = vpack.c.b16 %v557, %v444
      %v560 = vshrl.u32 %v558, 16
      %v562 = vrot.slane %v560, 2
      %v563 = vshll.u32 %v558, 16
      %v565 = vrot.slane %v563, 3
      %v566 = vor.u32 %v562, %v565
      %v584 = vunpack.c.l.b16 %v540
      %v585 = vunpack.c.l.b16 %v541
      %v586 = vunpack.c.l.b16 %v542
      %v587 = vunpack.c.l.b16 %v543
      %v588 = vunpack.c.l.b16 %v544
      %v589 = vunpack.c.l.b16 %v545
      %v590 = vunpack.c.l.b16 %v546
      %v591 = vunpack.c.l.b16 %v547
      %v592 = vunpack.c.l.b16 %v548
      %v593 = vunpack.c.l.b16 %v549
      %v594 = vunpack.c.l.b16 %v550
      %v595 = vunpack.c.l.b16 %v551
      %v596 = vunpack.c.l.b16 %v552
      %v597 = vunpack.c.l.b16 %v553
      %v598 = vunpack.c.l.b16 %v554
      %v599 = vunpack.c.l.b16 %v555
      %v600 = vpack.c.b16 %v585, %v584
      %v601 = vpack.c.b16 %v587, %v586
      %v602 = vpack.c.b16 %v589, %v588
      %v603 = vpack.c.b16 %v591, %v590
      %v604 = vpack.c.b16 %v593, %v592
      %v605 = vpack.c.b16 %v595, %v594
      %v606 = vpack.c.b16 %v597, %v596
      %v607 = vpack.c.b16 %v599, %v598
      %616 = vmatprep.subr.bf16.mxu0 0
      %617 = vmatpush1.bf16.msra.mxu0 %v607
      %618 = vmatprep.subr.bf16.mxu0 0
      %619 = vmatpush1.bf16.msra.mxu0 %v606
      %620 = vmatprep.subr.bf16.mxu0 0
      %621 = vmatpush1.bf16.msra.mxu0 %v605
      %622 = vmatprep.subr.bf16.mxu0 0
      %623 = vmatpush1.bf16.msra.mxu0 %v604
      %624 = vmatprep.subr.bf16.mxu0 0
      %625 = vmatpush1.bf16.msra.mxu0 %v603
      %626 = vmatprep.subr.bf16.mxu0 0
      %627 = vmatpush1.bf16.msra.mxu0 %v602
      %628 = vmatprep.subr.bf16.mxu0 0
      %629 = vmatpush1.bf16.msra.mxu0 %v601
      %630 = vmatprep.subr.bf16.mxu0 0
      %631 = vmatpush1.bf16.msra.mxu0 %v600
      %632 = vmatprep.subr.bf16.mxu0 0
      %633 = vmatpush2.bf16.msra.mxu0 0
      %634 = vmatprep.subr.bf16.mxu0 0
      %635 = vmatpush2.bf16.msra.mxu0 0
      %636 = vmatprep.subr.bf16.mxu0 0
      %637 = vmatpush2.bf16.msra.mxu0 0
      %638 = vmatprep.subr.bf16.mxu0 0
      %639 = vmatpush2.bf16.msra.mxu0 0
      %640 = vmatprep.subr.bf16.mxu0 0
      %641 = vmatpush2.bf16.msra.mxu0 0
      %642 = vmatprep.subr.bf16.mxu0 0
      %643 = vmatpush2.bf16.msra.mxu0 0
      %644 = vmatprep.subr.bf16.mxu0 0
      %645 = vmatpush2.bf16.msra.mxu0 0
      %646 = vmatprep.subr.bf16.mxu0 0
      %647 = vmatpush2.bf16.msra.mxu0 0
      %648 = vmatprep.mubr.bf16.mxu0 0
      %649 = vmatmul.mubr.bf16.gmra.mxu0 %v566
      %v650 = vpop.f32.mrf.mxu0
      %v651 = vadd.f32 0.0, %v650
      %v652 = vpop.f32.mrf.mxu0
      %v653 = vpop.f32.mrf.mxu0
      %v654 = vpop.f32.mrf.mxu0
      %655 = vdwg.mxu0
      %v656 = vadd.f32 %v537, %v651
      %v658 = vlaneseq
      %v659 = vshrl.u32 %v658, 7
      %v660 = vsub.s32 0, %v659
      %v661 = vrot.slane %v197, %v660
      %v663 = vmul.f32 %v656, %v661
      %v665 = vlaneseq
      %v666 = vshrl.u32 %v665, 7
      %v667 = vsub.s32 0, %v666
      %v668 = vrot.slane %v198, %v667
      %v670 = vadd.f32 %v663, %v668
      %s671 = scalar_lea.vmem %s1, 256
      %v672 = vld [vmem:[%s671] sm:$0xf]
      %v673 = vld [vmem:[%s671 + $0x4] sm:$0xf]
      %v674 = vld [vmem:[%s671 + $0x8] sm:$0xf]
      %v675 = vld [vmem:[%s671 + $0xc] sm:$0xf]
      %v676 = vld [vmem:[%s671 + $0x10] sm:$0xf]
      %v677 = vld [vmem:[%s671 + $0x14] sm:$0xf]
      %v678 = vld [vmem:[%s671 + $0x18] sm:$0xf]
      %v679 = vld [vmem:[%s671 + $0x1c] sm:$0xf]
      %v680 = vld [vmem:[%s671 + $0x20] sm:$0xf]
      %v681 = vld [vmem:[%s671 + $0x24] sm:$0xf]
      %v682 = vld [vmem:[%s671 + $0x28] sm:$0xf]
      %v683 = vld [vmem:[%s671 + $0x2c] sm:$0xf]
      %v684 = vld [vmem:[%s671 + $0x30] sm:$0xf]
      %v685 = vld [vmem:[%s671 + $0x34] sm:$0xf]
      %v686 = vld [vmem:[%s671 + $0x38] sm:$0xf]
      %v687 = vld [vmem:[%s671 + $0x3c] sm:$0xf]
      %v688 = vld [vmem:[%s191] sm:$0xe]
      %s689 = scalar_lea.vmem %s1, 320
      %v690 = vld [vmem:[%s689] sm:$0xf]
      %v691 = vld [vmem:[%s689 + $0x4] sm:$0xf]
      %v692 = vld [vmem:[%s689 + $0x8] sm:$0xf]
      %v693 = vld [vmem:[%s689 + $0xc] sm:$0xf]
      %v694 = vld [vmem:[%s689 + $0x10] sm:$0xf]
      %v695 = vld [vmem:[%s689 + $0x14] sm:$0xf]
      %v696 = vld [vmem:[%s689 + $0x18] sm:$0xf]
      %v697 = vld [vmem:[%s689 + $0x1c] sm:$0xf]
      %v698 = vld [vmem:[%s689 + $0x20] sm:$0xf]
      %v699 = vld [vmem:[%s689 + $0x24] sm:$0xf]
      %v700 = vld [vmem:[%s689 + $0x28] sm:$0xf]
      %v701 = vld [vmem:[%s689 + $0x2c] sm:$0xf]
      %v702 = vld [vmem:[%s689 + $0x30] sm:$0xf]
      %v703 = vld [vmem:[%s689 + $0x34] sm:$0xf]
      %v704 = vld [vmem:[%s689 + $0x38] sm:$0xf]
      %v705 = vld [vmem:[%s689 + $0x3c] sm:$0xf]
      %v707 = vunpack.c.l.b16 %v688
      %v708 = vpack.c.b16 %v237, %v707
      %v709 = vrot.slane %v708, 1
      %v727 = vunpack.c.l.b16 %v690
      %v728 = vunpack.c.l.b16 %v691
      %v729 = vunpack.c.l.b16 %v692
      %v730 = vunpack.c.l.b16 %v693
      %v731 = vunpack.c.l.b16 %v694
      %v732 = vunpack.c.l.b16 %v695
      %v733 = vunpack.c.l.b16 %v696
      %v734 = vunpack.c.l.b16 %v697
      %v735 = vunpack.c.l.b16 %v698
      %v736 = vunpack.c.l.b16 %v699
      %v737 = vunpack.c.l.b16 %v700
      %v738 = vunpack.c.l.b16 %v701
      %v739 = vunpack.c.l.b16 %v702
      %v740 = vunpack.c.l.b16 %v703
      %v741 = vunpack.c.l.b16 %v704
      %v742 = vunpack.c.l.b16 %v705
      %v743 = vpack.c.b16 %v728, %v727
      %v744 = vpack.c.b16 %v730, %v729
      %v745 = vpack.c.b16 %v732, %v731
      %v746 = vpack.c.b16 %v734, %v733
      %v747 = vpack.c.b16 %v736, %v735
      %v748 = vpack.c.b16 %v738, %v737
      %v749 = vpack.c.b16 %v740, %v739
      %v750 = vpack.c.b16 %v742, %v741
      %759 = vmatprep.subr.bf16.mxu0 0
      %760 = vmatpush1.bf16.msra.mxu0 %v750
      %761 = vmatprep.subr.bf16.mxu0 0
      %762 = vmatpush1.bf16.msra.mxu0 %v749
      %763 = vmatprep.subr.bf16.mxu0 0
      %764 = vmatpush1.bf16.msra.mxu0 %v748
      %765 = vmatprep.subr.bf16.mxu0 0
      %766 = vmatpush1.bf16.msra.mxu0 %v747
      %767 = vmatprep.subr.bf16.mxu0 0
      %768 = vmatpush1.bf16.msra.mxu0 %v746
      %769 = vmatprep.subr.bf16.mxu0 0
      %770 = vmatpush1.bf16.msra.mxu0 %v745
      %771 = vmatprep.subr.bf16.mxu0 0
      %772 = vmatpush1.bf16.msra.mxu0 %v744
      %773 = vmatprep.subr.bf16.mxu0 0
      %774 = vmatpush1.bf16.msra.mxu0 %v743
      %775 = vmatprep.subr.bf16.mxu0 0
      %776 = vmatpush2.bf16.msra.mxu0 0
      %777 = vmatprep.subr.bf16.mxu0 0
      %778 = vmatpush2.bf16.msra.mxu0 0
      %779 = vmatprep.subr.bf16.mxu0 0
      %780 = vmatpush2.bf16.msra.mxu0 0
      %781 = vmatprep.subr.bf16.mxu0 0
      %782 = vmatpush2.bf16.msra.mxu0 0
      %783 = vmatprep.subr.bf16.mxu0 0
      %784 = vmatpush2.bf16.msra.mxu0 0
      %785 = vmatprep.subr.bf16.mxu0 0
      %786 = vmatpush2.bf16.msra.mxu0 0
      %787 = vmatprep.subr.bf16.mxu0 0
      %788 = vmatpush2.bf16.msra.mxu0 0
      %789 = vmatprep.subr.bf16.mxu0 0
      %790 = vmatpush2.bf16.msra.mxu0 0
      %791 = vmatprep.mubr.bf16.mxu0 0
      %792 = vmatmul.mubr.bf16.gmra.mxu0 %v709
      %v793 = vpop.f32.mrf.mxu0
      %v794 = vadd.f32 0.0, %v793
      %v795 = vpop.f32.mrf.mxu0
      %v796 = vpop.f32.mrf.mxu0
      %v797 = vpop.f32.mrf.mxu0
      %798 = vdwg.mxu0
      %v815 = vunpack.c.l.b16 %v672
      %v816 = vunpack.c.l.b16 %v673
      %v817 = vunpack.c.l.b16 %v674
      %v818 = vunpack.c.l.b16 %v675
      %v819 = vunpack.c.l.b16 %v676
      %v820 = vunpack.c.l.b16 %v677
      %v821 = vunpack.c.l.b16 %v678
      %v822 = vunpack.c.l.b16 %v679
      %v823 = vunpack.c.l.b16 %v680
      %v824 = vunpack.c.l.b16 %v681
      %v825 = vunpack.c.l.b16 %v682
      %v826 = vunpack.c.l.b16 %v683
      %v827 = vunpack.c.l.b16 %v684
      %v828 = vunpack.c.l.b16 %v685
      %v829 = vunpack.c.l.b16 %v686
      %v830 = vunpack.c.l.b16 %v687
      %v831 = vpack.c.b16 %v816, %v815
      %v832 = vpack.c.b16 %v818, %v817
      %v833 = vpack.c.b16 %v820, %v819
      %v834 = vpack.c.b16 %v822, %v821
      %v835 = vpack.c.b16 %v824, %v823
      %v836 = vpack.c.b16 %v826, %v825
      %v837 = vpack.c.b16 %v828, %v827
      %v838 = vpack.c.b16 %v830, %v829
      %847 = vmatprep.subr.bf16.mxu0 0
      %848 = vmatpush1.bf16.msra.mxu0 %v838
      %849 = vmatprep.subr.bf16.mxu0 0
      %850 = vmatpush1.bf16.msra.mxu0 %v837
      %851 = vmatprep.subr.bf16.mxu0 0
      %852 = vmatpush1.bf16.msra.mxu0 %v836
      %853 = vmatprep.subr.bf16.mxu0 0
      %854 = vmatpush1.bf16.msra.mxu0 %v835
      %855 = vmatprep.subr.bf16.mxu0 0
      %856 = vmatpush1.bf16.msra.mxu0 %v834
      %857 = vmatprep.subr.bf16.mxu0 0
      %858 = vmatpush1.bf16.msra.mxu0 %v833
      %859 = vmatprep.subr.bf16.mxu0 0
      %860 = vmatpush1.bf16.msra.mxu0 %v832
      %861 = vmatprep.subr.bf16.mxu0 0
      %862 = vmatpush1.bf16.msra.mxu0 %v831
      %863 = vmatprep.subr.bf16.mxu0 0
      %864 = vmatpush2.bf16.msra.mxu0 0
      %865 = vmatprep.subr.bf16.mxu0 0
      %866 = vmatpush2.bf16.msra.mxu0 0
      %867 = vmatprep.subr.bf16.mxu0 0
      %868 = vmatpush2.bf16.msra.mxu0 0
      %869 = vmatprep.subr.bf16.mxu0 0
      %870 = vmatpush2.bf16.msra.mxu0 0
      %871 = vmatprep.subr.bf16.mxu0 0
      %872 = vmatpush2.bf16.msra.mxu0 0
      %873 = vmatprep.subr.bf16.mxu0 0
      %874 = vmatpush2.bf16.msra.mxu0 0
      %875 = vmatprep.subr.bf16.mxu0 0
      %876 = vmatpush2.bf16.msra.mxu0 0
      %877 = vmatprep.subr.bf16.mxu0 0
      %878 = vmatpush2.bf16.msra.mxu0 0
      %879 = vmatprep.mubr.bf16.mxu0 0
      %880 = vmatmul.mubr.bf16.gmra.mxu0 %v245
      %v881 = vpop.f32.mrf.mxu0
      %v882 = vadd.f32 %v794, %v881
      %v883 = vpop.f32.mrf.mxu0
      %v884 = vpop.f32.mrf.mxu0
      %v885 = vpop.f32.mrf.mxu0
      %886 = vdwg.mxu0
      %s887 = scalar_lea.vmem %s1, 384
      %v888 = vld [vmem:[%s887] sm:$0xf]
      %v889 = vld [vmem:[%s887 + $0x4] sm:$0xf]
      %v890 = vld [vmem:[%s887 + $0x8] sm:$0xf]
      %v891 = vld [vmem:[%s887 + $0xc] sm:$0xf]
      %v892 = vld [vmem:[%s887 + $0x10] sm:$0xf]
      %v893 = vld [vmem:[%s887 + $0x14] sm:$0xf]
      %v894 = vld [vmem:[%s887 + $0x18] sm:$0xf]
      %v895 = vld [vmem:[%s887 + $0x1c] sm:$0xf]
      %v896 = vld [vmem:[%s887 + $0x20] sm:$0xf]
      %v897 = vld [vmem:[%s887 + $0x24] sm:$0xf]
      %v898 = vld [vmem:[%s887 + $0x28] sm:$0xf]
      %v899 = vld [vmem:[%s887 + $0x2c] sm:$0xf]
      %v900 = vld [vmem:[%s887 + $0x30] sm:$0xf]
      %v901 = vld [vmem:[%s887 + $0x34] sm:$0xf]
      %v902 = vld [vmem:[%s887 + $0x38] sm:$0xf]
      %v903 = vld [vmem:[%s887 + $0x3c] sm:$0xf]
      %v920 = vunpack.c.l.b16 %v888
      %v921 = vunpack.c.l.b16 %v889
      %v922 = vunpack.c.l.b16 %v890
      %v923 = vunpack.c.l.b16 %v891
      %v924 = vunpack.c.l.b16 %v892
      %v925 = vunpack.c.l.b16 %v893
      %v926 = vunpack.c.l.b16 %v894
      %v927 = vunpack.c.l.b16 %v895
      %v928 = vunpack.c.l.b16 %v896
      %v929 = vunpack.c.l.b16 %v897
      %v930 = vunpack.c.l.b16 %v898
      %v931 = vunpack.c.l.b16 %v899
      %v932 = vunpack.c.l.b16 %v900
      %v933 = vunpack.c.l.b16 %v901
      %v934 = vunpack.c.l.b16 %v902
      %v935 = vunpack.c.l.b16 %v903
      %v936 = vpack.c.b16 %v921, %v920
      %v937 = vpack.c.b16 %v923, %v922
      %v938 = vpack.c.b16 %v925, %v924
      %v939 = vpack.c.b16 %v927, %v926
      %v940 = vpack.c.b16 %v929, %v928
      %v941 = vpack.c.b16 %v931, %v930
      %v942 = vpack.c.b16 %v933, %v932
      %v943 = vpack.c.b16 %v935, %v934
      %952 = vmatprep.subr.bf16.mxu0 0
      %953 = vmatpush1.bf16.msra.mxu0 %v943
      %954 = vmatprep.subr.bf16.mxu0 0
      %955 = vmatpush1.bf16.msra.mxu0 %v942
      %956 = vmatprep.subr.bf16.mxu0 0
      %957 = vmatpush1.bf16.msra.mxu0 %v941
      %958 = vmatprep.subr.bf16.mxu0 0
      %959 = vmatpush1.bf16.msra.mxu0 %v940
      %960 = vmatprep.subr.bf16.mxu0 0
      %961 = vmatpush1.bf16.msra.mxu0 %v939
      %962 = vmatprep.subr.bf16.mxu0 0
      %963 = vmatpush1.bf16.msra.mxu0 %v938
      %964 = vmatprep.subr.bf16.mxu0 0
      %965 = vmatpush1.bf16.msra.mxu0 %v937
      %966 = vmatprep.subr.bf16.mxu0 0
      %967 = vmatpush1.bf16.msra.mxu0 %v936
      %968 = vmatprep.subr.bf16.mxu0 0
      %969 = vmatpush2.bf16.msra.mxu0 0
      %970 = vmatprep.subr.bf16.mxu0 0
      %971 = vmatpush2.bf16.msra.mxu0 0
      %972 = vmatprep.subr.bf16.mxu0 0
      %973 = vmatpush2.bf16.msra.mxu0 0
      %974 = vmatprep.subr.bf16.mxu0 0
      %975 = vmatpush2.bf16.msra.mxu0 0
      %976 = vmatprep.subr.bf16.mxu0 0
      %977 = vmatpush2.bf16.msra.mxu0 0
      %978 = vmatprep.subr.bf16.mxu0 0
      %979 = vmatpush2.bf16.msra.mxu0 0
      %980 = vmatprep.subr.bf16.mxu0 0
      %981 = vmatpush2.bf16.msra.mxu0 0
      %982 = vmatprep.subr.bf16.mxu0 0
      %983 = vmatpush2.bf16.msra.mxu0 0
      %984 = vmatprep.mubr.bf16.mxu0 0
      %985 = vmatmul.mubr.bf16.gmra.mxu0 %v566
      %v986 = vpop.f32.mrf.mxu0
      %v987 = vadd.f32 0.0, %v986
      %v988 = vpop.f32.mrf.mxu0
      %v989 = vpop.f32.mrf.mxu0
      %v990 = vpop.f32.mrf.mxu0
      %991 = vdwg.mxu0
      %v992 = vadd.f32 %v882, %v987
      %v993 = vld [vmem:[%s191] sm:$0x8]
      %s994 = scalar_lea.vmem %s1, 448
      %v995 = vld [vmem:[%s994] sm:$0xf]
      %v996 = vld [vmem:[%s994 + $0x4] sm:$0xf]
      %v997 = vld [vmem:[%s994 + $0x8] sm:$0xf]
      %v998 = vld [vmem:[%s994 + $0xc] sm:$0xf]
      %v999 = vld [vmem:[%s994 + $0x10] sm:$0xf]
      %v1000 = vld [vmem:[%s994 + $0x14] sm:$0xf]
      %v1001 = vld [vmem:[%s994 + $0x18] sm:$0xf]
      %v1002 = vld [vmem:[%s994 + $0x1c] sm:$0xf]
      %v1003 = vld [vmem:[%s994 + $0x20] sm:$0xf]
      %v1004 = vld [vmem:[%s994 + $0x24] sm:$0xf]
      %v1005 = vld [vmem:[%s994 + $0x28] sm:$0xf]
      %v1006 = vld [vmem:[%s994 + $0x2c] sm:$0xf]
      %v1007 = vld [vmem:[%s994 + $0x30] sm:$0xf]
      %v1008 = vld [vmem:[%s994 + $0x34] sm:$0xf]
      %v1009 = vld [vmem:[%s994 + $0x38] sm:$0xf]
      %v1010 = vld [vmem:[%s994 + $0x3c] sm:$0xf]
      %v1012 = vunpack.c.l.b16 %v993
      %v1013 = vpack.c.b16 %v557, %v1012
      %v1014 = vrot.slane %v1013, 3
      %v1032 = vunpack.c.l.b16 %v995
      %v1033 = vunpack.c.l.b16 %v996
      %v1034 = vunpack.c.l.b16 %v997
      %v1035 = vunpack.c.l.b16 %v998
      %v1036 = vunpack.c.l.b16 %v999
      %v1037 = vunpack.c.l.b16 %v1000
      %v1038 = vunpack.c.l.b16 %v1001
      %v1039 = vunpack.c.l.b16 %v1002
      %v1040 = vunpack.c.l.b16 %v1003
      %v1041 = vunpack.c.l.b16 %v1004
      %v1042 = vunpack.c.l.b16 %v1005
      %v1043 = vunpack.c.l.b16 %v1006
      %v1044 = vunpack.c.l.b16 %v1007
      %v1045 = vunpack.c.l.b16 %v1008
      %v1046 = vunpack.c.l.b16 %v1009
      %v1047 = vunpack.c.l.b16 %v1010
      %v1048 = vpack.c.b16 %v1033, %v1032
      %v1049 = vpack.c.b16 %v1035, %v1034
      %v1050 = vpack.c.b16 %v1037, %v1036
      %v1051 = vpack.c.b16 %v1039, %v1038
      %v1052 = vpack.c.b16 %v1041, %v1040
      %v1053 = vpack.c.b16 %v1043, %v1042
      %v1054 = vpack.c.b16 %v1045, %v1044
      %v1055 = vpack.c.b16 %v1047, %v1046
      %1064 = vmatprep.subr.bf16.mxu0 0
      %1065 = vmatpush1.bf16.msra.mxu0 %v1055
      %1066 = vmatprep.subr.bf16.mxu0 0
      %1067 = vmatpush1.bf16.msra.mxu0 %v1054
      %1068 = vmatprep.subr.bf16.mxu0 0
      %1069 = vmatpush1.bf16.msra.mxu0 %v1053
      %1070 = vmatprep.subr.bf16.mxu0 0
      %1071 = vmatpush1.bf16.msra.mxu0 %v1052
      %1072 = vmatprep.subr.bf16.mxu0 0
      %1073 = vmatpush1.bf16.msra.mxu0 %v1051
      %1074 = vmatprep.subr.bf16.mxu0 0
      %1075 = vmatpush1.bf16.msra.mxu0 %v1050
      %1076 = vmatprep.subr.bf16.mxu0 0
      %1077 = vmatpush1.bf16.msra.mxu0 %v1049
      %1078 = vmatprep.subr.bf16.mxu0 0
      %1079 = vmatpush1.bf16.msra.mxu0 %v1048
      %1080 = vmatprep.subr.bf16.mxu0 0
      %1081 = vmatpush2.bf16.msra.mxu0 0
      %1082 = vmatprep.subr.bf16.mxu0 0
      %1083 = vmatpush2.bf16.msra.mxu0 0
      %1084 = vmatprep.subr.bf16.mxu0 0
      %1085 = vmatpush2.bf16.msra.mxu0 0
      %1086 = vmatprep.subr.bf16.mxu0 0
      %1087 = vmatpush2.bf16.msra.mxu0 0
      %1088 = vmatprep.subr.bf16.mxu0 0
      %1089 = vmatpush2.bf16.msra.mxu0 0
      %1090 = vmatprep.subr.bf16.mxu0 0
      %1091 = vmatpush2.bf16.msra.mxu0 0
      %1092 = vmatprep.subr.bf16.mxu0 0
      %1093 = vmatpush2.bf16.msra.mxu0 0
      %1094 = vmatprep.subr.bf16.mxu0 0
      %1095 = vmatpush2.bf16.msra.mxu0 0
      %1096 = vmatprep.mubr.bf16.mxu0 0
      %1097 = vmatmul.mubr.bf16.gmra.mxu0 %v1014
      %v1098 = vpop.f32.mrf.mxu0
      %v1099 = vadd.f32 0.0, %v1098
      %v1100 = vpop.f32.mrf.mxu0
      %v1101 = vpop.f32.mrf.mxu0
      %v1102 = vpop.f32.mrf.mxu0
      %1103 = vdwg.mxu0
      %v1104 = vadd.f32 %v992, %v1099
      %v1105 = vmul.f32 %v1104, %v661
      %v1106 = vadd.f32 %v1105, %v668
      %v1107 = vmax.f32 %v670, %v1106
      %s1108 = scalar_lea.vmem %s1, 512
      %v1109 = vld [vmem:[%s1108] sm:$0xf]
      %v1110 = vld [vmem:[%s1108 + $0x4] sm:$0xf]
      %v1111 = vld [vmem:[%s1108 + $0x8] sm:$0xf]
      %v1112 = vld [vmem:[%s1108 + $0xc] sm:$0xf]
      %v1113 = vld [vmem:[%s1108 + $0x10] sm:$0xf]
      %v1114 = vld [vmem:[%s1108 + $0x14] sm:$0xf]
      %v1115 = vld [vmem:[%s1108 + $0x18] sm:$0xf]
      %v1116 = vld [vmem:[%s1108 + $0x1c] sm:$0xf]
      %v1117 = vld [vmem:[%s1108 + $0x20] sm:$0xf]
      %v1118 = vld [vmem:[%s1108 + $0x24] sm:$0xf]
      %v1119 = vld [vmem:[%s1108 + $0x28] sm:$0xf]
      %v1120 = vld [vmem:[%s1108 + $0x2c] sm:$0xf]
      %v1121 = vld [vmem:[%s1108 + $0x30] sm:$0xf]
      %v1122 = vld [vmem:[%s1108 + $0x34] sm:$0xf]
      %v1123 = vld [vmem:[%s1108 + $0x38] sm:$0xf]
      %v1124 = vld [vmem:[%s1108 + $0x3c] sm:$0xf]
      %s1125 = scalar_lea.vmem %s1, 576
      %v1126 = vld [vmem:[%s1125] sm:$0xf]
      %v1127 = vld [vmem:[%s1125 + $0x4] sm:$0xf]
      %v1128 = vld [vmem:[%s1125 + $0x8] sm:$0xf]
      %v1129 = vld [vmem:[%s1125 + $0xc] sm:$0xf]
      %v1130 = vld [vmem:[%s1125 + $0x10] sm:$0xf]
      %v1131 = vld [vmem:[%s1125 + $0x14] sm:$0xf]
      %v1132 = vld [vmem:[%s1125 + $0x18] sm:$0xf]
      %v1133 = vld [vmem:[%s1125 + $0x1c] sm:$0xf]
      %v1134 = vld [vmem:[%s1125 + $0x20] sm:$0xf]
      %v1135 = vld [vmem:[%s1125 + $0x24] sm:$0xf]
      %v1136 = vld [vmem:[%s1125 + $0x28] sm:$0xf]
      %v1137 = vld [vmem:[%s1125 + $0x2c] sm:$0xf]
      %v1138 = vld [vmem:[%s1125 + $0x30] sm:$0xf]
      %v1139 = vld [vmem:[%s1125 + $0x34] sm:$0xf]
      %v1140 = vld [vmem:[%s1125 + $0x38] sm:$0xf]
      %v1141 = vld [vmem:[%s1125 + $0x3c] sm:$0xf]
      %v1158 = vunpack.c.l.b16 %v1126
      %v1159 = vunpack.c.l.b16 %v1127
      %v1160 = vunpack.c.l.b16 %v1128
      %v1161 = vunpack.c.l.b16 %v1129
      %v1162 = vunpack.c.l.b16 %v1130
      %v1163 = vunpack.c.l.b16 %v1131
      %v1164 = vunpack.c.l.b16 %v1132
      %v1165 = vunpack.c.l.b16 %v1133
      %v1166 = vunpack.c.l.b16 %v1134
      %v1167 = vunpack.c.l.b16 %v1135
      %v1168 = vunpack.c.l.b16 %v1136
      %v1169 = vunpack.c.l.b16 %v1137
      %v1170 = vunpack.c.l.b16 %v1138
      %v1171 = vunpack.c.l.b16 %v1139
      %v1172 = vunpack.c.l.b16 %v1140
      %v1173 = vunpack.c.l.b16 %v1141
      %v1174 = vpack.c.b16 %v1159, %v1158
      %v1175 = vpack.c.b16 %v1161, %v1160
      %v1176 = vpack.c.b16 %v1163, %v1162
      %v1177 = vpack.c.b16 %v1165, %v1164
      %v1178 = vpack.c.b16 %v1167, %v1166
      %v1179 = vpack.c.b16 %v1169, %v1168
      %v1180 = vpack.c.b16 %v1171, %v1170
      %v1181 = vpack.c.b16 %v1173, %v1172
      %1190 = vmatprep.subr.bf16.mxu0 0
      %1191 = vmatpush1.bf16.msra.mxu0 %v1181
      %1192 = vmatprep.subr.bf16.mxu0 0
      %1193 = vmatpush1.bf16.msra.mxu0 %v1180
      %1194 = vmatprep.subr.bf16.mxu0 0
      %1195 = vmatpush1.bf16.msra.mxu0 %v1179
      %1196 = vmatprep.subr.bf16.mxu0 0
      %1197 = vmatpush1.bf16.msra.mxu0 %v1178
      %1198 = vmatprep.subr.bf16.mxu0 0
      %1199 = vmatpush1.bf16.msra.mxu0 %v1177
      %1200 = vmatprep.subr.bf16.mxu0 0
      %1201 = vmatpush1.bf16.msra.mxu0 %v1176
      %1202 = vmatprep.subr.bf16.mxu0 0
      %1203 = vmatpush1.bf16.msra.mxu0 %v1175
      %1204 = vmatprep.subr.bf16.mxu0 0
      %1205 = vmatpush1.bf16.msra.mxu0 %v1174
      %1206 = vmatprep.subr.bf16.mxu0 0
      %1207 = vmatpush2.bf16.msra.mxu0 0
      %1208 = vmatprep.subr.bf16.mxu0 0
      %1209 = vmatpush2.bf16.msra.mxu0 0
      %1210 = vmatprep.subr.bf16.mxu0 0
      %1211 = vmatpush2.bf16.msra.mxu0 0
      %1212 = vmatprep.subr.bf16.mxu0 0
      %1213 = vmatpush2.bf16.msra.mxu0 0
      %1214 = vmatprep.subr.bf16.mxu0 0
      %1215 = vmatpush2.bf16.msra.mxu0 0
      %1216 = vmatprep.subr.bf16.mxu0 0
      %1217 = vmatpush2.bf16.msra.mxu0 0
      %1218 = vmatprep.subr.bf16.mxu0 0
      %1219 = vmatpush2.bf16.msra.mxu0 0
      %1220 = vmatprep.subr.bf16.mxu0 0
      %1221 = vmatpush2.bf16.msra.mxu0 0
      %1222 = vmatprep.mubr.bf16.mxu0 0
      %1223 = vmatmul.mubr.bf16.gmra.mxu0 %v566
      %v1224 = vpop.f32.mrf.mxu0
      %v1225 = vadd.f32 0.0, %v1224
      %v1226 = vpop.f32.mrf.mxu0
      %v1227 = vpop.f32.mrf.mxu0
      %v1228 = vpop.f32.mrf.mxu0
      %1229 = vdwg.mxu0
      %v1246 = vunpack.c.l.b16 %v1109
      %v1247 = vunpack.c.l.b16 %v1110
      %v1248 = vunpack.c.l.b16 %v1111
      %v1249 = vunpack.c.l.b16 %v1112
      %v1250 = vunpack.c.l.b16 %v1113
      %v1251 = vunpack.c.l.b16 %v1114
      %v1252 = vunpack.c.l.b16 %v1115
      %v1253 = vunpack.c.l.b16 %v1116
      %v1254 = vunpack.c.l.b16 %v1117
      %v1255 = vunpack.c.l.b16 %v1118
      %v1256 = vunpack.c.l.b16 %v1119
      %v1257 = vunpack.c.l.b16 %v1120
      %v1258 = vunpack.c.l.b16 %v1121
      %v1259 = vunpack.c.l.b16 %v1122
      %v1260 = vunpack.c.l.b16 %v1123
      %v1261 = vunpack.c.l.b16 %v1124
      %v1262 = vpack.c.b16 %v1247, %v1246
      %v1263 = vpack.c.b16 %v1249, %v1248
      %v1264 = vpack.c.b16 %v1251, %v1250
      %v1265 = vpack.c.b16 %v1253, %v1252
      %v1266 = vpack.c.b16 %v1255, %v1254
      %v1267 = vpack.c.b16 %v1257, %v1256
      %v1268 = vpack.c.b16 %v1259, %v1258
      %v1269 = vpack.c.b16 %v1261, %v1260
      %1278 = vmatprep.subr.bf16.mxu0 0
      %1279 = vmatpush1.bf16.msra.mxu0 %v1269
      %1280 = vmatprep.subr.bf16.mxu0 0
      %1281 = vmatpush1.bf16.msra.mxu0 %v1268
      %1282 = vmatprep.subr.bf16.mxu0 0
      %1283 = vmatpush1.bf16.msra.mxu0 %v1267
      %1284 = vmatprep.subr.bf16.mxu0 0
      %1285 = vmatpush1.bf16.msra.mxu0 %v1266
      %1286 = vmatprep.subr.bf16.mxu0 0
      %1287 = vmatpush1.bf16.msra.mxu0 %v1265
      %1288 = vmatprep.subr.bf16.mxu0 0
      %1289 = vmatpush1.bf16.msra.mxu0 %v1264
      %1290 = vmatprep.subr.bf16.mxu0 0
      %1291 = vmatpush1.bf16.msra.mxu0 %v1263
      %1292 = vmatprep.subr.bf16.mxu0 0
      %1293 = vmatpush1.bf16.msra.mxu0 %v1262
      %1294 = vmatprep.subr.bf16.mxu0 0
      %1295 = vmatpush2.bf16.msra.mxu0 0
      %1296 = vmatprep.subr.bf16.mxu0 0
      %1297 = vmatpush2.bf16.msra.mxu0 0
      %1298 = vmatprep.subr.bf16.mxu0 0
      %1299 = vmatpush2.bf16.msra.mxu0 0
      %1300 = vmatprep.subr.bf16.mxu0 0
      %1301 = vmatpush2.bf16.msra.mxu0 0
      %1302 = vmatprep.subr.bf16.mxu0 0
      %1303 = vmatpush2.bf16.msra.mxu0 0
      %1304 = vmatprep.subr.bf16.mxu0 0
      %1305 = vmatpush2.bf16.msra.mxu0 0
      %1306 = vmatprep.subr.bf16.mxu0 0
      %1307 = vmatpush2.bf16.msra.mxu0 0
      %1308 = vmatprep.subr.bf16.mxu0 0
      %1309 = vmatpush2.bf16.msra.mxu0 0
      %1310 = vmatprep.mubr.bf16.mxu0 0
      %1311 = vmatmul.mubr.bf16.gmra.mxu0 %v447
      %v1312 = vpop.f32.mrf.mxu0
      %v1313 = vadd.f32 %v1225, %v1312
      %v1314 = vpop.f32.mrf.mxu0
      %v1315 = vpop.f32.mrf.mxu0
      %v1316 = vpop.f32.mrf.mxu0
      %1317 = vdwg.mxu0
      %v1318 = vld [vmem:[%s191 + $0x4] sm:$0xf]
      %s1319 = scalar_lea.vmem %s1, 640
      %v1320 = vld [vmem:[%s1319] sm:$0xf]
      %v1321 = vld [vmem:[%s1319 + $0x4] sm:$0xf]
      %v1322 = vld [vmem:[%s1319 + $0x8] sm:$0xf]
      %v1323 = vld [vmem:[%s1319 + $0xc] sm:$0xf]
      %v1324 = vld [vmem:[%s1319 + $0x10] sm:$0xf]
      %v1325 = vld [vmem:[%s1319 + $0x14] sm:$0xf]
      %v1326 = vld [vmem:[%s1319 + $0x18] sm:$0xf]
      %v1327 = vld [vmem:[%s1319 + $0x1c] sm:$0xf]
      %v1328 = vld [vmem:[%s1319 + $0x20] sm:$0xf]
      %v1329 = vld [vmem:[%s1319 + $0x24] sm:$0xf]
      %v1330 = vld [vmem:[%s1319 + $0x28] sm:$0xf]
      %v1331 = vld [vmem:[%s1319 + $0x2c] sm:$0xf]
      %v1332 = vld [vmem:[%s1319 + $0x30] sm:$0xf]
      %v1333 = vld [vmem:[%s1319 + $0x34] sm:$0xf]
      %v1334 = vld [vmem:[%s1319 + $0x38] sm:$0xf]
      %v1335 = vld [vmem:[%s1319 + $0x3c] sm:$0xf]
      %v1352 = vunpack.c.l.b16 %v1320
      %v1353 = vunpack.c.l.b16 %v1321
      %v1354 = vunpack.c.l.b16 %v1322
      %v1355 = vunpack.c.l.b16 %v1323
      %v1356 = vunpack.c.l.b16 %v1324
      %v1357 = vunpack.c.l.b16 %v1325
      %v1358 = vunpack.c.l.b16 %v1326
      %v1359 = vunpack.c.l.b16 %v1327
      %v1360 = vunpack.c.l.b16 %v1328
      %v1361 = vunpack.c.l.b16 %v1329
      %v1362 = vunpack.c.l.b16 %v1330
      %v1363 = vunpack.c.l.b16 %v1331
      %v1364 = vunpack.c.l.b16 %v1332
      %v1365 = vunpack.c.l.b16 %v1333
      %v1366 = vunpack.c.l.b16 %v1334
      %v1367 = vunpack.c.l.b16 %v1335
      %v1368 = vpack.c.b16 %v1353, %v1352
      %v1369 = vpack.c.b16 %v1355, %v1354
      %v1370 = vpack.c.b16 %v1357, %v1356
      %v1371 = vpack.c.b16 %v1359, %v1358
      %v1372 = vpack.c.b16 %v1361, %v1360
      %v1373 = vpack.c.b16 %v1363, %v1362
      %v1374 = vpack.c.b16 %v1365, %v1364
      %v1375 = vpack.c.b16 %v1367, %v1366
      %1384 = vmatprep.subr.bf16.mxu0 0
      %1385 = vmatpush1.bf16.msra.mxu0 %v1375
      %1386 = vmatprep.subr.bf16.mxu0 0
      %1387 = vmatpush1.bf16.msra.mxu0 %v1374
      %1388 = vmatprep.subr.bf16.mxu0 0
      %1389 = vmatpush1.bf16.msra.mxu0 %v1373
      %1390 = vmatprep.subr.bf16.mxu0 0
      %1391 = vmatpush1.bf16.msra.mxu0 %v1372
      %1392 = vmatprep.subr.bf16.mxu0 0
      %1393 = vmatpush1.bf16.msra.mxu0 %v1371
      %1394 = vmatprep.subr.bf16.mxu0 0
      %1395 = vmatpush1.bf16.msra.mxu0 %v1370
      %1396 = vmatprep.subr.bf16.mxu0 0
      %1397 = vmatpush1.bf16.msra.mxu0 %v1369
      %1398 = vmatprep.subr.bf16.mxu0 0
      %1399 = vmatpush1.bf16.msra.mxu0 %v1368
      %1400 = vmatprep.subr.bf16.mxu0 0
      %1401 = vmatpush2.bf16.msra.mxu0 0
      %1402 = vmatprep.subr.bf16.mxu0 0
      %1403 = vmatpush2.bf16.msra.mxu0 0
      %1404 = vmatprep.subr.bf16.mxu0 0
      %1405 = vmatpush2.bf16.msra.mxu0 0
      %1406 = vmatprep.subr.bf16.mxu0 0
      %1407 = vmatpush2.bf16.msra.mxu0 0
      %1408 = vmatprep.subr.bf16.mxu0 0
      %1409 = vmatpush2.bf16.msra.mxu0 0
      %1410 = vmatprep.subr.bf16.mxu0 0
      %1411 = vmatpush2.bf16.msra.mxu0 0
      %1412 = vmatprep.subr.bf16.mxu0 0
      %1413 = vmatpush2.bf16.msra.mxu0 0
      %1414 = vmatprep.subr.bf16.mxu0 0
      %1415 = vmatpush2.bf16.msra.mxu0 0
      %1416 = vmatprep.mubr.bf16.mxu0 0
      %1417 = vmatmul.mubr.bf16.gmra.mxu0 %v1318
      %v1418 = vpop.f32.mrf.mxu0
      %v1419 = vadd.f32 0.0, %v1418
      %v1420 = vpop.f32.mrf.mxu0
      %v1421 = vpop.f32.mrf.mxu0
      %v1422 = vpop.f32.mrf.mxu0
      %1423 = vdwg.mxu0
      %v1424 = vadd.f32 %v1313, %v1419
      %v1425 = vld [vmem:[%s191 + $0x4] sm:$0xf]
      %v1426 = vld [vmem:[%s191 + $0x8] sm:$0x1]
      %s1427 = scalar_lea.vmem %s1, 704
      %v1428 = vld [vmem:[%s1427] sm:$0xf]
      %v1429 = vld [vmem:[%s1427 + $0x4] sm:$0xf]
      %v1430 = vld [vmem:[%s1427 + $0x8] sm:$0xf]
      %v1431 = vld [vmem:[%s1427 + $0xc] sm:$0xf]
      %v1432 = vld [vmem:[%s1427 + $0x10] sm:$0xf]
      %v1433 = vld [vmem:[%s1427 + $0x14] sm:$0xf]
      %v1434 = vld [vmem:[%s1427 + $0x18] sm:$0xf]
      %v1435 = vld [vmem:[%s1427 + $0x1c] sm:$0xf]
      %v1436 = vld [vmem:[%s1427 + $0x20] sm:$0xf]
      %v1437 = vld [vmem:[%s1427 + $0x24] sm:$0xf]
      %v1438 = vld [vmem:[%s1427 + $0x28] sm:$0xf]
      %v1439 = vld [vmem:[%s1427 + $0x2c] sm:$0xf]
      %v1440 = vld [vmem:[%s1427 + $0x30] sm:$0xf]
      %v1441 = vld [vmem:[%s1427 + $0x34] sm:$0xf]
      %v1442 = vld [vmem:[%s1427 + $0x38] sm:$0xf]
      %v1443 = vld [vmem:[%s1427 + $0x3c] sm:$0xf]
      %v1446 = vunpack.c.l.b16 %v1425
      %v1447 = vunpack.c.l.b16 %v1426
      %v1448 = vpack.c.b16 %v1447, %v1446
      %v1450 = vshrl.u32 %v1448, 16
      %v1452 = vshll.u32 %v1448, 16
      %v1454 = vrot.slane %v1452, 1
      %v1455 = vor.u32 %v1450, %v1454
      %v1473 = vunpack.c.l.b16 %v1428
      %v1474 = vunpack.c.l.b16 %v1429
      %v1475 = vunpack.c.l.b16 %v1430
      %v1476 = vunpack.c.l.b16 %v1431
      %v1477 = vunpack.c.l.b16 %v1432
      %v1478 = vunpack.c.l.b16 %v1433
      %v1479 = vunpack.c.l.b16 %v1434
      %v1480 = vunpack.c.l.b16 %v1435
      %v1481 = vunpack.c.l.b16 %v1436
      %v1482 = vunpack.c.l.b16 %v1437
      %v1483 = vunpack.c.l.b16 %v1438
      %v1484 = vunpack.c.l.b16 %v1439
      %v1485 = vunpack.c.l.b16 %v1440
      %v1486 = vunpack.c.l.b16 %v1441
      %v1487 = vunpack.c.l.b16 %v1442
      %v1488 = vunpack.c.l.b16 %v1443
      %v1489 = vpack.c.b16 %v1474, %v1473
      %v1490 = vpack.c.b16 %v1476, %v1475
      %v1491 = vpack.c.b16 %v1478, %v1477
      %v1492 = vpack.c.b16 %v1480, %v1479
      %v1493 = vpack.c.b16 %v1482, %v1481
      %v1494 = vpack.c.b16 %v1484, %v1483
      %v1495 = vpack.c.b16 %v1486, %v1485
      %v1496 = vpack.c.b16 %v1488, %v1487
      %1505 = vmatprep.subr.bf16.mxu0 0
      %1506 = vmatpush1.bf16.msra.mxu0 %v1496
      %1507 = vmatprep.subr.bf16.mxu0 0
      %1508 = vmatpush1.bf16.msra.mxu0 %v1495
      %1509 = vmatprep.subr.bf16.mxu0 0
      %1510 = vmatpush1.bf16.msra.mxu0 %v1494
      %1511 = vmatprep.subr.bf16.mxu0 0
      %1512 = vmatpush1.bf16.msra.mxu0 %v1493
      %1513 = vmatprep.subr.bf16.mxu0 0
      %1514 = vmatpush1.bf16.msra.mxu0 %v1492
      %1515 = vmatprep.subr.bf16.mxu0 0
      %1516 = vmatpush1.bf16.msra.mxu0 %v1491
      %1517 = vmatprep.subr.bf16.mxu0 0
      %1518 = vmatpush1.bf16.msra.mxu0 %v1490
      %1519 = vmatprep.subr.bf16.mxu0 0
      %1520 = vmatpush1.bf16.msra.mxu0 %v1489
      %1521 = vmatprep.subr.bf16.mxu0 0
      %1522 = vmatpush2.bf16.msra.mxu0 0
      %1523 = vmatprep.subr.bf16.mxu0 0
      %1524 = vmatpush2.bf16.msra.mxu0 0
      %1525 = vmatprep.subr.bf16.mxu0 0
      %1526 = vmatpush2.bf16.msra.mxu0 0
      %1527 = vmatprep.subr.bf16.mxu0 0
      %1528 = vmatpush2.bf16.msra.mxu0 0
      %1529 = vmatprep.subr.bf16.mxu0 0
      %1530 = vmatpush2.bf16.msra.mxu0 0
      %1531 = vmatprep.subr.bf16.mxu0 0
      %1532 = vmatpush2.bf16.msra.mxu0 0
      %1533 = vmatprep.subr.bf16.mxu0 0
      %1534 = vmatpush2.bf16.msra.mxu0 0
      %1535 = vmatprep.subr.bf16.mxu0 0
      %1536 = vmatpush2.bf16.msra.mxu0 0
      %1537 = vmatprep.mubr.bf16.mxu0 0
      %1538 = vmatmul.mubr.bf16.gmra.mxu0 %v1455
      %v1539 = vpop.f32.mrf.mxu0
      %v1540 = vadd.f32 0.0, %v1539
      %v1541 = vpop.f32.mrf.mxu0
      %v1542 = vpop.f32.mrf.mxu0
      %v1543 = vpop.f32.mrf.mxu0
      %1544 = vdwg.mxu0
      %v1545 = vadd.f32 %v1424, %v1540
      %v1546 = vmul.f32 %v1545, %v661
      %v1547 = vadd.f32 %v1546, %v668
      %v1548 = vmax.f32 %v1107, %v1547
      %s1549 = scalar_lea.vmem %s1, 768
      %v1550 = vld [vmem:[%s1549] sm:$0xf]
      %v1551 = vld [vmem:[%s1549 + $0x4] sm:$0xf]
      %v1552 = vld [vmem:[%s1549 + $0x8] sm:$0xf]
      %v1553 = vld [vmem:[%s1549 + $0xc] sm:$0xf]
      %v1554 = vld [vmem:[%s1549 + $0x10] sm:$0xf]
      %v1555 = vld [vmem:[%s1549 + $0x14] sm:$0xf]
      %v1556 = vld [vmem:[%s1549 + $0x18] sm:$0xf]
      %v1557 = vld [vmem:[%s1549 + $0x1c] sm:$0xf]
      %v1558 = vld [vmem:[%s1549 + $0x20] sm:$0xf]
      %v1559 = vld [vmem:[%s1549 + $0x24] sm:$0xf]
      %v1560 = vld [vmem:[%s1549 + $0x28] sm:$0xf]
      %v1561 = vld [vmem:[%s1549 + $0x2c] sm:$0xf]
      %v1562 = vld [vmem:[%s1549 + $0x30] sm:$0xf]
      %v1563 = vld [vmem:[%s1549 + $0x34] sm:$0xf]
      %v1564 = vld [vmem:[%s1549 + $0x38] sm:$0xf]
      %v1565 = vld [vmem:[%s1549 + $0x3c] sm:$0xf]
      %s1566 = scalar_lea.vmem %s1, 832
      %v1567 = vld [vmem:[%s1566] sm:$0xf]
      %v1568 = vld [vmem:[%s1566 + $0x4] sm:$0xf]
      %v1569 = vld [vmem:[%s1566 + $0x8] sm:$0xf]
      %v1570 = vld [vmem:[%s1566 + $0xc] sm:$0xf]
      %v1571 = vld [vmem:[%s1566 + $0x10] sm:$0xf]
      %v1572 = vld [vmem:[%s1566 + $0x14] sm:$0xf]
      %v1573 = vld [vmem:[%s1566 + $0x18] sm:$0xf]
      %v1574 = vld [vmem:[%s1566 + $0x1c] sm:$0xf]
      %v1575 = vld [vmem:[%s1566 + $0x20] sm:$0xf]
      %v1576 = vld [vmem:[%s1566 + $0x24] sm:$0xf]
      %v1577 = vld [vmem:[%s1566 + $0x28] sm:$0xf]
      %v1578 = vld [vmem:[%s1566 + $0x2c] sm:$0xf]
      %v1579 = vld [vmem:[%s1566 + $0x30] sm:$0xf]
      %v1580 = vld [vmem:[%s1566 + $0x34] sm:$0xf]
      %v1581 = vld [vmem:[%s1566 + $0x38] sm:$0xf]
      %v1582 = vld [vmem:[%s1566 + $0x3c] sm:$0xf]
      %v1599 = vunpack.c.l.b16 %v1567
      %v1600 = vunpack.c.l.b16 %v1568
      %v1601 = vunpack.c.l.b16 %v1569
      %v1602 = vunpack.c.l.b16 %v1570
      %v1603 = vunpack.c.l.b16 %v1571
      %v1604 = vunpack.c.l.b16 %v1572
      %v1605 = vunpack.c.l.b16 %v1573
      %v1606 = vunpack.c.l.b16 %v1574
      %v1607 = vunpack.c.l.b16 %v1575
      %v1608 = vunpack.c.l.b16 %v1576
      %v1609 = vunpack.c.l.b16 %v1577
      %v1610 = vunpack.c.l.b16 %v1578
      %v1611 = vunpack.c.l.b16 %v1579
      %v1612 = vunpack.c.l.b16 %v1580
      %v1613 = vunpack.c.l.b16 %v1581
      %v1614 = vunpack.c.l.b16 %v1582
      %v1615 = vpack.c.b16 %v1600, %v1599
      %v1616 = vpack.c.b16 %v1602, %v1601
      %v1617 = vpack.c.b16 %v1604, %v1603
      %v1618 = vpack.c.b16 %v1606, %v1605
      %v1619 = vpack.c.b16 %v1608, %v1607
      %v1620 = vpack.c.b16 %v1610, %v1609
      %v1621 = vpack.c.b16 %v1612, %v1611
      %v1622 = vpack.c.b16 %v1614, %v1613
      %1631 = vmatprep.subr.bf16.mxu0 0
      %1632 = vmatpush1.bf16.msra.mxu0 %v1622
      %1633 = vmatprep.subr.bf16.mxu0 0
      %1634 = vmatpush1.bf16.msra.mxu0 %v1621
      %1635 = vmatprep.subr.bf16.mxu0 0
      %1636 = vmatpush1.bf16.msra.mxu0 %v1620
      %1637 = vmatprep.subr.bf16.mxu0 0
      %1638 = vmatpush1.bf16.msra.mxu0 %v1619
      %1639 = vmatprep.subr.bf16.mxu0 0
      %1640 = vmatpush1.bf16.msra.mxu0 %v1618
      %1641 = vmatprep.subr.bf16.mxu0 0
      %1642 = vmatpush1.bf16.msra.mxu0 %v1617
      %1643 = vmatprep.subr.bf16.mxu0 0
      %1644 = vmatpush1.bf16.msra.mxu0 %v1616
      %1645 = vmatprep.subr.bf16.mxu0 0
      %1646 = vmatpush1.bf16.msra.mxu0 %v1615
      %1647 = vmatprep.subr.bf16.mxu0 0
      %1648 = vmatpush2.bf16.msra.mxu0 0
      %1649 = vmatprep.subr.bf16.mxu0 0
      %1650 = vmatpush2.bf16.msra.mxu0 0
      %1651 = vmatprep.subr.bf16.mxu0 0
      %1652 = vmatpush2.bf16.msra.mxu0 0
      %1653 = vmatprep.subr.bf16.mxu0 0
      %1654 = vmatpush2.bf16.msra.mxu0 0
      %1655 = vmatprep.subr.bf16.mxu0 0
      %1656 = vmatpush2.bf16.msra.mxu0 0
      %1657 = vmatprep.subr.bf16.mxu0 0
      %1658 = vmatpush2.bf16.msra.mxu0 0
      %1659 = vmatprep.subr.bf16.mxu0 0
      %1660 = vmatpush2.bf16.msra.mxu0 0
      %1661 = vmatprep.subr.bf16.mxu0 0
      %1662 = vmatpush2.bf16.msra.mxu0 0
      %1663 = vmatprep.mubr.bf16.mxu0 0
      %1664 = vmatmul.mubr.bf16.gmra.mxu0 %v1014
      %v1665 = vpop.f32.mrf.mxu0
      %v1666 = vadd.f32 0.0, %v1665
      %v1667 = vpop.f32.mrf.mxu0
      %v1668 = vpop.f32.mrf.mxu0
      %v1669 = vpop.f32.mrf.mxu0
      %1670 = vdwg.mxu0
      %v1687 = vunpack.c.l.b16 %v1550
      %v1688 = vunpack.c.l.b16 %v1551
      %v1689 = vunpack.c.l.b16 %v1552
      %v1690 = vunpack.c.l.b16 %v1553
      %v1691 = vunpack.c.l.b16 %v1554
      %v1692 = vunpack.c.l.b16 %v1555
      %v1693 = vunpack.c.l.b16 %v1556
      %v1694 = vunpack.c.l.b16 %v1557
      %v1695 = vunpack.c.l.b16 %v1558
      %v1696 = vunpack.c.l.b16 %v1559
      %v1697 = vunpack.c.l.b16 %v1560
      %v1698 = vunpack.c.l.b16 %v1561
      %v1699 = vunpack.c.l.b16 %v1562
      %v1700 = vunpack.c.l.b16 %v1563
      %v1701 = vunpack.c.l.b16 %v1564
      %v1702 = vunpack.c.l.b16 %v1565
      %v1703 = vpack.c.b16 %v1688, %v1687
      %v1704 = vpack.c.b16 %v1690, %v1689
      %v1705 = vpack.c.b16 %v1692, %v1691
      %v1706 = vpack.c.b16 %v1694, %v1693
      %v1707 = vpack.c.b16 %v1696, %v1695
      %v1708 = vpack.c.b16 %v1698, %v1697
      %v1709 = vpack.c.b16 %v1700, %v1699
      %v1710 = vpack.c.b16 %v1702, %v1701
      %1719 = vmatprep.subr.bf16.mxu0 0
      %1720 = vmatpush1.bf16.msra.mxu0 %v1710
      %1721 = vmatprep.subr.bf16.mxu0 0
      %1722 = vmatpush1.bf16.msra.mxu0 %v1709
      %1723 = vmatprep.subr.bf16.mxu0 0
      %1724 = vmatpush1.bf16.msra.mxu0 %v1708
      %1725 = vmatprep.subr.bf16.mxu0 0
      %1726 = vmatpush1.bf16.msra.mxu0 %v1707
      %1727 = vmatprep.subr.bf16.mxu0 0
      %1728 = vmatpush1.bf16.msra.mxu0 %v1706
      %1729 = vmatprep.subr.bf16.mxu0 0
      %1730 = vmatpush1.bf16.msra.mxu0 %v1705
      %1731 = vmatprep.subr.bf16.mxu0 0
      %1732 = vmatpush1.bf16.msra.mxu0 %v1704
      %1733 = vmatprep.subr.bf16.mxu0 0
      %1734 = vmatpush1.bf16.msra.mxu0 %v1703
      %1735 = vmatprep.subr.bf16.mxu0 0
      %1736 = vmatpush2.bf16.msra.mxu0 0
      %1737 = vmatprep.subr.bf16.mxu0 0
      %1738 = vmatpush2.bf16.msra.mxu0 0
      %1739 = vmatprep.subr.bf16.mxu0 0
      %1740 = vmatpush2.bf16.msra.mxu0 0
      %1741 = vmatprep.subr.bf16.mxu0 0
      %1742 = vmatpush2.bf16.msra.mxu0 0
      %1743 = vmatprep.subr.bf16.mxu0 0
      %1744 = vmatpush2.bf16.msra.mxu0 0
      %1745 = vmatprep.subr.bf16.mxu0 0
      %1746 = vmatpush2.bf16.msra.mxu0 0
      %1747 = vmatprep.subr.bf16.mxu0 0
      %1748 = vmatpush2.bf16.msra.mxu0 0
      %1749 = vmatprep.subr.bf16.mxu0 0
      %1750 = vmatpush2.bf16.msra.mxu0 0
      %1751 = vmatprep.mubr.bf16.mxu0 0
      %1752 = vmatmul.mubr.bf16.gmra.mxu0 %v566
      %v1753 = vpop.f32.mrf.mxu0
      %v1754 = vadd.f32 %v1666, %v1753
      %v1755 = vpop.f32.mrf.mxu0
      %v1756 = vpop.f32.mrf.mxu0
      %v1757 = vpop.f32.mrf.mxu0
      %1758 = vdwg.mxu0
      %s1759 = scalar_lea.vmem %s1, 896
      %v1760 = vld [vmem:[%s1759] sm:$0xf]
      %v1761 = vld [vmem:[%s1759 + $0x4] sm:$0xf]
      %v1762 = vld [vmem:[%s1759 + $0x8] sm:$0xf]
      %v1763 = vld [vmem:[%s1759 + $0xc] sm:$0xf]
      %v1764 = vld [vmem:[%s1759 + $0x10] sm:$0xf]
      %v1765 = vld [vmem:[%s1759 + $0x14] sm:$0xf]
      %v1766 = vld [vmem:[%s1759 + $0x18] sm:$0xf]
      %v1767 = vld [vmem:[%s1759 + $0x1c] sm:$0xf]
      %v1768 = vld [vmem:[%s1759 + $0x20] sm:$0xf]
      %v1769 = vld [vmem:[%s1759 + $0x24] sm:$0xf]
      %v1770 = vld [vmem:[%s1759 + $0x28] sm:$0xf]
      %v1771 = vld [vmem:[%s1759 + $0x2c] sm:$0xf]
      %v1772 = vld [vmem:[%s1759 + $0x30] sm:$0xf]
      %v1773 = vld [vmem:[%s1759 + $0x34] sm:$0xf]
      %v1774 = vld [vmem:[%s1759 + $0x38] sm:$0xf]
      %v1775 = vld [vmem:[%s1759 + $0x3c] sm:$0xf]
      %v1792 = vunpack.c.l.b16 %v1760
      %v1793 = vunpack.c.l.b16 %v1761
      %v1794 = vunpack.c.l.b16 %v1762
      %v1795 = vunpack.c.l.b16 %v1763
      %v1796 = vunpack.c.l.b16 %v1764
      %v1797 = vunpack.c.l.b16 %v1765
      %v1798 = vunpack.c.l.b16 %v1766
      %v1799 = vunpack.c.l.b16 %v1767
      %v1800 = vunpack.c.l.b16 %v1768
      %v1801 = vunpack.c.l.b16 %v1769
      %v1802 = vunpack.c.l.b16 %v1770
      %v1803 = vunpack.c.l.b16 %v1771
      %v1804 = vunpack.c.l.b16 %v1772
      %v1805 = vunpack.c.l.b16 %v1773
      %v1806 = vunpack.c.l.b16 %v1774
      %v1807 = vunpack.c.l.b16 %v1775
      %v1808 = vpack.c.b16 %v1793, %v1792
      %v1809 = vpack.c.b16 %v1795, %v1794
      %v1810 = vpack.c.b16 %v1797, %v1796
      %v1811 = vpack.c.b16 %v1799, %v1798
      %v1812 = vpack.c.b16 %v1801, %v1800
      %v1813 = vpack.c.b16 %v1803, %v1802
      %v1814 = vpack.c.b16 %v1805, %v1804
      %v1815 = vpack.c.b16 %v1807, %v1806
      %1824 = vmatprep.subr.bf16.mxu0 0
      %1825 = vmatpush1.bf16.msra.mxu0 %v1815
      %1826 = vmatprep.subr.bf16.mxu0 0
      %1827 = vmatpush1.bf16.msra.mxu0 %v1814
      %1828 = vmatprep.subr.bf16.mxu0 0
      %1829 = vmatpush1.bf16.msra.mxu0 %v1813
      %1830 = vmatprep.subr.bf16.mxu0 0
      %1831 = vmatpush1.bf16.msra.mxu0 %v1812
      %1832 = vmatprep.subr.bf16.mxu0 0
      %1833 = vmatpush1.bf16.msra.mxu0 %v1811
      %1834 = vmatprep.subr.bf16.mxu0 0
      %1835 = vmatpush1.bf16.msra.mxu0 %v1810
      %1836 = vmatprep.subr.bf16.mxu0 0
      %1837 = vmatpush1.bf16.msra.mxu0 %v1809
      %1838 = vmatprep.subr.bf16.mxu0 0
      %1839 = vmatpush1.bf16.msra.mxu0 %v1808
      %1840 = vmatprep.subr.bf16.mxu0 0
      %1841 = vmatpush2.bf16.msra.mxu0 0
      %1842 = vmatprep.subr.bf16.mxu0 0
      %1843 = vmatpush2.bf16.msra.mxu0 0
      %1844 = vmatprep.subr.bf16.mxu0 0
      %1845 = vmatpush2.bf16.msra.mxu0 0
      %1846 = vmatprep.subr.bf16.mxu0 0
      %1847 = vmatpush2.bf16.msra.mxu0 0
      %1848 = vmatprep.subr.bf16.mxu0 0
      %1849 = vmatpush2.bf16.msra.mxu0 0
      %1850 = vmatprep.subr.bf16.mxu0 0
      %1851 = vmatpush2.bf16.msra.mxu0 0
      %1852 = vmatprep.subr.bf16.mxu0 0
      %1853 = vmatpush2.bf16.msra.mxu0 0
      %1854 = vmatprep.subr.bf16.mxu0 0
      %1855 = vmatpush2.bf16.msra.mxu0 0
      %1856 = vmatprep.mubr.bf16.mxu0 0
      %1857 = vmatmul.mubr.bf16.gmra.mxu0 %v1455
      %v1858 = vpop.f32.mrf.mxu0
      %v1859 = vadd.f32 0.0, %v1858
      %v1860 = vpop.f32.mrf.mxu0
      %v1861 = vpop.f32.mrf.mxu0
      %v1862 = vpop.f32.mrf.mxu0
      %1863 = vdwg.mxu0
      %v1864 = vadd.f32 %v1754, %v1859
      %v1865 = vld [vmem:[%s191 + $0x4] sm:$0xe]
      %s1866 = scalar_lea.vmem %s1, 960
      %v1867 = vld [vmem:[%s1866] sm:$0xf]
      %v1868 = vld [vmem:[%s1866 + $0x4] sm:$0xf]
      %v1869 = vld [vmem:[%s1866 + $0x8] sm:$0xf]
      %v1870 = vld [vmem:[%s1866 + $0xc] sm:$0xf]
      %v1871 = vld [vmem:[%s1866 + $0x10] sm:$0xf]
      %v1872 = vld [vmem:[%s1866 + $0x14] sm:$0xf]
      %v1873 = vld [vmem:[%s1866 + $0x18] sm:$0xf]
      %v1874 = vld [vmem:[%s1866 + $0x1c] sm:$0xf]
      %v1875 = vld [vmem:[%s1866 + $0x20] sm:$0xf]
      %v1876 = vld [vmem:[%s1866 + $0x24] sm:$0xf]
      %v1877 = vld [vmem:[%s1866 + $0x28] sm:$0xf]
      %v1878 = vld [vmem:[%s1866 + $0x2c] sm:$0xf]
      %v1879 = vld [vmem:[%s1866 + $0x30] sm:$0xf]
      %v1880 = vld [vmem:[%s1866 + $0x34] sm:$0xf]
      %v1881 = vld [vmem:[%s1866 + $0x38] sm:$0xf]
      %v1882 = vld [vmem:[%s1866 + $0x3c] sm:$0xf]
      %v1884 = vunpack.c.l.b16 %v1865
      %v1885 = vpack.c.b16 %v1447, %v1884
      %v1886 = vrot.slane %v1885, 1
      %v1904 = vunpack.c.l.b16 %v1867
      %v1905 = vunpack.c.l.b16 %v1868
      %v1906 = vunpack.c.l.b16 %v1869
      %v1907 = vunpack.c.l.b16 %v1870
      %v1908 = vunpack.c.l.b16 %v1871
      %v1909 = vunpack.c.l.b16 %v1872
      %v1910 = vunpack.c.l.b16 %v1873
      %v1911 = vunpack.c.l.b16 %v1874
      %v1912 = vunpack.c.l.b16 %v1875
      %v1913 = vunpack.c.l.b16 %v1876
      %v1914 = vunpack.c.l.b16 %v1877
      %v1915 = vunpack.c.l.b16 %v1878
      %v1916 = vunpack.c.l.b16 %v1879
      %v1917 = vunpack.c.l.b16 %v1880
      %v1918 = vunpack.c.l.b16 %v1881
      %v1919 = vunpack.c.l.b16 %v1882
      %v1920 = vpack.c.b16 %v1905, %v1904
      %v1921 = vpack.c.b16 %v1907, %v1906
      %v1922 = vpack.c.b16 %v1909, %v1908
      %v1923 = vpack.c.b16 %v1911, %v1910
      %v1924 = vpack.c.b16 %v1913, %v1912
      %v1925 = vpack.c.b16 %v1915, %v1914
      %v1926 = vpack.c.b16 %v1917, %v1916
      %v1927 = vpack.c.b16 %v1919, %v1918
      %1936 = vmatprep.subr.bf16.mxu0 0
      %1937 = vmatpush1.bf16.msra.mxu0 %v1927
      %1938 = vmatprep.subr.bf16.mxu0 0
      %1939 = vmatpush1.bf16.msra.mxu0 %v1926
      %1940 = vmatprep.subr.bf16.mxu0 0
      %1941 = vmatpush1.bf16.msra.mxu0 %v1925
      %1942 = vmatprep.subr.bf16.mxu0 0
      %1943 = vmatpush1.bf16.msra.mxu0 %v1924
      %1944 = vmatprep.subr.bf16.mxu0 0
      %1945 = vmatpush1.bf16.msra.mxu0 %v1923
      %1946 = vmatprep.subr.bf16.mxu0 0
      %1947 = vmatpush1.bf16.msra.mxu0 %v1922
      %1948 = vmatprep.subr.bf16.mxu0 0
      %1949 = vmatpush1.bf16.msra.mxu0 %v1921
      %1950 = vmatprep.subr.bf16.mxu0 0
      %1951 = vmatpush1.bf16.msra.mxu0 %v1920
      %1952 = vmatprep.subr.bf16.mxu0 0
      %1953 = vmatpush2.bf16.msra.mxu0 0
      %1954 = vmatprep.subr.bf16.mxu0 0
      %1955 = vmatpush2.bf16.msra.mxu0 0
      %1956 = vmatprep.subr.bf16.mxu0 0
      %1957 = vmatpush2.bf16.msra.mxu0 0
      %1958 = vmatprep.subr.bf16.mxu0 0
      %1959 = vmatpush2.bf16.msra.mxu0 0
      %1960 = vmatprep.subr.bf16.mxu0 0
      %1961 = vmatpush2.bf16.msra.mxu0 0
      %1962 = vmatprep.subr.bf16.mxu0 0
      %1963 = vmatpush2.bf16.msra.mxu0 0
      %1964 = vmatprep.subr.bf16.mxu0 0
      %1965 = vmatpush2.bf16.msra.mxu0 0
      %1966 = vmatprep.subr.bf16.mxu0 0
      %1967 = vmatpush2.bf16.msra.mxu0 0
      %1968 = vmatprep.mubr.bf16.mxu0 0
      %1969 = vmatmul.mubr.bf16.gmra.mxu0 %v1886
      %v1970 = vpop.f32.mrf.mxu0
      %v1971 = vadd.f32 0.0, %v1970
      %v1972 = vpop.f32.mrf.mxu0
      %v1973 = vpop.f32.mrf.mxu0
      %v1974 = vpop.f32.mrf.mxu0
      %1975 = vdwg.mxu0
      %v1976 = vadd.f32 %v1864, %v1971
      %v1977 = vmul.f32 %v1976, %v661
      %v1978 = vadd.f32 %v1977, %v668
      %v1979 = vmax.f32 %v1548, %v1978
      %v1980 = vmax.f32 %v1979, 0.0
      %v1981 = vpack.c.bf16 %v1980, %v1980
      %1982 = vst [vmem:[%s195] sm:$0xf] %v1981
      %p1983 = scmp.lt.s32.totalorder %s15, 1
      %s1984 = scalar_select %p1983, %s15, 1
      %s1985 = smul.addr %s1984, 4
      %s1986 = scalar_lea.vmem %s4, %s1985
      // Predicated region
      $region37: #{_forward_impl.6} parent=35 // pred_check
        %p1987 = pneg %p122
      $region38: #{_forward_impl.6} parent=35 // pred_check_branch
        %1989 = sbr.rel (%p1987) target = $region40
      $region39: #{_forward_impl.6} parent=35 // pred_region
        _
      $region40: #{_forward_impl.6} parent=35 // pred_fallthru
        _
    $region36: #{_forward_impl.6} parent=5 // pred_fallthru
      _
    %p1990 = scmp.le.s32.totalorder 2, %s10
    // Predicated region
    $region41: #{_forward_impl.6} parent=5 // pred_check
      %p1991 = pneg %p1990
    $region42: #{_forward_impl.6} parent=5 // pred_check_branch
      %1993 = sbr.rel (%p1991) target = $region44
    $region43: #{_forward_impl.6} parent=5 // pred_region
      %s1994 = ssub.s32 %s10, 2
      // Predicated region
      $region45: #{_forward_impl.6} parent=43 // pred_check
        %p1995 = pneg %p128
      $region46: #{_forward_impl.6} parent=43 // pred_check_branch
        %1997 = sbr.rel (%p1995) target = $region48
      $region47: #{_forward_impl.6} parent=43 // pred_region
        %p1998 = scmp.lt.s32.totalorder %s16, 1
        %s1999 = scalar_select %p1998, %s16, 1
        %s2000 = smul.addr %s1999, 4
        %s2001 = scalar_lea.vmem %s4, %s2000
      $region48: #{_forward_impl.6} parent=43 // pred_fallthru
        _
    $region44: #{_forward_impl.6} parent=5 // pred_fallthru
      _
  $region6: #{_forward_impl.6} parent=0 // loop_footer
    %s14 = sadd.s32 1, %s10
  $region7: #{_forward_impl.6} parent=0 // loop_footer_branch
    %9 = sbr.rel target = $region3
  $region8: #{_forward_impl.6} parent=0 // loop_exit
    _

// kernel: _forward_impl.7
$region0: #{_forward_impl.7}
  #allocation0 [shape = 'u32[]', space=smem, size = 0x4, offset = 0x4, fixed_abs, tag = 'smem constant byte address 0x4 - core index']
  #allocation1 [shape = 'u32[144,128]{1,0:T(1,128)}', space=vmem, size = 0x12000, scoped, tag = 'internal scratch']
  %s0 = inlined_call_operand.vmem [shape: bf16[2,16,128], index: 0, kind: input, shape index: {}]
  %s1 = inlined_call_operand.vmem [shape: bf16[16,128,128], index: 1, kind: input, shape index: {}]
  %s2 = inlined_call_operand.vmem [shape: f32[1,128], index: 2, kind: input, shape index: {}]
  %s3 = inlined_call_operand.vmem [shape: f32[1,128], index: 3, kind: input, shape index: {}]
  %s4 = inlined_call_operand.vmem [shape: f32[2,3,128], index: 4, kind: output, shape index: {}]
  %s5 = sld [smem:[#allocation0]]
  $region49: #{_forward_impl.7} parent=0
    _
  %s7 = ssub.s32 1, %s5
  %s8 = scalar_select 0, %s7, %s5
  loop: start=0, step=1, limit=4
  $region2: #{_forward_impl.7} parent=0 // loop_pre_header
    _
  $region3: #{_forward_impl.7} parent=0 // loop_header
    %s10 = sphi 0, %s14
    %p11 = scmp.ge.s32.totalorder %s10, 4
    %s20 = sphi 0, %s22
    %s23 = sphi 0, %s20
    %s24 = sphi 0, %s23
    %s40 = sphi 0, %s24
    %s44 = sphi 0, %s44
    %s46 = sphi 0, %s44
    %s47 = sphi 0, %s46
    %s61 = sphi 0, %s47
    %s65 = sphi 0, %s65
    %s67 = sphi 0, %s65
    %s68 = sphi 0, %s67
    %s82 = sphi 0, %s68
    %s86 = sphi 0, %s86
    %s88 = sphi 0, %s86
    %s89 = sphi 0, %s88
    %s103 = sphi 0, %s89
    %s109 = sphi 0, %s111
    %s112 = sphi 0, %s109
    %s113 = sphi 0, %s112
    %s129 = sphi 0, %s113
  $region4: #{_forward_impl.7} parent=0 // loop_header_branch
    %13 = sbr.rel (%p11) target = $region8
  $region5: #{_forward_impl.7} parent=0 // loop_body
    %s15 = ssub.s32 %s10, 1
    %s16 = ssub.s32 %s10, 2
    %s17 = sadd.s32 %s10, 1
    %s18 = ssub.s32 %s10, %s17
    %p19 = scmp.eq.s32.totalorder %s18, 0
    %s21 = sadd.s32 %s20, 1
    %s22 = scalar_select %p19, %s20, %s21
    %p25 = pneg %p19
    %p26 = scmp.eq.s32.totalorder %s10, 1
    %p27 = por %p25, %p26
    %p28 = scmp.ne.s32.totalorder %s20, %s23
    %p29 = scmp.eq.s32.totalorder %s10, 0
    %p30 = por %p28, %p29
    %p31 = scmp.ne.s32.totalorder %s20, %s23
    %p32 = scmp.eq.s32.totalorder %s15, 1
    %p33 = por %p31, %p32
    %p34 = scmp.ne.s32.totalorder %s23, %s24
    %p35 = scmp.eq.s32.totalorder %s15, 0
    %p36 = por %p34, %p35
    %p37 = scmp.ne.s32.totalorder %s23, %s24
    %p38 = scmp.eq.s32.totalorder %s16, 1
    %p39 = por %p37, %p38
    %p41 = scmp.ne.s32.totalorder %s24, %s40
    %p42 = scmp.eq.s32.totalorder %s16, 0
    %p43 = por %p41, %p42
    %s45 = sadd.s32 %s44, 1
    %p48 = scmp.eq.s32.totalorder %s10, 1
    %p49 = scmp.ne.s32.totalorder %s44, %s46
    %p50 = scmp.eq.s32.totalorder %s10, 0
    %p51 = por %p49, %p50
    %p52 = scmp.ne.s32.totalorder %s44, %s46
    %p53 = scmp.eq.s32.totalorder %s15, 1
    %p54 = por %p52, %p53
    %p55 = scmp.ne.s32.totalorder %s46, %s47
    %p56 = scmp.eq.s32.totalorder %s15, 0
    %p57 = por %p55, %p56
    %p58 = scmp.ne.s32.totalorder %s46, %s47
    %p59 = scmp.eq.s32.totalorder %s16, 1
    %p60 = por %p58, %p59
    %p62 = scmp.ne.s32.totalorder %s47, %s61
    %p63 = scmp.eq.s32.totalorder %s16, 0
    %p64 = por %p62, %p63
    %s66 = sadd.s32 %s65, 1
    %p69 = scmp.eq.s32.totalorder %s10, 1
    %p70 = scmp.ne.s32.totalorder %s65, %s67
    %p71 = scmp.eq.s32.totalorder %s10, 0
    %p72 = por %p70, %p71
    %p73 = scmp.ne.s32.totalorder %s65, %s67
    %p74 = scmp.eq.s32.totalorder %s15, 1
    %p75 = por %p73, %p74
    %p76 = scmp.ne.s32.totalorder %s67, %s68
    %p77 = scmp.eq.s32.totalorder %s15, 0
    %p78 = por %p76, %p77
    %p79 = scmp.ne.s32.totalorder %s67, %s68
    %p80 = scmp.eq.s32.totalorder %s16, 1
    %p81 = por %p79, %p80
    %p83 = scmp.ne.s32.totalorder %s68, %s82
    %p84 = scmp.eq.s32.totalorder %s16, 0
    %p85 = por %p83, %p84
    %s87 = sadd.s32 %s86, 1
    %p90 = scmp.eq.s32.totalorder %s10, 1
    %p91 = scmp.ne.s32.totalorder %s86, %s88
    %p92 = scmp.eq.s32.totalorder %s10, 0
    %p93 = por %p91, %p92
    %p94 = scmp.ne.s32.totalorder %s86, %s88
    %p95 = scmp.eq.s32.totalorder %s15, 1
    %p96 = por %p94, %p95
    %p97 = scmp.ne.s32.totalorder %s88, %s89
    %p98 = scmp.eq.s32.totalorder %s15, 0
    %p99 = por %p97, %p98
    %p100 = scmp.ne.s32.totalorder %s88, %s89
    %p101 = scmp.eq.s32.totalorder %s16, 1
    %p102 = por %p100, %p101
    %p104 = scmp.ne.s32.totalorder %s89, %s103
    %p105 = scmp.eq.s32.totalorder %s16, 0
    %p106 = por %p104, %p105
    %s107 = ssub.s32 %s10, %s17
    %p108 = scmp.eq.s32.totalorder %s107, 0
    %s110 = sadd.s32 %s109, 1
    %s111 = scalar_select %p108, %s109, %s110
    %p114 = pneg %p108
    %p115 = scmp.eq.s32.totalorder %s10, 1
    %p116 = por %p114, %p115
    %p117 = scmp.ne.s32.totalorder %s109, %s112
    %p118 = scmp.eq.s32.totalorder %s10, 0
    %p119 = por %p117, %p118
    %p120 = scmp.ne.s32.totalorder %s109, %s112
    %p121 = scmp.eq.s32.totalorder %s15, 1
    %p122 = por %p120, %p121
    %p123 = scmp.ne.s32.totalorder %s112, %s113
    %p124 = scmp.eq.s32.totalorder %s15, 0
    %p125 = por %p123, %p124
    %p126 = scmp.ne.s32.totalorder %s112, %s113
    %p127 = scmp.eq.s32.totalorder %s16, 1
    %p128 = por %p126, %p127
    %p130 = scmp.ne.s32.totalorder %s113, %s129
    %p131 = scmp.eq.s32.totalorder %s16, 0
    %p132 = por %p130, %p131
    %p133 = scmp.le.s32.totalorder 1, %s10
    %p134 = scmp.lt.s32.totalorder %s10, 3
    %p135 = pnand %p133, %p134
    %p136 = pneg %p135
    // Predicated region
    $region9: #{_forward_impl.7} parent=5 // pred_check
      _
    $region10: #{_forward_impl.7} parent=5 // pred_check_branch
      %138 = sbr.rel (%p135) target = $region12
    $region11: #{_forward_impl.7} parent=5 // pred_region
      %s139 = ssub.s32 %s10, 1
      // Predicated region
      $region13: #{_forward_impl.7} parent=11 // pred_check
        %p140 = pneg %p57
      $region14: #{_forward_impl.7} parent=11 // pred_check_branch
        %142 = sbr.rel (%p140) target = $region16
      $region15: #{_forward_impl.7} parent=11 // pred_region
        _
      $region16: #{_forward_impl.7} parent=11 // pred_fallthru
        _
      // Predicated region
      $region17: #{_forward_impl.7} parent=11 // pred_check
        %p143 = pneg %p78
      $region18: #{_forward_impl.7} parent=11 // pred_check_branch
        %145 = sbr.rel (%p143) target = $region20
      $region19: #{_forward_impl.7} parent=11 // pred_region
        _
      $region20: #{_forward_impl.7} parent=11 // pred_fallthru
        _
      // Predicated region
      $region21: #{_forward_impl.7} parent=11 // pred_check
        %p146 = pneg %p99
      $region22: #{_forward_impl.7} parent=11 // pred_check_branch
        %148 = sbr.rel (%p146) target = $region24
      $region23: #{_forward_impl.7} parent=11 // pred_region
        _
      $region24: #{_forward_impl.7} parent=11 // pred_fallthru
        _
    $region12: #{_forward_impl.7} parent=5 // pred_fallthru
      _
    %p149 = scmp.lt.s32.totalorder %s10, 2
    // Predicated region
    $region25: #{_forward_impl.7} parent=5 // pred_check
      %p150 = pneg %p149
    $region26: #{_forward_impl.7} parent=5 // pred_check_branch
      %152 = sbr.rel (%p150) target = $region28
    $region27: #{_forward_impl.7} parent=5 // pred_region
      // Predicated region
      $region29: #{_forward_impl.7} parent=27 // pred_check
        %p153 = pneg %p30
      $region30: #{_forward_impl.7} parent=27 // pred_check_branch
        %155 = sbr.rel (%p153) target = $region32
      $region31: #{_forward_impl.7} parent=27 // pred_region
        %p156 = scmp.lt.s32.totalorder %s10, 1
        %s157 = scalar_select %p156, %s10, 1
        %s158 = smul.addr %s157, 2
        %s159 = smul.addr %s158, 4
        %s160 = scalar_lea.vmem %s0, %s159
      $region32: #{_forward_impl.7} parent=27 // pred_fallthru
        _
    $region28: #{_forward_impl.7} parent=5 // pred_fallthru
      _
    %p161 = scmp.le.s32.totalorder 1, %s10
    %p162 = scmp.lt.s32.totalorder %s10, 3
    %p163 = pnand %p161, %p162
    %p164 = pneg %p163
    // Predicated region
    $region33: #{_forward_impl.7} parent=5 // pred_check
      _
    $region34: #{_forward_impl.7} parent=5 // pred_check_branch
      %166 = sbr.rel (%p163) target = $region36
    $region35: #{_forward_impl.7} parent=5 // pred_region
      %s167 = ssub.s32 %s10, 1
      %p168 = scmp.lt.s32.totalorder %s15, 1
      %s169 = scalar_select %p168, %s15, 1
      %s170 = smul.addr %s169, 2
      %s171 = smul.addr %s170, 4
      %s172 = scalar_lea.vmem %s0, %s171
      %p173 = pneg %p36
      %p174 = pneg %p33
      %p175 = pneg %p57
      %p176 = pneg %p54
      %p177 = pneg %p78
      %p178 = pneg %p75
      %p179 = pneg %p99
      %p180 = pneg %p96
      %p181 = pneg %p125
      %p182 = pneg %p122
      %p183 = scmp.lt.s32.totalorder %s15, 1
      %s184 = scalar_select %p183, %s15, 1
      %s185 = smul.addr %s184, 4
      %s186 = scalar_lea.vmem %s4, %s185
      %p187 = scmp.lt.s32.totalorder %s15, 1
      %s188 = scalar_select %p187, %s15, 1
      %s189 = smul.addr %s188, 2
      %s190 = smul.addr %s189, 4
      %s191 = scalar_lea.vmem %s0, %s190
      %p192 = scmp.lt.s32.totalorder %s15, 1
      %s193 = scalar_select %p192, %s15, 1
      %s194 = smul.addr %s193, 4
      %s195 = scalar_lea.vmem %s4, %s194
      %v197 = vld [vmem:[%s2] sm:$0x1]
      %v198 = vld [vmem:[%s3] sm:$0x1]
      %v199 = vld [vmem:[%s191] sm:$0x3]
      %v200 = vld [vmem:[%s1] sm:$0xf]
      %v201 = vld [vmem:[%s1 + $0x4] sm:$0xf]
      %v202 = vld [vmem:[%s1 + $0x8] sm:$0xf]
      %v203 = vld [vmem:[%s1 + $0xc] sm:$0xf]
      %v204 = vld [vmem:[%s1 + $0x10] sm:$0xf]
      %v205 = vld [vmem:[%s1 + $0x14] sm:$0xf]
      %v206 = vld [vmem:[%s1 + $0x18] sm:$0xf]
      %v207 = vld [vmem:[%s1 + $0x1c] sm:$0xf]
      %v208 = vld [vmem:[%s1 + $0x20] sm:$0xf]
      %v209 = vld [vmem:[%s1 + $0x24] sm:$0xf]
      %v210 = vld [vmem:[%s1 + $0x28] sm:$0xf]
      %v211 = vld [vmem:[%s1 + $0x2c] sm:$0xf]
      %v212 = vld [vmem:[%s1 + $0x30] sm:$0xf]
      %v213 = vld [vmem:[%s1 + $0x34] sm:$0xf]
      %v214 = vld [vmem:[%s1 + $0x38] sm:$0xf]
      %v215 = vld [vmem:[%s1 + $0x3c] sm:$0xf]
      %s216 = scalar_lea.vmem %s1, 64
      %v217 = vld [vmem:[%s216] sm:$0xf]
      %v218 = vld [vmem:[%s216 + $0x4] sm:$0xf]
      %v219 = vld [vmem:[%s216 + $0x8] sm:$0xf]
      %v220 = vld [vmem:[%s216 + $0xc] sm:$0xf]
      %v221 = vld [vmem:[%s216 + $0x10] sm:$0xf]
      %v222 = vld [vmem:[%s216 + $0x14] sm:$0xf]
      %v223 = vld [vmem:[%s216 + $0x18] sm:$0xf]
      %v224 = vld [vmem:[%s216 + $0x1c] sm:$0xf]
      %v225 = vld [vmem:[%s216 + $0x20] sm:$0xf]
      %v226 = vld [vmem:[%s216 + $0x24] sm:$0xf]
      %v227 = vld [vmem:[%s216 + $0x28] sm:$0xf]
      %v228 = vld [vmem:[%s216 + $0x2c] sm:$0xf]
      %v229 = vld [vmem:[%s216 + $0x30] sm:$0xf]
      %v230 = vld [vmem:[%s216 + $0x34] sm:$0xf]
      %v231 = vld [vmem:[%s216 + $0x38] sm:$0xf]
      %v232 = vld [vmem:[%s216 + $0x3c] sm:$0xf]
      %v234 = vunpack.c.l.b16 %v199
      %v235 = vpack.c.b16 %v234, %v234
      %v237 = vshrl.u32 %v235, 16
      %v239 = vshll.u32 %v235, 16
      %v241 = vrot.slane %v239, 1
      %v242 = vor.u32 %v237, %v241
      %v260 = vunpack.c.l.b16 %v217
      %v261 = vunpack.c.l.b16 %v218
      %v262 = vunpack.c.l.b16 %v219
      %v263 = vunpack.c.l.b16 %v220
      %v264 = vunpack.c.l.b16 %v221
      %v265 = vunpack.c.l.b16 %v222
      %v266 = vunpack.c.l.b16 %v223
      %v267 = vunpack.c.l.b16 %v224
      %v268 = vunpack.c.l.b16 %v225
      %v269 = vunpack.c.l.b16 %v226
      %v270 = vunpack.c.l.b16 %v227
      %v271 = vunpack.c.l.b16 %v228
      %v272 = vunpack.c.l.b16 %v229
      %v273 = vunpack.c.l.b16 %v230
      %v274 = vunpack.c.l.b16 %v231
      %v275 = vunpack.c.l.b16 %v232
      %v276 = vpack.c.b16 %v261, %v260
      %v277 = vpack.c.b16 %v263, %v262
      %v278 = vpack.c.b16 %v265, %v264
      %v279 = vpack.c.b16 %v267, %v266
      %v280 = vpack.c.b16 %v269, %v268
      %v281 = vpack.c.b16 %v271, %v270
      %v282 = vpack.c.b16 %v273, %v272
      %v283 = vpack.c.b16 %v275, %v274
      %292 = vmatprep.subr.bf16.mxu0 0
      %293 = vmatpush1.bf16.msra.mxu0 %v283
      %294 = vmatprep.subr.bf16.mxu0 0
      %295 = vmatpush1.bf16.msra.mxu0 %v282
      %296 = vmatprep.subr.bf16.mxu0 0
      %297 = vmatpush1.bf16.msra.mxu0 %v281
      %298 = vmatprep.subr.bf16.mxu0 0
      %299 = vmatpush1.bf16.msra.mxu0 %v280
      %300 = vmatprep.subr.bf16.mxu0 0
      %301 = vmatpush1.bf16.msra.mxu0 %v279
      %302 = vmatprep.subr.bf16.mxu0 0
      %303 = vmatpush1.bf16.msra.mxu0 %v278
      %304 = vmatprep.subr.bf16.mxu0 0
      %305 = vmatpush1.bf16.msra.mxu0 %v277
      %306 = vmatprep.subr.bf16.mxu0 0
      %307 = vmatpush1.bf16.msra.mxu0 %v276
      %308 = vmatprep.subr.bf16.mxu0 0
      %309 = vmatpush2.bf16.msra.mxu0 0
      %310 = vmatprep.subr.bf16.mxu0 0
      %311 = vmatpush2.bf16.msra.mxu0 0
      %312 = vmatprep.subr.bf16.mxu0 0
      %313 = vmatpush2.bf16.msra.mxu0 0
      %314 = vmatprep.subr.bf16.mxu0 0
      %315 = vmatpush2.bf16.msra.mxu0 0
      %316 = vmatprep.subr.bf16.mxu0 0
      %317 = vmatpush2.bf16.msra.mxu0 0
      %318 = vmatprep.subr.bf16.mxu0 0
      %319 = vmatpush2.bf16.msra.mxu0 0
      %320 = vmatprep.subr.bf16.mxu0 0
      %321 = vmatpush2.bf16.msra.mxu0 0
      %322 = vmatprep.subr.bf16.mxu0 0
      %323 = vmatpush2.bf16.msra.mxu0 0
      %324 = vmatprep.mubr.bf16.mxu0 0
      %325 = vmatmul.mubr.bf16.gmra.mxu0 %v242
      %v326 = vpop.f32.mrf.mxu0
      %v327 = vadd.f32 0.0, %v326
      %v328 = vpop.f32.mrf.mxu0
      %v329 = vpop.f32.mrf.mxu0
      %v330 = vpop.f32.mrf.mxu0
      %331 = vdwg.mxu0
      %v348 = vunpack.c.l.b16 %v200
      %v349 = vunpack.c.l.b16 %v201
      %v350 = vunpack.c.l.b16 %v202
      %v351 = vunpack.c.l.b16 %v203
      %v352 = vunpack.c.l.b16 %v204
      %v353 = vunpack.c.l.b16 %v205
      %v354 = vunpack.c.l.b16 %v206
      %v355 = vunpack.c.l.b16 %v207
      %v356 = vunpack.c.l.b16 %v208
      %v357 = vunpack.c.l.b16 %v209
      %v358 = vunpack.c.l.b16 %v210
      %v359 = vunpack.c.l.b16 %v211
      %v360 = vunpack.c.l.b16 %v212
      %v361 = vunpack.c.l.b16 %v213
      %v362 = vunpack.c.l.b16 %v214
      %v363 = vunpack.c.l.b16 %v215
      %v364 = vpack.c.b16 %v349, %v348
      %v365 = vpack.c.b16 %v351, %v350
      %v366 = vpack.c.b16 %v353, %v352
      %v367 = vpack.c.b16 %v355, %v354
      %v368 = vpack.c.b16 %v357, %v356
      %v369 = vpack.c.b16 %v359, %v358
      %v370 = vpack.c.b16 %v361, %v360
      %v371 = vpack.c.b16 %v363, %v362
      %380 = vmatprep.subr.bf16.mxu0 0
      %381 = vmatpush1.bf16.msra.mxu0 %v371
      %382 = vmatprep.subr.bf16.mxu0 0
      %383 = vmatpush1.bf16.msra.mxu0 %v370
      %384 = vmatprep.subr.bf16.mxu0 0
      %385 = vmatpush1.bf16.msra.mxu0 %v369
      %386 = vmatprep.subr.bf16.mxu0 0
      %387 = vmatpush1.bf16.msra.mxu0 %v368
      %388 = vmatprep.subr.bf16.mxu0 0
      %389 = vmatpush1.bf16.msra.mxu0 %v367
      %390 = vmatprep.subr.bf16.mxu0 0
      %391 = vmatpush1.bf16.msra.mxu0 %v366
      %392 = vmatprep.subr.bf16.mxu0 0
      %393 = vmatpush1.bf16.msra.mxu0 %v365
      %394 = vmatprep.subr.bf16.mxu0 0
      %395 = vmatpush1.bf16.msra.mxu0 %v364
      %396 = vmatprep.subr.bf16.mxu0 0
      %397 = vmatpush2.bf16.msra.mxu0 0
      %398 = vmatprep.subr.bf16.mxu0 0
      %399 = vmatpush2.bf16.msra.mxu0 0
      %400 = vmatprep.subr.bf16.mxu0 0
      %401 = vmatpush2.bf16.msra.mxu0 0
      %402 = vmatprep.subr.bf16.mxu0 0
      %403 = vmatpush2.bf16.msra.mxu0 0
      %404 = vmatprep.subr.bf16.mxu0 0
      %405 = vmatpush2.bf16.msra.mxu0 0
      %406 = vmatprep.subr.bf16.mxu0 0
      %407 = vmatpush2.bf16.msra.mxu0 0
      %408 = vmatprep.subr.bf16.mxu0 0
      %409 = vmatpush2.bf16.msra.mxu0 0
      %410 = vmatprep.subr.bf16.mxu0 0
      %411 = vmatpush2.bf16.msra.mxu0 0
      %412 = vmatprep.mubr.bf16.mxu0 0
      %413 = vmatmul.mubr.bf16.gmra.mxu0 %v199
      %v414 = vpop.f32.mrf.mxu0
      %v415 = vadd.f32 %v327, %v414
      %v416 = vpop.f32.mrf.mxu0
      %v417 = vpop.f32.mrf.mxu0
      %v418 = vpop.f32.mrf.mxu0
      %419 = vdwg.mxu0
      %v420 = vld [vmem:[%s191] sm:$0x6]
      %s421 = scalar_lea.vmem %s1, 128
      %v422 = vld [vmem:[%s421] sm:$0xf]
      %v423 = vld [vmem:[%s421 + $0x4] sm:$0xf]
      %v424 = vld [vmem:[%s421 + $0x8] sm:$0xf]
      %v425 = vld [vmem:[%s421 + $0xc] sm:$0xf]
      %v426 = vld [vmem:[%s421 + $0x10] sm:$0xf]
      %v427 = vld [vmem:[%s421 + $0x14] sm:$0xf]
      %v428 = vld [vmem:[%s421 + $0x18] sm:$0xf]
      %v429 = vld [vmem:[%s421 + $0x1c] sm:$0xf]
      %v430 = vld [vmem:[%s421 + $0x20] sm:$0xf]
      %v431 = vld [vmem:[%s421 + $0x24] sm:$0xf]
      %v432 = vld [vmem:[%s421 + $0x28] sm:$0xf]
      %v433 = vld [vmem:[%s421 + $0x2c] sm:$0xf]
      %v434 = vld [vmem:[%s421 + $0x30] sm:$0xf]
      %v435 = vld [vmem:[%s421 + $0x34] sm:$0xf]
      %v436 = vld [vmem:[%s421 + $0x38] sm:$0xf]
      %v437 = vld [vmem:[%s421 + $0x3c] sm:$0xf]
      %v439 = vunpack.c.l.b16 %v420
      %v440 = vpack.c.b16 %v439, %v439
      %v442 = vshrl.u32 %v440, 16
      %v444 = vrot.slane %v442, 1
      %v445 = vshll.u32 %v440, 16
      %v447 = vrot.slane %v445, 2
      %v448 = vor.u32 %v444, %v447
      %v466 = vunpack.c.l.b16 %v422
      %v467 = vunpack.c.l.b16 %v423
      %v468 = vunpack.c.l.b16 %v424
      %v469 = vunpack.c.l.b16 %v425
      %v470 = vunpack.c.l.b16 %v426
      %v471 = vunpack.c.l.b16 %v427
      %v472 = vunpack.c.l.b16 %v428
      %v473 = vunpack.c.l.b16 %v429
      %v474 = vunpack.c.l.b16 %v430
      %v475 = vunpack.c.l.b16 %v431
      %v476 = vunpack.c.l.b16 %v432
      %v477 = vunpack.c.l.b16 %v433
      %v478 = vunpack.c.l.b16 %v434
      %v479 = vunpack.c.l.b16 %v435
      %v480 = vunpack.c.l.b16 %v436
      %v481 = vunpack.c.l.b16 %v437
      %v482 = vpack.c.b16 %v467, %v466
      %v483 = vpack.c.b16 %v469, %v468
      %v484 = vpack.c.b16 %v471, %v470
      %v485 = vpack.c.b16 %v473, %v472
      %v486 = vpack.c.b16 %v475, %v474
      %v487 = vpack.c.b16 %v477, %v476
      %v488 = vpack.c.b16 %v479, %v478
      %v489 = vpack.c.b16 %v481, %v480
      %498 = vmatprep.subr.bf16.mxu0 0
      %499 = vmatpush1.bf16.msra.mxu0 %v489
      %500 = vmatprep.subr.bf16.mxu0 0
      %501 = vmatpush1.bf16.msra.mxu0 %v488
      %502 = vmatprep.subr.bf16.mxu0 0
      %503 = vmatpush1.bf16.msra.mxu0 %v487
      %504 = vmatprep.subr.bf16.mxu0 0
      %505 = vmatpush1.bf16.msra.mxu0 %v486
      %506 = vmatprep.subr.bf16.mxu0 0
      %507 = vmatpush1.bf16.msra.mxu0 %v485
      %508 = vmatprep.subr.bf16.mxu0 0
      %509 = vmatpush1.bf16.msra.mxu0 %v484
      %510 = vmatprep.subr.bf16.mxu0 0
      %511 = vmatpush1.bf16.msra.mxu0 %v483
      %512 = vmatprep.subr.bf16.mxu0 0
      %513 = vmatpush1.bf16.msra.mxu0 %v482
      %514 = vmatprep.subr.bf16.mxu0 0
      %515 = vmatpush2.bf16.msra.mxu0 0
      %516 = vmatprep.subr.bf16.mxu0 0
      %517 = vmatpush2.bf16.msra.mxu0 0
      %518 = vmatprep.subr.bf16.mxu0 0
      %519 = vmatpush2.bf16.msra.mxu0 0
      %520 = vmatprep.subr.bf16.mxu0 0
      %521 = vmatpush2.bf16.msra.mxu0 0
      %522 = vmatprep.subr.bf16.mxu0 0
      %523 = vmatpush2.bf16.msra.mxu0 0
      %524 = vmatprep.subr.bf16.mxu0 0
      %525 = vmatpush2.bf16.msra.mxu0 0
      %526 = vmatprep.subr.bf16.mxu0 0
      %527 = vmatpush2.bf16.msra.mxu0 0
      %528 = vmatprep.subr.bf16.mxu0 0
      %529 = vmatpush2.bf16.msra.mxu0 0
      %530 = vmatprep.mubr.bf16.mxu0 0
      %531 = vmatmul.mubr.bf16.gmra.mxu0 %v448
      %v532 = vpop.f32.mrf.mxu0
      %v533 = vadd.f32 0.0, %v532
      %v534 = vpop.f32.mrf.mxu0
      %v535 = vpop.f32.mrf.mxu0
      %v536 = vpop.f32.mrf.mxu0
      %537 = vdwg.mxu0
      %v538 = vadd.f32 %v415, %v533
      %v539 = vld [vmem:[%s191] sm:$0xc]
      %s540 = scalar_lea.vmem %s1, 192
      %v541 = vld [vmem:[%s540] sm:$0xf]
      %v542 = vld [vmem:[%s540 + $0x4] sm:$0xf]
      %v543 = vld [vmem:[%s540 + $0x8] sm:$0xf]
      %v544 = vld [vmem:[%s540 + $0xc] sm:$0xf]
      %v545 = vld [vmem:[%s540 + $0x10] sm:$0xf]
      %v546 = vld [vmem:[%s540 + $0x14] sm:$0xf]
      %v547 = vld [vmem:[%s540 + $0x18] sm:$0xf]
      %v548 = vld [vmem:[%s540 + $0x1c] sm:$0xf]
      %v549 = vld [vmem:[%s540 + $0x20] sm:$0xf]
      %v550 = vld [vmem:[%s540 + $0x24] sm:$0xf]
      %v551 = vld [vmem:[%s540 + $0x28] sm:$0xf]
      %v552 = vld [vmem:[%s540 + $0x2c] sm:$0xf]
      %v553 = vld [vmem:[%s540 + $0x30] sm:$0xf]
      %v554 = vld [vmem:[%s540 + $0x34] sm:$0xf]
      %v555 = vld [vmem:[%s540 + $0x38] sm:$0xf]
      %v556 = vld [vmem:[%s540 + $0x3c] sm:$0xf]
      %v558 = vunpack.c.l.b16 %v539
      %v559 = vpack.c.b16 %v558, %v558
      %v560 = vrot.slane %v559, 2
      %v578 = vunpack.c.l.b16 %v541
      %v579 = vunpack.c.l.b16 %v542
      %v580 = vunpack.c.l.b16 %v543
      %v581 = vunpack.c.l.b16 %v544
      %v582 = vunpack.c.l.b16 %v545
      %v583 = vunpack.c.l.b16 %v546
      %v584 = vunpack.c.l.b16 %v547
      %v585 = vunpack.c.l.b16 %v548
      %v586 = vunpack.c.l.b16 %v549
      %v587 = vunpack.c.l.b16 %v550
      %v588 = vunpack.c.l.b16 %v551
      %v589 = vunpack.c.l.b16 %v552
      %v590 = vunpack.c.l.b16 %v553
      %v591 = vunpack.c.l.b16 %v554
      %v592 = vunpack.c.l.b16 %v555
      %v593 = vunpack.c.l.b16 %v556
      %v594 = vpack.c.b16 %v579, %v578
      %v595 = vpack.c.b16 %v581, %v580
      %v596 = vpack.c.b16 %v583, %v582
      %v597 = vpack.c.b16 %v585, %v584
      %v598 = vpack.c.b16 %v587, %v586
      %v599 = vpack.c.b16 %v589, %v588
      %v600 = vpack.c.b16 %v591, %v590
      %v601 = vpack.c.b16 %v593, %v592
      %610 = vmatprep.subr.bf16.mxu0 0
      %611 = vmatpush1.bf16.msra.mxu0 %v601
      %612 = vmatprep.subr.bf16.mxu0 0
      %613 = vmatpush1.bf16.msra.mxu0 %v600
      %614 = vmatprep.subr.bf16.mxu0 0
      %615 = vmatpush1.bf16.msra.mxu0 %v599
      %616 = vmatprep.subr.bf16.mxu0 0
      %617 = vmatpush1.bf16.msra.mxu0 %v598
      %618 = vmatprep.subr.bf16.mxu0 0
      %619 = vmatpush1.bf16.msra.mxu0 %v597
      %620 = vmatprep.subr.bf16.mxu0 0
      %621 = vmatpush1.bf16.msra.mxu0 %v596
      %622 = vmatprep.subr.bf16.mxu0 0
      %623 = vmatpush1.bf16.msra.mxu0 %v595
      %624 = vmatprep.subr.bf16.mxu0 0
      %625 = vmatpush1.bf16.msra.mxu0 %v594
      %626 = vmatprep.subr.bf16.mxu0 0
      %627 = vmatpush2.bf16.msra.mxu0 0
      %628 = vmatprep.subr.bf16.mxu0 0
      %629 = vmatpush2.bf16.msra.mxu0 0
      %630 = vmatprep.subr.bf16.mxu0 0
      %631 = vmatpush2.bf16.msra.mxu0 0
      %632 = vmatprep.subr.bf16.mxu0 0
      %633 = vmatpush2.bf16.msra.mxu0 0
      %634 = vmatprep.subr.bf16.mxu0 0
      %635 = vmatpush2.bf16.msra.mxu0 0
      %636 = vmatprep.subr.bf16.mxu0 0
      %637 = vmatpush2.bf16.msra.mxu0 0
      %638 = vmatprep.subr.bf16.mxu0 0
      %639 = vmatpush2.bf16.msra.mxu0 0
      %640 = vmatprep.subr.bf16.mxu0 0
      %641 = vmatpush2.bf16.msra.mxu0 0
      %642 = vmatprep.mubr.bf16.mxu0 0
      %643 = vmatmul.mubr.bf16.gmra.mxu0 %v560
      %v644 = vpop.f32.mrf.mxu0
      %v645 = vadd.f32 0.0, %v644
      %v646 = vpop.f32.mrf.mxu0
      %v647 = vpop.f32.mrf.mxu0
      %v648 = vpop.f32.mrf.mxu0
      %649 = vdwg.mxu0
      %v650 = vadd.f32 %v538, %v645
      %v652 = vlaneseq
      %v653 = vshrl.u32 %v652, 7
      %v654 = vsub.s32 0, %v653
      %v655 = vrot.slane %v197, %v654
      %v657 = vmul.f32 %v650, %v655
      %v659 = vlaneseq
      %v660 = vshrl.u32 %v659, 7
      %v661 = vsub.s32 0, %v660
      %v662 = vrot.slane %v198, %v661
      %v664 = vadd.f32 %v657, %v662
      %s665 = scalar_lea.vmem %s1, 256
      %v666 = vld [vmem:[%s665] sm:$0xf]
      %v667 = vld [vmem:[%s665 + $0x4] sm:$0xf]
      %v668 = vld [vmem:[%s665 + $0x8] sm:$0xf]
      %v669 = vld [vmem:[%s665 + $0xc] sm:$0xf]
      %v670 = vld [vmem:[%s665 + $0x10] sm:$0xf]
      %v671 = vld [vmem:[%s665 + $0x14] sm:$0xf]
      %v672 = vld [vmem:[%s665 + $0x18] sm:$0xf]
      %v673 = vld [vmem:[%s665 + $0x1c] sm:$0xf]
      %v674 = vld [vmem:[%s665 + $0x20] sm:$0xf]
      %v675 = vld [vmem:[%s665 + $0x24] sm:$0xf]
      %v676 = vld [vmem:[%s665 + $0x28] sm:$0xf]
      %v677 = vld [vmem:[%s665 + $0x2c] sm:$0xf]
      %v678 = vld [vmem:[%s665 + $0x30] sm:$0xf]
      %v679 = vld [vmem:[%s665 + $0x34] sm:$0xf]
      %v680 = vld [vmem:[%s665 + $0x38] sm:$0xf]
      %v681 = vld [vmem:[%s665 + $0x3c] sm:$0xf]
      %s682 = scalar_lea.vmem %s1, 320
      %v683 = vld [vmem:[%s682] sm:$0xf]
      %v684 = vld [vmem:[%s682 + $0x4] sm:$0xf]
      %v685 = vld [vmem:[%s682 + $0x8] sm:$0xf]
      %v686 = vld [vmem:[%s682 + $0xc] sm:$0xf]
      %v687 = vld [vmem:[%s682 + $0x10] sm:$0xf]
      %v688 = vld [vmem:[%s682 + $0x14] sm:$0xf]
      %v689 = vld [vmem:[%s682 + $0x18] sm:$0xf]
      %v690 = vld [vmem:[%s682 + $0x1c] sm:$0xf]
      %v691 = vld [vmem:[%s682 + $0x20] sm:$0xf]
      %v692 = vld [vmem:[%s682 + $0x24] sm:$0xf]
      %v693 = vld [vmem:[%s682 + $0x28] sm:$0xf]
      %v694 = vld [vmem:[%s682 + $0x2c] sm:$0xf]
      %v695 = vld [vmem:[%s682 + $0x30] sm:$0xf]
      %v696 = vld [vmem:[%s682 + $0x34] sm:$0xf]
      %v697 = vld [vmem:[%s682 + $0x38] sm:$0xf]
      %v698 = vld [vmem:[%s682 + $0x3c] sm:$0xf]
      %v699 = vrot.slane %v440, 1
      %v717 = vunpack.c.l.b16 %v683
      %v718 = vunpack.c.l.b16 %v684
      %v719 = vunpack.c.l.b16 %v685
      %v720 = vunpack.c.l.b16 %v686
      %v721 = vunpack.c.l.b16 %v687
      %v722 = vunpack.c.l.b16 %v688
      %v723 = vunpack.c.l.b16 %v689
      %v724 = vunpack.c.l.b16 %v690
      %v725 = vunpack.c.l.b16 %v691
      %v726 = vunpack.c.l.b16 %v692
      %v727 = vunpack.c.l.b16 %v693
      %v728 = vunpack.c.l.b16 %v694
      %v729 = vunpack.c.l.b16 %v695
      %v730 = vunpack.c.l.b16 %v696
      %v731 = vunpack.c.l.b16 %v697
      %v732 = vunpack.c.l.b16 %v698
      %v733 = vpack.c.b16 %v718, %v717
      %v734 = vpack.c.b16 %v720, %v719
      %v735 = vpack.c.b16 %v722, %v721
      %v736 = vpack.c.b16 %v724, %v723
      %v737 = vpack.c.b16 %v726, %v725
      %v738 = vpack.c.b16 %v728, %v727
      %v739 = vpack.c.b16 %v730, %v729
      %v740 = vpack.c.b16 %v732, %v731
      %749 = vmatprep.subr.bf16.mxu0 0
      %750 = vmatpush1.bf16.msra.mxu0 %v740
      %751 = vmatprep.subr.bf16.mxu0 0
      %752 = vmatpush1.bf16.msra.mxu0 %v739
      %753 = vmatprep.subr.bf16.mxu0 0
      %754 = vmatpush1.bf16.msra.mxu0 %v738
      %755 = vmatprep.subr.bf16.mxu0 0
      %756 = vmatpush1.bf16.msra.mxu0 %v737
      %757 = vmatprep.subr.bf16.mxu0 0
      %758 = vmatpush1.bf16.msra.mxu0 %v736
      %759 = vmatprep.subr.bf16.mxu0 0
      %760 = vmatpush1.bf16.msra.mxu0 %v735
      %761 = vmatprep.subr.bf16.mxu0 0
      %762 = vmatpush1.bf16.msra.mxu0 %v734
      %763 = vmatprep.subr.bf16.mxu0 0
      %764 = vmatpush1.bf16.msra.mxu0 %v733
      %765 = vmatprep.subr.bf16.mxu0 0
      %766 = vmatpush2.bf16.msra.mxu0 0
      %767 = vmatprep.subr.bf16.mxu0 0
      %768 = vmatpush2.bf16.msra.mxu0 0
      %769 = vmatprep.subr.bf16.mxu0 0
      %770 = vmatpush2.bf16.msra.mxu0 0
      %771 = vmatprep.subr.bf16.mxu0 0
      %772 = vmatpush2.bf16.msra.mxu0 0
      %773 = vmatprep.subr.bf16.mxu0 0
      %774 = vmatpush2.bf16.msra.mxu0 0
      %775 = vmatprep.subr.bf16.mxu0 0
      %776 = vmatpush2.bf16.msra.mxu0 0
      %777 = vmatprep.subr.bf16.mxu0 0
      %778 = vmatpush2.bf16.msra.mxu0 0
      %779 = vmatprep.subr.bf16.mxu0 0
      %780 = vmatpush2.bf16.msra.mxu0 0
      %781 = vmatprep.mubr.bf16.mxu0 0
      %782 = vmatmul.mubr.bf16.gmra.mxu0 %v699
      %v783 = vpop.f32.mrf.mxu0
      %v784 = vadd.f32 0.0, %v783
      %v785 = vpop.f32.mrf.mxu0
      %v786 = vpop.f32.mrf.mxu0
      %v787 = vpop.f32.mrf.mxu0
      %788 = vdwg.mxu0
      %v805 = vunpack.c.l.b16 %v666
      %v806 = vunpack.c.l.b16 %v667
      %v807 = vunpack.c.l.b16 %v668
      %v808 = vunpack.c.l.b16 %v669
      %v809 = vunpack.c.l.b16 %v670
      %v810 = vunpack.c.l.b16 %v671
      %v811 = vunpack.c.l.b16 %v672
      %v812 = vunpack.c.l.b16 %v673
      %v813 = vunpack.c.l.b16 %v674
      %v814 = vunpack.c.l.b16 %v675
      %v815 = vunpack.c.l.b16 %v676
      %v816 = vunpack.c.l.b16 %v677
      %v817 = vunpack.c.l.b16 %v678
      %v818 = vunpack.c.l.b16 %v679
      %v819 = vunpack.c.l.b16 %v680
      %v820 = vunpack.c.l.b16 %v681
      %v821 = vpack.c.b16 %v806, %v805
      %v822 = vpack.c.b16 %v808, %v807
      %v823 = vpack.c.b16 %v810, %v809
      %v824 = vpack.c.b16 %v812, %v811
      %v825 = vpack.c.b16 %v814, %v813
      %v826 = vpack.c.b16 %v816, %v815
      %v827 = vpack.c.b16 %v818, %v817
      %v828 = vpack.c.b16 %v820, %v819
      %837 = vmatprep.subr.bf16.mxu0 0
      %838 = vmatpush1.bf16.msra.mxu0 %v828
      %839 = vmatprep.subr.bf16.mxu0 0
      %840 = vmatpush1.bf16.msra.mxu0 %v827
      %841 = vmatprep.subr.bf16.mxu0 0
      %842 = vmatpush1.bf16.msra.mxu0 %v826
      %843 = vmatprep.subr.bf16.mxu0 0
      %844 = vmatpush1.bf16.msra.mxu0 %v825
      %845 = vmatprep.subr.bf16.mxu0 0
      %846 = vmatpush1.bf16.msra.mxu0 %v824
      %847 = vmatprep.subr.bf16.mxu0 0
      %848 = vmatpush1.bf16.msra.mxu0 %v823
      %849 = vmatprep.subr.bf16.mxu0 0
      %850 = vmatpush1.bf16.msra.mxu0 %v822
      %851 = vmatprep.subr.bf16.mxu0 0
      %852 = vmatpush1.bf16.msra.mxu0 %v821
      %853 = vmatprep.subr.bf16.mxu0 0
      %854 = vmatpush2.bf16.msra.mxu0 0
      %855 = vmatprep.subr.bf16.mxu0 0
      %856 = vmatpush2.bf16.msra.mxu0 0
      %857 = vmatprep.subr.bf16.mxu0 0
      %858 = vmatpush2.bf16.msra.mxu0 0
      %859 = vmatprep.subr.bf16.mxu0 0
      %860 = vmatpush2.bf16.msra.mxu0 0
      %861 = vmatprep.subr.bf16.mxu0 0
      %862 = vmatpush2.bf16.msra.mxu0 0
      %863 = vmatprep.subr.bf16.mxu0 0
      %864 = vmatpush2.bf16.msra.mxu0 0
      %865 = vmatprep.subr.bf16.mxu0 0
      %866 = vmatpush2.bf16.msra.mxu0 0
      %867 = vmatprep.subr.bf16.mxu0 0
      %868 = vmatpush2.bf16.msra.mxu0 0
      %869 = vmatprep.mubr.bf16.mxu0 0
      %870 = vmatmul.mubr.bf16.gmra.mxu0 %v242
      %v871 = vpop.f32.mrf.mxu0
      %v872 = vadd.f32 %v784, %v871
      %v873 = vpop.f32.mrf.mxu0
      %v874 = vpop.f32.mrf.mxu0
      %v875 = vpop.f32.mrf.mxu0
      %876 = vdwg.mxu0
      %s877 = scalar_lea.vmem %s1, 384
      %v878 = vld [vmem:[%s877] sm:$0xf]
      %v879 = vld [vmem:[%s877 + $0x4] sm:$0xf]
      %v880 = vld [vmem:[%s877 + $0x8] sm:$0xf]
      %v881 = vld [vmem:[%s877 + $0xc] sm:$0xf]
      %v882 = vld [vmem:[%s877 + $0x10] sm:$0xf]
      %v883 = vld [vmem:[%s877 + $0x14] sm:$0xf]
      %v884 = vld [vmem:[%s877 + $0x18] sm:$0xf]
      %v885 = vld [vmem:[%s877 + $0x1c] sm:$0xf]
      %v886 = vld [vmem:[%s877 + $0x20] sm:$0xf]
      %v887 = vld [vmem:[%s877 + $0x24] sm:$0xf]
      %v888 = vld [vmem:[%s877 + $0x28] sm:$0xf]
      %v889 = vld [vmem:[%s877 + $0x2c] sm:$0xf]
      %v890 = vld [vmem:[%s877 + $0x30] sm:$0xf]
      %v891 = vld [vmem:[%s877 + $0x34] sm:$0xf]
      %v892 = vld [vmem:[%s877 + $0x38] sm:$0xf]
      %v893 = vld [vmem:[%s877 + $0x3c] sm:$0xf]
      %v910 = vunpack.c.l.b16 %v878
      %v911 = vunpack.c.l.b16 %v879
      %v912 = vunpack.c.l.b16 %v880
      %v913 = vunpack.c.l.b16 %v881
      %v914 = vunpack.c.l.b16 %v882
      %v915 = vunpack.c.l.b16 %v883
      %v916 = vunpack.c.l.b16 %v884
      %v917 = vunpack.c.l.b16 %v885
      %v918 = vunpack.c.l.b16 %v886
      %v919 = vunpack.c.l.b16 %v887
      %v920 = vunpack.c.l.b16 %v888
      %v921 = vunpack.c.l.b16 %v889
      %v922 = vunpack.c.l.b16 %v890
      %v923 = vunpack.c.l.b16 %v891
      %v924 = vunpack.c.l.b16 %v892
      %v925 = vunpack.c.l.b16 %v893
      %v926 = vpack.c.b16 %v911, %v910
      %v927 = vpack.c.b16 %v913, %v912
      %v928 = vpack.c.b16 %v915, %v914
      %v929 = vpack.c.b16 %v917, %v916
      %v930 = vpack.c.b16 %v919, %v918
      %v931 = vpack.c.b16 %v921, %v920
      %v932 = vpack.c.b16 %v923, %v922
      %v933 = vpack.c.b16 %v925, %v924
      %942 = vmatprep.subr.bf16.mxu0 0
      %943 = vmatpush1.bf16.msra.mxu0 %v933
      %944 = vmatprep.subr.bf16.mxu0 0
      %945 = vmatpush1.bf16.msra.mxu0 %v932
      %946 = vmatprep.subr.bf16.mxu0 0
      %947 = vmatpush1.bf16.msra.mxu0 %v931
      %948 = vmatprep.subr.bf16.mxu0 0
      %949 = vmatpush1.bf16.msra.mxu0 %v930
      %950 = vmatprep.subr.bf16.mxu0 0
      %951 = vmatpush1.bf16.msra.mxu0 %v929
      %952 = vmatprep.subr.bf16.mxu0 0
      %953 = vmatpush1.bf16.msra.mxu0 %v928
      %954 = vmatprep.subr.bf16.mxu0 0
      %955 = vmatpush1.bf16.msra.mxu0 %v927
      %956 = vmatprep.subr.bf16.mxu0 0
      %957 = vmatpush1.bf16.msra.mxu0 %v926
      %958 = vmatprep.subr.bf16.mxu0 0
      %959 = vmatpush2.bf16.msra.mxu0 0
      %960 = vmatprep.subr.bf16.mxu0 0
      %961 = vmatpush2.bf16.msra.mxu0 0
      %962 = vmatprep.subr.bf16.mxu0 0
      %963 = vmatpush2.bf16.msra.mxu0 0
      %964 = vmatprep.subr.bf16.mxu0 0
      %965 = vmatpush2.bf16.msra.mxu0 0
      %966 = vmatprep.subr.bf16.mxu0 0
      %967 = vmatpush2.bf16.msra.mxu0 0
      %968 = vmatprep.subr.bf16.mxu0 0
      %969 = vmatpush2.bf16.msra.mxu0 0
      %970 = vmatprep.subr.bf16.mxu0 0
      %971 = vmatpush2.bf16.msra.mxu0 0
      %972 = vmatprep.subr.bf16.mxu0 0
      %973 = vmatpush2.bf16.msra.mxu0 0
      %974 = vmatprep.mubr.bf16.mxu0 0
      %975 = vmatmul.mubr.bf16.gmra.mxu0 %v560
      %v976 = vpop.f32.mrf.mxu0
      %v977 = vadd.f32 0.0, %v976
      %v978 = vpop.f32.mrf.mxu0
      %v979 = vpop.f32.mrf.mxu0
      %v980 = vpop.f32.mrf.mxu0
      %981 = vdwg.mxu0
      %v982 = vadd.f32 %v872, %v977
      %s983 = scalar_lea.vmem %s1, 448
      %v984 = vld [vmem:[%s983] sm:$0xf]
      %v985 = vld [vmem:[%s983 + $0x4] sm:$0xf]
      %v986 = vld [vmem:[%s983 + $0x8] sm:$0xf]
      %v987 = vld [vmem:[%s983 + $0xc] sm:$0xf]
      %v988 = vld [vmem:[%s983 + $0x10] sm:$0xf]
      %v989 = vld [vmem:[%s983 + $0x14] sm:$0xf]
      %v990 = vld [vmem:[%s983 + $0x18] sm:$0xf]
      %v991 = vld [vmem:[%s983 + $0x1c] sm:$0xf]
      %v992 = vld [vmem:[%s983 + $0x20] sm:$0xf]
      %v993 = vld [vmem:[%s983 + $0x24] sm:$0xf]
      %v994 = vld [vmem:[%s983 + $0x28] sm:$0xf]
      %v995 = vld [vmem:[%s983 + $0x2c] sm:$0xf]
      %v996 = vld [vmem:[%s983 + $0x30] sm:$0xf]
      %v997 = vld [vmem:[%s983 + $0x34] sm:$0xf]
      %v998 = vld [vmem:[%s983 + $0x38] sm:$0xf]
      %v999 = vld [vmem:[%s983 + $0x3c] sm:$0xf]
      %v1001 = vshrl.u32 %v559, 16
      %v1003 = vrot.slane %v1001, 2
      %v1004 = vshll.u32 %v559, 16
      %v1006 = vrot.slane %v1004, 3
      %v1007 = vor.u32 %v1003, %v1006
      %v1025 = vunpack.c.l.b16 %v984
      %v1026 = vunpack.c.l.b16 %v985
      %v1027 = vunpack.c.l.b16 %v986
      %v1028 = vunpack.c.l.b16 %v987
      %v1029 = vunpack.c.l.b16 %v988
      %v1030 = vunpack.c.l.b16 %v989
      %v1031 = vunpack.c.l.b16 %v990
      %v1032 = vunpack.c.l.b16 %v991
      %v1033 = vunpack.c.l.b16 %v992
      %v1034 = vunpack.c.l.b16 %v993
      %v1035 = vunpack.c.l.b16 %v994
      %v1036 = vunpack.c.l.b16 %v995
      %v1037 = vunpack.c.l.b16 %v996
      %v1038 = vunpack.c.l.b16 %v997
      %v1039 = vunpack.c.l.b16 %v998
      %v1040 = vunpack.c.l.b16 %v999
      %v1041 = vpack.c.b16 %v1026, %v1025
      %v1042 = vpack.c.b16 %v1028, %v1027
      %v1043 = vpack.c.b16 %v1030, %v1029
      %v1044 = vpack.c.b16 %v1032, %v1031
      %v1045 = vpack.c.b16 %v1034, %v1033
      %v1046 = vpack.c.b16 %v1036, %v1035
      %v1047 = vpack.c.b16 %v1038, %v1037
      %v1048 = vpack.c.b16 %v1040, %v1039
      %1057 = vmatprep.subr.bf16.mxu0 0
      %1058 = vmatpush1.bf16.msra.mxu0 %v1048
      %1059 = vmatprep.subr.bf16.mxu0 0
      %1060 = vmatpush1.bf16.msra.mxu0 %v1047
      %1061 = vmatprep.subr.bf16.mxu0 0
      %1062 = vmatpush1.bf16.msra.mxu0 %v1046
      %1063 = vmatprep.subr.bf16.mxu0 0
      %1064 = vmatpush1.bf16.msra.mxu0 %v1045
      %1065 = vmatprep.subr.bf16.mxu0 0
      %1066 = vmatpush1.bf16.msra.mxu0 %v1044
      %1067 = vmatprep.subr.bf16.mxu0 0
      %1068 = vmatpush1.bf16.msra.mxu0 %v1043
      %1069 = vmatprep.subr.bf16.mxu0 0
      %1070 = vmatpush1.bf16.msra.mxu0 %v1042
      %1071 = vmatprep.subr.bf16.mxu0 0
      %1072 = vmatpush1.bf16.msra.mxu0 %v1041
      %1073 = vmatprep.subr.bf16.mxu0 0
      %1074 = vmatpush2.bf16.msra.mxu0 0
      %1075 = vmatprep.subr.bf16.mxu0 0
      %1076 = vmatpush2.bf16.msra.mxu0 0
      %1077 = vmatprep.subr.bf16.mxu0 0
      %1078 = vmatpush2.bf16.msra.mxu0 0
      %1079 = vmatprep.subr.bf16.mxu0 0
      %1080 = vmatpush2.bf16.msra.mxu0 0
      %1081 = vmatprep.subr.bf16.mxu0 0
      %1082 = vmatpush2.bf16.msra.mxu0 0
      %1083 = vmatprep.subr.bf16.mxu0 0
      %1084 = vmatpush2.bf16.msra.mxu0 0
      %1085 = vmatprep.subr.bf16.mxu0 0
      %1086 = vmatpush2.bf16.msra.mxu0 0
      %1087 = vmatprep.subr.bf16.mxu0 0
      %1088 = vmatpush2.bf16.msra.mxu0 0
      %1089 = vmatprep.mubr.bf16.mxu0 0
      %1090 = vmatmul.mubr.bf16.gmra.mxu0 %v1007
      %v1091 = vpop.f32.mrf.mxu0
      %v1092 = vadd.f32 0.0, %v1091
      %v1093 = vpop.f32.mrf.mxu0
      %v1094 = vpop.f32.mrf.mxu0
      %v1095 = vpop.f32.mrf.mxu0
      %1096 = vdwg.mxu0
      %v1097 = vadd.f32 %v982, %v1092
      %v1098 = vmul.f32 %v1097, %v655
      %v1099 = vadd.f32 %v1098, %v662
      %v1100 = vmax.f32 %v664, %v1099
      %s1101 = scalar_lea.vmem %s1, 512
      %v1102 = vld [vmem:[%s1101] sm:$0xf]
      %v1103 = vld [vmem:[%s1101 + $0x4] sm:$0xf]
      %v1104 = vld [vmem:[%s1101 + $0x8] sm:$0xf]
      %v1105 = vld [vmem:[%s1101 + $0xc] sm:$0xf]
      %v1106 = vld [vmem:[%s1101 + $0x10] sm:$0xf]
      %v1107 = vld [vmem:[%s1101 + $0x14] sm:$0xf]
      %v1108 = vld [vmem:[%s1101 + $0x18] sm:$0xf]
      %v1109 = vld [vmem:[%s1101 + $0x1c] sm:$0xf]
      %v1110 = vld [vmem:[%s1101 + $0x20] sm:$0xf]
      %v1111 = vld [vmem:[%s1101 + $0x24] sm:$0xf]
      %v1112 = vld [vmem:[%s1101 + $0x28] sm:$0xf]
      %v1113 = vld [vmem:[%s1101 + $0x2c] sm:$0xf]
      %v1114 = vld [vmem:[%s1101 + $0x30] sm:$0xf]
      %v1115 = vld [vmem:[%s1101 + $0x34] sm:$0xf]
      %v1116 = vld [vmem:[%s1101 + $0x38] sm:$0xf]
      %v1117 = vld [vmem:[%s1101 + $0x3c] sm:$0xf]
      %s1118 = scalar_lea.vmem %s1, 576
      %v1119 = vld [vmem:[%s1118] sm:$0xf]
      %v1120 = vld [vmem:[%s1118 + $0x4] sm:$0xf]
      %v1121 = vld [vmem:[%s1118 + $0x8] sm:$0xf]
      %v1122 = vld [vmem:[%s1118 + $0xc] sm:$0xf]
      %v1123 = vld [vmem:[%s1118 + $0x10] sm:$0xf]
      %v1124 = vld [vmem:[%s1118 + $0x14] sm:$0xf]
      %v1125 = vld [vmem:[%s1118 + $0x18] sm:$0xf]
      %v1126 = vld [vmem:[%s1118 + $0x1c] sm:$0xf]
      %v1127 = vld [vmem:[%s1118 + $0x20] sm:$0xf]
      %v1128 = vld [vmem:[%s1118 + $0x24] sm:$0xf]
      %v1129 = vld [vmem:[%s1118 + $0x28] sm:$0xf]
      %v1130 = vld [vmem:[%s1118 + $0x2c] sm:$0xf]
      %v1131 = vld [vmem:[%s1118 + $0x30] sm:$0xf]
      %v1132 = vld [vmem:[%s1118 + $0x34] sm:$0xf]
      %v1133 = vld [vmem:[%s1118 + $0x38] sm:$0xf]
      %v1134 = vld [vmem:[%s1118 + $0x3c] sm:$0xf]
      %v1151 = vunpack.c.l.b16 %v1119
      %v1152 = vunpack.c.l.b16 %v1120
      %v1153 = vunpack.c.l.b16 %v1121
      %v1154 = vunpack.c.l.b16 %v1122
      %v1155 = vunpack.c.l.b16 %v1123
      %v1156 = vunpack.c.l.b16 %v1124
      %v1157 = vunpack.c.l.b16 %v1125
      %v1158 = vunpack.c.l.b16 %v1126
      %v1159 = vunpack.c.l.b16 %v1127
      %v1160 = vunpack.c.l.b16 %v1128
      %v1161 = vunpack.c.l.b16 %v1129
      %v1162 = vunpack.c.l.b16 %v1130
      %v1163 = vunpack.c.l.b16 %v1131
      %v1164 = vunpack.c.l.b16 %v1132
      %v1165 = vunpack.c.l.b16 %v1133
      %v1166 = vunpack.c.l.b16 %v1134
      %v1167 = vpack.c.b16 %v1152, %v1151
      %v1168 = vpack.c.b16 %v1154, %v1153
      %v1169 = vpack.c.b16 %v1156, %v1155
      %v1170 = vpack.c.b16 %v1158, %v1157
      %v1171 = vpack.c.b16 %v1160, %v1159
      %v1172 = vpack.c.b16 %v1162, %v1161
      %v1173 = vpack.c.b16 %v1164, %v1163
      %v1174 = vpack.c.b16 %v1166, %v1165
      %1183 = vmatprep.subr.bf16.mxu0 0
      %1184 = vmatpush1.bf16.msra.mxu0 %v1174
      %1185 = vmatprep.subr.bf16.mxu0 0
      %1186 = vmatpush1.bf16.msra.mxu0 %v1173
      %1187 = vmatprep.subr.bf16.mxu0 0
      %1188 = vmatpush1.bf16.msra.mxu0 %v1172
      %1189 = vmatprep.subr.bf16.mxu0 0
      %1190 = vmatpush1.bf16.msra.mxu0 %v1171
      %1191 = vmatprep.subr.bf16.mxu0 0
      %1192 = vmatpush1.bf16.msra.mxu0 %v1170
      %1193 = vmatprep.subr.bf16.mxu0 0
      %1194 = vmatpush1.bf16.msra.mxu0 %v1169
      %1195 = vmatprep.subr.bf16.mxu0 0
      %1196 = vmatpush1.bf16.msra.mxu0 %v1168
      %1197 = vmatprep.subr.bf16.mxu0 0
      %1198 = vmatpush1.bf16.msra.mxu0 %v1167
      %1199 = vmatprep.subr.bf16.mxu0 0
      %1200 = vmatpush2.bf16.msra.mxu0 0
      %1201 = vmatprep.subr.bf16.mxu0 0
      %1202 = vmatpush2.bf16.msra.mxu0 0
      %1203 = vmatprep.subr.bf16.mxu0 0
      %1204 = vmatpush2.bf16.msra.mxu0 0
      %1205 = vmatprep.subr.bf16.mxu0 0
      %1206 = vmatpush2.bf16.msra.mxu0 0
      %1207 = vmatprep.subr.bf16.mxu0 0
      %1208 = vmatpush2.bf16.msra.mxu0 0
      %1209 = vmatprep.subr.bf16.mxu0 0
      %1210 = vmatpush2.bf16.msra.mxu0 0
      %1211 = vmatprep.subr.bf16.mxu0 0
      %1212 = vmatpush2.bf16.msra.mxu0 0
      %1213 = vmatprep.subr.bf16.mxu0 0
      %1214 = vmatpush2.bf16.msra.mxu0 0
      %1215 = vmatprep.mubr.bf16.mxu0 0
      %1216 = vmatmul.mubr.bf16.gmra.mxu0 %v560
      %v1217 = vpop.f32.mrf.mxu0
      %v1218 = vadd.f32 0.0, %v1217
      %v1219 = vpop.f32.mrf.mxu0
      %v1220 = vpop.f32.mrf.mxu0
      %v1221 = vpop.f32.mrf.mxu0
      %1222 = vdwg.mxu0
      %v1239 = vunpack.c.l.b16 %v1102
      %v1240 = vunpack.c.l.b16 %v1103
      %v1241 = vunpack.c.l.b16 %v1104
      %v1242 = vunpack.c.l.b16 %v1105
      %v1243 = vunpack.c.l.b16 %v1106
      %v1244 = vunpack.c.l.b16 %v1107
      %v1245 = vunpack.c.l.b16 %v1108
      %v1246 = vunpack.c.l.b16 %v1109
      %v1247 = vunpack.c.l.b16 %v1110
      %v1248 = vunpack.c.l.b16 %v1111
      %v1249 = vunpack.c.l.b16 %v1112
      %v1250 = vunpack.c.l.b16 %v1113
      %v1251 = vunpack.c.l.b16 %v1114
      %v1252 = vunpack.c.l.b16 %v1115
      %v1253 = vunpack.c.l.b16 %v1116
      %v1254 = vunpack.c.l.b16 %v1117
      %v1255 = vpack.c.b16 %v1240, %v1239
      %v1256 = vpack.c.b16 %v1242, %v1241
      %v1257 = vpack.c.b16 %v1244, %v1243
      %v1258 = vpack.c.b16 %v1246, %v1245
      %v1259 = vpack.c.b16 %v1248, %v1247
      %v1260 = vpack.c.b16 %v1250, %v1249
      %v1261 = vpack.c.b16 %v1252, %v1251
      %v1262 = vpack.c.b16 %v1254, %v1253
      %1271 = vmatprep.subr.bf16.mxu0 0
      %1272 = vmatpush1.bf16.msra.mxu0 %v1262
      %1273 = vmatprep.subr.bf16.mxu0 0
      %1274 = vmatpush1.bf16.msra.mxu0 %v1261
      %1275 = vmatprep.subr.bf16.mxu0 0
      %1276 = vmatpush1.bf16.msra.mxu0 %v1260
      %1277 = vmatprep.subr.bf16.mxu0 0
      %1278 = vmatpush1.bf16.msra.mxu0 %v1259
      %1279 = vmatprep.subr.bf16.mxu0 0
      %1280 = vmatpush1.bf16.msra.mxu0 %v1258
      %1281 = vmatprep.subr.bf16.mxu0 0
      %1282 = vmatpush1.bf16.msra.mxu0 %v1257
      %1283 = vmatprep.subr.bf16.mxu0 0
      %1284 = vmatpush1.bf16.msra.mxu0 %v1256
      %1285 = vmatprep.subr.bf16.mxu0 0
      %1286 = vmatpush1.bf16.msra.mxu0 %v1255
      %1287 = vmatprep.subr.bf16.mxu0 0
      %1288 = vmatpush2.bf16.msra.mxu0 0
      %1289 = vmatprep.subr.bf16.mxu0 0
      %1290 = vmatpush2.bf16.msra.mxu0 0
      %1291 = vmatprep.subr.bf16.mxu0 0
      %1292 = vmatpush2.bf16.msra.mxu0 0
      %1293 = vmatprep.subr.bf16.mxu0 0
      %1294 = vmatpush2.bf16.msra.mxu0 0
      %1295 = vmatprep.subr.bf16.mxu0 0
      %1296 = vmatpush2.bf16.msra.mxu0 0
      %1297 = vmatprep.subr.bf16.mxu0 0
      %1298 = vmatpush2.bf16.msra.mxu0 0
      %1299 = vmatprep.subr.bf16.mxu0 0
      %1300 = vmatpush2.bf16.msra.mxu0 0
      %1301 = vmatprep.subr.bf16.mxu0 0
      %1302 = vmatpush2.bf16.msra.mxu0 0
      %1303 = vmatprep.mubr.bf16.mxu0 0
      %1304 = vmatmul.mubr.bf16.gmra.mxu0 %v448
      %v1305 = vpop.f32.mrf.mxu0
      %v1306 = vadd.f32 %v1218, %v1305
      %v1307 = vpop.f32.mrf.mxu0
      %v1308 = vpop.f32.mrf.mxu0
      %v1309 = vpop.f32.mrf.mxu0
      %1310 = vdwg.mxu0
      %v1311 = vld [vmem:[%s191] sm:$0x8]
      %v1312 = vld [vmem:[%s191 + $0x4] sm:$0x1]
      %s1313 = scalar_lea.vmem %s1, 640
      %v1314 = vld [vmem:[%s1313] sm:$0xf]
      %v1315 = vld [vmem:[%s1313 + $0x4] sm:$0xf]
      %v1316 = vld [vmem:[%s1313 + $0x8] sm:$0xf]
      %v1317 = vld [vmem:[%s1313 + $0xc] sm:$0xf]
      %v1318 = vld [vmem:[%s1313 + $0x10] sm:$0xf]
      %v1319 = vld [vmem:[%s1313 + $0x14] sm:$0xf]
      %v1320 = vld [vmem:[%s1313 + $0x18] sm:$0xf]
      %v1321 = vld [vmem:[%s1313 + $0x1c] sm:$0xf]
      %v1322 = vld [vmem:[%s1313 + $0x20] sm:$0xf]
      %v1323 = vld [vmem:[%s1313 + $0x24] sm:$0xf]
      %v1324 = vld [vmem:[%s1313 + $0x28] sm:$0xf]
      %v1325 = vld [vmem:[%s1313 + $0x2c] sm:$0xf]
      %v1326 = vld [vmem:[%s1313 + $0x30] sm:$0xf]
      %v1327 = vld [vmem:[%s1313 + $0x34] sm:$0xf]
      %v1328 = vld [vmem:[%s1313 + $0x38] sm:$0xf]
      %v1329 = vld [vmem:[%s1313 + $0x3c] sm:$0xf]
      %v1332 = vunpack.c.l.b16 %v1311
      %v1333 = vunpack.c.l.b16 %v1312
      %v1334 = vpack.c.b16 %v1333, %v1332
      %v1335 = vrot.slane %v1334, 3
      %v1353 = vunpack.c.l.b16 %v1314
      %v1354 = vunpack.c.l.b16 %v1315
      %v1355 = vunpack.c.l.b16 %v1316
      %v1356 = vunpack.c.l.b16 %v1317
      %v1357 = vunpack.c.l.b16 %v1318
      %v1358 = vunpack.c.l.b16 %v1319
      %v1359 = vunpack.c.l.b16 %v1320
      %v1360 = vunpack.c.l.b16 %v1321
      %v1361 = vunpack.c.l.b16 %v1322
      %v1362 = vunpack.c.l.b16 %v1323
      %v1363 = vunpack.c.l.b16 %v1324
      %v1364 = vunpack.c.l.b16 %v1325
      %v1365 = vunpack.c.l.b16 %v1326
      %v1366 = vunpack.c.l.b16 %v1327
      %v1367 = vunpack.c.l.b16 %v1328
      %v1368 = vunpack.c.l.b16 %v1329
      %v1369 = vpack.c.b16 %v1354, %v1353
      %v1370 = vpack.c.b16 %v1356, %v1355
      %v1371 = vpack.c.b16 %v1358, %v1357
      %v1372 = vpack.c.b16 %v1360, %v1359
      %v1373 = vpack.c.b16 %v1362, %v1361
      %v1374 = vpack.c.b16 %v1364, %v1363
      %v1375 = vpack.c.b16 %v1366, %v1365
      %v1376 = vpack.c.b16 %v1368, %v1367
      %1385 = vmatprep.subr.bf16.mxu0 0
      %1386 = vmatpush1.bf16.msra.mxu0 %v1376
      %1387 = vmatprep.subr.bf16.mxu0 0
      %1388 = vmatpush1.bf16.msra.mxu0 %v1375
      %1389 = vmatprep.subr.bf16.mxu0 0
      %1390 = vmatpush1.bf16.msra.mxu0 %v1374
      %1391 = vmatprep.subr.bf16.mxu0 0
      %1392 = vmatpush1.bf16.msra.mxu0 %v1373
      %1393 = vmatprep.subr.bf16.mxu0 0
      %1394 = vmatpush1.bf16.msra.mxu0 %v1372
      %1395 = vmatprep.subr.bf16.mxu0 0
      %1396 = vmatpush1.bf16.msra.mxu0 %v1371
      %1397 = vmatprep.subr.bf16.mxu0 0
      %1398 = vmatpush1.bf16.msra.mxu0 %v1370
      %1399 = vmatprep.subr.bf16.mxu0 0
      %1400 = vmatpush1.bf16.msra.mxu0 %v1369
      %1401 = vmatprep.subr.bf16.mxu0 0
      %1402 = vmatpush2.bf16.msra.mxu0 0
      %1403 = vmatprep.subr.bf16.mxu0 0
      %1404 = vmatpush2.bf16.msra.mxu0 0
      %1405 = vmatprep.subr.bf16.mxu0 0
      %1406 = vmatpush2.bf16.msra.mxu0 0
      %1407 = vmatprep.subr.bf16.mxu0 0
      %1408 = vmatpush2.bf16.msra.mxu0 0
      %1409 = vmatprep.subr.bf16.mxu0 0
      %1410 = vmatpush2.bf16.msra.mxu0 0
      %1411 = vmatprep.subr.bf16.mxu0 0
      %1412 = vmatpush2.bf16.msra.mxu0 0
      %1413 = vmatprep.subr.bf16.mxu0 0
      %1414 = vmatpush2.bf16.msra.mxu0 0
      %1415 = vmatprep.subr.bf16.mxu0 0
      %1416 = vmatpush2.bf16.msra.mxu0 0
      %1417 = vmatprep.mubr.bf16.mxu0 0
      %1418 = vmatmul.mubr.bf16.gmra.mxu0 %v1335
      %v1419 = vpop.f32.mrf.mxu0
      %v1420 = vadd.f32 0.0, %v1419
      %v1421 = vpop.f32.mrf.mxu0
      %v1422 = vpop.f32.mrf.mxu0
      %v1423 = vpop.f32.mrf.mxu0
      %1424 = vdwg.mxu0
      %v1425 = vadd.f32 %v1306, %v1420
      %s1426 = scalar_lea.vmem %s1, 704
      %v1427 = vld [vmem:[%s1426] sm:$0xf]
      %v1428 = vld [vmem:[%s1426 + $0x4] sm:$0xf]
      %v1429 = vld [vmem:[%s1426 + $0x8] sm:$0xf]
      %v1430 = vld [vmem:[%s1426 + $0xc] sm:$0xf]
      %v1431 = vld [vmem:[%s1426 + $0x10] sm:$0xf]
      %v1432 = vld [vmem:[%s1426 + $0x14] sm:$0xf]
      %v1433 = vld [vmem:[%s1426 + $0x18] sm:$0xf]
      %v1434 = vld [vmem:[%s1426 + $0x1c] sm:$0xf]
      %v1435 = vld [vmem:[%s1426 + $0x20] sm:$0xf]
      %v1436 = vld [vmem:[%s1426 + $0x24] sm:$0xf]
      %v1437 = vld [vmem:[%s1426 + $0x28] sm:$0xf]
      %v1438 = vld [vmem:[%s1426 + $0x2c] sm:$0xf]
      %v1439 = vld [vmem:[%s1426 + $0x30] sm:$0xf]
      %v1440 = vld [vmem:[%s1426 + $0x34] sm:$0xf]
      %v1441 = vld [vmem:[%s1426 + $0x38] sm:$0xf]
      %v1442 = vld [vmem:[%s1426 + $0x3c] sm:$0xf]
      %v1444 = vshrl.u32 %v1334, 16
      %v1446 = vrot.slane %v1444, 3
      %v1447 = vshll.u32 %v1334, 16
      %v1449 = vrot.slane %v1447, 4
      %v1450 = vor.u32 %v1446, %v1449
      %v1468 = vunpack.c.l.b16 %v1427
      %v1469 = vunpack.c.l.b16 %v1428
      %v1470 = vunpack.c.l.b16 %v1429
      %v1471 = vunpack.c.l.b16 %v1430
      %v1472 = vunpack.c.l.b16 %v1431
      %v1473 = vunpack.c.l.b16 %v1432
      %v1474 = vunpack.c.l.b16 %v1433
      %v1475 = vunpack.c.l.b16 %v1434
      %v1476 = vunpack.c.l.b16 %v1435
      %v1477 = vunpack.c.l.b16 %v1436
      %v1478 = vunpack.c.l.b16 %v1437
      %v1479 = vunpack.c.l.b16 %v1438
      %v1480 = vunpack.c.l.b16 %v1439
      %v1481 = vunpack.c.l.b16 %v1440
      %v1482 = vunpack.c.l.b16 %v1441
      %v1483 = vunpack.c.l.b16 %v1442
      %v1484 = vpack.c.b16 %v1469, %v1468
      %v1485 = vpack.c.b16 %v1471, %v1470
      %v1486 = vpack.c.b16 %v1473, %v1472
      %v1487 = vpack.c.b16 %v1475, %v1474
      %v1488 = vpack.c.b16 %v1477, %v1476
      %v1489 = vpack.c.b16 %v1479, %v1478
      %v1490 = vpack.c.b16 %v1481, %v1480
      %v1491 = vpack.c.b16 %v1483, %v1482
      %1500 = vmatprep.subr.bf16.mxu0 0
      %1501 = vmatpush1.bf16.msra.mxu0 %v1491
      %1502 = vmatprep.subr.bf16.mxu0 0
      %1503 = vmatpush1.bf16.msra.mxu0 %v1490
      %1504 = vmatprep.subr.bf16.mxu0 0
      %1505 = vmatpush1.bf16.msra.mxu0 %v1489
      %1506 = vmatprep.subr.bf16.mxu0 0
      %1507 = vmatpush1.bf16.msra.mxu0 %v1488
      %1508 = vmatprep.subr.bf16.mxu0 0
      %1509 = vmatpush1.bf16.msra.mxu0 %v1487
      %1510 = vmatprep.subr.bf16.mxu0 0
      %1511 = vmatpush1.bf16.msra.mxu0 %v1486
      %1512 = vmatprep.subr.bf16.mxu0 0
      %1513 = vmatpush1.bf16.msra.mxu0 %v1485
      %1514 = vmatprep.subr.bf16.mxu0 0
      %1515 = vmatpush1.bf16.msra.mxu0 %v1484
      %1516 = vmatprep.subr.bf16.mxu0 0
      %1517 = vmatpush2.bf16.msra.mxu0 0
      %1518 = vmatprep.subr.bf16.mxu0 0
      %1519 = vmatpush2.bf16.msra.mxu0 0
      %1520 = vmatprep.subr.bf16.mxu0 0
      %1521 = vmatpush2.bf16.msra.mxu0 0
      %1522 = vmatprep.subr.bf16.mxu0 0
      %1523 = vmatpush2.bf16.msra.mxu0 0
      %1524 = vmatprep.subr.bf16.mxu0 0
      %1525 = vmatpush2.bf16.msra.mxu0 0
      %1526 = vmatprep.subr.bf16.mxu0 0
      %1527 = vmatpush2.bf16.msra.mxu0 0
      %1528 = vmatprep.subr.bf16.mxu0 0
      %1529 = vmatpush2.bf16.msra.mxu0 0
      %1530 = vmatprep.subr.bf16.mxu0 0
      %1531 = vmatpush2.bf16.msra.mxu0 0
      %1532 = vmatprep.mubr.bf16.mxu0 0
      %1533 = vmatmul.mubr.bf16.gmra.mxu0 %v1450
      %v1534 = vpop.f32.mrf.mxu0
      %v1535 = vadd.f32 0.0, %v1534
      %v1536 = vpop.f32.mrf.mxu0
      %v1537 = vpop.f32.mrf.mxu0
      %v1538 = vpop.f32.mrf.mxu0
      %1539 = vdwg.mxu0
      %v1540 = vadd.f32 %v1425, %v1535
      %v1541 = vmul.f32 %v1540, %v655
      %v1542 = vadd.f32 %v1541, %v662
      %v1543 = vmax.f32 %v1100, %v1542
      %s1544 = scalar_lea.vmem %s1, 768
      %v1545 = vld [vmem:[%s1544] sm:$0xf]
      %v1546 = vld [vmem:[%s1544 + $0x4] sm:$0xf]
      %v1547 = vld [vmem:[%s1544 + $0x8] sm:$0xf]
      %v1548 = vld [vmem:[%s1544 + $0xc] sm:$0xf]
      %v1549 = vld [vmem:[%s1544 + $0x10] sm:$0xf]
      %v1550 = vld [vmem:[%s1544 + $0x14] sm:$0xf]
      %v1551 = vld [vmem:[%s1544 + $0x18] sm:$0xf]
      %v1552 = vld [vmem:[%s1544 + $0x1c] sm:$0xf]
      %v1553 = vld [vmem:[%s1544 + $0x20] sm:$0xf]
      %v1554 = vld [vmem:[%s1544 + $0x24] sm:$0xf]
      %v1555 = vld [vmem:[%s1544 + $0x28] sm:$0xf]
      %v1556 = vld [vmem:[%s1544 + $0x2c] sm:$0xf]
      %v1557 = vld [vmem:[%s1544 + $0x30] sm:$0xf]
      %v1558 = vld [vmem:[%s1544 + $0x34] sm:$0xf]
      %v1559 = vld [vmem:[%s1544 + $0x38] sm:$0xf]
      %v1560 = vld [vmem:[%s1544 + $0x3c] sm:$0xf]
      %s1561 = scalar_lea.vmem %s1, 832
      %v1562 = vld [vmem:[%s1561] sm:$0xf]
      %v1563 = vld [vmem:[%s1561 + $0x4] sm:$0xf]
      %v1564 = vld [vmem:[%s1561 + $0x8] sm:$0xf]
      %v1565 = vld [vmem:[%s1561 + $0xc] sm:$0xf]
      %v1566 = vld [vmem:[%s1561 + $0x10] sm:$0xf]
      %v1567 = vld [vmem:[%s1561 + $0x14] sm:$0xf]
      %v1568 = vld [vmem:[%s1561 + $0x18] sm:$0xf]
      %v1569 = vld [vmem:[%s1561 + $0x1c] sm:$0xf]
      %v1570 = vld [vmem:[%s1561 + $0x20] sm:$0xf]
      %v1571 = vld [vmem:[%s1561 + $0x24] sm:$0xf]
      %v1572 = vld [vmem:[%s1561 + $0x28] sm:$0xf]
      %v1573 = vld [vmem:[%s1561 + $0x2c] sm:$0xf]
      %v1574 = vld [vmem:[%s1561 + $0x30] sm:$0xf]
      %v1575 = vld [vmem:[%s1561 + $0x34] sm:$0xf]
      %v1576 = vld [vmem:[%s1561 + $0x38] sm:$0xf]
      %v1577 = vld [vmem:[%s1561 + $0x3c] sm:$0xf]
      %v1594 = vunpack.c.l.b16 %v1562
      %v1595 = vunpack.c.l.b16 %v1563
      %v1596 = vunpack.c.l.b16 %v1564
      %v1597 = vunpack.c.l.b16 %v1565
      %v1598 = vunpack.c.l.b16 %v1566
      %v1599 = vunpack.c.l.b16 %v1567
      %v1600 = vunpack.c.l.b16 %v1568
      %v1601 = vunpack.c.l.b16 %v1569
      %v1602 = vunpack.c.l.b16 %v1570
      %v1603 = vunpack.c.l.b16 %v1571
      %v1604 = vunpack.c.l.b16 %v1572
      %v1605 = vunpack.c.l.b16 %v1573
      %v1606 = vunpack.c.l.b16 %v1574
      %v1607 = vunpack.c.l.b16 %v1575
      %v1608 = vunpack.c.l.b16 %v1576
      %v1609 = vunpack.c.l.b16 %v1577
      %v1610 = vpack.c.b16 %v1595, %v1594
      %v1611 = vpack.c.b16 %v1597, %v1596
      %v1612 = vpack.c.b16 %v1599, %v1598
      %v1613 = vpack.c.b16 %v1601, %v1600
      %v1614 = vpack.c.b16 %v1603, %v1602
      %v1615 = vpack.c.b16 %v1605, %v1604
      %v1616 = vpack.c.b16 %v1607, %v1606
      %v1617 = vpack.c.b16 %v1609, %v1608
      %1626 = vmatprep.subr.bf16.mxu0 0
      %1627 = vmatpush1.bf16.msra.mxu0 %v1617
      %1628 = vmatprep.subr.bf16.mxu0 0
      %1629 = vmatpush1.bf16.msra.mxu0 %v1616
      %1630 = vmatprep.subr.bf16.mxu0 0
      %1631 = vmatpush1.bf16.msra.mxu0 %v1615
      %1632 = vmatprep.subr.bf16.mxu0 0
      %1633 = vmatpush1.bf16.msra.mxu0 %v1614
      %1634 = vmatprep.subr.bf16.mxu0 0
      %1635 = vmatpush1.bf16.msra.mxu0 %v1613
      %1636 = vmatprep.subr.bf16.mxu0 0
      %1637 = vmatpush1.bf16.msra.mxu0 %v1612
      %1638 = vmatprep.subr.bf16.mxu0 0
      %1639 = vmatpush1.bf16.msra.mxu0 %v1611
      %1640 = vmatprep.subr.bf16.mxu0 0
      %1641 = vmatpush1.bf16.msra.mxu0 %v1610
      %1642 = vmatprep.subr.bf16.mxu0 0
      %1643 = vmatpush2.bf16.msra.mxu0 0
      %1644 = vmatprep.subr.bf16.mxu0 0
      %1645 = vmatpush2.bf16.msra.mxu0 0
      %1646 = vmatprep.subr.bf16.mxu0 0
      %1647 = vmatpush2.bf16.msra.mxu0 0
      %1648 = vmatprep.subr.bf16.mxu0 0
      %1649 = vmatpush2.bf16.msra.mxu0 0
      %1650 = vmatprep.subr.bf16.mxu0 0
      %1651 = vmatpush2.bf16.msra.mxu0 0
      %1652 = vmatprep.subr.bf16.mxu0 0
      %1653 = vmatpush2.bf16.msra.mxu0 0
      %1654 = vmatprep.subr.bf16.mxu0 0
      %1655 = vmatpush2.bf16.msra.mxu0 0
      %1656 = vmatprep.subr.bf16.mxu0 0
      %1657 = vmatpush2.bf16.msra.mxu0 0
      %1658 = vmatprep.mubr.bf16.mxu0 0
      %1659 = vmatmul.mubr.bf16.gmra.mxu0 %v1007
      %v1660 = vpop.f32.mrf.mxu0
      %v1661 = vadd.f32 0.0, %v1660
      %v1662 = vpop.f32.mrf.mxu0
      %v1663 = vpop.f32.mrf.mxu0
      %v1664 = vpop.f32.mrf.mxu0
      %1665 = vdwg.mxu0
      %v1682 = vunpack.c.l.b16 %v1545
      %v1683 = vunpack.c.l.b16 %v1546
      %v1684 = vunpack.c.l.b16 %v1547
      %v1685 = vunpack.c.l.b16 %v1548
      %v1686 = vunpack.c.l.b16 %v1549
      %v1687 = vunpack.c.l.b16 %v1550
      %v1688 = vunpack.c.l.b16 %v1551
      %v1689 = vunpack.c.l.b16 %v1552
      %v1690 = vunpack.c.l.b16 %v1553
      %v1691 = vunpack.c.l.b16 %v1554
      %v1692 = vunpack.c.l.b16 %v1555
      %v1693 = vunpack.c.l.b16 %v1556
      %v1694 = vunpack.c.l.b16 %v1557
      %v1695 = vunpack.c.l.b16 %v1558
      %v1696 = vunpack.c.l.b16 %v1559
      %v1697 = vunpack.c.l.b16 %v1560
      %v1698 = vpack.c.b16 %v1683, %v1682
      %v1699 = vpack.c.b16 %v1685, %v1684
      %v1700 = vpack.c.b16 %v1687, %v1686
      %v1701 = vpack.c.b16 %v1689, %v1688
      %v1702 = vpack.c.b16 %v1691, %v1690
      %v1703 = vpack.c.b16 %v1693, %v1692
      %v1704 = vpack.c.b16 %v1695, %v1694
      %v1705 = vpack.c.b16 %v1697, %v1696
      %1714 = vmatprep.subr.bf16.mxu0 0
      %1715 = vmatpush1.bf16.msra.mxu0 %v1705
      %1716 = vmatprep.subr.bf16.mxu0 0
      %1717 = vmatpush1.bf16.msra.mxu0 %v1704
      %1718 = vmatprep.subr.bf16.mxu0 0
      %1719 = vmatpush1.bf16.msra.mxu0 %v1703
      %1720 = vmatprep.subr.bf16.mxu0 0
      %1721 = vmatpush1.bf16.msra.mxu0 %v1702
      %1722 = vmatprep.subr.bf16.mxu0 0
      %1723 = vmatpush1.bf16.msra.mxu0 %v1701
      %1724 = vmatprep.subr.bf16.mxu0 0
      %1725 = vmatpush1.bf16.msra.mxu0 %v1700
      %1726 = vmatprep.subr.bf16.mxu0 0
      %1727 = vmatpush1.bf16.msra.mxu0 %v1699
      %1728 = vmatprep.subr.bf16.mxu0 0
      %1729 = vmatpush1.bf16.msra.mxu0 %v1698
      %1730 = vmatprep.subr.bf16.mxu0 0
      %1731 = vmatpush2.bf16.msra.mxu0 0
      %1732 = vmatprep.subr.bf16.mxu0 0
      %1733 = vmatpush2.bf16.msra.mxu0 0
      %1734 = vmatprep.subr.bf16.mxu0 0
      %1735 = vmatpush2.bf16.msra.mxu0 0
      %1736 = vmatprep.subr.bf16.mxu0 0
      %1737 = vmatpush2.bf16.msra.mxu0 0
      %1738 = vmatprep.subr.bf16.mxu0 0
      %1739 = vmatpush2.bf16.msra.mxu0 0
      %1740 = vmatprep.subr.bf16.mxu0 0
      %1741 = vmatpush2.bf16.msra.mxu0 0
      %1742 = vmatprep.subr.bf16.mxu0 0
      %1743 = vmatpush2.bf16.msra.mxu0 0
      %1744 = vmatprep.subr.bf16.mxu0 0
      %1745 = vmatpush2.bf16.msra.mxu0 0
      %1746 = vmatprep.mubr.bf16.mxu0 0
      %1747 = vmatmul.mubr.bf16.gmra.mxu0 %v560
      %v1748 = vpop.f32.mrf.mxu0
      %v1749 = vadd.f32 %v1661, %v1748
      %v1750 = vpop.f32.mrf.mxu0
      %v1751 = vpop.f32.mrf.mxu0
      %v1752 = vpop.f32.mrf.mxu0
      %1753 = vdwg.mxu0
      %s1754 = scalar_lea.vmem %s1, 896
      %v1755 = vld [vmem:[%s1754] sm:$0xf]
      %v1756 = vld [vmem:[%s1754 + $0x4] sm:$0xf]
      %v1757 = vld [vmem:[%s1754 + $0x8] sm:$0xf]
      %v1758 = vld [vmem:[%s1754 + $0xc] sm:$0xf]
      %v1759 = vld [vmem:[%s1754 + $0x10] sm:$0xf]
      %v1760 = vld [vmem:[%s1754 + $0x14] sm:$0xf]
      %v1761 = vld [vmem:[%s1754 + $0x18] sm:$0xf]
      %v1762 = vld [vmem:[%s1754 + $0x1c] sm:$0xf]
      %v1763 = vld [vmem:[%s1754 + $0x20] sm:$0xf]
      %v1764 = vld [vmem:[%s1754 + $0x24] sm:$0xf]
      %v1765 = vld [vmem:[%s1754 + $0x28] sm:$0xf]
      %v1766 = vld [vmem:[%s1754 + $0x2c] sm:$0xf]
      %v1767 = vld [vmem:[%s1754 + $0x30] sm:$0xf]
      %v1768 = vld [vmem:[%s1754 + $0x34] sm:$0xf]
      %v1769 = vld [vmem:[%s1754 + $0x38] sm:$0xf]
      %v1770 = vld [vmem:[%s1754 + $0x3c] sm:$0xf]
      %v1787 = vunpack.c.l.b16 %v1755
      %v1788 = vunpack.c.l.b16 %v1756
      %v1789 = vunpack.c.l.b16 %v1757
      %v1790 = vunpack.c.l.b16 %v1758
      %v1791 = vunpack.c.l.b16 %v1759
      %v1792 = vunpack.c.l.b16 %v1760
      %v1793 = vunpack.c.l.b16 %v1761
      %v1794 = vunpack.c.l.b16 %v1762
      %v1795 = vunpack.c.l.b16 %v1763
      %v1796 = vunpack.c.l.b16 %v1764
      %v1797 = vunpack.c.l.b16 %v1765
      %v1798 = vunpack.c.l.b16 %v1766
      %v1799 = vunpack.c.l.b16 %v1767
      %v1800 = vunpack.c.l.b16 %v1768
      %v1801 = vunpack.c.l.b16 %v1769
      %v1802 = vunpack.c.l.b16 %v1770
      %v1803 = vpack.c.b16 %v1788, %v1787
      %v1804 = vpack.c.b16 %v1790, %v1789
      %v1805 = vpack.c.b16 %v1792, %v1791
      %v1806 = vpack.c.b16 %v1794, %v1793
      %v1807 = vpack.c.b16 %v1796, %v1795
      %v1808 = vpack.c.b16 %v1798, %v1797
      %v1809 = vpack.c.b16 %v1800, %v1799
      %v1810 = vpack.c.b16 %v1802, %v1801
      %1819 = vmatprep.subr.bf16.mxu0 0
      %1820 = vmatpush1.bf16.msra.mxu0 %v1810
      %1821 = vmatprep.subr.bf16.mxu0 0
      %1822 = vmatpush1.bf16.msra.mxu0 %v1809
      %1823 = vmatprep.subr.bf16.mxu0 0
      %1824 = vmatpush1.bf16.msra.mxu0 %v1808
      %1825 = vmatprep.subr.bf16.mxu0 0
      %1826 = vmatpush1.bf16.msra.mxu0 %v1807
      %1827 = vmatprep.subr.bf16.mxu0 0
      %1828 = vmatpush1.bf16.msra.mxu0 %v1806
      %1829 = vmatprep.subr.bf16.mxu0 0
      %1830 = vmatpush1.bf16.msra.mxu0 %v1805
      %1831 = vmatprep.subr.bf16.mxu0 0
      %1832 = vmatpush1.bf16.msra.mxu0 %v1804
      %1833 = vmatprep.subr.bf16.mxu0 0
      %1834 = vmatpush1.bf16.msra.mxu0 %v1803
      %1835 = vmatprep.subr.bf16.mxu0 0
      %1836 = vmatpush2.bf16.msra.mxu0 0
      %1837 = vmatprep.subr.bf16.mxu0 0
      %1838 = vmatpush2.bf16.msra.mxu0 0
      %1839 = vmatprep.subr.bf16.mxu0 0
      %1840 = vmatpush2.bf16.msra.mxu0 0
      %1841 = vmatprep.subr.bf16.mxu0 0
      %1842 = vmatpush2.bf16.msra.mxu0 0
      %1843 = vmatprep.subr.bf16.mxu0 0
      %1844 = vmatpush2.bf16.msra.mxu0 0
      %1845 = vmatprep.subr.bf16.mxu0 0
      %1846 = vmatpush2.bf16.msra.mxu0 0
      %1847 = vmatprep.subr.bf16.mxu0 0
      %1848 = vmatpush2.bf16.msra.mxu0 0
      %1849 = vmatprep.subr.bf16.mxu0 0
      %1850 = vmatpush2.bf16.msra.mxu0 0
      %1851 = vmatprep.mubr.bf16.mxu0 0
      %1852 = vmatmul.mubr.bf16.gmra.mxu0 %v1450
      %v1853 = vpop.f32.mrf.mxu0
      %v1854 = vadd.f32 0.0, %v1853
      %v1855 = vpop.f32.mrf.mxu0
      %v1856 = vpop.f32.mrf.mxu0
      %v1857 = vpop.f32.mrf.mxu0
      %1858 = vdwg.mxu0
      %v1859 = vadd.f32 %v1749, %v1854
      %v1860 = vld [vmem:[%s191 + $0x4] sm:$0x3]
      %s1861 = scalar_lea.vmem %s1, 960
      %v1862 = vld [vmem:[%s1861] sm:$0xf]
      %v1863 = vld [vmem:[%s1861 + $0x4] sm:$0xf]
      %v1864 = vld [vmem:[%s1861 + $0x8] sm:$0xf]
      %v1865 = vld [vmem:[%s1861 + $0xc] sm:$0xf]
      %v1866 = vld [vmem:[%s1861 + $0x10] sm:$0xf]
      %v1867 = vld [vmem:[%s1861 + $0x14] sm:$0xf]
      %v1868 = vld [vmem:[%s1861 + $0x18] sm:$0xf]
      %v1869 = vld [vmem:[%s1861 + $0x1c] sm:$0xf]
      %v1870 = vld [vmem:[%s1861 + $0x20] sm:$0xf]
      %v1871 = vld [vmem:[%s1861 + $0x24] sm:$0xf]
      %v1872 = vld [vmem:[%s1861 + $0x28] sm:$0xf]
      %v1873 = vld [vmem:[%s1861 + $0x2c] sm:$0xf]
      %v1874 = vld [vmem:[%s1861 + $0x30] sm:$0xf]
      %v1875 = vld [vmem:[%s1861 + $0x34] sm:$0xf]
      %v1876 = vld [vmem:[%s1861 + $0x38] sm:$0xf]
      %v1877 = vld [vmem:[%s1861 + $0x3c] sm:$0xf]
      %v1894 = vunpack.c.l.b16 %v1862
      %v1895 = vunpack.c.l.b16 %v1863
      %v1896 = vunpack.c.l.b16 %v1864
      %v1897 = vunpack.c.l.b16 %v1865
      %v1898 = vunpack.c.l.b16 %v1866
      %v1899 = vunpack.c.l.b16 %v1867
      %v1900 = vunpack.c.l.b16 %v1868
      %v1901 = vunpack.c.l.b16 %v1869
      %v1902 = vunpack.c.l.b16 %v1870
      %v1903 = vunpack.c.l.b16 %v1871
      %v1904 = vunpack.c.l.b16 %v1872
      %v1905 = vunpack.c.l.b16 %v1873
      %v1906 = vunpack.c.l.b16 %v1874
      %v1907 = vunpack.c.l.b16 %v1875
      %v1908 = vunpack.c.l.b16 %v1876
      %v1909 = vunpack.c.l.b16 %v1877
      %v1910 = vpack.c.b16 %v1895, %v1894
      %v1911 = vpack.c.b16 %v1897, %v1896
      %v1912 = vpack.c.b16 %v1899, %v1898
      %v1913 = vpack.c.b16 %v1901, %v1900
      %v1914 = vpack.c.b16 %v1903, %v1902
      %v1915 = vpack.c.b16 %v1905, %v1904
      %v1916 = vpack.c.b16 %v1907, %v1906
      %v1917 = vpack.c.b16 %v1909, %v1908
      %1926 = vmatprep.subr.bf16.mxu0 0
      %1927 = vmatpush1.bf16.msra.mxu0 %v1917
      %1928 = vmatprep.subr.bf16.mxu0 0
      %1929 = vmatpush1.bf16.msra.mxu0 %v1916
      %1930 = vmatprep.subr.bf16.mxu0 0
      %1931 = vmatpush1.bf16.msra.mxu0 %v1915
      %1932 = vmatprep.subr.bf16.mxu0 0
      %1933 = vmatpush1.bf16.msra.mxu0 %v1914
      %1934 = vmatprep.subr.bf16.mxu0 0
      %1935 = vmatpush1.bf16.msra.mxu0 %v1913
      %1936 = vmatprep.subr.bf16.mxu0 0
      %1937 = vmatpush1.bf16.msra.mxu0 %v1912
      %1938 = vmatprep.subr.bf16.mxu0 0
      %1939 = vmatpush1.bf16.msra.mxu0 %v1911
      %1940 = vmatprep.subr.bf16.mxu0 0
      %1941 = vmatpush1.bf16.msra.mxu0 %v1910
      %1942 = vmatprep.subr.bf16.mxu0 0
      %1943 = vmatpush2.bf16.msra.mxu0 0
      %1944 = vmatprep.subr.bf16.mxu0 0
      %1945 = vmatpush2.bf16.msra.mxu0 0
      %1946 = vmatprep.subr.bf16.mxu0 0
      %1947 = vmatpush2.bf16.msra.mxu0 0
      %1948 = vmatprep.subr.bf16.mxu0 0
      %1949 = vmatpush2.bf16.msra.mxu0 0
      %1950 = vmatprep.subr.bf16.mxu0 0
      %1951 = vmatpush2.bf16.msra.mxu0 0
      %1952 = vmatprep.subr.bf16.mxu0 0
      %1953 = vmatpush2.bf16.msra.mxu0 0
      %1954 = vmatprep.subr.bf16.mxu0 0
      %1955 = vmatpush2.bf16.msra.mxu0 0
      %1956 = vmatprep.subr.bf16.mxu0 0
      %1957 = vmatpush2.bf16.msra.mxu0 0
      %1958 = vmatprep.mubr.bf16.mxu0 0
      %1959 = vmatmul.mubr.bf16.gmra.mxu0 %v1860
      %v1960 = vpop.f32.mrf.mxu0
      %v1961 = vadd.f32 0.0, %v1960
      %v1962 = vpop.f32.mrf.mxu0
      %v1963 = vpop.f32.mrf.mxu0
      %v1964 = vpop.f32.mrf.mxu0
      %1965 = vdwg.mxu0
      %v1966 = vadd.f32 %v1859, %v1961
      %v1967 = vmul.f32 %v1966, %v655
      %v1968 = vadd.f32 %v1967, %v662
      %v1969 = vmax.f32 %v1543, %v1968
      %v1970 = vmax.f32 %v1969, 0.0
      %1971 = vst [vmem:[%s195] sm:$0x7] %v1970
      %p1972 = scmp.lt.s32.totalorder %s15, 1
      %s1973 = scalar_select %p1972, %s15, 1
      %s1974 = smul.addr %s1973, 4
      %s1975 = scalar_lea.vmem %s4, %s1974
      // Predicated region
      $region37: #{_forward_impl.7} parent=35 // pred_check
        %p1976 = pneg %p122
      $region38: #{_forward_impl.7} parent=35 // pred_check_branch
        %1978 = sbr.rel (%p1976) target = $region40
      $region39: #{_forward_impl.7} parent=35 // pred_region
        _
      $region40: #{_forward_impl.7} parent=35 // pred_fallthru
        _
    $region36: #{_forward_impl.7} parent=5 // pred_fallthru
      _
    %p1979 = scmp.le.s32.totalorder 2, %s10
    // Predicated region
    $region41: #{_forward_impl.7} parent=5 // pred_check
      %p1980 = pneg %p1979
    $region42: #{_forward_impl.7} parent=5 // pred_check_branch
      %1982 = sbr.rel (%p1980) target = $region44
    $region43: #{_forward_impl.7} parent=5 // pred_region
      %s1983 = ssub.s32 %s10, 2
      // Predicated region
      $region45: #{_forward_impl.7} parent=43 // pred_check
        %p1984 = pneg %p128
      $region46: #{_forward_impl.7} parent=43 // pred_check_branch
        %1986 = sbr.rel (%p1984) target = $region48
      $region47: #{_forward_impl.7} parent=43 // pred_region
        %p1987 = scmp.lt.s32.totalorder %s16, 1
        %s1988 = scalar_select %p1987, %s16, 1
        %s1989 = smul.addr %s1988, 4
        %s1990 = scalar_lea.vmem %s4, %s1989
      $region48: #{_forward_impl.7} parent=43 // pred_fallthru
        _
    $region44: #{_forward_impl.7} parent=5 // pred_fallthru
      _
  $region6: #{_forward_impl.7} parent=0 // loop_footer
    %s14 = sadd.s32 1, %s10
  $region7: #{_forward_impl.7} parent=0 // loop_footer_branch
    %9 = sbr.rel target = $region3
  $region8: #{_forward_impl.7} parent=0 // loop_exit
    _

</llo_original>
